<compile_context>
chip_gen: v5e
topology: v5e:2x2
jax: 0.10.0
libtpu: 0.0.40
codegen_flags: <defaults>
</compile_context>

<pallas_src>
import functools

import jax
import jax.numpy as jnp
import numpy as np
from jax import lax
from jax.experimental import pallas as pl
from jax.experimental.pallas import tpu as pltpu


# ----------------------------------------------------------------------------
# Trace-time constants (numpy): conv-as-matmul tap matrix + reduce selection.
# ----------------------------------------------------------------------------
def _conv_tap_matrix(P):
    """T[t, d_in, d_out] = 1 iff tap t=(kx*3+ky) of output pixel d_out reads
    input pixel d_in (zero padding handled by omission)."""
    D = P * P
    xo, yo = np.meshgrid(np.arange(P), np.arange(P), indexing="ij")
    d_out = (xo * P + yo).reshape(-1)
    T = np.zeros((9, D, D), np.float32)
    for kx in range(3):
        for ky in range(3):
            xi, yi = xo + kx - 1, yo + ky - 1
            ok = ((xi >= 0) & (xi < P) & (yi >= 0) & (yi < P)).reshape(-1)
            d_in = (xi * P + yi).reshape(-1)
            T[kx * 3 + ky, d_in[ok], d_out[ok]] = 1.0
    return T


def _reduce_select_matrix(S, Sout, bblk):
    """sel[t*bblk*Sout + b*Sout + j, b*S + s] = 1 iff s == 4j + t - 1 (window
    taps of the stride-4 / kernel-3 / pad-1 reduce), block-diagonal over the
    batch rows folded into one grid step."""
    sel = np.zeros((3, bblk, Sout, bblk, S), np.float32)
    for t in range(3):
        for j in range(Sout):
            s = 4 * j + t - 1
            if 0 <= s < S:
                for b in range(bblk):
                    sel[t, b, j, b, s] = 1.0
    return sel.reshape(3 * bblk * Sout, bblk * S)


def _softmax_block_bias(S, Sout, bblk):
    """Additive bias isolating each folded batch row-block in the softmax."""
    rb = np.arange(bblk * S)[:, None] // S
    cb = np.arange(bblk * Sout)[None, :] // Sout
    return np.where(rb == cb, 0.0, -1e30).astype(np.float32)


def _default_batches_per_step(batch):
    """v7x has 2 TensorCores/chip -> split the batch across a parallel grid;
    single-TC chips (v5e/v6e) fold the whole batch into one grid step."""
    try:
        kind = jax.devices()[0].device_kind.lower()
    except Exception:
        kind = ""
    if "v7" in kind and batch % 2 == 0 and batch >= 2:
        return batch // 2
    return batch


# ----------------------------------------------------------------------------
# Fused kernel: one grid step = `bblk` batch elements, everything VMEM/MXU.
# Activation layout: rows = b*S + s, lanes = x*P + y.
# ----------------------------------------------------------------------------
def _stb_kernel(x_ref, wqkv_ref, sel_ref, wred_ref, bias_ref, wout_ref,
                g_ref, beta_ref, wffn_ref, o_ref, *, heads, P, S, Sout, bblk):
    D = P * P
    HD = heads * D
    BS = bblk * S
    BSo = bblk * Sout
    scale = 1.0 / P
    hp = lax.Precision.HIGHEST
    f32 = jnp.float32
    nt_dims = (((1,), (1,)), ((), ()))            # contract last dims: q @ kr^T

    x = x_ref[...]                                                   # (BS, D)

    # conv_project: Conv3d(1 -> 3*heads, (3,3,1), pad (1,1,0)) folded into one
    # lane-dense MXU matmul; output lanes ordered (q|k|v, head, x*P+y).
    qkv = jnp.dot(x, wqkv_ref[...], preferred_element_type=f32,
                  precision=hp)                                      # (BS, 3*HD)

    # reduce_k / reduce_v (depthwise 3-tap, stride-4 along s, pad 1): gather
    # all window taps at once with one small matmul, then a 3-term per-head
    # weighted combine (k and v lane-packed together).
    red = jnp.dot(sel_ref[...], qkv[:, HD:], preferred_element_type=f32,
                  precision=hp)                                      # (3*BSo, 2*HD)
    wred = wred_ref[...]                                             # (3, 2*HD)
    krvr = (wred[0:1] * red[0:BSo]
            + wred[1:2] * red[BSo:2 * BSo]
            + wred[2:3] * red[2 * BSo:3 * BSo])                      # (BSo, 2*HD)
    kr = krvr[:, :HD]
    vr = krvr[:, HD:]

    bias = bias_ref[...]                                             # (BS, BSo)

    # Spectral attention: per head, one (BS, BSo) dots block, batched softmax.
    outs = []
    for h in range(heads):
        sl = slice(h * D, (h + 1) * D)
        dots = lax.dot_general(qkv[:, sl], kr[:, sl], nt_dims,
                               preferred_element_type=f32,
                               precision=hp) * scale + bias          # (BS, BSo)
        m = jnp.max(dots, axis=-1, keepdims=True)
        e = jnp.exp(dots - m)
        attn = e / jnp.sum(e, axis=-1, keepdims=True)                # exact
        outs.append(jnp.dot(attn, vr[:, sl], preferred_element_type=f32,
                            precision=hp))                           # (BS, D)
    att = jnp.concatenate(outs, axis=-1)                             # (BS, HD)

    # conv_out: Conv3d(heads -> 1, (3,3,1)) as one matmul, then LayerNorm((P,P)).
    y1 = jnp.dot(att, wout_ref[...], preferred_element_type=f32,
                 precision=hp)                                       # (BS, D)
    mu = jnp.mean(y1, axis=-1, keepdims=True)
    var = jnp.mean((y1 - mu) * (y1 - mu), axis=-1, keepdims=True)
    att_n = (y1 - mu) * lax.rsqrt(var + 1e-5) * g_ref[...] + beta_ref[...]

    # Residual + FFN conv (as matmul) + ReLU6 + residual.
    x1 = x + att_n
    f = jnp.dot(x1, wffn_ref[...], preferred_element_type=f32, precision=hp)
    o_ref[...] = x1 + jnp.clip(f, 0.0, 6.0)


# ----------------------------------------------------------------------------
# Wrapper: layout plumbing (trace-time constants) + a single pallas_call.
# ----------------------------------------------------------------------------
def spectral_transformer_block(x, params, *, heads, batches_per_step=None):
    B, _, P, _, S = x.shape
    D = P * P
    HD = heads * D
    Sout = (S - 1) // 4 + 1

    bblk = batches_per_step or _default_batches_per_step(B)
    if B % bblk:
        bblk = B
    nsteps = B // bblk

    # (B, 1, P, P, S) -> (B*S, D) with lane index d = x*P + y.
    x2 = jnp.transpose(x.reshape(B, D, S), (0, 2, 1)).reshape(B * S, D)

    # Fold the 3x3x1 spatial convs into lane-dense matrices.
    T = _conv_tap_matrix(P)                                     # (9, D, D)
    w_proj = params["w_proj"].reshape(3 * heads, 9)
    w_out = params["w_out"].reshape(heads, 9)
    w_ffn = params["w_ffn"].reshape(9)
    Wqkv = jnp.einsum("ct,tde->dce", w_proj, T).reshape(D, 3 * HD)
    Wout = jnp.einsum("ht,tde->hde", w_out, T).reshape(HD, D)
    Wffn = jnp.einsum("t,tde->de", w_ffn, T)

    # Stride-4 / width-3 spectral reduce: selection matrix + per-head lane rows.
    sel = jnp.asarray(_reduce_select_matrix(S, Sout, bblk))     # (3*bblk*Sout, bblk*S)
    wk = params["w_rk"].reshape(heads, 3).T                     # (3, heads)
    wv = params["w_rv"].reshape(heads, 3).T
    wred = jnp.concatenate([jnp.repeat(wk, D, axis=1),
                            jnp.repeat(wv, D, axis=1)], axis=1)  # (3, 2*HD)

    bias = jnp.asarray(_softmax_block_bias(S, Sout, bblk))      # (bblk*S, bblk*Sout)

    ln_g = params["ln_g"].reshape(1, D)
    ln_b = params["ln_b"].reshape(1, D)

    kern = functools.partial(_stb_kernel, heads=heads, P=P, S=S, Sout=Sout,
                             bblk=bblk)

    out = pl.pallas_call(
        kern,
        grid=(nsteps,),
        out_shape=jax.ShapeDtypeStruct((B * S, D), jnp.float32),
        in_specs=[
            pl.BlockSpec((bblk * S, D), lambda i: (i, 0)),                 # x
            pl.BlockSpec((D, 3 * HD), lambda i: (0, 0)),                   # Wqkv
            pl.BlockSpec((3 * bblk * Sout, bblk * S), lambda i: (0, 0)),   # sel
            pl.BlockSpec((3, 2 * HD), lambda i: (0, 0)),                   # wred
            pl.BlockSpec((bblk * S, bblk * Sout), lambda i: (0, 0)),       # bias
            pl.BlockSpec((HD, D), lambda i: (0, 0)),                       # Wout
            pl.BlockSpec((1, D), lambda i: (0, 0)),                        # gamma
            pl.BlockSpec((1, D), lambda i: (0, 0)),                        # beta
            pl.BlockSpec((D, D), lambda i: (0, 0)),                        # Wffn
        ],
        out_specs=pl.BlockSpec((bblk * S, D), lambda i: (i, 0)),
        compiler_params=pltpu.CompilerParams(
            dimension_semantics=("parallel",)),
    )(x2, Wqkv, sel, wred, bias, Wout, ln_g, ln_b, Wffn)

    return jnp.transpose(out.reshape(B, S, D), (0, 2, 1)).reshape(B, 1, P, P, S)


# ----------------------------------------------------------------------------
# Pure-JAX reference (independent check, pinned to f32 precision).
# ----------------------------------------------------------------------------
def reference_forward(x, params, *, heads):
    B, _, P, _, S = x.shape
    D = P * P
    hp = lax.Precision.HIGHEST
    dn3 = ("NCDHW", "OIDHW", "NCDHW")
    dn2 = ("NCHW", "OIHW", "NCHW")

    qkv = lax.conv_general_dilated(x, params["w_proj"], (1, 1, 1),
                                   [(1, 1), (1, 1), (0, 0)],
                                   dimension_numbers=dn3, precision=hp)
    qkv = jnp.transpose(qkv.reshape(B, 3 * heads, D, S), (0, 1, 3, 2))
    q, k, v = qkv[:, :heads], qkv[:, heads:2 * heads], qkv[:, 2 * heads:]

    kr = lax.conv_general_dilated(k, params["w_rk"], (4, 1), [(1, 1), (0, 0)],
                                  dimension_numbers=dn2,
                                  feature_group_count=heads, precision=hp)
    vr = lax.conv_general_dilated(v, params["w_rv"], (4, 1), [(1, 1), (0, 0)],
                                  dimension_numbers=dn2,
                                  feature_group_count=heads, precision=hp)

    dots = jnp.einsum("bhid,bhjd->bhij", q, kr, precision=hp) / P
    attn = jax.nn.softmax(dots, axis=-1)
    out = jnp.einsum("bhij,bhjd->bhid", attn, vr, precision=hp)
    out = jnp.transpose(out.reshape(B, heads, S, P, P), (0, 1, 3, 4, 2))

    out = lax.conv_general_dilated(out, params["w_out"], (1, 1, 1),
                                   [(1, 1), (1, 1), (0, 0)],
                                   dimension_numbers=dn3, precision=hp)
    o = jnp.transpose(out, (0, 1, 4, 2, 3))                 # (B,1,S,P,P)
    mean = o.mean(axis=(-2, -1), keepdims=True)
    var = ((o - mean) ** 2).mean(axis=(-2, -1), keepdims=True)
    o = (o - mean) / jnp.sqrt(var + 1e-5)
    o = o * params["ln_g"] + params["ln_b"]
    att = jnp.transpose(o, (0, 1, 3, 4, 2))

    x1 = x + att
    f = lax.conv_general_dilated(x1, params["w_ffn"], (1, 1, 1),
                                 [(1, 1), (1, 1), (0, 0)],
                                 dimension_numbers=dn3, precision=hp)
    return x1 + jnp.clip(f, 0.0, 6.0)


# ----------------------------------------------------------------------------
if __name__ == "__main__":
    heads, P, S, B = 4, 8, 16, 2

    key = jax.random.PRNGKey(0)
    ks = jax.random.split(key, 8)
    params = {
        # Conv3d(1, 3*heads, (3,3,1), bias=False)
        "w_proj": jax.random.normal(ks[0], (3 * heads, 1, 3, 3, 1), jnp.float32) * 0.1,
        # depthwise Conv2d(heads, heads, (3,1), stride (4,1), groups=heads)
        "w_rk": jax.random.normal(ks[1], (heads, 1, 3, 1), jnp.float32) * 0.3,
        "w_rv": jax.random.normal(ks[2], (heads, 1, 3, 1), jnp.float32) * 0.3,
        # Conv3d(heads, 1, (3,3,1), bias=False)
        "w_out": jax.random.normal(ks[3], (1, heads, 3, 3, 1), jnp.float32) * 0.1,
        # LayerNorm((P, P)) affine params
        "ln_g": 1.0 + 0.1 * jax.random.normal(ks[4], (P, P), jnp.float32),
        "ln_b": 0.1 * jax.random.normal(ks[5], (P, P), jnp.float32),
        # FFN Conv3d(1, 1, (3,3,1), bias=False)
        "w_ffn": jax.random.normal(ks[6], (1, 1, 3, 3, 1), jnp.float32) * 0.1,
    }
    x = jax.random.normal(ks[7], (B, 1, P, P, S), jnp.float32)

    fwd = jax.jit(functools.partial(spectral_transformer_block, heads=heads))
    out = jax.block_until_ready(fwd(x, params))

    ref_fn = jax.jit(functools.partial(reference_forward, heads=heads))
    ref = jax.block_until_ready(ref_fn(x, params))

    np.testing.assert_allclose(np.asarray(out), np.asarray(ref),
                               rtol=2e-3, atol=2e-3)
    print("KERNEL_OK")
</pallas_src>

<mosaic_0001>
module attributes {stable_mosaic.version = 11 : i64} {
  func.func @_stb_kernel(%arg0: i32, %arg1: memref<32x64xf32, #tpu.memory_space<vmem>>, %arg2: memref<64x768xf32, #tpu.memory_space<vmem>>, %arg3: memref<24x32xf32, #tpu.memory_space<vmem>>, %arg4: memref<3x512xf32, #tpu.memory_space<vmem>>, %arg5: memref<32x8xf32, #tpu.memory_space<vmem>>, %arg6: memref<256x64xf32, #tpu.memory_space<vmem>>, %arg7: memref<1x64xf32, #tpu.memory_space<vmem>>, %arg8: memref<1x64xf32, #tpu.memory_space<vmem>>, %arg9: memref<64x64xf32, #tpu.memory_space<vmem>>, %arg10: memref<32x64xf32, #tpu.memory_space<vmem>>) attributes {dimension_semantics = [#tpu.dimension_semantics<parallel>], iteration_bounds = array<i64: 1>, scalar_prefetch = 0 : i64, scratch_operands = 0 : i64, tpu.core_type = #tpu.core_type<tc>, window_params = [{transform_indices = @transform_0, window_bounds = array<i64: 32, 64>}, {pipeline_mode = #tpu.pipeline_mode<synchronous>, transform_indices = @transform_1, window_bounds = array<i64: 64, 768>}, {pipeline_mode = #tpu.pipeline_mode<synchronous>, transform_indices = @transform_2, window_bounds = array<i64: 24, 32>}, {pipeline_mode = #tpu.pipeline_mode<synchronous>, transform_indices = @transform_3, window_bounds = array<i64: 3, 512>}, {pipeline_mode = #tpu.pipeline_mode<synchronous>, transform_indices = @transform_4, window_bounds = array<i64: 32, 8>}, {pipeline_mode = #tpu.pipeline_mode<synchronous>, transform_indices = @transform_5, window_bounds = array<i64: 256, 64>}, {pipeline_mode = #tpu.pipeline_mode<synchronous>, transform_indices = @transform_6, window_bounds = array<i64: 1, 64>}, {pipeline_mode = #tpu.pipeline_mode<synchronous>, transform_indices = @transform_7, window_bounds = array<i64: 1, 64>}, {pipeline_mode = #tpu.pipeline_mode<synchronous>, transform_indices = @transform_8, window_bounds = array<i64: 64, 64>}, {transform_indices = @transform_9, window_bounds = array<i64: 32, 64>}]} {
    %c0 = arith.constant 0 : index
    %c0_0 = arith.constant 0 : index
    %0 = vector.load %arg1[%c0, %c0_0] : memref<32x64xf32, #tpu.memory_space<vmem>>, vector<32x64xf32>
    %c0_1 = arith.constant 0 : index
    %c0_2 = arith.constant 0 : index
    %1 = vector.load %arg2[%c0_1, %c0_2] : memref<64x768xf32, #tpu.memory_space<vmem>>, vector<64x768xf32>
    %cst = arith.constant dense<0.000000e+00> : vector<32x768xf32>
    %2 = tpu.matmul %0, %1, %cst {dimension_numbers = #tpu.dot_dimension_numbers<[1], [0], [0], [1], [0, 0, 1, 1], [], []>, precision = #tpu.contract_precision<fp32>} : vector<32x64xf32>, vector<64x768xf32>, vector<32x768xf32> -> vector<32x768xf32>
    %c0_3 = arith.constant 0 : index
    %c0_4 = arith.constant 0 : index
    %3 = vector.load %arg3[%c0_3, %c0_4] : memref<24x32xf32, #tpu.memory_space<vmem>>, vector<24x32xf32>
    %4 = vector.extract_strided_slice %2 {offsets = [0, 256], sizes = [32, 512], strides = [1, 1]} : vector<32x768xf32> to vector<32x512xf32>
    %cst_5 = arith.constant dense<0.000000e+00> : vector<24x512xf32>
    %5 = tpu.matmul %3, %4, %cst_5 {dimension_numbers = #tpu.dot_dimension_numbers<[1], [0], [0], [1], [0, 0, 1, 1], [], []>, precision = #tpu.contract_precision<fp32>} : vector<24x32xf32>, vector<32x512xf32>, vector<24x512xf32> -> vector<24x512xf32>
    %c0_6 = arith.constant 0 : index
    %c0_7 = arith.constant 0 : index
    %6 = vector.load %arg4[%c0_6, %c0_7] : memref<3x512xf32, #tpu.memory_space<vmem>>, vector<3x512xf32>
    %7 = vector.extract_strided_slice %6 {offsets = [0, 0], sizes = [1, 512], strides = [1, 1]} : vector<3x512xf32> to vector<1x512xf32>
    %8 = vector.extract_strided_slice %5 {offsets = [0, 0], sizes = [8, 512], strides = [1, 1]} : vector<24x512xf32> to vector<8x512xf32>
    %9 = vector.broadcast %7 : vector<1x512xf32> to vector<8x512xf32>
    %10 = arith.mulf %9, %8 : vector<8x512xf32>
    %11 = vector.extract_strided_slice %6 {offsets = [1, 0], sizes = [1, 512], strides = [1, 1]} : vector<3x512xf32> to vector<1x512xf32>
    %12 = vector.extract_strided_slice %5 {offsets = [8, 0], sizes = [8, 512], strides = [1, 1]} : vector<24x512xf32> to vector<8x512xf32>
    %13 = vector.broadcast %11 : vector<1x512xf32> to vector<8x512xf32>
    %14 = arith.mulf %13, %12 : vector<8x512xf32>
    %15 = arith.addf %10, %14 : vector<8x512xf32>
    %16 = vector.extract_strided_slice %6 {offsets = [2, 0], sizes = [1, 512], strides = [1, 1]} : vector<3x512xf32> to vector<1x512xf32>
    %17 = vector.extract_strided_slice %5 {offsets = [16, 0], sizes = [8, 512], strides = [1, 1]} : vector<24x512xf32> to vector<8x512xf32>
    %18 = vector.broadcast %16 : vector<1x512xf32> to vector<8x512xf32>
    %19 = arith.mulf %18, %17 : vector<8x512xf32>
    %20 = arith.addf %15, %19 : vector<8x512xf32>
    %21 = vector.extract_strided_slice %20 {offsets = [0, 0], sizes = [8, 256], strides = [1, 1]} : vector<8x512xf32> to vector<8x256xf32>
    %22 = vector.extract_strided_slice %20 {offsets = [0, 256], sizes = [8, 256], strides = [1, 1]} : vector<8x512xf32> to vector<8x256xf32>
    %c0_8 = arith.constant 0 : index
    %c0_9 = arith.constant 0 : index
    %23 = vector.load %arg5[%c0_8, %c0_9] : memref<32x8xf32, #tpu.memory_space<vmem>>, vector<32x8xf32>
    %24 = vector.extract_strided_slice %2 {offsets = [0, 0], sizes = [32, 64], strides = [1, 1]} : vector<32x768xf32> to vector<32x64xf32>
    %25 = vector.extract_strided_slice %21 {offsets = [0, 0], sizes = [8, 64], strides = [1, 1]} : vector<8x256xf32> to vector<8x64xf32>
    %cst_10 = arith.constant dense<0.000000e+00> : vector<32x8xf32>
    %26 = tpu.matmul %24, %25, %cst_10 {dimension_numbers = #tpu.dot_dimension_numbers<[1], [1], [0], [0], [0, 0, 1, 0], [], []>, precision = #tpu.contract_precision<fp32>} : vector<32x64xf32>, vector<8x64xf32>, vector<32x8xf32> -> vector<32x8xf32>
    %cst_11 = arith.constant 1.250000e-01 : f32
    %27 = vector.broadcast %cst_11 : f32 to vector<32x8xf32>
    %28 = arith.mulf %26, %27 : vector<32x8xf32>
    %29 = arith.addf %28, %23 : vector<32x8xf32>
    %cst_12 = arith.constant dense<0xFF800000> : vector<32xf32>
    %30 = vector.multi_reduction <maximumf>, %29, %cst_12 [1] : vector<32x8xf32> to vector<32xf32>
    %31 = vector.shape_cast %30 : vector<32xf32> to vector<32x1xf32>
    %32 = vector.broadcast %31 : vector<32x1xf32> to vector<32x8xf32>
    %33 = arith.subf %29, %32 : vector<32x8xf32>
    %34 = math.exp %33 : vector<32x8xf32>
    %cst_13 = arith.constant dense<0.000000e+00> : vector<32xf32>
    %35 = vector.multi_reduction <add>, %34, %cst_13 [1] : vector<32x8xf32> to vector<32xf32>
    %36 = vector.shape_cast %35 : vector<32xf32> to vector<32x1xf32>
    %37 = vector.broadcast %36 : vector<32x1xf32> to vector<32x8xf32>
    %38 = arith.divf %34, %37 : vector<32x8xf32>
    %39 = vector.extract_strided_slice %22 {offsets = [0, 0], sizes = [8, 64], strides = [1, 1]} : vector<8x256xf32> to vector<8x64xf32>
    %cst_14 = arith.constant dense<0.000000e+00> : vector<32x64xf32>
    %40 = tpu.matmul %38, %39, %cst_14 {dimension_numbers = #tpu.dot_dimension_numbers<[1], [0], [0], [1], [0, 0, 1, 1], [], []>, precision = #tpu.contract_precision<fp32>} : vector<32x8xf32>, vector<8x64xf32>, vector<32x64xf32> -> vector<32x64xf32>
    %41 = vector.extract_strided_slice %2 {offsets = [0, 64], sizes = [32, 64], strides = [1, 1]} : vector<32x768xf32> to vector<32x64xf32>
    %42 = vector.extract_strided_slice %21 {offsets = [0, 64], sizes = [8, 64], strides = [1, 1]} : vector<8x256xf32> to vector<8x64xf32>
    %cst_15 = arith.constant dense<0.000000e+00> : vector<32x8xf32>
    %43 = tpu.matmul %41, %42, %cst_15 {dimension_numbers = #tpu.dot_dimension_numbers<[1], [1], [0], [0], [0, 0, 1, 0], [], []>, precision = #tpu.contract_precision<fp32>} : vector<32x64xf32>, vector<8x64xf32>, vector<32x8xf32> -> vector<32x8xf32>
    %cst_16 = arith.constant 1.250000e-01 : f32
    %44 = vector.broadcast %cst_16 : f32 to vector<32x8xf32>
    %45 = arith.mulf %43, %44 : vector<32x8xf32>
    %46 = arith.addf %45, %23 : vector<32x8xf32>
    %cst_17 = arith.constant dense<0xFF800000> : vector<32xf32>
    %47 = vector.multi_reduction <maximumf>, %46, %cst_17 [1] : vector<32x8xf32> to vector<32xf32>
    %48 = vector.shape_cast %47 : vector<32xf32> to vector<32x1xf32>
    %49 = vector.broadcast %48 : vector<32x1xf32> to vector<32x8xf32>
    %50 = arith.subf %46, %49 : vector<32x8xf32>
    %51 = math.exp %50 : vector<32x8xf32>
    %cst_18 = arith.constant dense<0.000000e+00> : vector<32xf32>
    %52 = vector.multi_reduction <add>, %51, %cst_18 [1] : vector<32x8xf32> to vector<32xf32>
    %53 = vector.shape_cast %52 : vector<32xf32> to vector<32x1xf32>
    %54 = vector.broadcast %53 : vector<32x1xf32> to vector<32x8xf32>
    %55 = arith.divf %51, %54 : vector<32x8xf32>
    %56 = vector.extract_strided_slice %22 {offsets = [0, 64], sizes = [8, 64], strides = [1, 1]} : vector<8x256xf32> to vector<8x64xf32>
    %cst_19 = arith.constant dense<0.000000e+00> : vector<32x64xf32>
    %57 = tpu.matmul %55, %56, %cst_19 {dimension_numbers = #tpu.dot_dimension_numbers<[1], [0], [0], [1], [0, 0, 1, 1], [], []>, precision = #tpu.contract_precision<fp32>} : vector<32x8xf32>, vector<8x64xf32>, vector<32x64xf32> -> vector<32x64xf32>
    %58 = vector.extract_strided_slice %2 {offsets = [0, 128], sizes = [32, 64], strides = [1, 1]} : vector<32x768xf32> to vector<32x64xf32>
    %59 = vector.extract_strided_slice %21 {offsets = [0, 128], sizes = [8, 64], strides = [1, 1]} : vector<8x256xf32> to vector<8x64xf32>
    %cst_20 = arith.constant dense<0.000000e+00> : vector<32x8xf32>
    %60 = tpu.matmul %58, %59, %cst_20 {dimension_numbers = #tpu.dot_dimension_numbers<[1], [1], [0], [0], [0, 0, 1, 0], [], []>, precision = #tpu.contract_precision<fp32>} : vector<32x64xf32>, vector<8x64xf32>, vector<32x8xf32> -> vector<32x8xf32>
    %cst_21 = arith.constant 1.250000e-01 : f32
    %61 = vector.broadcast %cst_21 : f32 to vector<32x8xf32>
    %62 = arith.mulf %60, %61 : vector<32x8xf32>
    %63 = arith.addf %62, %23 : vector<32x8xf32>
    %cst_22 = arith.constant dense<0xFF800000> : vector<32xf32>
    %64 = vector.multi_reduction <maximumf>, %63, %cst_22 [1] : vector<32x8xf32> to vector<32xf32>
    %65 = vector.shape_cast %64 : vector<32xf32> to vector<32x1xf32>
    %66 = vector.broadcast %65 : vector<32x1xf32> to vector<32x8xf32>
    %67 = arith.subf %63, %66 : vector<32x8xf32>
    %68 = math.exp %67 : vector<32x8xf32>
    %cst_23 = arith.constant dense<0.000000e+00> : vector<32xf32>
    %69 = vector.multi_reduction <add>, %68, %cst_23 [1] : vector<32x8xf32> to vector<32xf32>
    %70 = vector.shape_cast %69 : vector<32xf32> to vector<32x1xf32>
    %71 = vector.broadcast %70 : vector<32x1xf32> to vector<32x8xf32>
    %72 = arith.divf %68, %71 : vector<32x8xf32>
    %73 = vector.extract_strided_slice %22 {offsets = [0, 128], sizes = [8, 64], strides = [1, 1]} : vector<8x256xf32> to vector<8x64xf32>
    %cst_24 = arith.constant dense<0.000000e+00> : vector<32x64xf32>
    %74 = tpu.matmul %72, %73, %cst_24 {dimension_numbers = #tpu.dot_dimension_numbers<[1], [0], [0], [1], [0, 0, 1, 1], [], []>, precision = #tpu.contract_precision<fp32>} : vector<32x8xf32>, vector<8x64xf32>, vector<32x64xf32> -> vector<32x64xf32>
    %75 = vector.extract_strided_slice %2 {offsets = [0, 192], sizes = [32, 64], strides = [1, 1]} : vector<32x768xf32> to vector<32x64xf32>
    %76 = vector.extract_strided_slice %21 {offsets = [0, 192], sizes = [8, 64], strides = [1, 1]} : vector<8x256xf32> to vector<8x64xf32>
    %cst_25 = arith.constant dense<0.000000e+00> : vector<32x8xf32>
    %77 = tpu.matmul %75, %76, %cst_25 {dimension_numbers = #tpu.dot_dimension_numbers<[1], [1], [0], [0], [0, 0, 1, 0], [], []>, precision = #tpu.contract_precision<fp32>} : vector<32x64xf32>, vector<8x64xf32>, vector<32x8xf32> -> vector<32x8xf32>
    %cst_26 = arith.constant 1.250000e-01 : f32
    %78 = vector.broadcast %cst_26 : f32 to vector<32x8xf32>
    %79 = arith.mulf %77, %78 : vector<32x8xf32>
    %80 = arith.addf %79, %23 : vector<32x8xf32>
    %cst_27 = arith.constant dense<0xFF800000> : vector<32xf32>
    %81 = vector.multi_reduction <maximumf>, %80, %cst_27 [1] : vector<32x8xf32> to vector<32xf32>
    %82 = vector.shape_cast %81 : vector<32xf32> to vector<32x1xf32>
    %83 = vector.broadcast %82 : vector<32x1xf32> to vector<32x8xf32>
    %84 = arith.subf %80, %83 : vector<32x8xf32>
    %85 = math.exp %84 : vector<32x8xf32>
    %cst_28 = arith.constant dense<0.000000e+00> : vector<32xf32>
    %86 = vector.multi_reduction <add>, %85, %cst_28 [1] : vector<32x8xf32> to vector<32xf32>
    %87 = vector.shape_cast %86 : vector<32xf32> to vector<32x1xf32>
    %88 = vector.broadcast %87 : vector<32x1xf32> to vector<32x8xf32>
    %89 = arith.divf %85, %88 : vector<32x8xf32>
    %90 = vector.extract_strided_slice %22 {offsets = [0, 192], sizes = [8, 64], strides = [1, 1]} : vector<8x256xf32> to vector<8x64xf32>
    %cst_29 = arith.constant dense<0.000000e+00> : vector<32x64xf32>
    %91 = tpu.matmul %89, %90, %cst_29 {dimension_numbers = #tpu.dot_dimension_numbers<[1], [0], [0], [1], [0, 0, 1, 1], [], []>, precision = #tpu.contract_precision<fp32>} : vector<32x8xf32>, vector<8x64xf32>, vector<32x64xf32> -> vector<32x64xf32>
    %92 = tpu.concatenate %40, %57, %74, %91 in 1 : vector<32x64xf32>, vector<32x64xf32>, vector<32x64xf32>, vector<32x64xf32> -> vector<32x256xf32>
    %c0_30 = arith.constant 0 : index
    %c0_31 = arith.constant 0 : index
    %93 = vector.load %arg6[%c0_30, %c0_31] : memref<256x64xf32, #tpu.memory_space<vmem>>, vector<256x64xf32>
    %cst_32 = arith.constant dense<0.000000e+00> : vector<32x64xf32>
    %94 = tpu.matmul %92, %93, %cst_32 {dimension_numbers = #tpu.dot_dimension_numbers<[1], [0], [0], [1], [0, 0, 1, 1], [], []>, precision = #tpu.contract_precision<fp32>} : vector<32x256xf32>, vector<256x64xf32>, vector<32x64xf32> -> vector<32x64xf32>
    %cst_33 = arith.constant dense<0.000000e+00> : vector<32xf32>
    %95 = vector.multi_reduction <add>, %94, %cst_33 [1] : vector<32x64xf32> to vector<32xf32>
    %96 = vector.shape_cast %95 : vector<32xf32> to vector<32x1xf32>
    %cst_34 = arith.constant 6.400000e+01 : f32
    %97 = vector.broadcast %cst_34 : f32 to vector<32x1xf32>
    %98 = arith.divf %96, %97 : vector<32x1xf32>
    %99 = vector.broadcast %98 : vector<32x1xf32> to vector<32x64xf32>
    %100 = arith.subf %94, %99 : vector<32x64xf32>
    %101 = vector.broadcast %98 : vector<32x1xf32> to vector<32x64xf32>
    %102 = arith.subf %94, %101 : vector<32x64xf32>
    %103 = arith.mulf %100, %102 : vector<32x64xf32>
    %cst_35 = arith.constant dense<0.000000e+00> : vector<32xf32>
    %104 = vector.multi_reduction <add>, %103, %cst_35 [1] : vector<32x64xf32> to vector<32xf32>
    %105 = vector.shape_cast %104 : vector<32xf32> to vector<32x1xf32>
    %cst_36 = arith.constant 6.400000e+01 : f32
    %106 = vector.broadcast %cst_36 : f32 to vector<32x1xf32>
    %107 = arith.divf %105, %106 : vector<32x1xf32>
    %108 = vector.broadcast %98 : vector<32x1xf32> to vector<32x64xf32>
    %109 = arith.subf %94, %108 : vector<32x64xf32>
    %cst_37 = arith.constant 9.99999974E-6 : f32
    %110 = vector.broadcast %cst_37 : f32 to vector<32x1xf32>
    %111 = arith.addf %107, %110 : vector<32x1xf32>
    %112 = math.rsqrt %111 : vector<32x1xf32>
    %113 = vector.broadcast %112 : vector<32x1xf32> to vector<32x64xf32>
    %114 = arith.mulf %109, %113 : vector<32x64xf32>
    %c0_38 = arith.constant 0 : index
    %c0_39 = arith.constant 0 : index
    %115 = vector.load %arg7[%c0_38, %c0_39] : memref<1x64xf32, #tpu.memory_space<vmem>>, vector<1x64xf32>
    %116 = vector.broadcast %115 : vector<1x64xf32> to vector<32x64xf32>
    %117 = arith.mulf %114, %116 : vector<32x64xf32>
    %c0_40 = arith.constant 0 : index
    %c0_41 = arith.constant 0 : index
    %118 = vector.load %arg8[%c0_40, %c0_41] : memref<1x64xf32, #tpu.memory_space<vmem>>, vector<1x64xf32>
    %119 = vector.broadcast %118 : vector<1x64xf32> to vector<32x64xf32>
    %120 = arith.addf %117, %119 : vector<32x64xf32>
    %121 = arith.addf %0, %120 : vector<32x64xf32>
    %c0_42 = arith.constant 0 : index
    %c0_43 = arith.constant 0 : index
    %122 = vector.load %arg9[%c0_42, %c0_43] : memref<64x64xf32, #tpu.memory_space<vmem>>, vector<64x64xf32>
    %cst_44 = arith.constant dense<0.000000e+00> : vector<32x64xf32>
    %123 = tpu.matmul %121, %122, %cst_44 {dimension_numbers = #tpu.dot_dimension_numbers<[1], [0], [0], [1], [0, 0, 1, 1], [], []>, precision = #tpu.contract_precision<fp32>} : vector<32x64xf32>, vector<64x64xf32>, vector<32x64xf32> -> vector<32x64xf32>
    %cst_45 = arith.constant 0.000000e+00 : f32
    %cst_46 = arith.constant 6.000000e+00 : f32
    %124 = vector.broadcast %cst_45 : f32 to vector<32x64xf32>
    %125 = arith.maximumf %124, %123 : vector<32x64xf32>
    %126 = vector.broadcast %cst_46 : f32 to vector<32x64xf32>
    %127 = arith.minimumf %126, %125 : vector<32x64xf32>
    %128 = arith.addf %121, %127 : vector<32x64xf32>
    %c0_47 = arith.constant 0 : index
    %c0_48 = arith.constant 0 : index
    %129 = vector.load %arg10[%c0_47, %c0_48] : memref<32x64xf32, #tpu.memory_space<vmem>>, vector<32x64xf32>
    tpu.vector_store %arg10[%c0_47, %c0_48], %128 {strides = array<i32>} : memref<32x64xf32, #tpu.memory_space<vmem>>, vector<32x64xf32>,
    return
  }
  func.func @transform_0(%arg0: i32) -> (i32, i32) {
    %c0_i32 = arith.constant 0 : i32
    %c0_i32_0 = arith.constant 0 : i32
    return %arg0, %c0_i32 : i32, i32
  }
  func.func @transform_1(%arg0: i32) -> (i32, i32) {
    %c0_i32 = arith.constant 0 : i32
    %c0_i32_0 = arith.constant 0 : i32
    %c0_i32_1 = arith.constant 0 : i32
    return %c0_i32, %c0_i32_0 : i32, i32
  }
  func.func @transform_2(%arg0: i32) -> (i32, i32) {
    %c0_i32 = arith.constant 0 : i32
    %c0_i32_0 = arith.constant 0 : i32
    %c0_i32_1 = arith.constant 0 : i32
    return %c0_i32, %c0_i32_0 : i32, i32
  }
  func.func @transform_3(%arg0: i32) -> (i32, i32) {
    %c0_i32 = arith.constant 0 : i32
    %c0_i32_0 = arith.constant 0 : i32
    %c0_i32_1 = arith.constant 0 : i32
    return %c0_i32, %c0_i32_0 : i32, i32
  }
  func.func @transform_4(%arg0: i32) -> (i32, i32) {
    %c0_i32 = arith.constant 0 : i32
    %c0_i32_0 = arith.constant 0 : i32
    %c0_i32_1 = arith.constant 0 : i32
    return %c0_i32, %c0_i32_0 : i32, i32
  }
  func.func @transform_5(%arg0: i32) -> (i32, i32) {
    %c0_i32 = arith.constant 0 : i32
    %c0_i32_0 = arith.constant 0 : i32
    %c0_i32_1 = arith.constant 0 : i32
    return %c0_i32, %c0_i32_0 : i32, i32
  }
  func.func @transform_6(%arg0: i32) -> (i32, i32) {
    %c0_i32 = arith.constant 0 : i32
    %c0_i32_0 = arith.constant 0 : i32
    %c0_i32_1 = arith.constant 0 : i32
    return %c0_i32, %c0_i32_0 : i32, i32
  }
  func.func @transform_7(%arg0: i32) -> (i32, i32) {
    %c0_i32 = arith.constant 0 : i32
    %c0_i32_0 = arith.constant 0 : i32
    %c0_i32_1 = arith.constant 0 : i32
    return %c0_i32, %c0_i32_0 : i32, i32
  }
  func.func @transform_8(%arg0: i32) -> (i32, i32) {
    %c0_i32 = arith.constant 0 : i32
    %c0_i32_0 = arith.constant 0 : i32
    %c0_i32_1 = arith.constant 0 : i32
    return %c0_i32, %c0_i32_0 : i32, i32
  }
  func.func @transform_9(%arg0: i32) -> (i32, i32) {
    %c0_i32 = arith.constant 0 : i32
    %c0_i32_0 = arith.constant 0 : i32
    return %arg0, %c0_i32 : i32, i32
  }
}

</mosaic_0001>

<llo_original>
// kernel: spectral_transformer_block.1
$region0: #{spectral_transformer_block.1}
  #allocation0 [shape = 'u32[]', space=smem, size = 0x4, offset = 0x4, fixed_abs, tag = 'smem constant byte address 0x4 - core index']
  #allocation1 [shape = 'u32[72,128]{1,0:T(1,128)}', space=vmem, size = 0x9000, scoped, tag = 'internal scratch']
  %s0 = inlined_call_operand.vmem [shape: f32[32,64], index: 0, kind: input, shape index: {}]
  %s1 = inlined_call_operand.vmem [shape: f32[64,768], index: 1, kind: input, shape index: {}]
  %s2 = inlined_call_operand.vmem [shape: f32[24,32], index: 2, kind: input, shape index: {}]
  %s3 = inlined_call_operand.vmem [shape: f32[3,512], index: 3, kind: input, shape index: {}]
  %s4 = inlined_call_operand.vmem [shape: f32[32,8], index: 4, kind: input, shape index: {}]
  %s5 = inlined_call_operand.vmem [shape: f32[256,64], index: 5, kind: input, shape index: {}]
  %s6 = inlined_call_operand.vmem [shape: f32[1,64], index: 6, kind: input, shape index: {}]
  %s7 = inlined_call_operand.vmem [shape: f32[1,64], index: 7, kind: input, shape index: {}]
  %s8 = inlined_call_operand.vmem [shape: f32[64,64], index: 8, kind: input, shape index: {}]
  %s9 = inlined_call_operand.vmem [shape: f32[32,64], index: 9, kind: output, shape index: {}]
  %s10 = sld [smem:[#allocation0]]
  $region46: #{spectral_transformer_block.1} parent=0
    _
  %s12 = ssub.s32 1, %s10
  %s13 = scalar_select 0, %s12, %s10
  // Predicated region
  $region2: #{spectral_transformer_block.1} parent=0 // pred_check
    _
  $region3: #{spectral_transformer_block.1} parent=0 // pred_check_branch
    %15 = sbr.rel (0) target = $region5
  $region4: #{spectral_transformer_block.1} parent=0 // pred_region
    _
  $region5: #{spectral_transformer_block.1} parent=0 // pred_fallthru
    _
  // Predicated region
  $region6: #{spectral_transformer_block.1} parent=0 // pred_check
    _
  $region7: #{spectral_transformer_block.1} parent=0 // pred_check_branch
    %17 = sbr.rel (0) target = $region9
  $region8: #{spectral_transformer_block.1} parent=0 // pred_region
    _
  $region9: #{spectral_transformer_block.1} parent=0 // pred_fallthru
    _
  // Predicated region
  $region10: #{spectral_transformer_block.1} parent=0 // pred_check
    _
  $region11: #{spectral_transformer_block.1} parent=0 // pred_check_branch
    %19 = sbr.rel (0) target = $region13
  $region12: #{spectral_transformer_block.1} parent=0 // pred_region
    _
  $region13: #{spectral_transformer_block.1} parent=0 // pred_fallthru
    _
  // Predicated region
  $region14: #{spectral_transformer_block.1} parent=0 // pred_check
    _
  $region15: #{spectral_transformer_block.1} parent=0 // pred_check_branch
    %21 = sbr.rel (0) target = $region17
  $region16: #{spectral_transformer_block.1} parent=0 // pred_region
    _
  $region17: #{spectral_transformer_block.1} parent=0 // pred_fallthru
    _
  // Predicated region
  $region18: #{spectral_transformer_block.1} parent=0 // pred_check
    _
  $region19: #{spectral_transformer_block.1} parent=0 // pred_check_branch
    %23 = sbr.rel (0) target = $region21
  $region20: #{spectral_transformer_block.1} parent=0 // pred_region
    _
  $region21: #{spectral_transformer_block.1} parent=0 // pred_fallthru
    _
  // Predicated region
  $region22: #{spectral_transformer_block.1} parent=0 // pred_check
    _
  $region23: #{spectral_transformer_block.1} parent=0 // pred_check_branch
    %25 = sbr.rel (0) target = $region25
  $region24: #{spectral_transformer_block.1} parent=0 // pred_region
    _
  $region25: #{spectral_transformer_block.1} parent=0 // pred_fallthru
    _
  // Predicated region
  $region26: #{spectral_transformer_block.1} parent=0 // pred_check
    _
  $region27: #{spectral_transformer_block.1} parent=0 // pred_check_branch
    %27 = sbr.rel (0) target = $region29
  $region28: #{spectral_transformer_block.1} parent=0 // pred_region
    _
  $region29: #{spectral_transformer_block.1} parent=0 // pred_fallthru
    _
  // Predicated region
  $region30: #{spectral_transformer_block.1} parent=0 // pred_check
    _
  $region31: #{spectral_transformer_block.1} parent=0 // pred_check_branch
    %29 = sbr.rel (0) target = $region33
  $region32: #{spectral_transformer_block.1} parent=0 // pred_region
    _
  $region33: #{spectral_transformer_block.1} parent=0 // pred_fallthru
    _
  // Predicated region
  $region34: #{spectral_transformer_block.1} parent=0 // pred_check
    _
  $region35: #{spectral_transformer_block.1} parent=0 // pred_check_branch
    %31 = sbr.rel (0) target = $region37
  $region36: #{spectral_transformer_block.1} parent=0 // pred_region
    _
  $region37: #{spectral_transformer_block.1} parent=0 // pred_fallthru
    _
  %v32 = vld [vmem:[%s0] sm:$0xff]
  %v33 = vld [vmem:[%s0 + $0x8] sm:$0xff]
  %v34 = vld [vmem:[%s0 + $0x10] sm:$0xff]
  %v35 = vld [vmem:[%s0 + $0x18] sm:$0xff]
  %v36 = vld [vmem:[%s1] sm:$0xff]
  %v37 = vld [vmem:[%s1 + $0x8] sm:$0xff]
  %v38 = vld [vmem:[%s1 + $0x10] sm:$0xff]
  %v39 = vld [vmem:[%s1 + $0x18] sm:$0xff]
  %v40 = vld [vmem:[%s1 + $0x20] sm:$0xff]
  %v41 = vld [vmem:[%s1 + $0x28] sm:$0xff]
  %v42 = vld [vmem:[%s1 + $0x30] sm:$0xff]
  %v43 = vld [vmem:[%s1 + $0x38] sm:$0xff]
  %v44 = vld [vmem:[%s1 + $0x40] sm:$0xff]
  %v45 = vld [vmem:[%s1 + $0x48] sm:$0xff]
  %v46 = vld [vmem:[%s1 + $0x50] sm:$0xff]
  %v47 = vld [vmem:[%s1 + $0x58] sm:$0xff]
  %v48 = vld [vmem:[%s1 + $0x60] sm:$0xff]
  %v49 = vld [vmem:[%s1 + $0x68] sm:$0xff]
  %v50 = vld [vmem:[%s1 + $0x70] sm:$0xff]
  %v51 = vld [vmem:[%s1 + $0x78] sm:$0xff]
  %v52 = vld [vmem:[%s1 + $0x80] sm:$0xff]
  %v53 = vld [vmem:[%s1 + $0x88] sm:$0xff]
  %v54 = vld [vmem:[%s1 + $0x90] sm:$0xff]
  %v55 = vld [vmem:[%s1 + $0x98] sm:$0xff]
  %v56 = vld [vmem:[%s1 + $0xa0] sm:$0xff]
  %v57 = vld [vmem:[%s1 + $0xa8] sm:$0xff]
  %v58 = vld [vmem:[%s1 + $0xb0] sm:$0xff]
  %v59 = vld [vmem:[%s1 + $0xb8] sm:$0xff]
  %v60 = vld [vmem:[%s1 + $0xc0] sm:$0xff]
  %v61 = vld [vmem:[%s1 + $0xc8] sm:$0xff]
  %v62 = vld [vmem:[%s1 + $0xd0] sm:$0xff]
  %v63 = vld [vmem:[%s1 + $0xd8] sm:$0xff]
  %v64 = vld [vmem:[%s1 + $0xe0] sm:$0xff]
  %v65 = vld [vmem:[%s1 + $0xe8] sm:$0xff]
  %v66 = vld [vmem:[%s1 + $0xf0] sm:$0xff]
  %v67 = vld [vmem:[%s1 + $0xf8] sm:$0xff]
  %v68 = vld [vmem:[%s1 + $0x100] sm:$0xff]
  %v69 = vld [vmem:[%s1 + $0x108] sm:$0xff]
  %v70 = vld [vmem:[%s1 + $0x110] sm:$0xff]
  %v71 = vld [vmem:[%s1 + $0x118] sm:$0xff]
  %v72 = vld [vmem:[%s1 + $0x120] sm:$0xff]
  %v73 = vld [vmem:[%s1 + $0x128] sm:$0xff]
  %v74 = vld [vmem:[%s1 + $0x130] sm:$0xff]
  %v75 = vld [vmem:[%s1 + $0x138] sm:$0xff]
  %v76 = vld [vmem:[%s1 + $0x140] sm:$0xff]
  %v77 = vld [vmem:[%s1 + $0x148] sm:$0xff]
  %v78 = vld [vmem:[%s1 + $0x150] sm:$0xff]
  %v79 = vld [vmem:[%s1 + $0x158] sm:$0xff]
  %v80 = vld [vmem:[%s1 + $0x160] sm:$0xff]
  %v81 = vld [vmem:[%s1 + $0x168] sm:$0xff]
  %v82 = vld [vmem:[%s1 + $0x170] sm:$0xff]
  %v83 = vld [vmem:[%s1 + $0x178] sm:$0xff]
  %vm84 = vcmask 523264
  %v86 = vsel %vm84, %v32, 0
  %v89 = vsel %vm84, %v33, 0
  %v92 = vsel %vm84, %v34, 0
  %v95 = vsel %vm84, %v35, 0
  %97 = vmatpush.msra.mxu0 0.0
  %98 = vmatpush.msra.mxu0 0.0
  %99 = vmatpush.msra.mxu0 0.0
  %100 = vmatpush.msra.mxu0 0.0
  %101 = vmatpush.msra.mxu0 0.0
  %102 = vmatpush.msra.mxu0 0.0
  %103 = vmatpush.msra.mxu0 0.0
  %104 = vmatpush.msra.mxu0 0.0
  %v105 = vand.u32 %v78, 4294901760
  %106 = vmatpush.msra.mxu0 %v105
  %v107 = vand.u32 %v72, 4294901760
  %108 = vmatpush.msra.mxu0 %v107
  %v109 = vand.u32 %v66, 4294901760
  %110 = vmatpush.msra.mxu0 %v109
  %v111 = vand.u32 %v60, 4294901760
  %112 = vmatpush.msra.mxu0 %v111
  %v113 = vand.u32 %v54, 4294901760
  %114 = vmatpush.msra.mxu0 %v113
  %v115 = vand.u32 %v48, 4294901760
  %116 = vmatpush.msra.mxu0 %v115
  %v117 = vand.u32 %v42, 4294901760
  %118 = vmatpush.msra.mxu0 %v117
  %v119 = vand.u32 %v36, 4294901760
  %120 = vmatpush.msra.mxu0 %v119
  %v121 = vand.u32 %v86, 4294901760
  %v122 = vsub.f32 %v86, %v121
  %v123 = vand.u32 %v122, 4294901760
  %v124 = vsub.f32 %v122, %v123
  %v125 = vand.u32 %v124, 4294901760
  %126 = vmatmul.f32.gmra.mxu0 %v125
  %v127 = vpop.f32.mrf.mxu0
  %v128 = vadd.f32 0.0, %v127
  %v129 = vand.u32 %v89, 4294901760
  %v130 = vsub.f32 %v89, %v129
  %v131 = vand.u32 %v130, 4294901760
  %v132 = vsub.f32 %v130, %v131
  %v133 = vand.u32 %v132, 4294901760
  %134 = vmatmul.f32.gmra.mxu0 %v133
  %v135 = vpop.f32.mrf.mxu0
  %v136 = vadd.f32 0.0, %v135
  %v137 = vand.u32 %v92, 4294901760
  %v138 = vsub.f32 %v92, %v137
  %v139 = vand.u32 %v138, 4294901760
  %v140 = vsub.f32 %v138, %v139
  %v141 = vand.u32 %v140, 4294901760
  %142 = vmatmul.f32.gmra.mxu0 %v141
  %v143 = vpop.f32.mrf.mxu0
  %v144 = vadd.f32 0.0, %v143
  %v145 = vand.u32 %v95, 4294901760
  %v146 = vsub.f32 %v95, %v145
  %v147 = vand.u32 %v146, 4294901760
  %v148 = vsub.f32 %v146, %v147
  %v149 = vand.u32 %v148, 4294901760
  %150 = vmatmul.f32.gmra.mxu0 %v149
  %v151 = vpop.f32.mrf.mxu0
  %v152 = vadd.f32 0.0, %v151
  %153 = vdwg.mxu0
  %154 = vmatpush.msra.mxu0 0.0
  %155 = vmatpush.msra.mxu0 0.0
  %156 = vmatpush.msra.mxu0 0.0
  %157 = vmatpush.msra.mxu0 0.0
  %158 = vmatpush.msra.mxu0 0.0
  %159 = vmatpush.msra.mxu0 0.0
  %160 = vmatpush.msra.mxu0 0.0
  %161 = vmatpush.msra.mxu0 0.0
  %v162 = vand.u32 %v78, 4294901760
  %v163 = vsub.f32 %v78, %v162
  %v164 = vand.u32 %v163, 4294901760
  %v165 = vsub.f32 %v163, %v164
  %v166 = vand.u32 %v165, 4294901760
  %167 = vmatpush.msra.mxu0 %v166
  %v168 = vand.u32 %v72, 4294901760
  %v169 = vsub.f32 %v72, %v168
  %v170 = vand.u32 %v169, 4294901760
  %v171 = vsub.f32 %v169, %v170
  %v172 = vand.u32 %v171, 4294901760
  %173 = vmatpush.msra.mxu0 %v172
  %v174 = vand.u32 %v66, 4294901760
  %v175 = vsub.f32 %v66, %v174
  %v176 = vand.u32 %v175, 4294901760
  %v177 = vsub.f32 %v175, %v176
  %v178 = vand.u32 %v177, 4294901760
  %179 = vmatpush.msra.mxu0 %v178
  %v180 = vand.u32 %v60, 4294901760
  %v181 = vsub.f32 %v60, %v180
  %v182 = vand.u32 %v181, 4294901760
  %v183 = vsub.f32 %v181, %v182
  %v184 = vand.u32 %v183, 4294901760
  %185 = vmatpush.msra.mxu0 %v184
  %v186 = vand.u32 %v54, 4294901760
  %v187 = vsub.f32 %v54, %v186
  %v188 = vand.u32 %v187, 4294901760
  %v189 = vsub.f32 %v187, %v188
  %v190 = vand.u32 %v189, 4294901760
  %191 = vmatpush.msra.mxu0 %v190
  %v192 = vand.u32 %v48, 4294901760
  %v193 = vsub.f32 %v48, %v192
  %v194 = vand.u32 %v193, 4294901760
  %v195 = vsub.f32 %v193, %v194
  %v196 = vand.u32 %v195, 4294901760
  %197 = vmatpush.msra.mxu0 %v196
  %v198 = vand.u32 %v42, 4294901760
  %v199 = vsub.f32 %v42, %v198
  %v200 = vand.u32 %v199, 4294901760
  %v201 = vsub.f32 %v199, %v200
  %v202 = vand.u32 %v201, 4294901760
  %203 = vmatpush.msra.mxu0 %v202
  %v204 = vand.u32 %v36, 4294901760
  %v205 = vsub.f32 %v36, %v204
  %v206 = vand.u32 %v205, 4294901760
  %v207 = vsub.f32 %v205, %v206
  %v208 = vand.u32 %v207, 4294901760
  %209 = vmatpush.msra.mxu0 %v208
  %v210 = vand.u32 %v86, 4294901760
  %211 = vmatmul.f32.gmra.mxu0 %v210
  %v212 = vpop.f32.mrf.mxu0
  %v213 = vadd.f32 %v128, %v212
  %v214 = vand.u32 %v89, 4294901760
  %215 = vmatmul.f32.gmra.mxu0 %v214
  %v216 = vpop.f32.mrf.mxu0
  %v217 = vadd.f32 %v136, %v216
  %v218 = vand.u32 %v92, 4294901760
  %219 = vmatmul.f32.gmra.mxu0 %v218
  %v220 = vpop.f32.mrf.mxu0
  %v221 = vadd.f32 %v144, %v220
  %v222 = vand.u32 %v95, 4294901760
  %223 = vmatmul.f32.gmra.mxu0 %v222
  %v224 = vpop.f32.mrf.mxu0
  %v225 = vadd.f32 %v152, %v224
  %226 = vdwg.mxu0
  %227 = vmatpush.msra.mxu0 0.0
  %228 = vmatpush.msra.mxu0 0.0
  %229 = vmatpush.msra.mxu0 0.0
  %230 = vmatpush.msra.mxu0 0.0
  %231 = vmatpush.msra.mxu0 0.0
  %232 = vmatpush.msra.mxu0 0.0
  %233 = vmatpush.msra.mxu0 0.0
  %234 = vmatpush.msra.mxu0 0.0
  %v235 = vand.u32 %v78, 4294901760
  %v236 = vsub.f32 %v78, %v235
  %237 = vmatpush.msra.mxu0 %v236
  %v238 = vand.u32 %v72, 4294901760
  %v239 = vsub.f32 %v72, %v238
  %240 = vmatpush.msra.mxu0 %v239
  %v241 = vand.u32 %v66, 4294901760
  %v242 = vsub.f32 %v66, %v241
  %243 = vmatpush.msra.mxu0 %v242
  %v244 = vand.u32 %v60, 4294901760
  %v245 = vsub.f32 %v60, %v244
  %246 = vmatpush.msra.mxu0 %v245
  %v247 = vand.u32 %v54, 4294901760
  %v248 = vsub.f32 %v54, %v247
  %249 = vmatpush.msra.mxu0 %v248
  %v250 = vand.u32 %v48, 4294901760
  %v251 = vsub.f32 %v48, %v250
  %252 = vmatpush.msra.mxu0 %v251
  %v253 = vand.u32 %v42, 4294901760
  %v254 = vsub.f32 %v42, %v253
  %255 = vmatpush.msra.mxu0 %v254
  %v256 = vand.u32 %v36, 4294901760
  %v257 = vsub.f32 %v36, %v256
  %258 = vmatpush.msra.mxu0 %v257
  %v259 = vand.u32 %v86, 4294901760
  %v260 = vsub.f32 %v86, %v259
  %261 = vmatmul.f32.gmra.mxu0 %v260
  %v262 = vpop.f32.mrf.mxu0
  %v263 = vadd.f32 %v213, %v262
  %v264 = vand.u32 %v89, 4294901760
  %v265 = vsub.f32 %v89, %v264
  %266 = vmatmul.f32.gmra.mxu0 %v265
  %v267 = vpop.f32.mrf.mxu0
  %v268 = vadd.f32 %v217, %v267
  %v269 = vand.u32 %v92, 4294901760
  %v270 = vsub.f32 %v92, %v269
  %271 = vmatmul.f32.gmra.mxu0 %v270
  %v272 = vpop.f32.mrf.mxu0
  %v273 = vadd.f32 %v221, %v272
  %v274 = vand.u32 %v95, 4294901760
  %v275 = vsub.f32 %v95, %v274
  %276 = vmatmul.f32.gmra.mxu0 %v275
  %v277 = vpop.f32.mrf.mxu0
  %v278 = vadd.f32 %v225, %v277
  %279 = vdwg.mxu0
  %280 = vmatpush.msra.mxu0 0.0
  %281 = vmatpush.msra.mxu0 0.0
  %282 = vmatpush.msra.mxu0 0.0
  %283 = vmatpush.msra.mxu0 0.0
  %284 = vmatpush.msra.mxu0 0.0
  %285 = vmatpush.msra.mxu0 0.0
  %286 = vmatpush.msra.mxu0 0.0
  %287 = vmatpush.msra.mxu0 0.0
  %v288 = vand.u32 %v78, 4294901760
  %289 = vmatpush.msra.mxu0 %v288
  %v290 = vand.u32 %v72, 4294901760
  %291 = vmatpush.msra.mxu0 %v290
  %v292 = vand.u32 %v66, 4294901760
  %293 = vmatpush.msra.mxu0 %v292
  %v294 = vand.u32 %v60, 4294901760
  %295 = vmatpush.msra.mxu0 %v294
  %v296 = vand.u32 %v54, 4294901760
  %297 = vmatpush.msra.mxu0 %v296
  %v298 = vand.u32 %v48, 4294901760
  %299 = vmatpush.msra.mxu0 %v298
  %v300 = vand.u32 %v42, 4294901760
  %301 = vmatpush.msra.mxu0 %v300
  %v302 = vand.u32 %v36, 4294901760
  %303 = vmatpush.msra.mxu0 %v302
  %v304 = vand.u32 %v86, 4294901760
  %v305 = vsub.f32 %v86, %v304
  %v306 = vand.u32 %v305, 4294901760
  %307 = vmatmul.f32.gmra.mxu0 %v306
  %v308 = vpop.f32.mrf.mxu0
  %v309 = vadd.f32 %v263, %v308
  %v310 = vand.u32 %v89, 4294901760
  %v311 = vsub.f32 %v89, %v310
  %v312 = vand.u32 %v311, 4294901760
  %313 = vmatmul.f32.gmra.mxu0 %v312
  %v314 = vpop.f32.mrf.mxu0
  %v315 = vadd.f32 %v268, %v314
  %v316 = vand.u32 %v92, 4294901760
  %v317 = vsub.f32 %v92, %v316
  %v318 = vand.u32 %v317, 4294901760
  %319 = vmatmul.f32.gmra.mxu0 %v318
  %v320 = vpop.f32.mrf.mxu0
  %v321 = vadd.f32 %v273, %v320
  %v322 = vand.u32 %v95, 4294901760
  %v323 = vsub.f32 %v95, %v322
  %v324 = vand.u32 %v323, 4294901760
  %325 = vmatmul.f32.gmra.mxu0 %v324
  %v326 = vpop.f32.mrf.mxu0
  %v327 = vadd.f32 %v278, %v326
  %328 = vdwg.mxu0
  %329 = vmatpush.msra.mxu0 0.0
  %330 = vmatpush.msra.mxu0 0.0
  %331 = vmatpush.msra.mxu0 0.0
  %332 = vmatpush.msra.mxu0 0.0
  %333 = vmatpush.msra.mxu0 0.0
  %334 = vmatpush.msra.mxu0 0.0
  %335 = vmatpush.msra.mxu0 0.0
  %336 = vmatpush.msra.mxu0 0.0
  %v337 = vand.u32 %v78, 4294901760
  %v338 = vsub.f32 %v78, %v337
  %v339 = vand.u32 %v338, 4294901760
  %340 = vmatpush.msra.mxu0 %v339
  %v341 = vand.u32 %v72, 4294901760
  %v342 = vsub.f32 %v72, %v341
  %v343 = vand.u32 %v342, 4294901760
  %344 = vmatpush.msra.mxu0 %v343
  %v345 = vand.u32 %v66, 4294901760
  %v346 = vsub.f32 %v66, %v345
  %v347 = vand.u32 %v346, 4294901760
  %348 = vmatpush.msra.mxu0 %v347
  %v349 = vand.u32 %v60, 4294901760
  %v350 = vsub.f32 %v60, %v349
  %v351 = vand.u32 %v350, 4294901760
  %352 = vmatpush.msra.mxu0 %v351
  %v353 = vand.u32 %v54, 4294901760
  %v354 = vsub.f32 %v54, %v353
  %v355 = vand.u32 %v354, 4294901760
  %356 = vmatpush.msra.mxu0 %v355
  %v357 = vand.u32 %v48, 4294901760
  %v358 = vsub.f32 %v48, %v357
  %v359 = vand.u32 %v358, 4294901760
  %360 = vmatpush.msra.mxu0 %v359
  %v361 = vand.u32 %v42, 4294901760
  %v362 = vsub.f32 %v42, %v361
  %v363 = vand.u32 %v362, 4294901760
  %364 = vmatpush.msra.mxu0 %v363
  %v365 = vand.u32 %v36, 4294901760
  %v366 = vsub.f32 %v36, %v365
  %v367 = vand.u32 %v366, 4294901760
  %368 = vmatpush.msra.mxu0 %v367
  %v369 = vand.u32 %v86, 4294901760
  %370 = vmatmul.f32.gmra.mxu0 %v369
  %v371 = vpop.f32.mrf.mxu0
  %v372 = vadd.f32 %v309, %v371
  %v373 = vand.u32 %v89, 4294901760
  %374 = vmatmul.f32.gmra.mxu0 %v373
  %v375 = vpop.f32.mrf.mxu0
  %v376 = vadd.f32 %v315, %v375
  %v377 = vand.u32 %v92, 4294901760
  %378 = vmatmul.f32.gmra.mxu0 %v377
  %v379 = vpop.f32.mrf.mxu0
  %v380 = vadd.f32 %v321, %v379
  %v381 = vand.u32 %v95, 4294901760
  %382 = vmatmul.f32.gmra.mxu0 %v381
  %v383 = vpop.f32.mrf.mxu0
  %v384 = vadd.f32 %v327, %v383
  %385 = vdwg.mxu0
  %386 = vmatpush.msra.mxu0 0.0
  %387 = vmatpush.msra.mxu0 0.0
  %388 = vmatpush.msra.mxu0 0.0
  %389 = vmatpush.msra.mxu0 0.0
  %390 = vmatpush.msra.mxu0 0.0
  %391 = vmatpush.msra.mxu0 0.0
  %392 = vmatpush.msra.mxu0 0.0
  %393 = vmatpush.msra.mxu0 0.0
  %v394 = vand.u32 %v78, 4294901760
  %395 = vmatpush.msra.mxu0 %v394
  %v396 = vand.u32 %v72, 4294901760
  %397 = vmatpush.msra.mxu0 %v396
  %v398 = vand.u32 %v66, 4294901760
  %399 = vmatpush.msra.mxu0 %v398
  %v400 = vand.u32 %v60, 4294901760
  %401 = vmatpush.msra.mxu0 %v400
  %v402 = vand.u32 %v54, 4294901760
  %403 = vmatpush.msra.mxu0 %v402
  %v404 = vand.u32 %v48, 4294901760
  %405 = vmatpush.msra.mxu0 %v404
  %v406 = vand.u32 %v42, 4294901760
  %407 = vmatpush.msra.mxu0 %v406
  %v408 = vand.u32 %v36, 4294901760
  %409 = vmatpush.msra.mxu0 %v408
  %v410 = vand.u32 %v86, 4294901760
  %411 = vmatmul.f32.gmra.mxu0 %v410
  %v412 = vpop.f32.mrf.mxu0
  %v413 = vadd.f32 %v372, %v412
  %v414 = vand.u32 %v89, 4294901760
  %415 = vmatmul.f32.gmra.mxu0 %v414
  %v416 = vpop.f32.mrf.mxu0
  %v417 = vadd.f32 %v376, %v416
  %v418 = vand.u32 %v92, 4294901760
  %419 = vmatmul.f32.gmra.mxu0 %v418
  %v420 = vpop.f32.mrf.mxu0
  %v421 = vadd.f32 %v380, %v420
  %v422 = vand.u32 %v95, 4294901760
  %423 = vmatmul.f32.gmra.mxu0 %v422
  %v424 = vpop.f32.mrf.mxu0
  %v425 = vadd.f32 %v384, %v424
  %426 = vdwg.mxu0
  %427 = vmatpush.msra.mxu0 0.0
  %428 = vmatpush.msra.mxu0 0.0
  %429 = vmatpush.msra.mxu0 0.0
  %430 = vmatpush.msra.mxu0 0.0
  %431 = vmatpush.msra.mxu0 0.0
  %432 = vmatpush.msra.mxu0 0.0
  %433 = vmatpush.msra.mxu0 0.0
  %434 = vmatpush.msra.mxu0 0.0
  %v435 = vand.u32 %v79, 4294901760
  %436 = vmatpush.msra.mxu0 %v435
  %v437 = vand.u32 %v73, 4294901760
  %438 = vmatpush.msra.mxu0 %v437
  %v439 = vand.u32 %v67, 4294901760
  %440 = vmatpush.msra.mxu0 %v439
  %v441 = vand.u32 %v61, 4294901760
  %442 = vmatpush.msra.mxu0 %v441
  %v443 = vand.u32 %v55, 4294901760
  %444 = vmatpush.msra.mxu0 %v443
  %v445 = vand.u32 %v49, 4294901760
  %446 = vmatpush.msra.mxu0 %v445
  %v447 = vand.u32 %v43, 4294901760
  %448 = vmatpush.msra.mxu0 %v447
  %v449 = vand.u32 %v37, 4294901760
  %450 = vmatpush.msra.mxu0 %v449
  %v451 = vand.u32 %v86, 4294901760
  %v452 = vsub.f32 %v86, %v451
  %v453 = vand.u32 %v452, 4294901760
  %v454 = vsub.f32 %v452, %v453
  %v455 = vand.u32 %v454, 4294901760
  %456 = vmatmul.f32.gmra.mxu0 %v455
  %v457 = vpop.f32.mrf.mxu0
  %v458 = vadd.f32 0.0, %v457
  %v459 = vand.u32 %v89, 4294901760
  %v460 = vsub.f32 %v89, %v459
  %v461 = vand.u32 %v460, 4294901760
  %v462 = vsub.f32 %v460, %v461
  %v463 = vand.u32 %v462, 4294901760
  %464 = vmatmul.f32.gmra.mxu0 %v463
  %v465 = vpop.f32.mrf.mxu0
  %v466 = vadd.f32 0.0, %v465
  %v467 = vand.u32 %v92, 4294901760
  %v468 = vsub.f32 %v92, %v467
  %v469 = vand.u32 %v468, 4294901760
  %v470 = vsub.f32 %v468, %v469
  %v471 = vand.u32 %v470, 4294901760
  %472 = vmatmul.f32.gmra.mxu0 %v471
  %v473 = vpop.f32.mrf.mxu0
  %v474 = vadd.f32 0.0, %v473
  %v475 = vand.u32 %v95, 4294901760
  %v476 = vsub.f32 %v95, %v475
  %v477 = vand.u32 %v476, 4294901760
  %v478 = vsub.f32 %v476, %v477
  %v479 = vand.u32 %v478, 4294901760
  %480 = vmatmul.f32.gmra.mxu0 %v479
  %v481 = vpop.f32.mrf.mxu0
  %v482 = vadd.f32 0.0, %v481
  %483 = vdwg.mxu0
  %484 = vmatpush.msra.mxu0 0.0
  %485 = vmatpush.msra.mxu0 0.0
  %486 = vmatpush.msra.mxu0 0.0
  %487 = vmatpush.msra.mxu0 0.0
  %488 = vmatpush.msra.mxu0 0.0
  %489 = vmatpush.msra.mxu0 0.0
  %490 = vmatpush.msra.mxu0 0.0
  %491 = vmatpush.msra.mxu0 0.0
  %v492 = vand.u32 %v79, 4294901760
  %v493 = vsub.f32 %v79, %v492
  %v494 = vand.u32 %v493, 4294901760
  %v495 = vsub.f32 %v493, %v494
  %v496 = vand.u32 %v495, 4294901760
  %497 = vmatpush.msra.mxu0 %v496
  %v498 = vand.u32 %v73, 4294901760
  %v499 = vsub.f32 %v73, %v498
  %v500 = vand.u32 %v499, 4294901760
  %v501 = vsub.f32 %v499, %v500
  %v502 = vand.u32 %v501, 4294901760
  %503 = vmatpush.msra.mxu0 %v502
  %v504 = vand.u32 %v67, 4294901760
  %v505 = vsub.f32 %v67, %v504
  %v506 = vand.u32 %v505, 4294901760
  %v507 = vsub.f32 %v505, %v506
  %v508 = vand.u32 %v507, 4294901760
  %509 = vmatpush.msra.mxu0 %v508
  %v510 = vand.u32 %v61, 4294901760
  %v511 = vsub.f32 %v61, %v510
  %v512 = vand.u32 %v511, 4294901760
  %v513 = vsub.f32 %v511, %v512
  %v514 = vand.u32 %v513, 4294901760
  %515 = vmatpush.msra.mxu0 %v514
  %v516 = vand.u32 %v55, 4294901760
  %v517 = vsub.f32 %v55, %v516
  %v518 = vand.u32 %v517, 4294901760
  %v519 = vsub.f32 %v517, %v518
  %v520 = vand.u32 %v519, 4294901760
  %521 = vmatpush.msra.mxu0 %v520
  %v522 = vand.u32 %v49, 4294901760
  %v523 = vsub.f32 %v49, %v522
  %v524 = vand.u32 %v523, 4294901760
  %v525 = vsub.f32 %v523, %v524
  %v526 = vand.u32 %v525, 4294901760
  %527 = vmatpush.msra.mxu0 %v526
  %v528 = vand.u32 %v43, 4294901760
  %v529 = vsub.f32 %v43, %v528
  %v530 = vand.u32 %v529, 4294901760
  %v531 = vsub.f32 %v529, %v530
  %v532 = vand.u32 %v531, 4294901760
  %533 = vmatpush.msra.mxu0 %v532
  %v534 = vand.u32 %v37, 4294901760
  %v535 = vsub.f32 %v37, %v534
  %v536 = vand.u32 %v535, 4294901760
  %v537 = vsub.f32 %v535, %v536
  %v538 = vand.u32 %v537, 4294901760
  %539 = vmatpush.msra.mxu0 %v538
  %v540 = vand.u32 %v86, 4294901760
  %541 = vmatmul.f32.gmra.mxu0 %v540
  %v542 = vpop.f32.mrf.mxu0
  %v543 = vadd.f32 %v458, %v542
  %v544 = vand.u32 %v89, 4294901760
  %545 = vmatmul.f32.gmra.mxu0 %v544
  %v546 = vpop.f32.mrf.mxu0
  %v547 = vadd.f32 %v466, %v546
  %v548 = vand.u32 %v92, 4294901760
  %549 = vmatmul.f32.gmra.mxu0 %v548
  %v550 = vpop.f32.mrf.mxu0
  %v551 = vadd.f32 %v474, %v550
  %v552 = vand.u32 %v95, 4294901760
  %553 = vmatmul.f32.gmra.mxu0 %v552
  %v554 = vpop.f32.mrf.mxu0
  %v555 = vadd.f32 %v482, %v554
  %556 = vdwg.mxu0
  %557 = vmatpush.msra.mxu0 0.0
  %558 = vmatpush.msra.mxu0 0.0
  %559 = vmatpush.msra.mxu0 0.0
  %560 = vmatpush.msra.mxu0 0.0
  %561 = vmatpush.msra.mxu0 0.0
  %562 = vmatpush.msra.mxu0 0.0
  %563 = vmatpush.msra.mxu0 0.0
  %564 = vmatpush.msra.mxu0 0.0
  %v565 = vand.u32 %v79, 4294901760
  %v566 = vsub.f32 %v79, %v565
  %567 = vmatpush.msra.mxu0 %v566
  %v568 = vand.u32 %v73, 4294901760
  %v569 = vsub.f32 %v73, %v568
  %570 = vmatpush.msra.mxu0 %v569
  %v571 = vand.u32 %v67, 4294901760
  %v572 = vsub.f32 %v67, %v571
  %573 = vmatpush.msra.mxu0 %v572
  %v574 = vand.u32 %v61, 4294901760
  %v575 = vsub.f32 %v61, %v574
  %576 = vmatpush.msra.mxu0 %v575
  %v577 = vand.u32 %v55, 4294901760
  %v578 = vsub.f32 %v55, %v577
  %579 = vmatpush.msra.mxu0 %v578
  %v580 = vand.u32 %v49, 4294901760
  %v581 = vsub.f32 %v49, %v580
  %582 = vmatpush.msra.mxu0 %v581
  %v583 = vand.u32 %v43, 4294901760
  %v584 = vsub.f32 %v43, %v583
  %585 = vmatpush.msra.mxu0 %v584
  %v586 = vand.u32 %v37, 4294901760
  %v587 = vsub.f32 %v37, %v586
  %588 = vmatpush.msra.mxu0 %v587
  %v589 = vand.u32 %v86, 4294901760
  %v590 = vsub.f32 %v86, %v589
  %591 = vmatmul.f32.gmra.mxu0 %v590
  %v592 = vpop.f32.mrf.mxu0
  %v593 = vadd.f32 %v543, %v592
  %v594 = vand.u32 %v89, 4294901760
  %v595 = vsub.f32 %v89, %v594
  %596 = vmatmul.f32.gmra.mxu0 %v595
  %v597 = vpop.f32.mrf.mxu0
  %v598 = vadd.f32 %v547, %v597
  %v599 = vand.u32 %v92, 4294901760
  %v600 = vsub.f32 %v92, %v599
  %601 = vmatmul.f32.gmra.mxu0 %v600
  %v602 = vpop.f32.mrf.mxu0
  %v603 = vadd.f32 %v551, %v602
  %v604 = vand.u32 %v95, 4294901760
  %v605 = vsub.f32 %v95, %v604
  %606 = vmatmul.f32.gmra.mxu0 %v605
  %v607 = vpop.f32.mrf.mxu0
  %v608 = vadd.f32 %v555, %v607
  %609 = vdwg.mxu0
  %610 = vmatpush.msra.mxu0 0.0
  %611 = vmatpush.msra.mxu0 0.0
  %612 = vmatpush.msra.mxu0 0.0
  %613 = vmatpush.msra.mxu0 0.0
  %614 = vmatpush.msra.mxu0 0.0
  %615 = vmatpush.msra.mxu0 0.0
  %616 = vmatpush.msra.mxu0 0.0
  %617 = vmatpush.msra.mxu0 0.0
  %v618 = vand.u32 %v79, 4294901760
  %619 = vmatpush.msra.mxu0 %v618
  %v620 = vand.u32 %v73, 4294901760
  %621 = vmatpush.msra.mxu0 %v620
  %v622 = vand.u32 %v67, 4294901760
  %623 = vmatpush.msra.mxu0 %v622
  %v624 = vand.u32 %v61, 4294901760
  %625 = vmatpush.msra.mxu0 %v624
  %v626 = vand.u32 %v55, 4294901760
  %627 = vmatpush.msra.mxu0 %v626
  %v628 = vand.u32 %v49, 4294901760
  %629 = vmatpush.msra.mxu0 %v628
  %v630 = vand.u32 %v43, 4294901760
  %631 = vmatpush.msra.mxu0 %v630
  %v632 = vand.u32 %v37, 4294901760
  %633 = vmatpush.msra.mxu0 %v632
  %v634 = vand.u32 %v86, 4294901760
  %v635 = vsub.f32 %v86, %v634
  %v636 = vand.u32 %v635, 4294901760
  %637 = vmatmul.f32.gmra.mxu0 %v636
  %v638 = vpop.f32.mrf.mxu0
  %v639 = vadd.f32 %v593, %v638
  %v640 = vand.u32 %v89, 4294901760
  %v641 = vsub.f32 %v89, %v640
  %v642 = vand.u32 %v641, 4294901760
  %643 = vmatmul.f32.gmra.mxu0 %v642
  %v644 = vpop.f32.mrf.mxu0
  %v645 = vadd.f32 %v598, %v644
  %v646 = vand.u32 %v92, 4294901760
  %v647 = vsub.f32 %v92, %v646
  %v648 = vand.u32 %v647, 4294901760
  %649 = vmatmul.f32.gmra.mxu0 %v648
  %v650 = vpop.f32.mrf.mxu0
  %v651 = vadd.f32 %v603, %v650
  %v652 = vand.u32 %v95, 4294901760
  %v653 = vsub.f32 %v95, %v652
  %v654 = vand.u32 %v653, 4294901760
  %655 = vmatmul.f32.gmra.mxu0 %v654
  %v656 = vpop.f32.mrf.mxu0
  %v657 = vadd.f32 %v608, %v656
  %658 = vdwg.mxu0
  %659 = vmatpush.msra.mxu0 0.0
  %660 = vmatpush.msra.mxu0 0.0
  %661 = vmatpush.msra.mxu0 0.0
  %662 = vmatpush.msra.mxu0 0.0
  %663 = vmatpush.msra.mxu0 0.0
  %664 = vmatpush.msra.mxu0 0.0
  %665 = vmatpush.msra.mxu0 0.0
  %666 = vmatpush.msra.mxu0 0.0
  %v667 = vand.u32 %v79, 4294901760
  %v668 = vsub.f32 %v79, %v667
  %v669 = vand.u32 %v668, 4294901760
  %670 = vmatpush.msra.mxu0 %v669
  %v671 = vand.u32 %v73, 4294901760
  %v672 = vsub.f32 %v73, %v671
  %v673 = vand.u32 %v672, 4294901760
  %674 = vmatpush.msra.mxu0 %v673
  %v675 = vand.u32 %v67, 4294901760
  %v676 = vsub.f32 %v67, %v675
  %v677 = vand.u32 %v676, 4294901760
  %678 = vmatpush.msra.mxu0 %v677
  %v679 = vand.u32 %v61, 4294901760
  %v680 = vsub.f32 %v61, %v679
  %v681 = vand.u32 %v680, 4294901760
  %682 = vmatpush.msra.mxu0 %v681
  %v683 = vand.u32 %v55, 4294901760
  %v684 = vsub.f32 %v55, %v683
  %v685 = vand.u32 %v684, 4294901760
  %686 = vmatpush.msra.mxu0 %v685
  %v687 = vand.u32 %v49, 4294901760
  %v688 = vsub.f32 %v49, %v687
  %v689 = vand.u32 %v688, 4294901760
  %690 = vmatpush.msra.mxu0 %v689
  %v691 = vand.u32 %v43, 4294901760
  %v692 = vsub.f32 %v43, %v691
  %v693 = vand.u32 %v692, 4294901760
  %694 = vmatpush.msra.mxu0 %v693
  %v695 = vand.u32 %v37, 4294901760
  %v696 = vsub.f32 %v37, %v695
  %v697 = vand.u32 %v696, 4294901760
  %698 = vmatpush.msra.mxu0 %v697
  %v699 = vand.u32 %v86, 4294901760
  %700 = vmatmul.f32.gmra.mxu0 %v699
  %v701 = vpop.f32.mrf.mxu0
  %v702 = vadd.f32 %v639, %v701
  %v703 = vand.u32 %v89, 4294901760
  %704 = vmatmul.f32.gmra.mxu0 %v703
  %v705 = vpop.f32.mrf.mxu0
  %v706 = vadd.f32 %v645, %v705
  %v707 = vand.u32 %v92, 4294901760
  %708 = vmatmul.f32.gmra.mxu0 %v707
  %v709 = vpop.f32.mrf.mxu0
  %v710 = vadd.f32 %v651, %v709
  %v711 = vand.u32 %v95, 4294901760
  %712 = vmatmul.f32.gmra.mxu0 %v711
  %v713 = vpop.f32.mrf.mxu0
  %v714 = vadd.f32 %v657, %v713
  %715 = vdwg.mxu0
  %716 = vmatpush.msra.mxu0 0.0
  %717 = vmatpush.msra.mxu0 0.0
  %718 = vmatpush.msra.mxu0 0.0
  %719 = vmatpush.msra.mxu0 0.0
  %720 = vmatpush.msra.mxu0 0.0
  %721 = vmatpush.msra.mxu0 0.0
  %722 = vmatpush.msra.mxu0 0.0
  %723 = vmatpush.msra.mxu0 0.0
  %v724 = vand.u32 %v79, 4294901760
  %725 = vmatpush.msra.mxu0 %v724
  %v726 = vand.u32 %v73, 4294901760
  %727 = vmatpush.msra.mxu0 %v726
  %v728 = vand.u32 %v67, 4294901760
  %729 = vmatpush.msra.mxu0 %v728
  %v730 = vand.u32 %v61, 4294901760
  %731 = vmatpush.msra.mxu0 %v730
  %v732 = vand.u32 %v55, 4294901760
  %733 = vmatpush.msra.mxu0 %v732
  %v734 = vand.u32 %v49, 4294901760
  %735 = vmatpush.msra.mxu0 %v734
  %v736 = vand.u32 %v43, 4294901760
  %737 = vmatpush.msra.mxu0 %v736
  %v738 = vand.u32 %v37, 4294901760
  %739 = vmatpush.msra.mxu0 %v738
  %v740 = vand.u32 %v86, 4294901760
  %741 = vmatmul.f32.gmra.mxu0 %v740
  %v742 = vpop.f32.mrf.mxu0
  %v743 = vadd.f32 %v702, %v742
  %v744 = vand.u32 %v89, 4294901760
  %745 = vmatmul.f32.gmra.mxu0 %v744
  %v746 = vpop.f32.mrf.mxu0
  %v747 = vadd.f32 %v706, %v746
  %v748 = vand.u32 %v92, 4294901760
  %749 = vmatmul.f32.gmra.mxu0 %v748
  %v750 = vpop.f32.mrf.mxu0
  %v751 = vadd.f32 %v710, %v750
  %v752 = vand.u32 %v95, 4294901760
  %753 = vmatmul.f32.gmra.mxu0 %v752
  %v754 = vpop.f32.mrf.mxu0
  %v755 = vadd.f32 %v714, %v754
  %756 = vdwg.mxu0
  %757 = vmatpush.msra.mxu0 0.0
  %758 = vmatpush.msra.mxu0 0.0
  %759 = vmatpush.msra.mxu0 0.0
  %760 = vmatpush.msra.mxu0 0.0
  %761 = vmatpush.msra.mxu0 0.0
  %762 = vmatpush.msra.mxu0 0.0
  %763 = vmatpush.msra.mxu0 0.0
  %764 = vmatpush.msra.mxu0 0.0
  %v765 = vand.u32 %v80, 4294901760
  %766 = vmatpush.msra.mxu0 %v765
  %v767 = vand.u32 %v74, 4294901760
  %768 = vmatpush.msra.mxu0 %v767
  %v769 = vand.u32 %v68, 4294901760
  %770 = vmatpush.msra.mxu0 %v769
  %v771 = vand.u32 %v62, 4294901760
  %772 = vmatpush.msra.mxu0 %v771
  %v773 = vand.u32 %v56, 4294901760
  %774 = vmatpush.msra.mxu0 %v773
  %v775 = vand.u32 %v50, 4294901760
  %776 = vmatpush.msra.mxu0 %v775
  %v777 = vand.u32 %v44, 4294901760
  %778 = vmatpush.msra.mxu0 %v777
  %v779 = vand.u32 %v38, 4294901760
  %780 = vmatpush.msra.mxu0 %v779
  %v781 = vand.u32 %v86, 4294901760
  %v782 = vsub.f32 %v86, %v781
  %v783 = vand.u32 %v782, 4294901760
  %v784 = vsub.f32 %v782, %v783
  %v785 = vand.u32 %v784, 4294901760
  %786 = vmatmul.f32.gmra.mxu0 %v785
  %v787 = vpop.f32.mrf.mxu0
  %v788 = vadd.f32 0.0, %v787
  %v789 = vand.u32 %v89, 4294901760
  %v790 = vsub.f32 %v89, %v789
  %v791 = vand.u32 %v790, 4294901760
  %v792 = vsub.f32 %v790, %v791
  %v793 = vand.u32 %v792, 4294901760
  %794 = vmatmul.f32.gmra.mxu0 %v793
  %v795 = vpop.f32.mrf.mxu0
  %v796 = vadd.f32 0.0, %v795
  %v797 = vand.u32 %v92, 4294901760
  %v798 = vsub.f32 %v92, %v797
  %v799 = vand.u32 %v798, 4294901760
  %v800 = vsub.f32 %v798, %v799
  %v801 = vand.u32 %v800, 4294901760
  %802 = vmatmul.f32.gmra.mxu0 %v801
  %v803 = vpop.f32.mrf.mxu0
  %v804 = vadd.f32 0.0, %v803
  %v805 = vand.u32 %v95, 4294901760
  %v806 = vsub.f32 %v95, %v805
  %v807 = vand.u32 %v806, 4294901760
  %v808 = vsub.f32 %v806, %v807
  %v809 = vand.u32 %v808, 4294901760
  %810 = vmatmul.f32.gmra.mxu0 %v809
  %v811 = vpop.f32.mrf.mxu0
  %v812 = vadd.f32 0.0, %v811
  %813 = vdwg.mxu0
  %814 = vmatpush.msra.mxu0 0.0
  %815 = vmatpush.msra.mxu0 0.0
  %816 = vmatpush.msra.mxu0 0.0
  %817 = vmatpush.msra.mxu0 0.0
  %818 = vmatpush.msra.mxu0 0.0
  %819 = vmatpush.msra.mxu0 0.0
  %820 = vmatpush.msra.mxu0 0.0
  %821 = vmatpush.msra.mxu0 0.0
  %v822 = vand.u32 %v80, 4294901760
  %v823 = vsub.f32 %v80, %v822
  %v824 = vand.u32 %v823, 4294901760
  %v825 = vsub.f32 %v823, %v824
  %v826 = vand.u32 %v825, 4294901760
  %827 = vmatpush.msra.mxu0 %v826
  %v828 = vand.u32 %v74, 4294901760
  %v829 = vsub.f32 %v74, %v828
  %v830 = vand.u32 %v829, 4294901760
  %v831 = vsub.f32 %v829, %v830
  %v832 = vand.u32 %v831, 4294901760
  %833 = vmatpush.msra.mxu0 %v832
  %v834 = vand.u32 %v68, 4294901760
  %v835 = vsub.f32 %v68, %v834
  %v836 = vand.u32 %v835, 4294901760
  %v837 = vsub.f32 %v835, %v836
  %v838 = vand.u32 %v837, 4294901760
  %839 = vmatpush.msra.mxu0 %v838
  %v840 = vand.u32 %v62, 4294901760
  %v841 = vsub.f32 %v62, %v840
  %v842 = vand.u32 %v841, 4294901760
  %v843 = vsub.f32 %v841, %v842
  %v844 = vand.u32 %v843, 4294901760
  %845 = vmatpush.msra.mxu0 %v844
  %v846 = vand.u32 %v56, 4294901760
  %v847 = vsub.f32 %v56, %v846
  %v848 = vand.u32 %v847, 4294901760
  %v849 = vsub.f32 %v847, %v848
  %v850 = vand.u32 %v849, 4294901760
  %851 = vmatpush.msra.mxu0 %v850
  %v852 = vand.u32 %v50, 4294901760
  %v853 = vsub.f32 %v50, %v852
  %v854 = vand.u32 %v853, 4294901760
  %v855 = vsub.f32 %v853, %v854
  %v856 = vand.u32 %v855, 4294901760
  %857 = vmatpush.msra.mxu0 %v856
  %v858 = vand.u32 %v44, 4294901760
  %v859 = vsub.f32 %v44, %v858
  %v860 = vand.u32 %v859, 4294901760
  %v861 = vsub.f32 %v859, %v860
  %v862 = vand.u32 %v861, 4294901760
  %863 = vmatpush.msra.mxu0 %v862
  %v864 = vand.u32 %v38, 4294901760
  %v865 = vsub.f32 %v38, %v864
  %v866 = vand.u32 %v865, 4294901760
  %v867 = vsub.f32 %v865, %v866
  %v868 = vand.u32 %v867, 4294901760
  %869 = vmatpush.msra.mxu0 %v868
  %v870 = vand.u32 %v86, 4294901760
  %871 = vmatmul.f32.gmra.mxu0 %v870
  %v872 = vpop.f32.mrf.mxu0
  %v873 = vadd.f32 %v788, %v872
  %v874 = vand.u32 %v89, 4294901760
  %875 = vmatmul.f32.gmra.mxu0 %v874
  %v876 = vpop.f32.mrf.mxu0
  %v877 = vadd.f32 %v796, %v876
  %v878 = vand.u32 %v92, 4294901760
  %879 = vmatmul.f32.gmra.mxu0 %v878
  %v880 = vpop.f32.mrf.mxu0
  %v881 = vadd.f32 %v804, %v880
  %v882 = vand.u32 %v95, 4294901760
  %883 = vmatmul.f32.gmra.mxu0 %v882
  %v884 = vpop.f32.mrf.mxu0
  %v885 = vadd.f32 %v812, %v884
  %886 = vdwg.mxu0
  %887 = vmatpush.msra.mxu0 0.0
  %888 = vmatpush.msra.mxu0 0.0
  %889 = vmatpush.msra.mxu0 0.0
  %890 = vmatpush.msra.mxu0 0.0
  %891 = vmatpush.msra.mxu0 0.0
  %892 = vmatpush.msra.mxu0 0.0
  %893 = vmatpush.msra.mxu0 0.0
  %894 = vmatpush.msra.mxu0 0.0
  %v895 = vand.u32 %v80, 4294901760
  %v896 = vsub.f32 %v80, %v895
  %897 = vmatpush.msra.mxu0 %v896
  %v898 = vand.u32 %v74, 4294901760
  %v899 = vsub.f32 %v74, %v898
  %900 = vmatpush.msra.mxu0 %v899
  %v901 = vand.u32 %v68, 4294901760
  %v902 = vsub.f32 %v68, %v901
  %903 = vmatpush.msra.mxu0 %v902
  %v904 = vand.u32 %v62, 4294901760
  %v905 = vsub.f32 %v62, %v904
  %906 = vmatpush.msra.mxu0 %v905
  %v907 = vand.u32 %v56, 4294901760
  %v908 = vsub.f32 %v56, %v907
  %909 = vmatpush.msra.mxu0 %v908
  %v910 = vand.u32 %v50, 4294901760
  %v911 = vsub.f32 %v50, %v910
  %912 = vmatpush.msra.mxu0 %v911
  %v913 = vand.u32 %v44, 4294901760
  %v914 = vsub.f32 %v44, %v913
  %915 = vmatpush.msra.mxu0 %v914
  %v916 = vand.u32 %v38, 4294901760
  %v917 = vsub.f32 %v38, %v916
  %918 = vmatpush.msra.mxu0 %v917
  %v919 = vand.u32 %v86, 4294901760
  %v920 = vsub.f32 %v86, %v919
  %921 = vmatmul.f32.gmra.mxu0 %v920
  %v922 = vpop.f32.mrf.mxu0
  %v923 = vadd.f32 %v873, %v922
  %v924 = vand.u32 %v89, 4294901760
  %v925 = vsub.f32 %v89, %v924
  %926 = vmatmul.f32.gmra.mxu0 %v925
  %v927 = vpop.f32.mrf.mxu0
  %v928 = vadd.f32 %v877, %v927
  %v929 = vand.u32 %v92, 4294901760
  %v930 = vsub.f32 %v92, %v929
  %931 = vmatmul.f32.gmra.mxu0 %v930
  %v932 = vpop.f32.mrf.mxu0
  %v933 = vadd.f32 %v881, %v932
  %v934 = vand.u32 %v95, 4294901760
  %v935 = vsub.f32 %v95, %v934
  %936 = vmatmul.f32.gmra.mxu0 %v935
  %v937 = vpop.f32.mrf.mxu0
  %v938 = vadd.f32 %v885, %v937
  %939 = vdwg.mxu0
  %940 = vmatpush.msra.mxu0 0.0
  %941 = vmatpush.msra.mxu0 0.0
  %942 = vmatpush.msra.mxu0 0.0
  %943 = vmatpush.msra.mxu0 0.0
  %944 = vmatpush.msra.mxu0 0.0
  %945 = vmatpush.msra.mxu0 0.0
  %946 = vmatpush.msra.mxu0 0.0
  %947 = vmatpush.msra.mxu0 0.0
  %v948 = vand.u32 %v80, 4294901760
  %949 = vmatpush.msra.mxu0 %v948
  %v950 = vand.u32 %v74, 4294901760
  %951 = vmatpush.msra.mxu0 %v950
  %v952 = vand.u32 %v68, 4294901760
  %953 = vmatpush.msra.mxu0 %v952
  %v954 = vand.u32 %v62, 4294901760
  %955 = vmatpush.msra.mxu0 %v954
  %v956 = vand.u32 %v56, 4294901760
  %957 = vmatpush.msra.mxu0 %v956
  %v958 = vand.u32 %v50, 4294901760
  %959 = vmatpush.msra.mxu0 %v958
  %v960 = vand.u32 %v44, 4294901760
  %961 = vmatpush.msra.mxu0 %v960
  %v962 = vand.u32 %v38, 4294901760
  %963 = vmatpush.msra.mxu0 %v962
  %v964 = vand.u32 %v86, 4294901760
  %v965 = vsub.f32 %v86, %v964
  %v966 = vand.u32 %v965, 4294901760
  %967 = vmatmul.f32.gmra.mxu0 %v966
  %v968 = vpop.f32.mrf.mxu0
  %v969 = vadd.f32 %v923, %v968
  %v970 = vand.u32 %v89, 4294901760
  %v971 = vsub.f32 %v89, %v970
  %v972 = vand.u32 %v971, 4294901760
  %973 = vmatmul.f32.gmra.mxu0 %v972
  %v974 = vpop.f32.mrf.mxu0
  %v975 = vadd.f32 %v928, %v974
  %v976 = vand.u32 %v92, 4294901760
  %v977 = vsub.f32 %v92, %v976
  %v978 = vand.u32 %v977, 4294901760
  %979 = vmatmul.f32.gmra.mxu0 %v978
  %v980 = vpop.f32.mrf.mxu0
  %v981 = vadd.f32 %v933, %v980
  %v982 = vand.u32 %v95, 4294901760
  %v983 = vsub.f32 %v95, %v982
  %v984 = vand.u32 %v983, 4294901760
  %985 = vmatmul.f32.gmra.mxu0 %v984
  %v986 = vpop.f32.mrf.mxu0
  %v987 = vadd.f32 %v938, %v986
  %988 = vdwg.mxu0
  %989 = vmatpush.msra.mxu0 0.0
  %990 = vmatpush.msra.mxu0 0.0
  %991 = vmatpush.msra.mxu0 0.0
  %992 = vmatpush.msra.mxu0 0.0
  %993 = vmatpush.msra.mxu0 0.0
  %994 = vmatpush.msra.mxu0 0.0
  %995 = vmatpush.msra.mxu0 0.0
  %996 = vmatpush.msra.mxu0 0.0
  %v997 = vand.u32 %v80, 4294901760
  %v998 = vsub.f32 %v80, %v997
  %v999 = vand.u32 %v998, 4294901760
  %1000 = vmatpush.msra.mxu0 %v999
  %v1001 = vand.u32 %v74, 4294901760
  %v1002 = vsub.f32 %v74, %v1001
  %v1003 = vand.u32 %v1002, 4294901760
  %1004 = vmatpush.msra.mxu0 %v1003
  %v1005 = vand.u32 %v68, 4294901760
  %v1006 = vsub.f32 %v68, %v1005
  %v1007 = vand.u32 %v1006, 4294901760
  %1008 = vmatpush.msra.mxu0 %v1007
  %v1009 = vand.u32 %v62, 4294901760
  %v1010 = vsub.f32 %v62, %v1009
  %v1011 = vand.u32 %v1010, 4294901760
  %1012 = vmatpush.msra.mxu0 %v1011
  %v1013 = vand.u32 %v56, 4294901760
  %v1014 = vsub.f32 %v56, %v1013
  %v1015 = vand.u32 %v1014, 4294901760
  %1016 = vmatpush.msra.mxu0 %v1015
  %v1017 = vand.u32 %v50, 4294901760
  %v1018 = vsub.f32 %v50, %v1017
  %v1019 = vand.u32 %v1018, 4294901760
  %1020 = vmatpush.msra.mxu0 %v1019
  %v1021 = vand.u32 %v44, 4294901760
  %v1022 = vsub.f32 %v44, %v1021
  %v1023 = vand.u32 %v1022, 4294901760
  %1024 = vmatpush.msra.mxu0 %v1023
  %v1025 = vand.u32 %v38, 4294901760
  %v1026 = vsub.f32 %v38, %v1025
  %v1027 = vand.u32 %v1026, 4294901760
  %1028 = vmatpush.msra.mxu0 %v1027
  %v1029 = vand.u32 %v86, 4294901760
  %1030 = vmatmul.f32.gmra.mxu0 %v1029
  %v1031 = vpop.f32.mrf.mxu0
  %v1032 = vadd.f32 %v969, %v1031
  %v1033 = vand.u32 %v89, 4294901760
  %1034 = vmatmul.f32.gmra.mxu0 %v1033
  %v1035 = vpop.f32.mrf.mxu0
  %v1036 = vadd.f32 %v975, %v1035
  %v1037 = vand.u32 %v92, 4294901760
  %1038 = vmatmul.f32.gmra.mxu0 %v1037
  %v1039 = vpop.f32.mrf.mxu0
  %v1040 = vadd.f32 %v981, %v1039
  %v1041 = vand.u32 %v95, 4294901760
  %1042 = vmatmul.f32.gmra.mxu0 %v1041
  %v1043 = vpop.f32.mrf.mxu0
  %v1044 = vadd.f32 %v987, %v1043
  %1045 = vdwg.mxu0
  %1046 = vmatpush.msra.mxu0 0.0
  %1047 = vmatpush.msra.mxu0 0.0
  %1048 = vmatpush.msra.mxu0 0.0
  %1049 = vmatpush.msra.mxu0 0.0
  %1050 = vmatpush.msra.mxu0 0.0
  %1051 = vmatpush.msra.mxu0 0.0
  %1052 = vmatpush.msra.mxu0 0.0
  %1053 = vmatpush.msra.mxu0 0.0
  %v1054 = vand.u32 %v80, 4294901760
  %1055 = vmatpush.msra.mxu0 %v1054
  %v1056 = vand.u32 %v74, 4294901760
  %1057 = vmatpush.msra.mxu0 %v1056
  %v1058 = vand.u32 %v68, 4294901760
  %1059 = vmatpush.msra.mxu0 %v1058
  %v1060 = vand.u32 %v62, 4294901760
  %1061 = vmatpush.msra.mxu0 %v1060
  %v1062 = vand.u32 %v56, 4294901760
  %1063 = vmatpush.msra.mxu0 %v1062
  %v1064 = vand.u32 %v50, 4294901760
  %1065 = vmatpush.msra.mxu0 %v1064
  %v1066 = vand.u32 %v44, 4294901760
  %1067 = vmatpush.msra.mxu0 %v1066
  %v1068 = vand.u32 %v38, 4294901760
  %1069 = vmatpush.msra.mxu0 %v1068
  %v1070 = vand.u32 %v86, 4294901760
  %1071 = vmatmul.f32.gmra.mxu0 %v1070
  %v1072 = vpop.f32.mrf.mxu0
  %v1073 = vadd.f32 %v1032, %v1072
  %v1074 = vand.u32 %v89, 4294901760
  %1075 = vmatmul.f32.gmra.mxu0 %v1074
  %v1076 = vpop.f32.mrf.mxu0
  %v1077 = vadd.f32 %v1036, %v1076
  %v1078 = vand.u32 %v92, 4294901760
  %1079 = vmatmul.f32.gmra.mxu0 %v1078
  %v1080 = vpop.f32.mrf.mxu0
  %v1081 = vadd.f32 %v1040, %v1080
  %v1082 = vand.u32 %v95, 4294901760
  %1083 = vmatmul.f32.gmra.mxu0 %v1082
  %v1084 = vpop.f32.mrf.mxu0
  %v1085 = vadd.f32 %v1044, %v1084
  %1086 = vdwg.mxu0
  %1087 = vmatpush.msra.mxu0 0.0
  %1088 = vmatpush.msra.mxu0 0.0
  %1089 = vmatpush.msra.mxu0 0.0
  %1090 = vmatpush.msra.mxu0 0.0
  %1091 = vmatpush.msra.mxu0 0.0
  %1092 = vmatpush.msra.mxu0 0.0
  %1093 = vmatpush.msra.mxu0 0.0
  %1094 = vmatpush.msra.mxu0 0.0
  %v1095 = vand.u32 %v81, 4294901760
  %1096 = vmatpush.msra.mxu0 %v1095
  %v1097 = vand.u32 %v75, 4294901760
  %1098 = vmatpush.msra.mxu0 %v1097
  %v1099 = vand.u32 %v69, 4294901760
  %1100 = vmatpush.msra.mxu0 %v1099
  %v1101 = vand.u32 %v63, 4294901760
  %1102 = vmatpush.msra.mxu0 %v1101
  %v1103 = vand.u32 %v57, 4294901760
  %1104 = vmatpush.msra.mxu0 %v1103
  %v1105 = vand.u32 %v51, 4294901760
  %1106 = vmatpush.msra.mxu0 %v1105
  %v1107 = vand.u32 %v45, 4294901760
  %1108 = vmatpush.msra.mxu0 %v1107
  %v1109 = vand.u32 %v39, 4294901760
  %1110 = vmatpush.msra.mxu0 %v1109
  %v1111 = vand.u32 %v86, 4294901760
  %v1112 = vsub.f32 %v86, %v1111
  %v1113 = vand.u32 %v1112, 4294901760
  %v1114 = vsub.f32 %v1112, %v1113
  %v1115 = vand.u32 %v1114, 4294901760
  %1116 = vmatmul.f32.gmra.mxu0 %v1115
  %v1117 = vpop.f32.mrf.mxu0
  %v1118 = vadd.f32 0.0, %v1117
  %v1119 = vand.u32 %v89, 4294901760
  %v1120 = vsub.f32 %v89, %v1119
  %v1121 = vand.u32 %v1120, 4294901760
  %v1122 = vsub.f32 %v1120, %v1121
  %v1123 = vand.u32 %v1122, 4294901760
  %1124 = vmatmul.f32.gmra.mxu0 %v1123
  %v1125 = vpop.f32.mrf.mxu0
  %v1126 = vadd.f32 0.0, %v1125
  %v1127 = vand.u32 %v92, 4294901760
  %v1128 = vsub.f32 %v92, %v1127
  %v1129 = vand.u32 %v1128, 4294901760
  %v1130 = vsub.f32 %v1128, %v1129
  %v1131 = vand.u32 %v1130, 4294901760
  %1132 = vmatmul.f32.gmra.mxu0 %v1131
  %v1133 = vpop.f32.mrf.mxu0
  %v1134 = vadd.f32 0.0, %v1133
  %v1135 = vand.u32 %v95, 4294901760
  %v1136 = vsub.f32 %v95, %v1135
  %v1137 = vand.u32 %v1136, 4294901760
  %v1138 = vsub.f32 %v1136, %v1137
  %v1139 = vand.u32 %v1138, 4294901760
  %1140 = vmatmul.f32.gmra.mxu0 %v1139
  %v1141 = vpop.f32.mrf.mxu0
  %v1142 = vadd.f32 0.0, %v1141
  %1143 = vdwg.mxu0
  %1144 = vmatpush.msra.mxu0 0.0
  %1145 = vmatpush.msra.mxu0 0.0
  %1146 = vmatpush.msra.mxu0 0.0
  %1147 = vmatpush.msra.mxu0 0.0
  %1148 = vmatpush.msra.mxu0 0.0
  %1149 = vmatpush.msra.mxu0 0.0
  %1150 = vmatpush.msra.mxu0 0.0
  %1151 = vmatpush.msra.mxu0 0.0
  %v1152 = vand.u32 %v81, 4294901760
  %v1153 = vsub.f32 %v81, %v1152
  %v1154 = vand.u32 %v1153, 4294901760
  %v1155 = vsub.f32 %v1153, %v1154
  %v1156 = vand.u32 %v1155, 4294901760
  %1157 = vmatpush.msra.mxu0 %v1156
  %v1158 = vand.u32 %v75, 4294901760
  %v1159 = vsub.f32 %v75, %v1158
  %v1160 = vand.u32 %v1159, 4294901760
  %v1161 = vsub.f32 %v1159, %v1160
  %v1162 = vand.u32 %v1161, 4294901760
  %1163 = vmatpush.msra.mxu0 %v1162
  %v1164 = vand.u32 %v69, 4294901760
  %v1165 = vsub.f32 %v69, %v1164
  %v1166 = vand.u32 %v1165, 4294901760
  %v1167 = vsub.f32 %v1165, %v1166
  %v1168 = vand.u32 %v1167, 4294901760
  %1169 = vmatpush.msra.mxu0 %v1168
  %v1170 = vand.u32 %v63, 4294901760
  %v1171 = vsub.f32 %v63, %v1170
  %v1172 = vand.u32 %v1171, 4294901760
  %v1173 = vsub.f32 %v1171, %v1172
  %v1174 = vand.u32 %v1173, 4294901760
  %1175 = vmatpush.msra.mxu0 %v1174
  %v1176 = vand.u32 %v57, 4294901760
  %v1177 = vsub.f32 %v57, %v1176
  %v1178 = vand.u32 %v1177, 4294901760
  %v1179 = vsub.f32 %v1177, %v1178
  %v1180 = vand.u32 %v1179, 4294901760
  %1181 = vmatpush.msra.mxu0 %v1180
  %v1182 = vand.u32 %v51, 4294901760
  %v1183 = vsub.f32 %v51, %v1182
  %v1184 = vand.u32 %v1183, 4294901760
  %v1185 = vsub.f32 %v1183, %v1184
  %v1186 = vand.u32 %v1185, 4294901760
  %1187 = vmatpush.msra.mxu0 %v1186
  %v1188 = vand.u32 %v45, 4294901760
  %v1189 = vsub.f32 %v45, %v1188
  %v1190 = vand.u32 %v1189, 4294901760
  %v1191 = vsub.f32 %v1189, %v1190
  %v1192 = vand.u32 %v1191, 4294901760
  %1193 = vmatpush.msra.mxu0 %v1192
  %v1194 = vand.u32 %v39, 4294901760
  %v1195 = vsub.f32 %v39, %v1194
  %v1196 = vand.u32 %v1195, 4294901760
  %v1197 = vsub.f32 %v1195, %v1196
  %v1198 = vand.u32 %v1197, 4294901760
  %1199 = vmatpush.msra.mxu0 %v1198
  %v1200 = vand.u32 %v86, 4294901760
  %1201 = vmatmul.f32.gmra.mxu0 %v1200
  %v1202 = vpop.f32.mrf.mxu0
  %v1203 = vadd.f32 %v1118, %v1202
  %v1204 = vand.u32 %v89, 4294901760
  %1205 = vmatmul.f32.gmra.mxu0 %v1204
  %v1206 = vpop.f32.mrf.mxu0
  %v1207 = vadd.f32 %v1126, %v1206
  %v1208 = vand.u32 %v92, 4294901760
  %1209 = vmatmul.f32.gmra.mxu0 %v1208
  %v1210 = vpop.f32.mrf.mxu0
  %v1211 = vadd.f32 %v1134, %v1210
  %v1212 = vand.u32 %v95, 4294901760
  %1213 = vmatmul.f32.gmra.mxu0 %v1212
  %v1214 = vpop.f32.mrf.mxu0
  %v1215 = vadd.f32 %v1142, %v1214
  %1216 = vdwg.mxu0
  %1217 = vmatpush.msra.mxu0 0.0
  %1218 = vmatpush.msra.mxu0 0.0
  %1219 = vmatpush.msra.mxu0 0.0
  %1220 = vmatpush.msra.mxu0 0.0
  %1221 = vmatpush.msra.mxu0 0.0
  %1222 = vmatpush.msra.mxu0 0.0
  %1223 = vmatpush.msra.mxu0 0.0
  %1224 = vmatpush.msra.mxu0 0.0
  %v1225 = vand.u32 %v81, 4294901760
  %v1226 = vsub.f32 %v81, %v1225
  %1227 = vmatpush.msra.mxu0 %v1226
  %v1228 = vand.u32 %v75, 4294901760
  %v1229 = vsub.f32 %v75, %v1228
  %1230 = vmatpush.msra.mxu0 %v1229
  %v1231 = vand.u32 %v69, 4294901760
  %v1232 = vsub.f32 %v69, %v1231
  %1233 = vmatpush.msra.mxu0 %v1232
  %v1234 = vand.u32 %v63, 4294901760
  %v1235 = vsub.f32 %v63, %v1234
  %1236 = vmatpush.msra.mxu0 %v1235
  %v1237 = vand.u32 %v57, 4294901760
  %v1238 = vsub.f32 %v57, %v1237
  %1239 = vmatpush.msra.mxu0 %v1238
  %v1240 = vand.u32 %v51, 4294901760
  %v1241 = vsub.f32 %v51, %v1240
  %1242 = vmatpush.msra.mxu0 %v1241
  %v1243 = vand.u32 %v45, 4294901760
  %v1244 = vsub.f32 %v45, %v1243
  %1245 = vmatpush.msra.mxu0 %v1244
  %v1246 = vand.u32 %v39, 4294901760
  %v1247 = vsub.f32 %v39, %v1246
  %1248 = vmatpush.msra.mxu0 %v1247
  %v1249 = vand.u32 %v86, 4294901760
  %v1250 = vsub.f32 %v86, %v1249
  %1251 = vmatmul.f32.gmra.mxu0 %v1250
  %v1252 = vpop.f32.mrf.mxu0
  %v1253 = vadd.f32 %v1203, %v1252
  %v1254 = vand.u32 %v89, 4294901760
  %v1255 = vsub.f32 %v89, %v1254
  %1256 = vmatmul.f32.gmra.mxu0 %v1255
  %v1257 = vpop.f32.mrf.mxu0
  %v1258 = vadd.f32 %v1207, %v1257
  %v1259 = vand.u32 %v92, 4294901760
  %v1260 = vsub.f32 %v92, %v1259
  %1261 = vmatmul.f32.gmra.mxu0 %v1260
  %v1262 = vpop.f32.mrf.mxu0
  %v1263 = vadd.f32 %v1211, %v1262
  %v1264 = vand.u32 %v95, 4294901760
  %v1265 = vsub.f32 %v95, %v1264
  %1266 = vmatmul.f32.gmra.mxu0 %v1265
  %v1267 = vpop.f32.mrf.mxu0
  %v1268 = vadd.f32 %v1215, %v1267
  %1269 = vdwg.mxu0
  %1270 = vmatpush.msra.mxu0 0.0
  %1271 = vmatpush.msra.mxu0 0.0
  %1272 = vmatpush.msra.mxu0 0.0
  %1273 = vmatpush.msra.mxu0 0.0
  %1274 = vmatpush.msra.mxu0 0.0
  %1275 = vmatpush.msra.mxu0 0.0
  %1276 = vmatpush.msra.mxu0 0.0
  %1277 = vmatpush.msra.mxu0 0.0
  %v1278 = vand.u32 %v81, 4294901760
  %1279 = vmatpush.msra.mxu0 %v1278
  %v1280 = vand.u32 %v75, 4294901760
  %1281 = vmatpush.msra.mxu0 %v1280
  %v1282 = vand.u32 %v69, 4294901760
  %1283 = vmatpush.msra.mxu0 %v1282
  %v1284 = vand.u32 %v63, 4294901760
  %1285 = vmatpush.msra.mxu0 %v1284
  %v1286 = vand.u32 %v57, 4294901760
  %1287 = vmatpush.msra.mxu0 %v1286
  %v1288 = vand.u32 %v51, 4294901760
  %1289 = vmatpush.msra.mxu0 %v1288
  %v1290 = vand.u32 %v45, 4294901760
  %1291 = vmatpush.msra.mxu0 %v1290
  %v1292 = vand.u32 %v39, 4294901760
  %1293 = vmatpush.msra.mxu0 %v1292
  %v1294 = vand.u32 %v86, 4294901760
  %v1295 = vsub.f32 %v86, %v1294
  %v1296 = vand.u32 %v1295, 4294901760
  %1297 = vmatmul.f32.gmra.mxu0 %v1296
  %v1298 = vpop.f32.mrf.mxu0
  %v1299 = vadd.f32 %v1253, %v1298
  %v1300 = vand.u32 %v89, 4294901760
  %v1301 = vsub.f32 %v89, %v1300
  %v1302 = vand.u32 %v1301, 4294901760
  %1303 = vmatmul.f32.gmra.mxu0 %v1302
  %v1304 = vpop.f32.mrf.mxu0
  %v1305 = vadd.f32 %v1258, %v1304
  %v1306 = vand.u32 %v92, 4294901760
  %v1307 = vsub.f32 %v92, %v1306
  %v1308 = vand.u32 %v1307, 4294901760
  %1309 = vmatmul.f32.gmra.mxu0 %v1308
  %v1310 = vpop.f32.mrf.mxu0
  %v1311 = vadd.f32 %v1263, %v1310
  %v1312 = vand.u32 %v95, 4294901760
  %v1313 = vsub.f32 %v95, %v1312
  %v1314 = vand.u32 %v1313, 4294901760
  %1315 = vmatmul.f32.gmra.mxu0 %v1314
  %v1316 = vpop.f32.mrf.mxu0
  %v1317 = vadd.f32 %v1268, %v1316
  %1318 = vdwg.mxu0
  %1319 = vmatpush.msra.mxu0 0.0
  %1320 = vmatpush.msra.mxu0 0.0
  %1321 = vmatpush.msra.mxu0 0.0
  %1322 = vmatpush.msra.mxu0 0.0
  %1323 = vmatpush.msra.mxu0 0.0
  %1324 = vmatpush.msra.mxu0 0.0
  %1325 = vmatpush.msra.mxu0 0.0
  %1326 = vmatpush.msra.mxu0 0.0
  %v1327 = vand.u32 %v81, 4294901760
  %v1328 = vsub.f32 %v81, %v1327
  %v1329 = vand.u32 %v1328, 4294901760
  %1330 = vmatpush.msra.mxu0 %v1329
  %v1331 = vand.u32 %v75, 4294901760
  %v1332 = vsub.f32 %v75, %v1331
  %v1333 = vand.u32 %v1332, 4294901760
  %1334 = vmatpush.msra.mxu0 %v1333
  %v1335 = vand.u32 %v69, 4294901760
  %v1336 = vsub.f32 %v69, %v1335
  %v1337 = vand.u32 %v1336, 4294901760
  %1338 = vmatpush.msra.mxu0 %v1337
  %v1339 = vand.u32 %v63, 4294901760
  %v1340 = vsub.f32 %v63, %v1339
  %v1341 = vand.u32 %v1340, 4294901760
  %1342 = vmatpush.msra.mxu0 %v1341
  %v1343 = vand.u32 %v57, 4294901760
  %v1344 = vsub.f32 %v57, %v1343
  %v1345 = vand.u32 %v1344, 4294901760
  %1346 = vmatpush.msra.mxu0 %v1345
  %v1347 = vand.u32 %v51, 4294901760
  %v1348 = vsub.f32 %v51, %v1347
  %v1349 = vand.u32 %v1348, 4294901760
  %1350 = vmatpush.msra.mxu0 %v1349
  %v1351 = vand.u32 %v45, 4294901760
  %v1352 = vsub.f32 %v45, %v1351
  %v1353 = vand.u32 %v1352, 4294901760
  %1354 = vmatpush.msra.mxu0 %v1353
  %v1355 = vand.u32 %v39, 4294901760
  %v1356 = vsub.f32 %v39, %v1355
  %v1357 = vand.u32 %v1356, 4294901760
  %1358 = vmatpush.msra.mxu0 %v1357
  %v1359 = vand.u32 %v86, 4294901760
  %1360 = vmatmul.f32.gmra.mxu0 %v1359
  %v1361 = vpop.f32.mrf.mxu0
  %v1362 = vadd.f32 %v1299, %v1361
  %v1363 = vand.u32 %v89, 4294901760
  %1364 = vmatmul.f32.gmra.mxu0 %v1363
  %v1365 = vpop.f32.mrf.mxu0
  %v1366 = vadd.f32 %v1305, %v1365
  %v1367 = vand.u32 %v92, 4294901760
  %1368 = vmatmul.f32.gmra.mxu0 %v1367
  %v1369 = vpop.f32.mrf.mxu0
  %v1370 = vadd.f32 %v1311, %v1369
  %v1371 = vand.u32 %v95, 4294901760
  %1372 = vmatmul.f32.gmra.mxu0 %v1371
  %v1373 = vpop.f32.mrf.mxu0
  %v1374 = vadd.f32 %v1317, %v1373
  %1375 = vdwg.mxu0
  %1376 = vmatpush.msra.mxu0 0.0
  %1377 = vmatpush.msra.mxu0 0.0
  %1378 = vmatpush.msra.mxu0 0.0
  %1379 = vmatpush.msra.mxu0 0.0
  %1380 = vmatpush.msra.mxu0 0.0
  %1381 = vmatpush.msra.mxu0 0.0
  %1382 = vmatpush.msra.mxu0 0.0
  %1383 = vmatpush.msra.mxu0 0.0
  %v1384 = vand.u32 %v81, 4294901760
  %1385 = vmatpush.msra.mxu0 %v1384
  %v1386 = vand.u32 %v75, 4294901760
  %1387 = vmatpush.msra.mxu0 %v1386
  %v1388 = vand.u32 %v69, 4294901760
  %1389 = vmatpush.msra.mxu0 %v1388
  %v1390 = vand.u32 %v63, 4294901760
  %1391 = vmatpush.msra.mxu0 %v1390
  %v1392 = vand.u32 %v57, 4294901760
  %1393 = vmatpush.msra.mxu0 %v1392
  %v1394 = vand.u32 %v51, 4294901760
  %1395 = vmatpush.msra.mxu0 %v1394
  %v1396 = vand.u32 %v45, 4294901760
  %1397 = vmatpush.msra.mxu0 %v1396
  %v1398 = vand.u32 %v39, 4294901760
  %1399 = vmatpush.msra.mxu0 %v1398
  %v1400 = vand.u32 %v86, 4294901760
  %1401 = vmatmul.f32.gmra.mxu0 %v1400
  %v1402 = vpop.f32.mrf.mxu0
  %v1403 = vadd.f32 %v1362, %v1402
  %v1404 = vand.u32 %v89, 4294901760
  %1405 = vmatmul.f32.gmra.mxu0 %v1404
  %v1406 = vpop.f32.mrf.mxu0
  %v1407 = vadd.f32 %v1366, %v1406
  %v1408 = vand.u32 %v92, 4294901760
  %1409 = vmatmul.f32.gmra.mxu0 %v1408
  %v1410 = vpop.f32.mrf.mxu0
  %v1411 = vadd.f32 %v1370, %v1410
  %v1412 = vand.u32 %v95, 4294901760
  %1413 = vmatmul.f32.gmra.mxu0 %v1412
  %v1414 = vpop.f32.mrf.mxu0
  %v1415 = vadd.f32 %v1374, %v1414
  %1416 = vdwg.mxu0
  %1417 = vmatpush.msra.mxu0 0.0
  %1418 = vmatpush.msra.mxu0 0.0
  %1419 = vmatpush.msra.mxu0 0.0
  %1420 = vmatpush.msra.mxu0 0.0
  %1421 = vmatpush.msra.mxu0 0.0
  %1422 = vmatpush.msra.mxu0 0.0
  %1423 = vmatpush.msra.mxu0 0.0
  %1424 = vmatpush.msra.mxu0 0.0
  %v1425 = vand.u32 %v82, 4294901760
  %1426 = vmatpush.msra.mxu0 %v1425
  %v1427 = vand.u32 %v76, 4294901760
  %1428 = vmatpush.msra.mxu0 %v1427
  %v1429 = vand.u32 %v70, 4294901760
  %1430 = vmatpush.msra.mxu0 %v1429
  %v1431 = vand.u32 %v64, 4294901760
  %1432 = vmatpush.msra.mxu0 %v1431
  %v1433 = vand.u32 %v58, 4294901760
  %1434 = vmatpush.msra.mxu0 %v1433
  %v1435 = vand.u32 %v52, 4294901760
  %1436 = vmatpush.msra.mxu0 %v1435
  %v1437 = vand.u32 %v46, 4294901760
  %1438 = vmatpush.msra.mxu0 %v1437
  %v1439 = vand.u32 %v40, 4294901760
  %1440 = vmatpush.msra.mxu0 %v1439
  %v1441 = vand.u32 %v86, 4294901760
  %v1442 = vsub.f32 %v86, %v1441
  %v1443 = vand.u32 %v1442, 4294901760
  %v1444 = vsub.f32 %v1442, %v1443
  %v1445 = vand.u32 %v1444, 4294901760
  %1446 = vmatmul.f32.gmra.mxu0 %v1445
  %v1447 = vpop.f32.mrf.mxu0
  %v1448 = vadd.f32 0.0, %v1447
  %v1449 = vand.u32 %v89, 4294901760
  %v1450 = vsub.f32 %v89, %v1449
  %v1451 = vand.u32 %v1450, 4294901760
  %v1452 = vsub.f32 %v1450, %v1451
  %v1453 = vand.u32 %v1452, 4294901760
  %1454 = vmatmul.f32.gmra.mxu0 %v1453
  %v1455 = vpop.f32.mrf.mxu0
  %v1456 = vadd.f32 0.0, %v1455
  %v1457 = vand.u32 %v92, 4294901760
  %v1458 = vsub.f32 %v92, %v1457
  %v1459 = vand.u32 %v1458, 4294901760
  %v1460 = vsub.f32 %v1458, %v1459
  %v1461 = vand.u32 %v1460, 4294901760
  %1462 = vmatmul.f32.gmra.mxu0 %v1461
  %v1463 = vpop.f32.mrf.mxu0
  %v1464 = vadd.f32 0.0, %v1463
  %v1465 = vand.u32 %v95, 4294901760
  %v1466 = vsub.f32 %v95, %v1465
  %v1467 = vand.u32 %v1466, 4294901760
  %v1468 = vsub.f32 %v1466, %v1467
  %v1469 = vand.u32 %v1468, 4294901760
  %1470 = vmatmul.f32.gmra.mxu0 %v1469
  %v1471 = vpop.f32.mrf.mxu0
  %v1472 = vadd.f32 0.0, %v1471
  %1473 = vdwg.mxu0
  %1474 = vmatpush.msra.mxu0 0.0
  %1475 = vmatpush.msra.mxu0 0.0
  %1476 = vmatpush.msra.mxu0 0.0
  %1477 = vmatpush.msra.mxu0 0.0
  %1478 = vmatpush.msra.mxu0 0.0
  %1479 = vmatpush.msra.mxu0 0.0
  %1480 = vmatpush.msra.mxu0 0.0
  %1481 = vmatpush.msra.mxu0 0.0
  %v1482 = vand.u32 %v82, 4294901760
  %v1483 = vsub.f32 %v82, %v1482
  %v1484 = vand.u32 %v1483, 4294901760
  %v1485 = vsub.f32 %v1483, %v1484
  %v1486 = vand.u32 %v1485, 4294901760
  %1487 = vmatpush.msra.mxu0 %v1486
  %v1488 = vand.u32 %v76, 4294901760
  %v1489 = vsub.f32 %v76, %v1488
  %v1490 = vand.u32 %v1489, 4294901760
  %v1491 = vsub.f32 %v1489, %v1490
  %v1492 = vand.u32 %v1491, 4294901760
  %1493 = vmatpush.msra.mxu0 %v1492
  %v1494 = vand.u32 %v70, 4294901760
  %v1495 = vsub.f32 %v70, %v1494
  %v1496 = vand.u32 %v1495, 4294901760
  %v1497 = vsub.f32 %v1495, %v1496
  %v1498 = vand.u32 %v1497, 4294901760
  %1499 = vmatpush.msra.mxu0 %v1498
  %v1500 = vand.u32 %v64, 4294901760
  %v1501 = vsub.f32 %v64, %v1500
  %v1502 = vand.u32 %v1501, 4294901760
  %v1503 = vsub.f32 %v1501, %v1502
  %v1504 = vand.u32 %v1503, 4294901760
  %1505 = vmatpush.msra.mxu0 %v1504
  %v1506 = vand.u32 %v58, 4294901760
  %v1507 = vsub.f32 %v58, %v1506
  %v1508 = vand.u32 %v1507, 4294901760
  %v1509 = vsub.f32 %v1507, %v1508
  %v1510 = vand.u32 %v1509, 4294901760
  %1511 = vmatpush.msra.mxu0 %v1510
  %v1512 = vand.u32 %v52, 4294901760
  %v1513 = vsub.f32 %v52, %v1512
  %v1514 = vand.u32 %v1513, 4294901760
  %v1515 = vsub.f32 %v1513, %v1514
  %v1516 = vand.u32 %v1515, 4294901760
  %1517 = vmatpush.msra.mxu0 %v1516
  %v1518 = vand.u32 %v46, 4294901760
  %v1519 = vsub.f32 %v46, %v1518
  %v1520 = vand.u32 %v1519, 4294901760
  %v1521 = vsub.f32 %v1519, %v1520
  %v1522 = vand.u32 %v1521, 4294901760
  %1523 = vmatpush.msra.mxu0 %v1522
  %v1524 = vand.u32 %v40, 4294901760
  %v1525 = vsub.f32 %v40, %v1524
  %v1526 = vand.u32 %v1525, 4294901760
  %v1527 = vsub.f32 %v1525, %v1526
  %v1528 = vand.u32 %v1527, 4294901760
  %1529 = vmatpush.msra.mxu0 %v1528
  %v1530 = vand.u32 %v86, 4294901760
  %1531 = vmatmul.f32.gmra.mxu0 %v1530
  %v1532 = vpop.f32.mrf.mxu0
  %v1533 = vadd.f32 %v1448, %v1532
  %v1534 = vand.u32 %v89, 4294901760
  %1535 = vmatmul.f32.gmra.mxu0 %v1534
  %v1536 = vpop.f32.mrf.mxu0
  %v1537 = vadd.f32 %v1456, %v1536
  %v1538 = vand.u32 %v92, 4294901760
  %1539 = vmatmul.f32.gmra.mxu0 %v1538
  %v1540 = vpop.f32.mrf.mxu0
  %v1541 = vadd.f32 %v1464, %v1540
  %v1542 = vand.u32 %v95, 4294901760
  %1543 = vmatmul.f32.gmra.mxu0 %v1542
  %v1544 = vpop.f32.mrf.mxu0
  %v1545 = vadd.f32 %v1472, %v1544
  %1546 = vdwg.mxu0
  %1547 = vmatpush.msra.mxu0 0.0
  %1548 = vmatpush.msra.mxu0 0.0
  %1549 = vmatpush.msra.mxu0 0.0
  %1550 = vmatpush.msra.mxu0 0.0
  %1551 = vmatpush.msra.mxu0 0.0
  %1552 = vmatpush.msra.mxu0 0.0
  %1553 = vmatpush.msra.mxu0 0.0
  %1554 = vmatpush.msra.mxu0 0.0
  %v1555 = vand.u32 %v82, 4294901760
  %v1556 = vsub.f32 %v82, %v1555
  %1557 = vmatpush.msra.mxu0 %v1556
  %v1558 = vand.u32 %v76, 4294901760
  %v1559 = vsub.f32 %v76, %v1558
  %1560 = vmatpush.msra.mxu0 %v1559
  %v1561 = vand.u32 %v70, 4294901760
  %v1562 = vsub.f32 %v70, %v1561
  %1563 = vmatpush.msra.mxu0 %v1562
  %v1564 = vand.u32 %v64, 4294901760
  %v1565 = vsub.f32 %v64, %v1564
  %1566 = vmatpush.msra.mxu0 %v1565
  %v1567 = vand.u32 %v58, 4294901760
  %v1568 = vsub.f32 %v58, %v1567
  %1569 = vmatpush.msra.mxu0 %v1568
  %v1570 = vand.u32 %v52, 4294901760
  %v1571 = vsub.f32 %v52, %v1570
  %1572 = vmatpush.msra.mxu0 %v1571
  %v1573 = vand.u32 %v46, 4294901760
  %v1574 = vsub.f32 %v46, %v1573
  %1575 = vmatpush.msra.mxu0 %v1574
  %v1576 = vand.u32 %v40, 4294901760
  %v1577 = vsub.f32 %v40, %v1576
  %1578 = vmatpush.msra.mxu0 %v1577
  %v1579 = vand.u32 %v86, 4294901760
  %v1580 = vsub.f32 %v86, %v1579
  %1581 = vmatmul.f32.gmra.mxu0 %v1580
  %v1582 = vpop.f32.mrf.mxu0
  %v1583 = vadd.f32 %v1533, %v1582
  %v1584 = vand.u32 %v89, 4294901760
  %v1585 = vsub.f32 %v89, %v1584
  %1586 = vmatmul.f32.gmra.mxu0 %v1585
  %v1587 = vpop.f32.mrf.mxu0
  %v1588 = vadd.f32 %v1537, %v1587
  %v1589 = vand.u32 %v92, 4294901760
  %v1590 = vsub.f32 %v92, %v1589
  %1591 = vmatmul.f32.gmra.mxu0 %v1590
  %v1592 = vpop.f32.mrf.mxu0
  %v1593 = vadd.f32 %v1541, %v1592
  %v1594 = vand.u32 %v95, 4294901760
  %v1595 = vsub.f32 %v95, %v1594
  %1596 = vmatmul.f32.gmra.mxu0 %v1595
  %v1597 = vpop.f32.mrf.mxu0
  %v1598 = vadd.f32 %v1545, %v1597
  %1599 = vdwg.mxu0
  %1600 = vmatpush.msra.mxu0 0.0
  %1601 = vmatpush.msra.mxu0 0.0
  %1602 = vmatpush.msra.mxu0 0.0
  %1603 = vmatpush.msra.mxu0 0.0
  %1604 = vmatpush.msra.mxu0 0.0
  %1605 = vmatpush.msra.mxu0 0.0
  %1606 = vmatpush.msra.mxu0 0.0
  %1607 = vmatpush.msra.mxu0 0.0
  %v1608 = vand.u32 %v82, 4294901760
  %1609 = vmatpush.msra.mxu0 %v1608
  %v1610 = vand.u32 %v76, 4294901760
  %1611 = vmatpush.msra.mxu0 %v1610
  %v1612 = vand.u32 %v70, 4294901760
  %1613 = vmatpush.msra.mxu0 %v1612
  %v1614 = vand.u32 %v64, 4294901760
  %1615 = vmatpush.msra.mxu0 %v1614
  %v1616 = vand.u32 %v58, 4294901760
  %1617 = vmatpush.msra.mxu0 %v1616
  %v1618 = vand.u32 %v52, 4294901760
  %1619 = vmatpush.msra.mxu0 %v1618
  %v1620 = vand.u32 %v46, 4294901760
  %1621 = vmatpush.msra.mxu0 %v1620
  %v1622 = vand.u32 %v40, 4294901760
  %1623 = vmatpush.msra.mxu0 %v1622
  %v1624 = vand.u32 %v86, 4294901760
  %v1625 = vsub.f32 %v86, %v1624
  %v1626 = vand.u32 %v1625, 4294901760
  %1627 = vmatmul.f32.gmra.mxu0 %v1626
  %v1628 = vpop.f32.mrf.mxu0
  %v1629 = vadd.f32 %v1583, %v1628
  %v1630 = vand.u32 %v89, 4294901760
  %v1631 = vsub.f32 %v89, %v1630
  %v1632 = vand.u32 %v1631, 4294901760
  %1633 = vmatmul.f32.gmra.mxu0 %v1632
  %v1634 = vpop.f32.mrf.mxu0
  %v1635 = vadd.f32 %v1588, %v1634
  %v1636 = vand.u32 %v92, 4294901760
  %v1637 = vsub.f32 %v92, %v1636
  %v1638 = vand.u32 %v1637, 4294901760
  %1639 = vmatmul.f32.gmra.mxu0 %v1638
  %v1640 = vpop.f32.mrf.mxu0
  %v1641 = vadd.f32 %v1593, %v1640
  %v1642 = vand.u32 %v95, 4294901760
  %v1643 = vsub.f32 %v95, %v1642
  %v1644 = vand.u32 %v1643, 4294901760
  %1645 = vmatmul.f32.gmra.mxu0 %v1644
  %v1646 = vpop.f32.mrf.mxu0
  %v1647 = vadd.f32 %v1598, %v1646
  %1648 = vdwg.mxu0
  %1649 = vmatpush.msra.mxu0 0.0
  %1650 = vmatpush.msra.mxu0 0.0
  %1651 = vmatpush.msra.mxu0 0.0
  %1652 = vmatpush.msra.mxu0 0.0
  %1653 = vmatpush.msra.mxu0 0.0
  %1654 = vmatpush.msra.mxu0 0.0
  %1655 = vmatpush.msra.mxu0 0.0
  %1656 = vmatpush.msra.mxu0 0.0
  %v1657 = vand.u32 %v82, 4294901760
  %v1658 = vsub.f32 %v82, %v1657
  %v1659 = vand.u32 %v1658, 4294901760
  %1660 = vmatpush.msra.mxu0 %v1659
  %v1661 = vand.u32 %v76, 4294901760
  %v1662 = vsub.f32 %v76, %v1661
  %v1663 = vand.u32 %v1662, 4294901760
  %1664 = vmatpush.msra.mxu0 %v1663
  %v1665 = vand.u32 %v70, 4294901760
  %v1666 = vsub.f32 %v70, %v1665
  %v1667 = vand.u32 %v1666, 4294901760
  %1668 = vmatpush.msra.mxu0 %v1667
  %v1669 = vand.u32 %v64, 4294901760
  %v1670 = vsub.f32 %v64, %v1669
  %v1671 = vand.u32 %v1670, 4294901760
  %1672 = vmatpush.msra.mxu0 %v1671
  %v1673 = vand.u32 %v58, 4294901760
  %v1674 = vsub.f32 %v58, %v1673
  %v1675 = vand.u32 %v1674, 4294901760
  %1676 = vmatpush.msra.mxu0 %v1675
  %v1677 = vand.u32 %v52, 4294901760
  %v1678 = vsub.f32 %v52, %v1677
  %v1679 = vand.u32 %v1678, 4294901760
  %1680 = vmatpush.msra.mxu0 %v1679
  %v1681 = vand.u32 %v46, 4294901760
  %v1682 = vsub.f32 %v46, %v1681
  %v1683 = vand.u32 %v1682, 4294901760
  %1684 = vmatpush.msra.mxu0 %v1683
  %v1685 = vand.u32 %v40, 4294901760
  %v1686 = vsub.f32 %v40, %v1685
  %v1687 = vand.u32 %v1686, 4294901760
  %1688 = vmatpush.msra.mxu0 %v1687
  %v1689 = vand.u32 %v86, 4294901760
  %1690 = vmatmul.f32.gmra.mxu0 %v1689
  %v1691 = vpop.f32.mrf.mxu0
  %v1692 = vadd.f32 %v1629, %v1691
  %v1693 = vand.u32 %v89, 4294901760
  %1694 = vmatmul.f32.gmra.mxu0 %v1693
  %v1695 = vpop.f32.mrf.mxu0
  %v1696 = vadd.f32 %v1635, %v1695
  %v1697 = vand.u32 %v92, 4294901760
  %1698 = vmatmul.f32.gmra.mxu0 %v1697
  %v1699 = vpop.f32.mrf.mxu0
  %v1700 = vadd.f32 %v1641, %v1699
  %v1701 = vand.u32 %v95, 4294901760
  %1702 = vmatmul.f32.gmra.mxu0 %v1701
  %v1703 = vpop.f32.mrf.mxu0
  %v1704 = vadd.f32 %v1647, %v1703
  %1705 = vdwg.mxu0
  %1706 = vmatpush.msra.mxu0 0.0
  %1707 = vmatpush.msra.mxu0 0.0
  %1708 = vmatpush.msra.mxu0 0.0
  %1709 = vmatpush.msra.mxu0 0.0
  %1710 = vmatpush.msra.mxu0 0.0
  %1711 = vmatpush.msra.mxu0 0.0
  %1712 = vmatpush.msra.mxu0 0.0
  %1713 = vmatpush.msra.mxu0 0.0
  %v1714 = vand.u32 %v82, 4294901760
  %1715 = vmatpush.msra.mxu0 %v1714
  %v1716 = vand.u32 %v76, 4294901760
  %1717 = vmatpush.msra.mxu0 %v1716
  %v1718 = vand.u32 %v70, 4294901760
  %1719 = vmatpush.msra.mxu0 %v1718
  %v1720 = vand.u32 %v64, 4294901760
  %1721 = vmatpush.msra.mxu0 %v1720
  %v1722 = vand.u32 %v58, 4294901760
  %1723 = vmatpush.msra.mxu0 %v1722
  %v1724 = vand.u32 %v52, 4294901760
  %1725 = vmatpush.msra.mxu0 %v1724
  %v1726 = vand.u32 %v46, 4294901760
  %1727 = vmatpush.msra.mxu0 %v1726
  %v1728 = vand.u32 %v40, 4294901760
  %1729 = vmatpush.msra.mxu0 %v1728
  %v1730 = vand.u32 %v86, 4294901760
  %1731 = vmatmul.f32.gmra.mxu0 %v1730
  %v1732 = vpop.f32.mrf.mxu0
  %v1733 = vadd.f32 %v1692, %v1732
  %v1734 = vand.u32 %v89, 4294901760
  %1735 = vmatmul.f32.gmra.mxu0 %v1734
  %v1736 = vpop.f32.mrf.mxu0
  %v1737 = vadd.f32 %v1696, %v1736
  %v1738 = vand.u32 %v92, 4294901760
  %1739 = vmatmul.f32.gmra.mxu0 %v1738
  %v1740 = vpop.f32.mrf.mxu0
  %v1741 = vadd.f32 %v1700, %v1740
  %v1742 = vand.u32 %v95, 4294901760
  %1743 = vmatmul.f32.gmra.mxu0 %v1742
  %v1744 = vpop.f32.mrf.mxu0
  %v1745 = vadd.f32 %v1704, %v1744
  %1746 = vdwg.mxu0
  %1747 = vmatpush.msra.mxu0 0.0
  %1748 = vmatpush.msra.mxu0 0.0
  %1749 = vmatpush.msra.mxu0 0.0
  %1750 = vmatpush.msra.mxu0 0.0
  %1751 = vmatpush.msra.mxu0 0.0
  %1752 = vmatpush.msra.mxu0 0.0
  %1753 = vmatpush.msra.mxu0 0.0
  %1754 = vmatpush.msra.mxu0 0.0
  %v1755 = vand.u32 %v83, 4294901760
  %1756 = vmatpush.msra.mxu0 %v1755
  %v1757 = vand.u32 %v77, 4294901760
  %1758 = vmatpush.msra.mxu0 %v1757
  %v1759 = vand.u32 %v71, 4294901760
  %1760 = vmatpush.msra.mxu0 %v1759
  %v1761 = vand.u32 %v65, 4294901760
  %1762 = vmatpush.msra.mxu0 %v1761
  %v1763 = vand.u32 %v59, 4294901760
  %1764 = vmatpush.msra.mxu0 %v1763
  %v1765 = vand.u32 %v53, 4294901760
  %1766 = vmatpush.msra.mxu0 %v1765
  %v1767 = vand.u32 %v47, 4294901760
  %1768 = vmatpush.msra.mxu0 %v1767
  %v1769 = vand.u32 %v41, 4294901760
  %1770 = vmatpush.msra.mxu0 %v1769
  %v1771 = vand.u32 %v86, 4294901760
  %v1772 = vsub.f32 %v86, %v1771
  %v1773 = vand.u32 %v1772, 4294901760
  %v1774 = vsub.f32 %v1772, %v1773
  %v1775 = vand.u32 %v1774, 4294901760
  %1776 = vmatmul.f32.gmra.mxu0 %v1775
  %v1777 = vpop.f32.mrf.mxu0
  %v1778 = vadd.f32 0.0, %v1777
  %v1779 = vand.u32 %v89, 4294901760
  %v1780 = vsub.f32 %v89, %v1779
  %v1781 = vand.u32 %v1780, 4294901760
  %v1782 = vsub.f32 %v1780, %v1781
  %v1783 = vand.u32 %v1782, 4294901760
  %1784 = vmatmul.f32.gmra.mxu0 %v1783
  %v1785 = vpop.f32.mrf.mxu0
  %v1786 = vadd.f32 0.0, %v1785
  %v1787 = vand.u32 %v92, 4294901760
  %v1788 = vsub.f32 %v92, %v1787
  %v1789 = vand.u32 %v1788, 4294901760
  %v1790 = vsub.f32 %v1788, %v1789
  %v1791 = vand.u32 %v1790, 4294901760
  %1792 = vmatmul.f32.gmra.mxu0 %v1791
  %v1793 = vpop.f32.mrf.mxu0
  %v1794 = vadd.f32 0.0, %v1793
  %v1795 = vand.u32 %v95, 4294901760
  %v1796 = vsub.f32 %v95, %v1795
  %v1797 = vand.u32 %v1796, 4294901760
  %v1798 = vsub.f32 %v1796, %v1797
  %v1799 = vand.u32 %v1798, 4294901760
  %1800 = vmatmul.f32.gmra.mxu0 %v1799
  %v1801 = vpop.f32.mrf.mxu0
  %v1802 = vadd.f32 0.0, %v1801
  %1803 = vdwg.mxu0
  %1804 = vmatpush.msra.mxu0 0.0
  %1805 = vmatpush.msra.mxu0 0.0
  %1806 = vmatpush.msra.mxu0 0.0
  %1807 = vmatpush.msra.mxu0 0.0
  %1808 = vmatpush.msra.mxu0 0.0
  %1809 = vmatpush.msra.mxu0 0.0
  %1810 = vmatpush.msra.mxu0 0.0
  %1811 = vmatpush.msra.mxu0 0.0
  %v1812 = vand.u32 %v83, 4294901760
  %v1813 = vsub.f32 %v83, %v1812
  %v1814 = vand.u32 %v1813, 4294901760
  %v1815 = vsub.f32 %v1813, %v1814
  %v1816 = vand.u32 %v1815, 4294901760
  %1817 = vmatpush.msra.mxu0 %v1816
  %v1818 = vand.u32 %v77, 4294901760
  %v1819 = vsub.f32 %v77, %v1818
  %v1820 = vand.u32 %v1819, 4294901760
  %v1821 = vsub.f32 %v1819, %v1820
  %v1822 = vand.u32 %v1821, 4294901760
  %1823 = vmatpush.msra.mxu0 %v1822
  %v1824 = vand.u32 %v71, 4294901760
  %v1825 = vsub.f32 %v71, %v1824
  %v1826 = vand.u32 %v1825, 4294901760
  %v1827 = vsub.f32 %v1825, %v1826
  %v1828 = vand.u32 %v1827, 4294901760
  %1829 = vmatpush.msra.mxu0 %v1828
  %v1830 = vand.u32 %v65, 4294901760
  %v1831 = vsub.f32 %v65, %v1830
  %v1832 = vand.u32 %v1831, 4294901760
  %v1833 = vsub.f32 %v1831, %v1832
  %v1834 = vand.u32 %v1833, 4294901760
  %1835 = vmatpush.msra.mxu0 %v1834
  %v1836 = vand.u32 %v59, 4294901760
  %v1837 = vsub.f32 %v59, %v1836
  %v1838 = vand.u32 %v1837, 4294901760
  %v1839 = vsub.f32 %v1837, %v1838
  %v1840 = vand.u32 %v1839, 4294901760
  %1841 = vmatpush.msra.mxu0 %v1840
  %v1842 = vand.u32 %v53, 4294901760
  %v1843 = vsub.f32 %v53, %v1842
  %v1844 = vand.u32 %v1843, 4294901760
  %v1845 = vsub.f32 %v1843, %v1844
  %v1846 = vand.u32 %v1845, 4294901760
  %1847 = vmatpush.msra.mxu0 %v1846
  %v1848 = vand.u32 %v47, 4294901760
  %v1849 = vsub.f32 %v47, %v1848
  %v1850 = vand.u32 %v1849, 4294901760
  %v1851 = vsub.f32 %v1849, %v1850
  %v1852 = vand.u32 %v1851, 4294901760
  %1853 = vmatpush.msra.mxu0 %v1852
  %v1854 = vand.u32 %v41, 4294901760
  %v1855 = vsub.f32 %v41, %v1854
  %v1856 = vand.u32 %v1855, 4294901760
  %v1857 = vsub.f32 %v1855, %v1856
  %v1858 = vand.u32 %v1857, 4294901760
  %1859 = vmatpush.msra.mxu0 %v1858
  %v1860 = vand.u32 %v86, 4294901760
  %1861 = vmatmul.f32.gmra.mxu0 %v1860
  %v1862 = vpop.f32.mrf.mxu0
  %v1863 = vadd.f32 %v1778, %v1862
  %v1864 = vand.u32 %v89, 4294901760
  %1865 = vmatmul.f32.gmra.mxu0 %v1864
  %v1866 = vpop.f32.mrf.mxu0
  %v1867 = vadd.f32 %v1786, %v1866
  %v1868 = vand.u32 %v92, 4294901760
  %1869 = vmatmul.f32.gmra.mxu0 %v1868
  %v1870 = vpop.f32.mrf.mxu0
  %v1871 = vadd.f32 %v1794, %v1870
  %v1872 = vand.u32 %v95, 4294901760
  %1873 = vmatmul.f32.gmra.mxu0 %v1872
  %v1874 = vpop.f32.mrf.mxu0
  %v1875 = vadd.f32 %v1802, %v1874
  %1876 = vdwg.mxu0
  %1877 = vmatpush.msra.mxu0 0.0
  %1878 = vmatpush.msra.mxu0 0.0
  %1879 = vmatpush.msra.mxu0 0.0
  %1880 = vmatpush.msra.mxu0 0.0
  %1881 = vmatpush.msra.mxu0 0.0
  %1882 = vmatpush.msra.mxu0 0.0
  %1883 = vmatpush.msra.mxu0 0.0
  %1884 = vmatpush.msra.mxu0 0.0
  %v1885 = vand.u32 %v83, 4294901760
  %v1886 = vsub.f32 %v83, %v1885
  %1887 = vmatpush.msra.mxu0 %v1886
  %v1888 = vand.u32 %v77, 4294901760
  %v1889 = vsub.f32 %v77, %v1888
  %1890 = vmatpush.msra.mxu0 %v1889
  %v1891 = vand.u32 %v71, 4294901760
  %v1892 = vsub.f32 %v71, %v1891
  %1893 = vmatpush.msra.mxu0 %v1892
  %v1894 = vand.u32 %v65, 4294901760
  %v1895 = vsub.f32 %v65, %v1894
  %1896 = vmatpush.msra.mxu0 %v1895
  %v1897 = vand.u32 %v59, 4294901760
  %v1898 = vsub.f32 %v59, %v1897
  %1899 = vmatpush.msra.mxu0 %v1898
  %v1900 = vand.u32 %v53, 4294901760
  %v1901 = vsub.f32 %v53, %v1900
  %1902 = vmatpush.msra.mxu0 %v1901
  %v1903 = vand.u32 %v47, 4294901760
  %v1904 = vsub.f32 %v47, %v1903
  %1905 = vmatpush.msra.mxu0 %v1904
  %v1906 = vand.u32 %v41, 4294901760
  %v1907 = vsub.f32 %v41, %v1906
  %1908 = vmatpush.msra.mxu0 %v1907
  %v1909 = vand.u32 %v86, 4294901760
  %v1910 = vsub.f32 %v86, %v1909
  %1911 = vmatmul.f32.gmra.mxu0 %v1910
  %v1912 = vpop.f32.mrf.mxu0
  %v1913 = vadd.f32 %v1863, %v1912
  %v1914 = vand.u32 %v89, 4294901760
  %v1915 = vsub.f32 %v89, %v1914
  %1916 = vmatmul.f32.gmra.mxu0 %v1915
  %v1917 = vpop.f32.mrf.mxu0
  %v1918 = vadd.f32 %v1867, %v1917
  %v1919 = vand.u32 %v92, 4294901760
  %v1920 = vsub.f32 %v92, %v1919
  %1921 = vmatmul.f32.gmra.mxu0 %v1920
  %v1922 = vpop.f32.mrf.mxu0
  %v1923 = vadd.f32 %v1871, %v1922
  %v1924 = vand.u32 %v95, 4294901760
  %v1925 = vsub.f32 %v95, %v1924
  %1926 = vmatmul.f32.gmra.mxu0 %v1925
  %v1927 = vpop.f32.mrf.mxu0
  %v1928 = vadd.f32 %v1875, %v1927
  %1929 = vdwg.mxu0
  %1930 = vmatpush.msra.mxu0 0.0
  %1931 = vmatpush.msra.mxu0 0.0
  %1932 = vmatpush.msra.mxu0 0.0
  %1933 = vmatpush.msra.mxu0 0.0
  %1934 = vmatpush.msra.mxu0 0.0
  %1935 = vmatpush.msra.mxu0 0.0
  %1936 = vmatpush.msra.mxu0 0.0
  %1937 = vmatpush.msra.mxu0 0.0
  %v1938 = vand.u32 %v83, 4294901760
  %1939 = vmatpush.msra.mxu0 %v1938
  %v1940 = vand.u32 %v77, 4294901760
  %1941 = vmatpush.msra.mxu0 %v1940
  %v1942 = vand.u32 %v71, 4294901760
  %1943 = vmatpush.msra.mxu0 %v1942
  %v1944 = vand.u32 %v65, 4294901760
  %1945 = vmatpush.msra.mxu0 %v1944
  %v1946 = vand.u32 %v59, 4294901760
  %1947 = vmatpush.msra.mxu0 %v1946
  %v1948 = vand.u32 %v53, 4294901760
  %1949 = vmatpush.msra.mxu0 %v1948
  %v1950 = vand.u32 %v47, 4294901760
  %1951 = vmatpush.msra.mxu0 %v1950
  %v1952 = vand.u32 %v41, 4294901760
  %1953 = vmatpush.msra.mxu0 %v1952
  %v1954 = vand.u32 %v86, 4294901760
  %v1955 = vsub.f32 %v86, %v1954
  %v1956 = vand.u32 %v1955, 4294901760
  %1957 = vmatmul.f32.gmra.mxu0 %v1956
  %v1958 = vpop.f32.mrf.mxu0
  %v1959 = vadd.f32 %v1913, %v1958
  %v1960 = vand.u32 %v89, 4294901760
  %v1961 = vsub.f32 %v89, %v1960
  %v1962 = vand.u32 %v1961, 4294901760
  %1963 = vmatmul.f32.gmra.mxu0 %v1962
  %v1964 = vpop.f32.mrf.mxu0
  %v1965 = vadd.f32 %v1918, %v1964
  %v1966 = vand.u32 %v92, 4294901760
  %v1967 = vsub.f32 %v92, %v1966
  %v1968 = vand.u32 %v1967, 4294901760
  %1969 = vmatmul.f32.gmra.mxu0 %v1968
  %v1970 = vpop.f32.mrf.mxu0
  %v1971 = vadd.f32 %v1923, %v1970
  %v1972 = vand.u32 %v95, 4294901760
  %v1973 = vsub.f32 %v95, %v1972
  %v1974 = vand.u32 %v1973, 4294901760
  %1975 = vmatmul.f32.gmra.mxu0 %v1974
  %v1976 = vpop.f32.mrf.mxu0
  %v1977 = vadd.f32 %v1928, %v1976
  %1978 = vdwg.mxu0
  %1979 = vmatpush.msra.mxu0 0.0
  %1980 = vmatpush.msra.mxu0 0.0
  %1981 = vmatpush.msra.mxu0 0.0
  %1982 = vmatpush.msra.mxu0 0.0
  %1983 = vmatpush.msra.mxu0 0.0
  %1984 = vmatpush.msra.mxu0 0.0
  %1985 = vmatpush.msra.mxu0 0.0
  %1986 = vmatpush.msra.mxu0 0.0
  %v1987 = vand.u32 %v83, 4294901760
  %v1988 = vsub.f32 %v83, %v1987
  %v1989 = vand.u32 %v1988, 4294901760
  %1990 = vmatpush.msra.mxu0 %v1989
  %v1991 = vand.u32 %v77, 4294901760
  %v1992 = vsub.f32 %v77, %v1991
  %v1993 = vand.u32 %v1992, 4294901760
  %1994 = vmatpush.msra.mxu0 %v1993
  %v1995 = vand.u32 %v71, 4294901760
  %v1996 = vsub.f32 %v71, %v1995
  %v1997 = vand.u32 %v1996, 4294901760
  %1998 = vmatpush.msra.mxu0 %v1997
  %v1999 = vand.u32 %v65, 4294901760
  %v2000 = vsub.f32 %v65, %v1999
  %v2001 = vand.u32 %v2000, 4294901760
  %2002 = vmatpush.msra.mxu0 %v2001
  %v2003 = vand.u32 %v59, 4294901760
  %v2004 = vsub.f32 %v59, %v2003
  %v2005 = vand.u32 %v2004, 4294901760
  %2006 = vmatpush.msra.mxu0 %v2005
  %v2007 = vand.u32 %v53, 4294901760
  %v2008 = vsub.f32 %v53, %v2007
  %v2009 = vand.u32 %v2008, 4294901760
  %2010 = vmatpush.msra.mxu0 %v2009
  %v2011 = vand.u32 %v47, 4294901760
  %v2012 = vsub.f32 %v47, %v2011
  %v2013 = vand.u32 %v2012, 4294901760
  %2014 = vmatpush.msra.mxu0 %v2013
  %v2015 = vand.u32 %v41, 4294901760
  %v2016 = vsub.f32 %v41, %v2015
  %v2017 = vand.u32 %v2016, 4294901760
  %2018 = vmatpush.msra.mxu0 %v2017
  %v2019 = vand.u32 %v86, 4294901760
  %2020 = vmatmul.f32.gmra.mxu0 %v2019
  %v2021 = vpop.f32.mrf.mxu0
  %v2022 = vadd.f32 %v1959, %v2021
  %v2023 = vand.u32 %v89, 4294901760
  %2024 = vmatmul.f32.gmra.mxu0 %v2023
  %v2025 = vpop.f32.mrf.mxu0
  %v2026 = vadd.f32 %v1965, %v2025
  %v2027 = vand.u32 %v92, 4294901760
  %2028 = vmatmul.f32.gmra.mxu0 %v2027
  %v2029 = vpop.f32.mrf.mxu0
  %v2030 = vadd.f32 %v1971, %v2029
  %v2031 = vand.u32 %v95, 4294901760
  %2032 = vmatmul.f32.gmra.mxu0 %v2031
  %v2033 = vpop.f32.mrf.mxu0
  %v2034 = vadd.f32 %v1977, %v2033
  %2035 = vdwg.mxu0
  %2036 = vmatpush.msra.mxu0 0.0
  %2037 = vmatpush.msra.mxu0 0.0
  %2038 = vmatpush.msra.mxu0 0.0
  %2039 = vmatpush.msra.mxu0 0.0
  %2040 = vmatpush.msra.mxu0 0.0
  %2041 = vmatpush.msra.mxu0 0.0
  %2042 = vmatpush.msra.mxu0 0.0
  %2043 = vmatpush.msra.mxu0 0.0
  %v2044 = vand.u32 %v83, 4294901760
  %2045 = vmatpush.msra.mxu0 %v2044
  %v2046 = vand.u32 %v77, 4294901760
  %2047 = vmatpush.msra.mxu0 %v2046
  %v2048 = vand.u32 %v71, 4294901760
  %2049 = vmatpush.msra.mxu0 %v2048
  %v2050 = vand.u32 %v65, 4294901760
  %2051 = vmatpush.msra.mxu0 %v2050
  %v2052 = vand.u32 %v59, 4294901760
  %2053 = vmatpush.msra.mxu0 %v2052
  %v2054 = vand.u32 %v53, 4294901760
  %2055 = vmatpush.msra.mxu0 %v2054
  %v2056 = vand.u32 %v47, 4294901760
  %2057 = vmatpush.msra.mxu0 %v2056
  %v2058 = vand.u32 %v41, 4294901760
  %2059 = vmatpush.msra.mxu0 %v2058
  %v2060 = vand.u32 %v86, 4294901760
  %2061 = vmatmul.f32.gmra.mxu0 %v2060
  %v2062 = vpop.f32.mrf.mxu0
  %v2063 = vadd.f32 %v2022, %v2062
  %v2064 = vand.u32 %v89, 4294901760
  %2065 = vmatmul.f32.gmra.mxu0 %v2064
  %v2066 = vpop.f32.mrf.mxu0
  %v2067 = vadd.f32 %v2026, %v2066
  %v2068 = vand.u32 %v92, 4294901760
  %2069 = vmatmul.f32.gmra.mxu0 %v2068
  %v2070 = vpop.f32.mrf.mxu0
  %v2071 = vadd.f32 %v2030, %v2070
  %v2072 = vand.u32 %v95, 4294901760
  %2073 = vmatmul.f32.gmra.mxu0 %v2072
  %v2074 = vpop.f32.mrf.mxu0
  %v2075 = vadd.f32 %v2034, %v2074
  %2076 = vdwg.mxu0
  %v2077 = vld [vmem:[%s2] sm:$0xff]
  %v2078 = vld [vmem:[%s2 + $0x8] sm:$0xff]
  %v2079 = vld [vmem:[%s2 + $0x10] sm:$0xff]
  %vm2080 = vcmask 261120
  %v2082 = vsel %vm2080, %v2077, 0
  %v2085 = vsel %vm2080, %v2078, 0
  %v2088 = vsel %vm2080, %v2079, 0
  %2090 = vmatpush.msra.mxu0 0.0
  %2091 = vmatpush.msra.mxu0 0.0
  %2092 = vmatpush.msra.mxu0 0.0
  %2093 = vmatpush.msra.mxu0 0.0
  %2094 = vmatpush.msra.mxu0 0.0
  %2095 = vmatpush.msra.mxu0 0.0
  %2096 = vmatpush.msra.mxu0 0.0
  %2097 = vmatpush.msra.mxu0 0.0
  %2098 = vmatpush.msra.mxu0 0.0
  %2099 = vmatpush.msra.mxu0 0.0
  %2100 = vmatpush.msra.mxu0 0.0
  %2101 = vmatpush.msra.mxu0 0.0
  %v2102 = vand.u32 %v1085, 4294901760
  %2103 = vmatpush.msra.mxu0 %v2102
  %v2104 = vand.u32 %v1081, 4294901760
  %2105 = vmatpush.msra.mxu0 %v2104
  %v2106 = vand.u32 %v1077, 4294901760
  %2107 = vmatpush.msra.mxu0 %v2106
  %v2108 = vand.u32 %v1073, 4294901760
  %2109 = vmatpush.msra.mxu0 %v2108
  %v2110 = vand.u32 %v2082, 4294901760
  %v2111 = vsub.f32 %v2082, %v2110
  %v2112 = vand.u32 %v2111, 4294901760
  %v2113 = vsub.f32 %v2111, %v2112
  %v2114 = vand.u32 %v2113, 4294901760
  %2115 = vmatmul.f32.gmra.mxu0 %v2114
  %v2116 = vpop.f32.mrf.mxu0
  %v2117 = vadd.f32 0.0, %v2116
  %v2118 = vand.u32 %v2085, 4294901760
  %v2119 = vsub.f32 %v2085, %v2118
  %v2120 = vand.u32 %v2119, 4294901760
  %v2121 = vsub.f32 %v2119, %v2120
  %v2122 = vand.u32 %v2121, 4294901760
  %2123 = vmatmul.f32.gmra.mxu0 %v2122
  %v2124 = vpop.f32.mrf.mxu0
  %v2125 = vadd.f32 0.0, %v2124
  %v2126 = vand.u32 %v2088, 4294901760
  %v2127 = vsub.f32 %v2088, %v2126
  %v2128 = vand.u32 %v2127, 4294901760
  %v2129 = vsub.f32 %v2127, %v2128
  %v2130 = vand.u32 %v2129, 4294901760
  %2131 = vmatmul.f32.gmra.mxu0 %v2130
  %v2132 = vpop.f32.mrf.mxu0
  %v2133 = vadd.f32 0.0, %v2132
  %2134 = vdwg.mxu0
  %2135 = vmatpush.msra.mxu0 0.0
  %2136 = vmatpush.msra.mxu0 0.0
  %2137 = vmatpush.msra.mxu0 0.0
  %2138 = vmatpush.msra.mxu0 0.0
  %2139 = vmatpush.msra.mxu0 0.0
  %2140 = vmatpush.msra.mxu0 0.0
  %2141 = vmatpush.msra.mxu0 0.0
  %2142 = vmatpush.msra.mxu0 0.0
  %2143 = vmatpush.msra.mxu0 0.0
  %2144 = vmatpush.msra.mxu0 0.0
  %2145 = vmatpush.msra.mxu0 0.0
  %2146 = vmatpush.msra.mxu0 0.0
  %v2147 = vand.u32 %v1085, 4294901760
  %v2148 = vsub.f32 %v1085, %v2147
  %v2149 = vand.u32 %v2148, 4294901760
  %v2150 = vsub.f32 %v2148, %v2149
  %v2151 = vand.u32 %v2150, 4294901760
  %2152 = vmatpush.msra.mxu0 %v2151
  %v2153 = vand.u32 %v1081, 4294901760
  %v2154 = vsub.f32 %v1081, %v2153
  %v2155 = vand.u32 %v2154, 4294901760
  %v2156 = vsub.f32 %v2154, %v2155
  %v2157 = vand.u32 %v2156, 4294901760
  %2158 = vmatpush.msra.mxu0 %v2157
  %v2159 = vand.u32 %v1077, 4294901760
  %v2160 = vsub.f32 %v1077, %v2159
  %v2161 = vand.u32 %v2160, 4294901760
  %v2162 = vsub.f32 %v2160, %v2161
  %v2163 = vand.u32 %v2162, 4294901760
  %2164 = vmatpush.msra.mxu0 %v2163
  %v2165 = vand.u32 %v1073, 4294901760
  %v2166 = vsub.f32 %v1073, %v2165
  %v2167 = vand.u32 %v2166, 4294901760
  %v2168 = vsub.f32 %v2166, %v2167
  %v2169 = vand.u32 %v2168, 4294901760
  %2170 = vmatpush.msra.mxu0 %v2169
  %v2171 = vand.u32 %v2082, 4294901760
  %2172 = vmatmul.f32.gmra.mxu0 %v2171
  %v2173 = vpop.f32.mrf.mxu0
  %v2174 = vadd.f32 %v2117, %v2173
  %v2175 = vand.u32 %v2085, 4294901760
  %2176 = vmatmul.f32.gmra.mxu0 %v2175
  %v2177 = vpop.f32.mrf.mxu0
  %v2178 = vadd.f32 %v2125, %v2177
  %v2179 = vand.u32 %v2088, 4294901760
  %2180 = vmatmul.f32.gmra.mxu0 %v2179
  %v2181 = vpop.f32.mrf.mxu0
  %v2182 = vadd.f32 %v2133, %v2181
  %2183 = vdwg.mxu0
  %2184 = vmatpush.msra.mxu0 0.0
  %2185 = vmatpush.msra.mxu0 0.0
  %2186 = vmatpush.msra.mxu0 0.0
  %2187 = vmatpush.msra.mxu0 0.0
  %2188 = vmatpush.msra.mxu0 0.0
  %2189 = vmatpush.msra.mxu0 0.0
  %2190 = vmatpush.msra.mxu0 0.0
  %2191 = vmatpush.msra.mxu0 0.0
  %2192 = vmatpush.msra.mxu0 0.0
  %2193 = vmatpush.msra.mxu0 0.0
  %2194 = vmatpush.msra.mxu0 0.0
  %2195 = vmatpush.msra.mxu0 0.0
  %v2196 = vand.u32 %v1085, 4294901760
  %v2197 = vsub.f32 %v1085, %v2196
  %2198 = vmatpush.msra.mxu0 %v2197
  %v2199 = vand.u32 %v1081, 4294901760
  %v2200 = vsub.f32 %v1081, %v2199
  %2201 = vmatpush.msra.mxu0 %v2200
  %v2202 = vand.u32 %v1077, 4294901760
  %v2203 = vsub.f32 %v1077, %v2202
  %2204 = vmatpush.msra.mxu0 %v2203
  %v2205 = vand.u32 %v1073, 4294901760
  %v2206 = vsub.f32 %v1073, %v2205
  %2207 = vmatpush.msra.mxu0 %v2206
  %v2208 = vand.u32 %v2082, 4294901760
  %v2209 = vsub.f32 %v2082, %v2208
  %2210 = vmatmul.f32.gmra.mxu0 %v2209
  %v2211 = vpop.f32.mrf.mxu0
  %v2212 = vadd.f32 %v2174, %v2211
  %v2213 = vand.u32 %v2085, 4294901760
  %v2214 = vsub.f32 %v2085, %v2213
  %2215 = vmatmul.f32.gmra.mxu0 %v2214
  %v2216 = vpop.f32.mrf.mxu0
  %v2217 = vadd.f32 %v2178, %v2216
  %v2218 = vand.u32 %v2088, 4294901760
  %v2219 = vsub.f32 %v2088, %v2218
  %2220 = vmatmul.f32.gmra.mxu0 %v2219
  %v2221 = vpop.f32.mrf.mxu0
  %v2222 = vadd.f32 %v2182, %v2221
  %2223 = vdwg.mxu0
  %2224 = vmatpush.msra.mxu0 0.0
  %2225 = vmatpush.msra.mxu0 0.0
  %2226 = vmatpush.msra.mxu0 0.0
  %2227 = vmatpush.msra.mxu0 0.0
  %2228 = vmatpush.msra.mxu0 0.0
  %2229 = vmatpush.msra.mxu0 0.0
  %2230 = vmatpush.msra.mxu0 0.0
  %2231 = vmatpush.msra.mxu0 0.0
  %2232 = vmatpush.msra.mxu0 0.0
  %2233 = vmatpush.msra.mxu0 0.0
  %2234 = vmatpush.msra.mxu0 0.0
  %2235 = vmatpush.msra.mxu0 0.0
  %v2236 = vand.u32 %v1085, 4294901760
  %2237 = vmatpush.msra.mxu0 %v2236
  %v2238 = vand.u32 %v1081, 4294901760
  %2239 = vmatpush.msra.mxu0 %v2238
  %v2240 = vand.u32 %v1077, 4294901760
  %2241 = vmatpush.msra.mxu0 %v2240
  %v2242 = vand.u32 %v1073, 4294901760
  %2243 = vmatpush.msra.mxu0 %v2242
  %v2244 = vand.u32 %v2082, 4294901760
  %v2245 = vsub.f32 %v2082, %v2244
  %v2246 = vand.u32 %v2245, 4294901760
  %2247 = vmatmul.f32.gmra.mxu0 %v2246
  %v2248 = vpop.f32.mrf.mxu0
  %v2249 = vadd.f32 %v2212, %v2248
  %v2250 = vand.u32 %v2085, 4294901760
  %v2251 = vsub.f32 %v2085, %v2250
  %v2252 = vand.u32 %v2251, 4294901760
  %2253 = vmatmul.f32.gmra.mxu0 %v2252
  %v2254 = vpop.f32.mrf.mxu0
  %v2255 = vadd.f32 %v2217, %v2254
  %v2256 = vand.u32 %v2088, 4294901760
  %v2257 = vsub.f32 %v2088, %v2256
  %v2258 = vand.u32 %v2257, 4294901760
  %2259 = vmatmul.f32.gmra.mxu0 %v2258
  %v2260 = vpop.f32.mrf.mxu0
  %v2261 = vadd.f32 %v2222, %v2260
  %2262 = vdwg.mxu0
  %2263 = vmatpush.msra.mxu0 0.0
  %2264 = vmatpush.msra.mxu0 0.0
  %2265 = vmatpush.msra.mxu0 0.0
  %2266 = vmatpush.msra.mxu0 0.0
  %2267 = vmatpush.msra.mxu0 0.0
  %2268 = vmatpush.msra.mxu0 0.0
  %2269 = vmatpush.msra.mxu0 0.0
  %2270 = vmatpush.msra.mxu0 0.0
  %2271 = vmatpush.msra.mxu0 0.0
  %2272 = vmatpush.msra.mxu0 0.0
  %2273 = vmatpush.msra.mxu0 0.0
  %2274 = vmatpush.msra.mxu0 0.0
  %v2275 = vand.u32 %v1085, 4294901760
  %v2276 = vsub.f32 %v1085, %v2275
  %v2277 = vand.u32 %v2276, 4294901760
  %2278 = vmatpush.msra.mxu0 %v2277
  %v2279 = vand.u32 %v1081, 4294901760
  %v2280 = vsub.f32 %v1081, %v2279
  %v2281 = vand.u32 %v2280, 4294901760
  %2282 = vmatpush.msra.mxu0 %v2281
  %v2283 = vand.u32 %v1077, 4294901760
  %v2284 = vsub.f32 %v1077, %v2283
  %v2285 = vand.u32 %v2284, 4294901760
  %2286 = vmatpush.msra.mxu0 %v2285
  %v2287 = vand.u32 %v1073, 4294901760
  %v2288 = vsub.f32 %v1073, %v2287
  %v2289 = vand.u32 %v2288, 4294901760
  %2290 = vmatpush.msra.mxu0 %v2289
  %v2291 = vand.u32 %v2082, 4294901760
  %2292 = vmatmul.f32.gmra.mxu0 %v2291
  %v2293 = vpop.f32.mrf.mxu0
  %v2294 = vadd.f32 %v2249, %v2293
  %v2295 = vand.u32 %v2085, 4294901760
  %2296 = vmatmul.f32.gmra.mxu0 %v2295
  %v2297 = vpop.f32.mrf.mxu0
  %v2298 = vadd.f32 %v2255, %v2297
  %v2299 = vand.u32 %v2088, 4294901760
  %2300 = vmatmul.f32.gmra.mxu0 %v2299
  %v2301 = vpop.f32.mrf.mxu0
  %v2302 = vadd.f32 %v2261, %v2301
  %2303 = vdwg.mxu0
  %2304 = vmatpush.msra.mxu0 0.0
  %2305 = vmatpush.msra.mxu0 0.0
  %2306 = vmatpush.msra.mxu0 0.0
  %2307 = vmatpush.msra.mxu0 0.0
  %2308 = vmatpush.msra.mxu0 0.0
  %2309 = vmatpush.msra.mxu0 0.0
  %2310 = vmatpush.msra.mxu0 0.0
  %2311 = vmatpush.msra.mxu0 0.0
  %2312 = vmatpush.msra.mxu0 0.0
  %2313 = vmatpush.msra.mxu0 0.0
  %2314 = vmatpush.msra.mxu0 0.0
  %2315 = vmatpush.msra.mxu0 0.0
  %v2316 = vand.u32 %v1085, 4294901760
  %2317 = vmatpush.msra.mxu0 %v2316
  %v2318 = vand.u32 %v1081, 4294901760
  %2319 = vmatpush.msra.mxu0 %v2318
  %v2320 = vand.u32 %v1077, 4294901760
  %2321 = vmatpush.msra.mxu0 %v2320
  %v2322 = vand.u32 %v1073, 4294901760
  %2323 = vmatpush.msra.mxu0 %v2322
  %v2324 = vand.u32 %v2082, 4294901760
  %2325 = vmatmul.f32.gmra.mxu0 %v2324
  %v2326 = vpop.f32.mrf.mxu0
  %v2327 = vadd.f32 %v2294, %v2326
  %v2328 = vand.u32 %v2085, 4294901760
  %2329 = vmatmul.f32.gmra.mxu0 %v2328
  %v2330 = vpop.f32.mrf.mxu0
  %v2331 = vadd.f32 %v2298, %v2330
  %v2332 = vand.u32 %v2088, 4294901760
  %2333 = vmatmul.f32.gmra.mxu0 %v2332
  %v2334 = vpop.f32.mrf.mxu0
  %v2335 = vadd.f32 %v2302, %v2334
  %2336 = vdwg.mxu0
  %2337 = vmatpush.msra.mxu0 0.0
  %2338 = vmatpush.msra.mxu0 0.0
  %2339 = vmatpush.msra.mxu0 0.0
  %2340 = vmatpush.msra.mxu0 0.0
  %2341 = vmatpush.msra.mxu0 0.0
  %2342 = vmatpush.msra.mxu0 0.0
  %2343 = vmatpush.msra.mxu0 0.0
  %2344 = vmatpush.msra.mxu0 0.0
  %2345 = vmatpush.msra.mxu0 0.0
  %2346 = vmatpush.msra.mxu0 0.0
  %2347 = vmatpush.msra.mxu0 0.0
  %2348 = vmatpush.msra.mxu0 0.0
  %v2349 = vand.u32 %v1415, 4294901760
  %2350 = vmatpush.msra.mxu0 %v2349
  %v2351 = vand.u32 %v1411, 4294901760
  %2352 = vmatpush.msra.mxu0 %v2351
  %v2353 = vand.u32 %v1407, 4294901760
  %2354 = vmatpush.msra.mxu0 %v2353
  %v2355 = vand.u32 %v1403, 4294901760
  %2356 = vmatpush.msra.mxu0 %v2355
  %v2357 = vand.u32 %v2082, 4294901760
  %v2358 = vsub.f32 %v2082, %v2357
  %v2359 = vand.u32 %v2358, 4294901760
  %v2360 = vsub.f32 %v2358, %v2359
  %v2361 = vand.u32 %v2360, 4294901760
  %2362 = vmatmul.f32.gmra.mxu0 %v2361
  %v2363 = vpop.f32.mrf.mxu0
  %v2364 = vadd.f32 0.0, %v2363
  %v2365 = vand.u32 %v2085, 4294901760
  %v2366 = vsub.f32 %v2085, %v2365
  %v2367 = vand.u32 %v2366, 4294901760
  %v2368 = vsub.f32 %v2366, %v2367
  %v2369 = vand.u32 %v2368, 4294901760
  %2370 = vmatmul.f32.gmra.mxu0 %v2369
  %v2371 = vpop.f32.mrf.mxu0
  %v2372 = vadd.f32 0.0, %v2371
  %v2373 = vand.u32 %v2088, 4294901760
  %v2374 = vsub.f32 %v2088, %v2373
  %v2375 = vand.u32 %v2374, 4294901760
  %v2376 = vsub.f32 %v2374, %v2375
  %v2377 = vand.u32 %v2376, 4294901760
  %2378 = vmatmul.f32.gmra.mxu0 %v2377
  %v2379 = vpop.f32.mrf.mxu0
  %v2380 = vadd.f32 0.0, %v2379
  %2381 = vdwg.mxu0
  %2382 = vmatpush.msra.mxu0 0.0
  %2383 = vmatpush.msra.mxu0 0.0
  %2384 = vmatpush.msra.mxu0 0.0
  %2385 = vmatpush.msra.mxu0 0.0
  %2386 = vmatpush.msra.mxu0 0.0
  %2387 = vmatpush.msra.mxu0 0.0
  %2388 = vmatpush.msra.mxu0 0.0
  %2389 = vmatpush.msra.mxu0 0.0
  %2390 = vmatpush.msra.mxu0 0.0
  %2391 = vmatpush.msra.mxu0 0.0
  %2392 = vmatpush.msra.mxu0 0.0
  %2393 = vmatpush.msra.mxu0 0.0
  %v2394 = vand.u32 %v1415, 4294901760
  %v2395 = vsub.f32 %v1415, %v2394
  %v2396 = vand.u32 %v2395, 4294901760
  %v2397 = vsub.f32 %v2395, %v2396
  %v2398 = vand.u32 %v2397, 4294901760
  %2399 = vmatpush.msra.mxu0 %v2398
  %v2400 = vand.u32 %v1411, 4294901760
  %v2401 = vsub.f32 %v1411, %v2400
  %v2402 = vand.u32 %v2401, 4294901760
  %v2403 = vsub.f32 %v2401, %v2402
  %v2404 = vand.u32 %v2403, 4294901760
  %2405 = vmatpush.msra.mxu0 %v2404
  %v2406 = vand.u32 %v1407, 4294901760
  %v2407 = vsub.f32 %v1407, %v2406
  %v2408 = vand.u32 %v2407, 4294901760
  %v2409 = vsub.f32 %v2407, %v2408
  %v2410 = vand.u32 %v2409, 4294901760
  %2411 = vmatpush.msra.mxu0 %v2410
  %v2412 = vand.u32 %v1403, 4294901760
  %v2413 = vsub.f32 %v1403, %v2412
  %v2414 = vand.u32 %v2413, 4294901760
  %v2415 = vsub.f32 %v2413, %v2414
  %v2416 = vand.u32 %v2415, 4294901760
  %2417 = vmatpush.msra.mxu0 %v2416
  %v2418 = vand.u32 %v2082, 4294901760
  %2419 = vmatmul.f32.gmra.mxu0 %v2418
  %v2420 = vpop.f32.mrf.mxu0
  %v2421 = vadd.f32 %v2364, %v2420
  %v2422 = vand.u32 %v2085, 4294901760
  %2423 = vmatmul.f32.gmra.mxu0 %v2422
  %v2424 = vpop.f32.mrf.mxu0
  %v2425 = vadd.f32 %v2372, %v2424
  %v2426 = vand.u32 %v2088, 4294901760
  %2427 = vmatmul.f32.gmra.mxu0 %v2426
  %v2428 = vpop.f32.mrf.mxu0
  %v2429 = vadd.f32 %v2380, %v2428
  %2430 = vdwg.mxu0
  %2431 = vmatpush.msra.mxu0 0.0
  %2432 = vmatpush.msra.mxu0 0.0
  %2433 = vmatpush.msra.mxu0 0.0
  %2434 = vmatpush.msra.mxu0 0.0
  %2435 = vmatpush.msra.mxu0 0.0
  %2436 = vmatpush.msra.mxu0 0.0
  %2437 = vmatpush.msra.mxu0 0.0
  %2438 = vmatpush.msra.mxu0 0.0
  %2439 = vmatpush.msra.mxu0 0.0
  %2440 = vmatpush.msra.mxu0 0.0
  %2441 = vmatpush.msra.mxu0 0.0
  %2442 = vmatpush.msra.mxu0 0.0
  %v2443 = vand.u32 %v1415, 4294901760
  %v2444 = vsub.f32 %v1415, %v2443
  %2445 = vmatpush.msra.mxu0 %v2444
  %v2446 = vand.u32 %v1411, 4294901760
  %v2447 = vsub.f32 %v1411, %v2446
  %2448 = vmatpush.msra.mxu0 %v2447
  %v2449 = vand.u32 %v1407, 4294901760
  %v2450 = vsub.f32 %v1407, %v2449
  %2451 = vmatpush.msra.mxu0 %v2450
  %v2452 = vand.u32 %v1403, 4294901760
  %v2453 = vsub.f32 %v1403, %v2452
  %2454 = vmatpush.msra.mxu0 %v2453
  %v2455 = vand.u32 %v2082, 4294901760
  %v2456 = vsub.f32 %v2082, %v2455
  %2457 = vmatmul.f32.gmra.mxu0 %v2456
  %v2458 = vpop.f32.mrf.mxu0
  %v2459 = vadd.f32 %v2421, %v2458
  %v2460 = vand.u32 %v2085, 4294901760
  %v2461 = vsub.f32 %v2085, %v2460
  %2462 = vmatmul.f32.gmra.mxu0 %v2461
  %v2463 = vpop.f32.mrf.mxu0
  %v2464 = vadd.f32 %v2425, %v2463
  %v2465 = vand.u32 %v2088, 4294901760
  %v2466 = vsub.f32 %v2088, %v2465
  %2467 = vmatmul.f32.gmra.mxu0 %v2466
  %v2468 = vpop.f32.mrf.mxu0
  %v2469 = vadd.f32 %v2429, %v2468
  %2470 = vdwg.mxu0
  %2471 = vmatpush.msra.mxu0 0.0
  %2472 = vmatpush.msra.mxu0 0.0
  %2473 = vmatpush.msra.mxu0 0.0
  %2474 = vmatpush.msra.mxu0 0.0
  %2475 = vmatpush.msra.mxu0 0.0
  %2476 = vmatpush.msra.mxu0 0.0
  %2477 = vmatpush.msra.mxu0 0.0
  %2478 = vmatpush.msra.mxu0 0.0
  %2479 = vmatpush.msra.mxu0 0.0
  %2480 = vmatpush.msra.mxu0 0.0
  %2481 = vmatpush.msra.mxu0 0.0
  %2482 = vmatpush.msra.mxu0 0.0
  %v2483 = vand.u32 %v1415, 4294901760
  %2484 = vmatpush.msra.mxu0 %v2483
  %v2485 = vand.u32 %v1411, 4294901760
  %2486 = vmatpush.msra.mxu0 %v2485
  %v2487 = vand.u32 %v1407, 4294901760
  %2488 = vmatpush.msra.mxu0 %v2487
  %v2489 = vand.u32 %v1403, 4294901760
  %2490 = vmatpush.msra.mxu0 %v2489
  %v2491 = vand.u32 %v2082, 4294901760
  %v2492 = vsub.f32 %v2082, %v2491
  %v2493 = vand.u32 %v2492, 4294901760
  %2494 = vmatmul.f32.gmra.mxu0 %v2493
  %v2495 = vpop.f32.mrf.mxu0
  %v2496 = vadd.f32 %v2459, %v2495
  %v2497 = vand.u32 %v2085, 4294901760
  %v2498 = vsub.f32 %v2085, %v2497
  %v2499 = vand.u32 %v2498, 4294901760
  %2500 = vmatmul.f32.gmra.mxu0 %v2499
  %v2501 = vpop.f32.mrf.mxu0
  %v2502 = vadd.f32 %v2464, %v2501
  %v2503 = vand.u32 %v2088, 4294901760
  %v2504 = vsub.f32 %v2088, %v2503
  %v2505 = vand.u32 %v2504, 4294901760
  %2506 = vmatmul.f32.gmra.mxu0 %v2505
  %v2507 = vpop.f32.mrf.mxu0
  %v2508 = vadd.f32 %v2469, %v2507
  %2509 = vdwg.mxu0
  %2510 = vmatpush.msra.mxu0 0.0
  %2511 = vmatpush.msra.mxu0 0.0
  %2512 = vmatpush.msra.mxu0 0.0
  %2513 = vmatpush.msra.mxu0 0.0
  %2514 = vmatpush.msra.mxu0 0.0
  %2515 = vmatpush.msra.mxu0 0.0
  %2516 = vmatpush.msra.mxu0 0.0
  %2517 = vmatpush.msra.mxu0 0.0
  %2518 = vmatpush.msra.mxu0 0.0
  %2519 = vmatpush.msra.mxu0 0.0
  %2520 = vmatpush.msra.mxu0 0.0
  %2521 = vmatpush.msra.mxu0 0.0
  %v2522 = vand.u32 %v1415, 4294901760
  %v2523 = vsub.f32 %v1415, %v2522
  %v2524 = vand.u32 %v2523, 4294901760
  %2525 = vmatpush.msra.mxu0 %v2524
  %v2526 = vand.u32 %v1411, 4294901760
  %v2527 = vsub.f32 %v1411, %v2526
  %v2528 = vand.u32 %v2527, 4294901760
  %2529 = vmatpush.msra.mxu0 %v2528
  %v2530 = vand.u32 %v1407, 4294901760
  %v2531 = vsub.f32 %v1407, %v2530
  %v2532 = vand.u32 %v2531, 4294901760
  %2533 = vmatpush.msra.mxu0 %v2532
  %v2534 = vand.u32 %v1403, 4294901760
  %v2535 = vsub.f32 %v1403, %v2534
  %v2536 = vand.u32 %v2535, 4294901760
  %2537 = vmatpush.msra.mxu0 %v2536
  %v2538 = vand.u32 %v2082, 4294901760
  %2539 = vmatmul.f32.gmra.mxu0 %v2538
  %v2540 = vpop.f32.mrf.mxu0
  %v2541 = vadd.f32 %v2496, %v2540
  %v2542 = vand.u32 %v2085, 4294901760
  %2543 = vmatmul.f32.gmra.mxu0 %v2542
  %v2544 = vpop.f32.mrf.mxu0
  %v2545 = vadd.f32 %v2502, %v2544
  %v2546 = vand.u32 %v2088, 4294901760
  %2547 = vmatmul.f32.gmra.mxu0 %v2546
  %v2548 = vpop.f32.mrf.mxu0
  %v2549 = vadd.f32 %v2508, %v2548
  %2550 = vdwg.mxu0
  %2551 = vmatpush.msra.mxu0 0.0
  %2552 = vmatpush.msra.mxu0 0.0
  %2553 = vmatpush.msra.mxu0 0.0
  %2554 = vmatpush.msra.mxu0 0.0
  %2555 = vmatpush.msra.mxu0 0.0
  %2556 = vmatpush.msra.mxu0 0.0
  %2557 = vmatpush.msra.mxu0 0.0
  %2558 = vmatpush.msra.mxu0 0.0
  %2559 = vmatpush.msra.mxu0 0.0
  %2560 = vmatpush.msra.mxu0 0.0
  %2561 = vmatpush.msra.mxu0 0.0
  %2562 = vmatpush.msra.mxu0 0.0
  %v2563 = vand.u32 %v1415, 4294901760
  %2564 = vmatpush.msra.mxu0 %v2563
  %v2565 = vand.u32 %v1411, 4294901760
  %2566 = vmatpush.msra.mxu0 %v2565
  %v2567 = vand.u32 %v1407, 4294901760
  %2568 = vmatpush.msra.mxu0 %v2567
  %v2569 = vand.u32 %v1403, 4294901760
  %2570 = vmatpush.msra.mxu0 %v2569
  %v2571 = vand.u32 %v2082, 4294901760
  %2572 = vmatmul.f32.gmra.mxu0 %v2571
  %v2573 = vpop.f32.mrf.mxu0
  %v2574 = vadd.f32 %v2541, %v2573
  %v2575 = vand.u32 %v2085, 4294901760
  %2576 = vmatmul.f32.gmra.mxu0 %v2575
  %v2577 = vpop.f32.mrf.mxu0
  %v2578 = vadd.f32 %v2545, %v2577
  %v2579 = vand.u32 %v2088, 4294901760
  %2580 = vmatmul.f32.gmra.mxu0 %v2579
  %v2581 = vpop.f32.mrf.mxu0
  %v2582 = vadd.f32 %v2549, %v2581
  %2583 = vdwg.mxu0
  %2584 = vmatpush.msra.mxu0 0.0
  %2585 = vmatpush.msra.mxu0 0.0
  %2586 = vmatpush.msra.mxu0 0.0
  %2587 = vmatpush.msra.mxu0 0.0
  %2588 = vmatpush.msra.mxu0 0.0
  %2589 = vmatpush.msra.mxu0 0.0
  %2590 = vmatpush.msra.mxu0 0.0
  %2591 = vmatpush.msra.mxu0 0.0
  %2592 = vmatpush.msra.mxu0 0.0
  %2593 = vmatpush.msra.mxu0 0.0
  %2594 = vmatpush.msra.mxu0 0.0
  %2595 = vmatpush.msra.mxu0 0.0
  %v2596 = vand.u32 %v1745, 4294901760
  %2597 = vmatpush.msra.mxu0 %v2596
  %v2598 = vand.u32 %v1741, 4294901760
  %2599 = vmatpush.msra.mxu0 %v2598
  %v2600 = vand.u32 %v1737, 4294901760
  %2601 = vmatpush.msra.mxu0 %v2600
  %v2602 = vand.u32 %v1733, 4294901760
  %2603 = vmatpush.msra.mxu0 %v2602
  %v2604 = vand.u32 %v2082, 4294901760
  %v2605 = vsub.f32 %v2082, %v2604
  %v2606 = vand.u32 %v2605, 4294901760
  %v2607 = vsub.f32 %v2605, %v2606
  %v2608 = vand.u32 %v2607, 4294901760
  %2609 = vmatmul.f32.gmra.mxu0 %v2608
  %v2610 = vpop.f32.mrf.mxu0
  %v2611 = vadd.f32 0.0, %v2610
  %v2612 = vand.u32 %v2085, 4294901760
  %v2613 = vsub.f32 %v2085, %v2612
  %v2614 = vand.u32 %v2613, 4294901760
  %v2615 = vsub.f32 %v2613, %v2614
  %v2616 = vand.u32 %v2615, 4294901760
  %2617 = vmatmul.f32.gmra.mxu0 %v2616
  %v2618 = vpop.f32.mrf.mxu0
  %v2619 = vadd.f32 0.0, %v2618
  %v2620 = vand.u32 %v2088, 4294901760
  %v2621 = vsub.f32 %v2088, %v2620
  %v2622 = vand.u32 %v2621, 4294901760
  %v2623 = vsub.f32 %v2621, %v2622
  %v2624 = vand.u32 %v2623, 4294901760
  %2625 = vmatmul.f32.gmra.mxu0 %v2624
  %v2626 = vpop.f32.mrf.mxu0
  %v2627 = vadd.f32 0.0, %v2626
  %2628 = vdwg.mxu0
  %2629 = vmatpush.msra.mxu0 0.0
  %2630 = vmatpush.msra.mxu0 0.0
  %2631 = vmatpush.msra.mxu0 0.0
  %2632 = vmatpush.msra.mxu0 0.0
  %2633 = vmatpush.msra.mxu0 0.0
  %2634 = vmatpush.msra.mxu0 0.0
  %2635 = vmatpush.msra.mxu0 0.0
  %2636 = vmatpush.msra.mxu0 0.0
  %2637 = vmatpush.msra.mxu0 0.0
  %2638 = vmatpush.msra.mxu0 0.0
  %2639 = vmatpush.msra.mxu0 0.0
  %2640 = vmatpush.msra.mxu0 0.0
  %v2641 = vand.u32 %v1745, 4294901760
  %v2642 = vsub.f32 %v1745, %v2641
  %v2643 = vand.u32 %v2642, 4294901760
  %v2644 = vsub.f32 %v2642, %v2643
  %v2645 = vand.u32 %v2644, 4294901760
  %2646 = vmatpush.msra.mxu0 %v2645
  %v2647 = vand.u32 %v1741, 4294901760
  %v2648 = vsub.f32 %v1741, %v2647
  %v2649 = vand.u32 %v2648, 4294901760
  %v2650 = vsub.f32 %v2648, %v2649
  %v2651 = vand.u32 %v2650, 4294901760
  %2652 = vmatpush.msra.mxu0 %v2651
  %v2653 = vand.u32 %v1737, 4294901760
  %v2654 = vsub.f32 %v1737, %v2653
  %v2655 = vand.u32 %v2654, 4294901760
  %v2656 = vsub.f32 %v2654, %v2655
  %v2657 = vand.u32 %v2656, 4294901760
  %2658 = vmatpush.msra.mxu0 %v2657
  %v2659 = vand.u32 %v1733, 4294901760
  %v2660 = vsub.f32 %v1733, %v2659
  %v2661 = vand.u32 %v2660, 4294901760
  %v2662 = vsub.f32 %v2660, %v2661
  %v2663 = vand.u32 %v2662, 4294901760
  %2664 = vmatpush.msra.mxu0 %v2663
  %v2665 = vand.u32 %v2082, 4294901760
  %2666 = vmatmul.f32.gmra.mxu0 %v2665
  %v2667 = vpop.f32.mrf.mxu0
  %v2668 = vadd.f32 %v2611, %v2667
  %v2669 = vand.u32 %v2085, 4294901760
  %2670 = vmatmul.f32.gmra.mxu0 %v2669
  %v2671 = vpop.f32.mrf.mxu0
  %v2672 = vadd.f32 %v2619, %v2671
  %v2673 = vand.u32 %v2088, 4294901760
  %2674 = vmatmul.f32.gmra.mxu0 %v2673
  %v2675 = vpop.f32.mrf.mxu0
  %v2676 = vadd.f32 %v2627, %v2675
  %2677 = vdwg.mxu0
  %2678 = vmatpush.msra.mxu0 0.0
  %2679 = vmatpush.msra.mxu0 0.0
  %2680 = vmatpush.msra.mxu0 0.0
  %2681 = vmatpush.msra.mxu0 0.0
  %2682 = vmatpush.msra.mxu0 0.0
  %2683 = vmatpush.msra.mxu0 0.0
  %2684 = vmatpush.msra.mxu0 0.0
  %2685 = vmatpush.msra.mxu0 0.0
  %2686 = vmatpush.msra.mxu0 0.0
  %2687 = vmatpush.msra.mxu0 0.0
  %2688 = vmatpush.msra.mxu0 0.0
  %2689 = vmatpush.msra.mxu0 0.0
  %v2690 = vand.u32 %v1745, 4294901760
  %v2691 = vsub.f32 %v1745, %v2690
  %2692 = vmatpush.msra.mxu0 %v2691
  %v2693 = vand.u32 %v1741, 4294901760
  %v2694 = vsub.f32 %v1741, %v2693
  %2695 = vmatpush.msra.mxu0 %v2694
  %v2696 = vand.u32 %v1737, 4294901760
  %v2697 = vsub.f32 %v1737, %v2696
  %2698 = vmatpush.msra.mxu0 %v2697
  %v2699 = vand.u32 %v1733, 4294901760
  %v2700 = vsub.f32 %v1733, %v2699
  %2701 = vmatpush.msra.mxu0 %v2700
  %v2702 = vand.u32 %v2082, 4294901760
  %v2703 = vsub.f32 %v2082, %v2702
  %2704 = vmatmul.f32.gmra.mxu0 %v2703
  %v2705 = vpop.f32.mrf.mxu0
  %v2706 = vadd.f32 %v2668, %v2705
  %v2707 = vand.u32 %v2085, 4294901760
  %v2708 = vsub.f32 %v2085, %v2707
  %2709 = vmatmul.f32.gmra.mxu0 %v2708
  %v2710 = vpop.f32.mrf.mxu0
  %v2711 = vadd.f32 %v2672, %v2710
  %v2712 = vand.u32 %v2088, 4294901760
  %v2713 = vsub.f32 %v2088, %v2712
  %2714 = vmatmul.f32.gmra.mxu0 %v2713
  %v2715 = vpop.f32.mrf.mxu0
  %v2716 = vadd.f32 %v2676, %v2715
  %2717 = vdwg.mxu0
  %2718 = vmatpush.msra.mxu0 0.0
  %2719 = vmatpush.msra.mxu0 0.0
  %2720 = vmatpush.msra.mxu0 0.0
  %2721 = vmatpush.msra.mxu0 0.0
  %2722 = vmatpush.msra.mxu0 0.0
  %2723 = vmatpush.msra.mxu0 0.0
  %2724 = vmatpush.msra.mxu0 0.0
  %2725 = vmatpush.msra.mxu0 0.0
  %2726 = vmatpush.msra.mxu0 0.0
  %2727 = vmatpush.msra.mxu0 0.0
  %2728 = vmatpush.msra.mxu0 0.0
  %2729 = vmatpush.msra.mxu0 0.0
  %v2730 = vand.u32 %v1745, 4294901760
  %2731 = vmatpush.msra.mxu0 %v2730
  %v2732 = vand.u32 %v1741, 4294901760
  %2733 = vmatpush.msra.mxu0 %v2732
  %v2734 = vand.u32 %v1737, 4294901760
  %2735 = vmatpush.msra.mxu0 %v2734
  %v2736 = vand.u32 %v1733, 4294901760
  %2737 = vmatpush.msra.mxu0 %v2736
  %v2738 = vand.u32 %v2082, 4294901760
  %v2739 = vsub.f32 %v2082, %v2738
  %v2740 = vand.u32 %v2739, 4294901760
  %2741 = vmatmul.f32.gmra.mxu0 %v2740
  %v2742 = vpop.f32.mrf.mxu0
  %v2743 = vadd.f32 %v2706, %v2742
  %v2744 = vand.u32 %v2085, 4294901760
  %v2745 = vsub.f32 %v2085, %v2744
  %v2746 = vand.u32 %v2745, 4294901760
  %2747 = vmatmul.f32.gmra.mxu0 %v2746
  %v2748 = vpop.f32.mrf.mxu0
  %v2749 = vadd.f32 %v2711, %v2748
  %v2750 = vand.u32 %v2088, 4294901760
  %v2751 = vsub.f32 %v2088, %v2750
  %v2752 = vand.u32 %v2751, 4294901760
  %2753 = vmatmul.f32.gmra.mxu0 %v2752
  %v2754 = vpop.f32.mrf.mxu0
  %v2755 = vadd.f32 %v2716, %v2754
  %2756 = vdwg.mxu0
  %2757 = vmatpush.msra.mxu0 0.0
  %2758 = vmatpush.msra.mxu0 0.0
  %2759 = vmatpush.msra.mxu0 0.0
  %2760 = vmatpush.msra.mxu0 0.0
  %2761 = vmatpush.msra.mxu0 0.0
  %2762 = vmatpush.msra.mxu0 0.0
  %2763 = vmatpush.msra.mxu0 0.0
  %2764 = vmatpush.msra.mxu0 0.0
  %2765 = vmatpush.msra.mxu0 0.0
  %2766 = vmatpush.msra.mxu0 0.0
  %2767 = vmatpush.msra.mxu0 0.0
  %2768 = vmatpush.msra.mxu0 0.0
  %v2769 = vand.u32 %v1745, 4294901760
  %v2770 = vsub.f32 %v1745, %v2769
  %v2771 = vand.u32 %v2770, 4294901760
  %2772 = vmatpush.msra.mxu0 %v2771
  %v2773 = vand.u32 %v1741, 4294901760
  %v2774 = vsub.f32 %v1741, %v2773
  %v2775 = vand.u32 %v2774, 4294901760
  %2776 = vmatpush.msra.mxu0 %v2775
  %v2777 = vand.u32 %v1737, 4294901760
  %v2778 = vsub.f32 %v1737, %v2777
  %v2779 = vand.u32 %v2778, 4294901760
  %2780 = vmatpush.msra.mxu0 %v2779
  %v2781 = vand.u32 %v1733, 4294901760
  %v2782 = vsub.f32 %v1733, %v2781
  %v2783 = vand.u32 %v2782, 4294901760
  %2784 = vmatpush.msra.mxu0 %v2783
  %v2785 = vand.u32 %v2082, 4294901760
  %2786 = vmatmul.f32.gmra.mxu0 %v2785
  %v2787 = vpop.f32.mrf.mxu0
  %v2788 = vadd.f32 %v2743, %v2787
  %v2789 = vand.u32 %v2085, 4294901760
  %2790 = vmatmul.f32.gmra.mxu0 %v2789
  %v2791 = vpop.f32.mrf.mxu0
  %v2792 = vadd.f32 %v2749, %v2791
  %v2793 = vand.u32 %v2088, 4294901760
  %2794 = vmatmul.f32.gmra.mxu0 %v2793
  %v2795 = vpop.f32.mrf.mxu0
  %v2796 = vadd.f32 %v2755, %v2795
  %2797 = vdwg.mxu0
  %2798 = vmatpush.msra.mxu0 0.0
  %2799 = vmatpush.msra.mxu0 0.0
  %2800 = vmatpush.msra.mxu0 0.0
  %2801 = vmatpush.msra.mxu0 0.0
  %2802 = vmatpush.msra.mxu0 0.0
  %2803 = vmatpush.msra.mxu0 0.0
  %2804 = vmatpush.msra.mxu0 0.0
  %2805 = vmatpush.msra.mxu0 0.0
  %2806 = vmatpush.msra.mxu0 0.0
  %2807 = vmatpush.msra.mxu0 0.0
  %2808 = vmatpush.msra.mxu0 0.0
  %2809 = vmatpush.msra.mxu0 0.0
  %v2810 = vand.u32 %v1745, 4294901760
  %2811 = vmatpush.msra.mxu0 %v2810
  %v2812 = vand.u32 %v1741, 4294901760
  %2813 = vmatpush.msra.mxu0 %v2812
  %v2814 = vand.u32 %v1737, 4294901760
  %2815 = vmatpush.msra.mxu0 %v2814
  %v2816 = vand.u32 %v1733, 4294901760
  %2817 = vmatpush.msra.mxu0 %v2816
  %v2818 = vand.u32 %v2082, 4294901760
  %2819 = vmatmul.f32.gmra.mxu0 %v2818
  %v2820 = vpop.f32.mrf.mxu0
  %v2821 = vadd.f32 %v2788, %v2820
  %v2822 = vand.u32 %v2085, 4294901760
  %2823 = vmatmul.f32.gmra.mxu0 %v2822
  %v2824 = vpop.f32.mrf.mxu0
  %v2825 = vadd.f32 %v2792, %v2824
  %v2826 = vand.u32 %v2088, 4294901760
  %2827 = vmatmul.f32.gmra.mxu0 %v2826
  %v2828 = vpop.f32.mrf.mxu0
  %v2829 = vadd.f32 %v2796, %v2828
  %2830 = vdwg.mxu0
  %2831 = vmatpush.msra.mxu0 0.0
  %2832 = vmatpush.msra.mxu0 0.0
  %2833 = vmatpush.msra.mxu0 0.0
  %2834 = vmatpush.msra.mxu0 0.0
  %2835 = vmatpush.msra.mxu0 0.0
  %2836 = vmatpush.msra.mxu0 0.0
  %2837 = vmatpush.msra.mxu0 0.0
  %2838 = vmatpush.msra.mxu0 0.0
  %2839 = vmatpush.msra.mxu0 0.0
  %2840 = vmatpush.msra.mxu0 0.0
  %2841 = vmatpush.msra.mxu0 0.0
  %2842 = vmatpush.msra.mxu0 0.0
  %v2843 = vand.u32 %v2075, 4294901760
  %2844 = vmatpush.msra.mxu0 %v2843
  %v2845 = vand.u32 %v2071, 4294901760
  %2846 = vmatpush.msra.mxu0 %v2845
  %v2847 = vand.u32 %v2067, 4294901760
  %2848 = vmatpush.msra.mxu0 %v2847
  %v2849 = vand.u32 %v2063, 4294901760
  %2850 = vmatpush.msra.mxu0 %v2849
  %v2851 = vand.u32 %v2082, 4294901760
  %v2852 = vsub.f32 %v2082, %v2851
  %v2853 = vand.u32 %v2852, 4294901760
  %v2854 = vsub.f32 %v2852, %v2853
  %v2855 = vand.u32 %v2854, 4294901760
  %2856 = vmatmul.f32.gmra.mxu0 %v2855
  %v2857 = vpop.f32.mrf.mxu0
  %v2858 = vadd.f32 0.0, %v2857
  %v2859 = vand.u32 %v2085, 4294901760
  %v2860 = vsub.f32 %v2085, %v2859
  %v2861 = vand.u32 %v2860, 4294901760
  %v2862 = vsub.f32 %v2860, %v2861
  %v2863 = vand.u32 %v2862, 4294901760
  %2864 = vmatmul.f32.gmra.mxu0 %v2863
  %v2865 = vpop.f32.mrf.mxu0
  %v2866 = vadd.f32 0.0, %v2865
  %v2867 = vand.u32 %v2088, 4294901760
  %v2868 = vsub.f32 %v2088, %v2867
  %v2869 = vand.u32 %v2868, 4294901760
  %v2870 = vsub.f32 %v2868, %v2869
  %v2871 = vand.u32 %v2870, 4294901760
  %2872 = vmatmul.f32.gmra.mxu0 %v2871
  %v2873 = vpop.f32.mrf.mxu0
  %v2874 = vadd.f32 0.0, %v2873
  %2875 = vdwg.mxu0
  %2876 = vmatpush.msra.mxu0 0.0
  %2877 = vmatpush.msra.mxu0 0.0
  %2878 = vmatpush.msra.mxu0 0.0
  %2879 = vmatpush.msra.mxu0 0.0
  %2880 = vmatpush.msra.mxu0 0.0
  %2881 = vmatpush.msra.mxu0 0.0
  %2882 = vmatpush.msra.mxu0 0.0
  %2883 = vmatpush.msra.mxu0 0.0
  %2884 = vmatpush.msra.mxu0 0.0
  %2885 = vmatpush.msra.mxu0 0.0
  %2886 = vmatpush.msra.mxu0 0.0
  %2887 = vmatpush.msra.mxu0 0.0
  %v2888 = vand.u32 %v2075, 4294901760
  %v2889 = vsub.f32 %v2075, %v2888
  %v2890 = vand.u32 %v2889, 4294901760
  %v2891 = vsub.f32 %v2889, %v2890
  %v2892 = vand.u32 %v2891, 4294901760
  %2893 = vmatpush.msra.mxu0 %v2892
  %v2894 = vand.u32 %v2071, 4294901760
  %v2895 = vsub.f32 %v2071, %v2894
  %v2896 = vand.u32 %v2895, 4294901760
  %v2897 = vsub.f32 %v2895, %v2896
  %v2898 = vand.u32 %v2897, 4294901760
  %2899 = vmatpush.msra.mxu0 %v2898
  %v2900 = vand.u32 %v2067, 4294901760
  %v2901 = vsub.f32 %v2067, %v2900
  %v2902 = vand.u32 %v2901, 4294901760
  %v2903 = vsub.f32 %v2901, %v2902
  %v2904 = vand.u32 %v2903, 4294901760
  %2905 = vmatpush.msra.mxu0 %v2904
  %v2906 = vand.u32 %v2063, 4294901760
  %v2907 = vsub.f32 %v2063, %v2906
  %v2908 = vand.u32 %v2907, 4294901760
  %v2909 = vsub.f32 %v2907, %v2908
  %v2910 = vand.u32 %v2909, 4294901760
  %2911 = vmatpush.msra.mxu0 %v2910
  %v2912 = vand.u32 %v2082, 4294901760
  %2913 = vmatmul.f32.gmra.mxu0 %v2912
  %v2914 = vpop.f32.mrf.mxu0
  %v2915 = vadd.f32 %v2858, %v2914
  %v2916 = vand.u32 %v2085, 4294901760
  %2917 = vmatmul.f32.gmra.mxu0 %v2916
  %v2918 = vpop.f32.mrf.mxu0
  %v2919 = vadd.f32 %v2866, %v2918
  %v2920 = vand.u32 %v2088, 4294901760
  %2921 = vmatmul.f32.gmra.mxu0 %v2920
  %v2922 = vpop.f32.mrf.mxu0
  %v2923 = vadd.f32 %v2874, %v2922
  %2924 = vdwg.mxu0
  %2925 = vmatpush.msra.mxu0 0.0
  %2926 = vmatpush.msra.mxu0 0.0
  %2927 = vmatpush.msra.mxu0 0.0
  %2928 = vmatpush.msra.mxu0 0.0
  %2929 = vmatpush.msra.mxu0 0.0
  %2930 = vmatpush.msra.mxu0 0.0
  %2931 = vmatpush.msra.mxu0 0.0
  %2932 = vmatpush.msra.mxu0 0.0
  %2933 = vmatpush.msra.mxu0 0.0
  %2934 = vmatpush.msra.mxu0 0.0
  %2935 = vmatpush.msra.mxu0 0.0
  %2936 = vmatpush.msra.mxu0 0.0
  %v2937 = vand.u32 %v2075, 4294901760
  %v2938 = vsub.f32 %v2075, %v2937
  %2939 = vmatpush.msra.mxu0 %v2938
  %v2940 = vand.u32 %v2071, 4294901760
  %v2941 = vsub.f32 %v2071, %v2940
  %2942 = vmatpush.msra.mxu0 %v2941
  %v2943 = vand.u32 %v2067, 4294901760
  %v2944 = vsub.f32 %v2067, %v2943
  %2945 = vmatpush.msra.mxu0 %v2944
  %v2946 = vand.u32 %v2063, 4294901760
  %v2947 = vsub.f32 %v2063, %v2946
  %2948 = vmatpush.msra.mxu0 %v2947
  %v2949 = vand.u32 %v2082, 4294901760
  %v2950 = vsub.f32 %v2082, %v2949
  %2951 = vmatmul.f32.gmra.mxu0 %v2950
  %v2952 = vpop.f32.mrf.mxu0
  %v2953 = vadd.f32 %v2915, %v2952
  %v2954 = vand.u32 %v2085, 4294901760
  %v2955 = vsub.f32 %v2085, %v2954
  %2956 = vmatmul.f32.gmra.mxu0 %v2955
  %v2957 = vpop.f32.mrf.mxu0
  %v2958 = vadd.f32 %v2919, %v2957
  %v2959 = vand.u32 %v2088, 4294901760
  %v2960 = vsub.f32 %v2088, %v2959
  %2961 = vmatmul.f32.gmra.mxu0 %v2960
  %v2962 = vpop.f32.mrf.mxu0
  %v2963 = vadd.f32 %v2923, %v2962
  %2964 = vdwg.mxu0
  %2965 = vmatpush.msra.mxu0 0.0
  %2966 = vmatpush.msra.mxu0 0.0
  %2967 = vmatpush.msra.mxu0 0.0
  %2968 = vmatpush.msra.mxu0 0.0
  %2969 = vmatpush.msra.mxu0 0.0
  %2970 = vmatpush.msra.mxu0 0.0
  %2971 = vmatpush.msra.mxu0 0.0
  %2972 = vmatpush.msra.mxu0 0.0
  %2973 = vmatpush.msra.mxu0 0.0
  %2974 = vmatpush.msra.mxu0 0.0
  %2975 = vmatpush.msra.mxu0 0.0
  %2976 = vmatpush.msra.mxu0 0.0
  %v2977 = vand.u32 %v2075, 4294901760
  %2978 = vmatpush.msra.mxu0 %v2977
  %v2979 = vand.u32 %v2071, 4294901760
  %2980 = vmatpush.msra.mxu0 %v2979
  %v2981 = vand.u32 %v2067, 4294901760
  %2982 = vmatpush.msra.mxu0 %v2981
  %v2983 = vand.u32 %v2063, 4294901760
  %2984 = vmatpush.msra.mxu0 %v2983
  %v2985 = vand.u32 %v2082, 4294901760
  %v2986 = vsub.f32 %v2082, %v2985
  %v2987 = vand.u32 %v2986, 4294901760
  %2988 = vmatmul.f32.gmra.mxu0 %v2987
  %v2989 = vpop.f32.mrf.mxu0
  %v2990 = vadd.f32 %v2953, %v2989
  %v2991 = vand.u32 %v2085, 4294901760
  %v2992 = vsub.f32 %v2085, %v2991
  %v2993 = vand.u32 %v2992, 4294901760
  %2994 = vmatmul.f32.gmra.mxu0 %v2993
  %v2995 = vpop.f32.mrf.mxu0
  %v2996 = vadd.f32 %v2958, %v2995
  %v2997 = vand.u32 %v2088, 4294901760
  %v2998 = vsub.f32 %v2088, %v2997
  %v2999 = vand.u32 %v2998, 4294901760
  %3000 = vmatmul.f32.gmra.mxu0 %v2999
  %v3001 = vpop.f32.mrf.mxu0
  %v3002 = vadd.f32 %v2963, %v3001
  %3003 = vdwg.mxu0
  %3004 = vmatpush.msra.mxu0 0.0
  %3005 = vmatpush.msra.mxu0 0.0
  %3006 = vmatpush.msra.mxu0 0.0
  %3007 = vmatpush.msra.mxu0 0.0
  %3008 = vmatpush.msra.mxu0 0.0
  %3009 = vmatpush.msra.mxu0 0.0
  %3010 = vmatpush.msra.mxu0 0.0
  %3011 = vmatpush.msra.mxu0 0.0
  %3012 = vmatpush.msra.mxu0 0.0
  %3013 = vmatpush.msra.mxu0 0.0
  %3014 = vmatpush.msra.mxu0 0.0
  %3015 = vmatpush.msra.mxu0 0.0
  %v3016 = vand.u32 %v2075, 4294901760
  %v3017 = vsub.f32 %v2075, %v3016
  %v3018 = vand.u32 %v3017, 4294901760
  %3019 = vmatpush.msra.mxu0 %v3018
  %v3020 = vand.u32 %v2071, 4294901760
  %v3021 = vsub.f32 %v2071, %v3020
  %v3022 = vand.u32 %v3021, 4294901760
  %3023 = vmatpush.msra.mxu0 %v3022
  %v3024 = vand.u32 %v2067, 4294901760
  %v3025 = vsub.f32 %v2067, %v3024
  %v3026 = vand.u32 %v3025, 4294901760
  %3027 = vmatpush.msra.mxu0 %v3026
  %v3028 = vand.u32 %v2063, 4294901760
  %v3029 = vsub.f32 %v2063, %v3028
  %v3030 = vand.u32 %v3029, 4294901760
  %3031 = vmatpush.msra.mxu0 %v3030
  %v3032 = vand.u32 %v2082, 4294901760
  %3033 = vmatmul.f32.gmra.mxu0 %v3032
  %v3034 = vpop.f32.mrf.mxu0
  %v3035 = vadd.f32 %v2990, %v3034
  %v3036 = vand.u32 %v2085, 4294901760
  %3037 = vmatmul.f32.gmra.mxu0 %v3036
  %v3038 = vpop.f32.mrf.mxu0
  %v3039 = vadd.f32 %v2996, %v3038
  %v3040 = vand.u32 %v2088, 4294901760
  %3041 = vmatmul.f32.gmra.mxu0 %v3040
  %v3042 = vpop.f32.mrf.mxu0
  %v3043 = vadd.f32 %v3002, %v3042
  %3044 = vdwg.mxu0
  %3045 = vmatpush.msra.mxu0 0.0
  %3046 = vmatpush.msra.mxu0 0.0
  %3047 = vmatpush.msra.mxu0 0.0
  %3048 = vmatpush.msra.mxu0 0.0
  %3049 = vmatpush.msra.mxu0 0.0
  %3050 = vmatpush.msra.mxu0 0.0
  %3051 = vmatpush.msra.mxu0 0.0
  %3052 = vmatpush.msra.mxu0 0.0
  %3053 = vmatpush.msra.mxu0 0.0
  %3054 = vmatpush.msra.mxu0 0.0
  %3055 = vmatpush.msra.mxu0 0.0
  %3056 = vmatpush.msra.mxu0 0.0
  %v3057 = vand.u32 %v2075, 4294901760
  %3058 = vmatpush.msra.mxu0 %v3057
  %v3059 = vand.u32 %v2071, 4294901760
  %3060 = vmatpush.msra.mxu0 %v3059
  %v3061 = vand.u32 %v2067, 4294901760
  %3062 = vmatpush.msra.mxu0 %v3061
  %v3063 = vand.u32 %v2063, 4294901760
  %3064 = vmatpush.msra.mxu0 %v3063
  %v3065 = vand.u32 %v2082, 4294901760
  %3066 = vmatmul.f32.gmra.mxu0 %v3065
  %v3067 = vpop.f32.mrf.mxu0
  %v3068 = vadd.f32 %v3035, %v3067
  %v3069 = vand.u32 %v2085, 4294901760
  %3070 = vmatmul.f32.gmra.mxu0 %v3069
  %v3071 = vpop.f32.mrf.mxu0
  %v3072 = vadd.f32 %v3039, %v3071
  %v3073 = vand.u32 %v2088, 4294901760
  %3074 = vmatmul.f32.gmra.mxu0 %v3073
  %v3075 = vpop.f32.mrf.mxu0
  %v3076 = vadd.f32 %v3043, %v3075
  %3077 = vdwg.mxu0
  %v3078 = vld [vmem:[%s3] sm:$0x77]
  %v3079 = vld [vmem:[%s3 + $0x8] sm:$0x77]
  %v3082 = vperm.slane %v3078, 0
  %v3083 = vperm.slane %v3078, 4
  %v3084 = vperm.slane %v3079, 0
  %v3085 = vperm.slane %v3079, 4
  %v3090 = vperm.slane %v3082, 0
  %v3091 = vperm.slane %v3083, 0
  %v3092 = vperm.slane %v3084, 0
  %v3093 = vperm.slane %v3085, 0
  %v3094 = vmul.f32 %v3090, %v2327
  %v3095 = vmul.f32 %v3091, %v2574
  %v3096 = vmul.f32 %v3092, %v2821
  %v3097 = vmul.f32 %v3093, %v3068
  %v3098 = vperm.slane %v3078, 1
  %v3099 = vperm.slane %v3078, 5
  %v3100 = vperm.slane %v3079, 1
  %v3101 = vperm.slane %v3079, 5
  %v3106 = vperm.slane %v3098, 1
  %v3107 = vperm.slane %v3099, 1
  %v3108 = vperm.slane %v3100, 1
  %v3109 = vperm.slane %v3101, 1
  %v3110 = vmul.f32 %v3106, %v2331
  %v3111 = vmul.f32 %v3107, %v2578
  %v3112 = vmul.f32 %v3108, %v2825
  %v3113 = vmul.f32 %v3109, %v3072
  %v3114 = vadd.f32 %v3094, %v3110
  %v3115 = vadd.f32 %v3095, %v3111
  %v3116 = vadd.f32 %v3096, %v3112
  %v3117 = vadd.f32 %v3097, %v3113
  %v3118 = vperm.slane %v3078, 2
  %v3119 = vperm.slane %v3078, 6
  %v3120 = vperm.slane %v3079, 2
  %v3121 = vperm.slane %v3079, 6
  %v3126 = vperm.slane %v3118, 2
  %v3127 = vperm.slane %v3119, 2
  %v3128 = vperm.slane %v3120, 2
  %v3129 = vperm.slane %v3121, 2
  %v3130 = vmul.f32 %v3126, %v2335
  %v3131 = vmul.f32 %v3127, %v2582
  %v3132 = vmul.f32 %v3128, %v2829
  %v3133 = vmul.f32 %v3129, %v3076
  %v3134 = vadd.f32 %v3114, %v3130
  %v3135 = vadd.f32 %v3115, %v3131
  %v3136 = vadd.f32 %v3116, %v3132
  %v3137 = vadd.f32 %v3117, %v3133
  %v3138 = vld [vmem:[%s4] sm:$0xff]
  %v3139 = vld [vmem:[%s4 + $0x8] sm:$0xff]
  %v3140 = vld [vmem:[%s4 + $0x10] sm:$0xff]
  %v3141 = vld [vmem:[%s4 + $0x18] sm:$0xff]
  %v3143 = vsel %vm84, %v413, 0
  %v3146 = vsel %vm84, %v417, 0
  %v3149 = vsel %vm84, %v421, 0
  %v3152 = vsel %vm84, %v425, 0
  %v3155 = vsel %vm84, %v3134, 0
  %3157 = vmatpush.xpose.msra.mxu0 0.0
  %3158 = vmatpush.xpose.msra.mxu0 0.0
  %3159 = vmatpush.xpose.msra.mxu0 0.0
  %3160 = vmatpush.xpose.msra.mxu0 0.0
  %3161 = vmatpush.xpose.msra.mxu0 0.0
  %3162 = vmatpush.xpose.msra.mxu0 0.0
  %3163 = vmatpush.xpose.msra.mxu0 0.0
  %3164 = vmatpush.xpose.msra.mxu0 0.0
  %3165 = vmatpush.xpose.msra.mxu0 0.0
  %3166 = vmatpush.xpose.msra.mxu0 0.0
  %3167 = vmatpush.xpose.msra.mxu0 0.0
  %3168 = vmatpush.xpose.msra.mxu0 0.0
  %3169 = vmatpush.xpose.msra.mxu0 0.0
  %3170 = vmatpush.xpose.msra.mxu0 0.0
  %3171 = vmatpush.xpose.msra.mxu0 0.0
  %v3172 = vand.u32 %v3155, 4294901760
  %3173 = vmatpush.xpose.msra.mxu0 %v3172
  %v3174 = vand.u32 %v3143, 4294901760
  %v3175 = vsub.f32 %v3143, %v3174
  %v3176 = vand.u32 %v3175, 4294901760
  %v3177 = vsub.f32 %v3175, %v3176
  %v3178 = vand.u32 %v3177, 4294901760
  %3179 = vmatmul.f32.gmra.mxu0 %v3178
  %v3180 = vpop.f32.mrf.mxu0
  %v3181 = vadd.f32 0.0, %v3180
  %v3182 = vand.u32 %v3146, 4294901760
  %v3183 = vsub.f32 %v3146, %v3182
  %v3184 = vand.u32 %v3183, 4294901760
  %v3185 = vsub.f32 %v3183, %v3184
  %v3186 = vand.u32 %v3185, 4294901760
  %3187 = vmatmul.f32.gmra.mxu0 %v3186
  %v3188 = vpop.f32.mrf.mxu0
  %v3189 = vadd.f32 0.0, %v3188
  %v3190 = vand.u32 %v3149, 4294901760
  %v3191 = vsub.f32 %v3149, %v3190
  %v3192 = vand.u32 %v3191, 4294901760
  %v3193 = vsub.f32 %v3191, %v3192
  %v3194 = vand.u32 %v3193, 4294901760
  %3195 = vmatmul.f32.gmra.mxu0 %v3194
  %v3196 = vpop.f32.mrf.mxu0
  %v3197 = vadd.f32 0.0, %v3196
  %v3198 = vand.u32 %v3152, 4294901760
  %v3199 = vsub.f32 %v3152, %v3198
  %v3200 = vand.u32 %v3199, 4294901760
  %v3201 = vsub.f32 %v3199, %v3200
  %v3202 = vand.u32 %v3201, 4294901760
  %3203 = vmatmul.f32.gmra.mxu0 %v3202
  %v3204 = vpop.f32.mrf.mxu0
  %v3205 = vadd.f32 0.0, %v3204
  %3206 = vdwg.mxu0
  %3207 = vmatpush.xpose.msra.mxu0 0.0
  %3208 = vmatpush.xpose.msra.mxu0 0.0
  %3209 = vmatpush.xpose.msra.mxu0 0.0
  %3210 = vmatpush.xpose.msra.mxu0 0.0
  %3211 = vmatpush.xpose.msra.mxu0 0.0
  %3212 = vmatpush.xpose.msra.mxu0 0.0
  %3213 = vmatpush.xpose.msra.mxu0 0.0
  %3214 = vmatpush.xpose.msra.mxu0 0.0
  %3215 = vmatpush.xpose.msra.mxu0 0.0
  %3216 = vmatpush.xpose.msra.mxu0 0.0
  %3217 = vmatpush.xpose.msra.mxu0 0.0
  %3218 = vmatpush.xpose.msra.mxu0 0.0
  %3219 = vmatpush.xpose.msra.mxu0 0.0
  %3220 = vmatpush.xpose.msra.mxu0 0.0
  %3221 = vmatpush.xpose.msra.mxu0 0.0
  %v3222 = vand.u32 %v3155, 4294901760
  %v3223 = vsub.f32 %v3155, %v3222
  %v3224 = vand.u32 %v3223, 4294901760
  %v3225 = vsub.f32 %v3223, %v3224
  %v3226 = vand.u32 %v3225, 4294901760
  %3227 = vmatpush.xpose.msra.mxu0 %v3226
  %v3228 = vand.u32 %v3143, 4294901760
  %3229 = vmatmul.f32.gmra.mxu0 %v3228
  %v3230 = vpop.f32.mrf.mxu0
  %v3231 = vadd.f32 %v3181, %v3230
  %v3232 = vand.u32 %v3146, 4294901760
  %3233 = vmatmul.f32.gmra.mxu0 %v3232
  %v3234 = vpop.f32.mrf.mxu0
  %v3235 = vadd.f32 %v3189, %v3234
  %v3236 = vand.u32 %v3149, 4294901760
  %3237 = vmatmul.f32.gmra.mxu0 %v3236
  %v3238 = vpop.f32.mrf.mxu0
  %v3239 = vadd.f32 %v3197, %v3238
  %v3240 = vand.u32 %v3152, 4294901760
  %3241 = vmatmul.f32.gmra.mxu0 %v3240
  %v3242 = vpop.f32.mrf.mxu0
  %v3243 = vadd.f32 %v3205, %v3242
  %3244 = vdwg.mxu0
  %3245 = vmatpush.xpose.msra.mxu0 0.0
  %3246 = vmatpush.xpose.msra.mxu0 0.0
  %3247 = vmatpush.xpose.msra.mxu0 0.0
  %3248 = vmatpush.xpose.msra.mxu0 0.0
  %3249 = vmatpush.xpose.msra.mxu0 0.0
  %3250 = vmatpush.xpose.msra.mxu0 0.0
  %3251 = vmatpush.xpose.msra.mxu0 0.0
  %3252 = vmatpush.xpose.msra.mxu0 0.0
  %3253 = vmatpush.xpose.msra.mxu0 0.0
  %3254 = vmatpush.xpose.msra.mxu0 0.0
  %3255 = vmatpush.xpose.msra.mxu0 0.0
  %3256 = vmatpush.xpose.msra.mxu0 0.0
  %3257 = vmatpush.xpose.msra.mxu0 0.0
  %3258 = vmatpush.xpose.msra.mxu0 0.0
  %3259 = vmatpush.xpose.msra.mxu0 0.0
  %v3260 = vand.u32 %v3155, 4294901760
  %v3261 = vsub.f32 %v3155, %v3260
  %3262 = vmatpush.xpose.msra.mxu0 %v3261
  %v3263 = vand.u32 %v3143, 4294901760
  %v3264 = vsub.f32 %v3143, %v3263
  %3265 = vmatmul.f32.gmra.mxu0 %v3264
  %v3266 = vpop.f32.mrf.mxu0
  %v3267 = vadd.f32 %v3231, %v3266
  %v3268 = vand.u32 %v3146, 4294901760
  %v3269 = vsub.f32 %v3146, %v3268
  %3270 = vmatmul.f32.gmra.mxu0 %v3269
  %v3271 = vpop.f32.mrf.mxu0
  %v3272 = vadd.f32 %v3235, %v3271
  %v3273 = vand.u32 %v3149, 4294901760
  %v3274 = vsub.f32 %v3149, %v3273
  %3275 = vmatmul.f32.gmra.mxu0 %v3274
  %v3276 = vpop.f32.mrf.mxu0
  %v3277 = vadd.f32 %v3239, %v3276
  %v3278 = vand.u32 %v3152, 4294901760
  %v3279 = vsub.f32 %v3152, %v3278
  %3280 = vmatmul.f32.gmra.mxu0 %v3279
  %v3281 = vpop.f32.mrf.mxu0
  %v3282 = vadd.f32 %v3243, %v3281
  %3283 = vdwg.mxu0
  %3284 = vmatpush.xpose.msra.mxu0 0.0
  %3285 = vmatpush.xpose.msra.mxu0 0.0
  %3286 = vmatpush.xpose.msra.mxu0 0.0
  %3287 = vmatpush.xpose.msra.mxu0 0.0
  %3288 = vmatpush.xpose.msra.mxu0 0.0
  %3289 = vmatpush.xpose.msra.mxu0 0.0
  %3290 = vmatpush.xpose.msra.mxu0 0.0
  %3291 = vmatpush.xpose.msra.mxu0 0.0
  %3292 = vmatpush.xpose.msra.mxu0 0.0
  %3293 = vmatpush.xpose.msra.mxu0 0.0
  %3294 = vmatpush.xpose.msra.mxu0 0.0
  %3295 = vmatpush.xpose.msra.mxu0 0.0
  %3296 = vmatpush.xpose.msra.mxu0 0.0
  %3297 = vmatpush.xpose.msra.mxu0 0.0
  %3298 = vmatpush.xpose.msra.mxu0 0.0
  %v3299 = vand.u32 %v3155, 4294901760
  %3300 = vmatpush.xpose.msra.mxu0 %v3299
  %v3301 = vand.u32 %v3143, 4294901760
  %v3302 = vsub.f32 %v3143, %v3301
  %v3303 = vand.u32 %v3302, 4294901760
  %3304 = vmatmul.f32.gmra.mxu0 %v3303
  %v3305 = vpop.f32.mrf.mxu0
  %v3306 = vadd.f32 %v3267, %v3305
  %v3307 = vand.u32 %v3146, 4294901760
  %v3308 = vsub.f32 %v3146, %v3307
  %v3309 = vand.u32 %v3308, 4294901760
  %3310 = vmatmul.f32.gmra.mxu0 %v3309
  %v3311 = vpop.f32.mrf.mxu0
  %v3312 = vadd.f32 %v3272, %v3311
  %v3313 = vand.u32 %v3149, 4294901760
  %v3314 = vsub.f32 %v3149, %v3313
  %v3315 = vand.u32 %v3314, 4294901760
  %3316 = vmatmul.f32.gmra.mxu0 %v3315
  %v3317 = vpop.f32.mrf.mxu0
  %v3318 = vadd.f32 %v3277, %v3317
  %v3319 = vand.u32 %v3152, 4294901760
  %v3320 = vsub.f32 %v3152, %v3319
  %v3321 = vand.u32 %v3320, 4294901760
  %3322 = vmatmul.f32.gmra.mxu0 %v3321
  %v3323 = vpop.f32.mrf.mxu0
  %v3324 = vadd.f32 %v3282, %v3323
  %3325 = vdwg.mxu0
  %3326 = vmatpush.xpose.msra.mxu0 0.0
  %3327 = vmatpush.xpose.msra.mxu0 0.0
  %3328 = vmatpush.xpose.msra.mxu0 0.0
  %3329 = vmatpush.xpose.msra.mxu0 0.0
  %3330 = vmatpush.xpose.msra.mxu0 0.0
  %3331 = vmatpush.xpose.msra.mxu0 0.0
  %3332 = vmatpush.xpose.msra.mxu0 0.0
  %3333 = vmatpush.xpose.msra.mxu0 0.0
  %3334 = vmatpush.xpose.msra.mxu0 0.0
  %3335 = vmatpush.xpose.msra.mxu0 0.0
  %3336 = vmatpush.xpose.msra.mxu0 0.0
  %3337 = vmatpush.xpose.msra.mxu0 0.0
  %3338 = vmatpush.xpose.msra.mxu0 0.0
  %3339 = vmatpush.xpose.msra.mxu0 0.0
  %3340 = vmatpush.xpose.msra.mxu0 0.0
  %v3341 = vand.u32 %v3155, 4294901760
  %v3342 = vsub.f32 %v3155, %v3341
  %v3343 = vand.u32 %v3342, 4294901760
  %3344 = vmatpush.xpose.msra.mxu0 %v3343
  %v3345 = vand.u32 %v3143, 4294901760
  %3346 = vmatmul.f32.gmra.mxu0 %v3345
  %v3347 = vpop.f32.mrf.mxu0
  %v3348 = vadd.f32 %v3306, %v3347
  %v3349 = vand.u32 %v3146, 4294901760
  %3350 = vmatmul.f32.gmra.mxu0 %v3349
  %v3351 = vpop.f32.mrf.mxu0
  %v3352 = vadd.f32 %v3312, %v3351
  %v3353 = vand.u32 %v3149, 4294901760
  %3354 = vmatmul.f32.gmra.mxu0 %v3353
  %v3355 = vpop.f32.mrf.mxu0
  %v3356 = vadd.f32 %v3318, %v3355
  %v3357 = vand.u32 %v3152, 4294901760
  %3358 = vmatmul.f32.gmra.mxu0 %v3357
  %v3359 = vpop.f32.mrf.mxu0
  %v3360 = vadd.f32 %v3324, %v3359
  %3361 = vdwg.mxu0
  %3362 = vmatpush.xpose.msra.mxu0 0.0
  %3363 = vmatpush.xpose.msra.mxu0 0.0
  %3364 = vmatpush.xpose.msra.mxu0 0.0
  %3365 = vmatpush.xpose.msra.mxu0 0.0
  %3366 = vmatpush.xpose.msra.mxu0 0.0
  %3367 = vmatpush.xpose.msra.mxu0 0.0
  %3368 = vmatpush.xpose.msra.mxu0 0.0
  %3369 = vmatpush.xpose.msra.mxu0 0.0
  %3370 = vmatpush.xpose.msra.mxu0 0.0
  %3371 = vmatpush.xpose.msra.mxu0 0.0
  %3372 = vmatpush.xpose.msra.mxu0 0.0
  %3373 = vmatpush.xpose.msra.mxu0 0.0
  %3374 = vmatpush.xpose.msra.mxu0 0.0
  %3375 = vmatpush.xpose.msra.mxu0 0.0
  %3376 = vmatpush.xpose.msra.mxu0 0.0
  %v3377 = vand.u32 %v3155, 4294901760
  %3378 = vmatpush.xpose.msra.mxu0 %v3377
  %v3379 = vand.u32 %v3143, 4294901760
  %3380 = vmatmul.f32.gmra.mxu0 %v3379
  %v3381 = vpop.f32.mrf.mxu0
  %v3382 = vadd.f32 %v3348, %v3381
  %v3383 = vand.u32 %v3146, 4294901760
  %3384 = vmatmul.f32.gmra.mxu0 %v3383
  %v3385 = vpop.f32.mrf.mxu0
  %v3386 = vadd.f32 %v3352, %v3385
  %v3387 = vand.u32 %v3149, 4294901760
  %3388 = vmatmul.f32.gmra.mxu0 %v3387
  %v3389 = vpop.f32.mrf.mxu0
  %v3390 = vadd.f32 %v3356, %v3389
  %v3391 = vand.u32 %v3152, 4294901760
  %3392 = vmatmul.f32.gmra.mxu0 %v3391
  %v3393 = vpop.f32.mrf.mxu0
  %v3394 = vadd.f32 %v3360, %v3393
  %3395 = vdwg.mxu0
  %v3396 = vmul.f32 %v3382, 0.125
  %v3397 = vmul.f32 %v3386, 0.125
  %v3398 = vmul.f32 %v3390, 0.125
  %v3399 = vmul.f32 %v3394, 0.125
  %v3400 = vadd.f32 %v3396, %v3138
  %v3401 = vadd.f32 %v3397, %v3139
  %v3402 = vadd.f32 %v3398, %v3140
  %v3403 = vadd.f32 %v3399, %v3141
  %vm3404 = vcmask 64512
  %v3405 = vsel %vm3404, %v3400, -inf
  %3406 = vmax.xlane.f32.xlu0 %v3405
  %v3407 = vpop.xlane.xlu0 %3406
  %v3408 = vsel %vm3404, %v3401, -inf
  %3409 = vmax.xlane.f32.xlu0 %v3408
  %v3410 = vpop.xlane.xlu0 %3409
  %v3411 = vsel %vm3404, %v3402, -inf
  %3412 = vmax.xlane.f32.xlu0 %v3411
  %v3413 = vpop.xlane.xlu0 %3412
  %v3414 = vsel %vm3404, %v3403, -inf
  %3415 = vmax.xlane.f32.xlu0 %v3414
  %v3416 = vpop.xlane.xlu0 %3415
  %v3417 = vsub.f32 %v3400, %v3407
  %v3418 = vsub.f32 %v3401, %v3410
  %v3419 = vsub.f32 %v3402, %v3413
  %v3420 = vsub.f32 %v3403, %v3416
  %v3421 = vmul.f32 %v3417, 1.442695
  %v3422 = vpow.pop %v3421
  %v3423 = vmul.f32 %v3418, 1.442695
  %v3424 = vpow.pop %v3423
  %v3425 = vmul.f32 %v3419, 1.442695
  %v3426 = vpow.pop %v3425
  %v3427 = vmul.f32 %v3420, 1.442695
  %v3428 = vpow.pop %v3427
  %v3429 = vsel %vm3404, %v3422, 0.0
  %3430 = vadd.xlane.f32.xlu0 %v3429
  %v3431 = vpop.xlane.xlu0 %3430
  %v3432 = vsel %vm3404, %v3424, 0.0
  %3433 = vadd.xlane.f32.xlu0 %v3432
  %v3434 = vpop.xlane.xlu0 %3433
  %v3435 = vsel %vm3404, %v3426, 0.0
  %3436 = vadd.xlane.f32.xlu0 %v3435
  %v3437 = vpop.xlane.xlu0 %3436
  %v3438 = vsel %vm3404, %v3428, 0.0
  %3439 = vadd.xlane.f32.xlu0 %v3438
  %v3440 = vpop.xlane.xlu0 %3439
  %v3441 = vrcp.pop %v3431
  %v3442 = vmul.f32 %v3431, %v3441
  %v3443 = vsub.f32 1.0, %v3442
  %v3444 = vmul.f32 %v3441, %v3443
  %v3445 = vadd.f32 %v3441, %v3444
  %vm3446 = vweird.f32 %v3431
  %vm3447 = vweird.f32 %v3441
  %vm3448 = vmor %vm3446, %vm3447
  %v3449 = vsel %vm3448, %v3441, %v3445
  %v3450 = vand.u32 2147483647, %v3431
  %vm3451 = vcmp.eq.f32.partialorder %v3450, 8.507059e+37
  %v3452 = vand.u32 %v3431, 2147483648
  %v3453 = vor.u32 1.1754944e-38, %v3452
  %v3454 = vsel %vm3451, %v3453, %v3449
  %v3455 = vmul.f32 %v3422, %v3454
  %v3456 = vrcp.pop %v3434
  %v3457 = vmul.f32 %v3434, %v3456
  %v3458 = vsub.f32 1.0, %v3457
  %v3459 = vmul.f32 %v3456, %v3458
  %v3460 = vadd.f32 %v3456, %v3459
  %vm3461 = vweird.f32 %v3434
  %vm3462 = vweird.f32 %v3456
  %vm3463 = vmor %vm3461, %vm3462
  %v3464 = vsel %vm3463, %v3456, %v3460
  %v3465 = vand.u32 2147483647, %v3434
  %vm3466 = vcmp.eq.f32.partialorder %v3465, 8.507059e+37
  %v3467 = vand.u32 %v3434, 2147483648
  %v3468 = vor.u32 1.1754944e-38, %v3467
  %v3469 = vsel %vm3466, %v3468, %v3464
  %v3470 = vmul.f32 %v3424, %v3469
  %v3471 = vrcp.pop %v3437
  %v3472 = vmul.f32 %v3437, %v3471
  %v3473 = vsub.f32 1.0, %v3472
  %v3474 = vmul.f32 %v3471, %v3473
  %v3475 = vadd.f32 %v3471, %v3474
  %vm3476 = vweird.f32 %v3437
  %vm3477 = vweird.f32 %v3471
  %vm3478 = vmor %vm3476, %vm3477
  %v3479 = vsel %vm3478, %v3471, %v3475
  %v3480 = vand.u32 2147483647, %v3437
  %vm3481 = vcmp.eq.f32.partialorder %v3480, 8.507059e+37
  %v3482 = vand.u32 %v3437, 2147483648
  %v3483 = vor.u32 1.1754944e-38, %v3482
  %v3484 = vsel %vm3481, %v3483, %v3479
  %v3485 = vmul.f32 %v3426, %v3484
  %v3486 = vrcp.pop %v3440
  %v3487 = vmul.f32 %v3440, %v3486
  %v3488 = vsub.f32 1.0, %v3487
  %v3489 = vmul.f32 %v3486, %v3488
  %v3490 = vadd.f32 %v3486, %v3489
  %vm3491 = vweird.f32 %v3440
  %vm3492 = vweird.f32 %v3486
  %vm3493 = vmor %vm3491, %vm3492
  %v3494 = vsel %vm3493, %v3486, %v3490
  %v3495 = vand.u32 2147483647, %v3440
  %vm3496 = vcmp.eq.f32.partialorder %v3495, 8.507059e+37
  %v3497 = vand.u32 %v3440, 2147483648
  %v3498 = vor.u32 1.1754944e-38, %v3497
  %v3499 = vsel %vm3496, %v3498, %v3494
  %v3500 = vmul.f32 %v3428, %v3499
  %v3502 = vsel %vm3404, %v3455, 0
  %v3505 = vsel %vm3404, %v3470, 0
  %v3508 = vsel %vm3404, %v3485, 0
  %v3511 = vsel %vm3404, %v3500, 0
  %3513 = vmatpush.msra.mxu0 0.0
  %3514 = vmatpush.msra.mxu0 0.0
  %3515 = vmatpush.msra.mxu0 0.0
  %3516 = vmatpush.msra.mxu0 0.0
  %3517 = vmatpush.msra.mxu0 0.0
  %3518 = vmatpush.msra.mxu0 0.0
  %3519 = vmatpush.msra.mxu0 0.0
  %3520 = vmatpush.msra.mxu0 0.0
  %3521 = vmatpush.msra.mxu0 0.0
  %3522 = vmatpush.msra.mxu0 0.0
  %3523 = vmatpush.msra.mxu0 0.0
  %3524 = vmatpush.msra.mxu0 0.0
  %3525 = vmatpush.msra.mxu0 0.0
  %3526 = vmatpush.msra.mxu0 0.0
  %3527 = vmatpush.msra.mxu0 0.0
  %v3528 = vand.u32 %v3136, 4294901760
  %3529 = vmatpush.msra.mxu0 %v3528
  %v3530 = vand.u32 %v3502, 4294901760
  %v3531 = vsub.f32 %v3502, %v3530
  %v3532 = vand.u32 %v3531, 4294901760
  %v3533 = vsub.f32 %v3531, %v3532
  %v3534 = vand.u32 %v3533, 4294901760
  %3535 = vmatmul.f32.gmra.mxu0 %v3534
  %v3536 = vpop.f32.mrf.mxu0
  %v3537 = vadd.f32 0.0, %v3536
  %v3538 = vand.u32 %v3505, 4294901760
  %v3539 = vsub.f32 %v3505, %v3538
  %v3540 = vand.u32 %v3539, 4294901760
  %v3541 = vsub.f32 %v3539, %v3540
  %v3542 = vand.u32 %v3541, 4294901760
  %3543 = vmatmul.f32.gmra.mxu0 %v3542
  %v3544 = vpop.f32.mrf.mxu0
  %v3545 = vadd.f32 0.0, %v3544
  %v3546 = vand.u32 %v3508, 4294901760
  %v3547 = vsub.f32 %v3508, %v3546
  %v3548 = vand.u32 %v3547, 4294901760
  %v3549 = vsub.f32 %v3547, %v3548
  %v3550 = vand.u32 %v3549, 4294901760
  %3551 = vmatmul.f32.gmra.mxu0 %v3550
  %v3552 = vpop.f32.mrf.mxu0
  %v3553 = vadd.f32 0.0, %v3552
  %v3554 = vand.u32 %v3511, 4294901760
  %v3555 = vsub.f32 %v3511, %v3554
  %v3556 = vand.u32 %v3555, 4294901760
  %v3557 = vsub.f32 %v3555, %v3556
  %v3558 = vand.u32 %v3557, 4294901760
  %3559 = vmatmul.f32.gmra.mxu0 %v3558
  %v3560 = vpop.f32.mrf.mxu0
  %v3561 = vadd.f32 0.0, %v3560
  %3562 = vdwg.mxu0
  %3563 = vmatpush.msra.mxu0 0.0
  %3564 = vmatpush.msra.mxu0 0.0
  %3565 = vmatpush.msra.mxu0 0.0
  %3566 = vmatpush.msra.mxu0 0.0
  %3567 = vmatpush.msra.mxu0 0.0
  %3568 = vmatpush.msra.mxu0 0.0
  %3569 = vmatpush.msra.mxu0 0.0
  %3570 = vmatpush.msra.mxu0 0.0
  %3571 = vmatpush.msra.mxu0 0.0
  %3572 = vmatpush.msra.mxu0 0.0
  %3573 = vmatpush.msra.mxu0 0.0
  %3574 = vmatpush.msra.mxu0 0.0
  %3575 = vmatpush.msra.mxu0 0.0
  %3576 = vmatpush.msra.mxu0 0.0
  %3577 = vmatpush.msra.mxu0 0.0
  %v3578 = vand.u32 %v3136, 4294901760
  %v3579 = vsub.f32 %v3136, %v3578
  %v3580 = vand.u32 %v3579, 4294901760
  %v3581 = vsub.f32 %v3579, %v3580
  %v3582 = vand.u32 %v3581, 4294901760
  %3583 = vmatpush.msra.mxu0 %v3582
  %v3584 = vand.u32 %v3502, 4294901760
  %3585 = vmatmul.f32.gmra.mxu0 %v3584
  %v3586 = vpop.f32.mrf.mxu0
  %v3587 = vadd.f32 %v3537, %v3586
  %v3588 = vand.u32 %v3505, 4294901760
  %3589 = vmatmul.f32.gmra.mxu0 %v3588
  %v3590 = vpop.f32.mrf.mxu0
  %v3591 = vadd.f32 %v3545, %v3590
  %v3592 = vand.u32 %v3508, 4294901760
  %3593 = vmatmul.f32.gmra.mxu0 %v3592
  %v3594 = vpop.f32.mrf.mxu0
  %v3595 = vadd.f32 %v3553, %v3594
  %v3596 = vand.u32 %v3511, 4294901760
  %3597 = vmatmul.f32.gmra.mxu0 %v3596
  %v3598 = vpop.f32.mrf.mxu0
  %v3599 = vadd.f32 %v3561, %v3598
  %3600 = vdwg.mxu0
  %3601 = vmatpush.msra.mxu0 0.0
  %3602 = vmatpush.msra.mxu0 0.0
  %3603 = vmatpush.msra.mxu0 0.0
  %3604 = vmatpush.msra.mxu0 0.0
  %3605 = vmatpush.msra.mxu0 0.0
  %3606 = vmatpush.msra.mxu0 0.0
  %3607 = vmatpush.msra.mxu0 0.0
  %3608 = vmatpush.msra.mxu0 0.0
  %3609 = vmatpush.msra.mxu0 0.0
  %3610 = vmatpush.msra.mxu0 0.0
  %3611 = vmatpush.msra.mxu0 0.0
  %3612 = vmatpush.msra.mxu0 0.0
  %3613 = vmatpush.msra.mxu0 0.0
  %3614 = vmatpush.msra.mxu0 0.0
  %3615 = vmatpush.msra.mxu0 0.0
  %v3616 = vand.u32 %v3136, 4294901760
  %v3617 = vsub.f32 %v3136, %v3616
  %3618 = vmatpush.msra.mxu0 %v3617
  %v3619 = vand.u32 %v3502, 4294901760
  %v3620 = vsub.f32 %v3502, %v3619
  %3621 = vmatmul.f32.gmra.mxu0 %v3620
  %v3622 = vpop.f32.mrf.mxu0
  %v3623 = vadd.f32 %v3587, %v3622
  %v3624 = vand.u32 %v3505, 4294901760
  %v3625 = vsub.f32 %v3505, %v3624
  %3626 = vmatmul.f32.gmra.mxu0 %v3625
  %v3627 = vpop.f32.mrf.mxu0
  %v3628 = vadd.f32 %v3591, %v3627
  %v3629 = vand.u32 %v3508, 4294901760
  %v3630 = vsub.f32 %v3508, %v3629
  %3631 = vmatmul.f32.gmra.mxu0 %v3630
  %v3632 = vpop.f32.mrf.mxu0
  %v3633 = vadd.f32 %v3595, %v3632
  %v3634 = vand.u32 %v3511, 4294901760
  %v3635 = vsub.f32 %v3511, %v3634
  %3636 = vmatmul.f32.gmra.mxu0 %v3635
  %v3637 = vpop.f32.mrf.mxu0
  %v3638 = vadd.f32 %v3599, %v3637
  %3639 = vdwg.mxu0
  %3640 = vmatpush.msra.mxu0 0.0
  %3641 = vmatpush.msra.mxu0 0.0
  %3642 = vmatpush.msra.mxu0 0.0
  %3643 = vmatpush.msra.mxu0 0.0
  %3644 = vmatpush.msra.mxu0 0.0
  %3645 = vmatpush.msra.mxu0 0.0
  %3646 = vmatpush.msra.mxu0 0.0
  %3647 = vmatpush.msra.mxu0 0.0
  %3648 = vmatpush.msra.mxu0 0.0
  %3649 = vmatpush.msra.mxu0 0.0
  %3650 = vmatpush.msra.mxu0 0.0
  %3651 = vmatpush.msra.mxu0 0.0
  %3652 = vmatpush.msra.mxu0 0.0
  %3653 = vmatpush.msra.mxu0 0.0
  %3654 = vmatpush.msra.mxu0 0.0
  %v3655 = vand.u32 %v3136, 4294901760
  %3656 = vmatpush.msra.mxu0 %v3655
  %v3657 = vand.u32 %v3502, 4294901760
  %v3658 = vsub.f32 %v3502, %v3657
  %v3659 = vand.u32 %v3658, 4294901760
  %3660 = vmatmul.f32.gmra.mxu0 %v3659
  %v3661 = vpop.f32.mrf.mxu0
  %v3662 = vadd.f32 %v3623, %v3661
  %v3663 = vand.u32 %v3505, 4294901760
  %v3664 = vsub.f32 %v3505, %v3663
  %v3665 = vand.u32 %v3664, 4294901760
  %3666 = vmatmul.f32.gmra.mxu0 %v3665
  %v3667 = vpop.f32.mrf.mxu0
  %v3668 = vadd.f32 %v3628, %v3667
  %v3669 = vand.u32 %v3508, 4294901760
  %v3670 = vsub.f32 %v3508, %v3669
  %v3671 = vand.u32 %v3670, 4294901760
  %3672 = vmatmul.f32.gmra.mxu0 %v3671
  %v3673 = vpop.f32.mrf.mxu0
  %v3674 = vadd.f32 %v3633, %v3673
  %v3675 = vand.u32 %v3511, 4294901760
  %v3676 = vsub.f32 %v3511, %v3675
  %v3677 = vand.u32 %v3676, 4294901760
  %3678 = vmatmul.f32.gmra.mxu0 %v3677
  %v3679 = vpop.f32.mrf.mxu0
  %v3680 = vadd.f32 %v3638, %v3679
  %3681 = vdwg.mxu0
  %3682 = vmatpush.msra.mxu0 0.0
  %3683 = vmatpush.msra.mxu0 0.0
  %3684 = vmatpush.msra.mxu0 0.0
  %3685 = vmatpush.msra.mxu0 0.0
  %3686 = vmatpush.msra.mxu0 0.0
  %3687 = vmatpush.msra.mxu0 0.0
  %3688 = vmatpush.msra.mxu0 0.0
  %3689 = vmatpush.msra.mxu0 0.0
  %3690 = vmatpush.msra.mxu0 0.0
  %3691 = vmatpush.msra.mxu0 0.0
  %3692 = vmatpush.msra.mxu0 0.0
  %3693 = vmatpush.msra.mxu0 0.0
  %3694 = vmatpush.msra.mxu0 0.0
  %3695 = vmatpush.msra.mxu0 0.0
  %3696 = vmatpush.msra.mxu0 0.0
  %v3697 = vand.u32 %v3136, 4294901760
  %v3698 = vsub.f32 %v3136, %v3697
  %v3699 = vand.u32 %v3698, 4294901760
  %3700 = vmatpush.msra.mxu0 %v3699
  %v3701 = vand.u32 %v3502, 4294901760
  %3702 = vmatmul.f32.gmra.mxu0 %v3701
  %v3703 = vpop.f32.mrf.mxu0
  %v3704 = vadd.f32 %v3662, %v3703
  %v3705 = vand.u32 %v3505, 4294901760
  %3706 = vmatmul.f32.gmra.mxu0 %v3705
  %v3707 = vpop.f32.mrf.mxu0
  %v3708 = vadd.f32 %v3668, %v3707
  %v3709 = vand.u32 %v3508, 4294901760
  %3710 = vmatmul.f32.gmra.mxu0 %v3709
  %v3711 = vpop.f32.mrf.mxu0
  %v3712 = vadd.f32 %v3674, %v3711
  %v3713 = vand.u32 %v3511, 4294901760
  %3714 = vmatmul.f32.gmra.mxu0 %v3713
  %v3715 = vpop.f32.mrf.mxu0
  %v3716 = vadd.f32 %v3680, %v3715
  %3717 = vdwg.mxu0
  %3718 = vmatpush.msra.mxu0 0.0
  %3719 = vmatpush.msra.mxu0 0.0
  %3720 = vmatpush.msra.mxu0 0.0
  %3721 = vmatpush.msra.mxu0 0.0
  %3722 = vmatpush.msra.mxu0 0.0
  %3723 = vmatpush.msra.mxu0 0.0
  %3724 = vmatpush.msra.mxu0 0.0
  %3725 = vmatpush.msra.mxu0 0.0
  %3726 = vmatpush.msra.mxu0 0.0
  %3727 = vmatpush.msra.mxu0 0.0
  %3728 = vmatpush.msra.mxu0 0.0
  %3729 = vmatpush.msra.mxu0 0.0
  %3730 = vmatpush.msra.mxu0 0.0
  %3731 = vmatpush.msra.mxu0 0.0
  %3732 = vmatpush.msra.mxu0 0.0
  %v3733 = vand.u32 %v3136, 4294901760
  %3734 = vmatpush.msra.mxu0 %v3733
  %v3735 = vand.u32 %v3502, 4294901760
  %3736 = vmatmul.f32.gmra.mxu0 %v3735
  %v3737 = vpop.f32.mrf.mxu0
  %v3738 = vadd.f32 %v3704, %v3737
  %v3739 = vand.u32 %v3505, 4294901760
  %3740 = vmatmul.f32.gmra.mxu0 %v3739
  %v3741 = vpop.f32.mrf.mxu0
  %v3742 = vadd.f32 %v3708, %v3741
  %v3743 = vand.u32 %v3508, 4294901760
  %3744 = vmatmul.f32.gmra.mxu0 %v3743
  %v3745 = vpop.f32.mrf.mxu0
  %v3746 = vadd.f32 %v3712, %v3745
  %v3747 = vand.u32 %v3511, 4294901760
  %3748 = vmatmul.f32.gmra.mxu0 %v3747
  %v3749 = vpop.f32.mrf.mxu0
  %v3750 = vadd.f32 %v3716, %v3749
  %3751 = vdwg.mxu0
  %3752 = vrot.lane.b32.xlu0 %v413, 64
  %v3753 = vpop.permute.xlu0 %3752
  %3754 = vrot.lane.b32.xlu0 %v417, 64
  %v3755 = vpop.permute.xlu0 %3754
  %3756 = vrot.lane.b32.xlu0 %v421, 64
  %v3757 = vpop.permute.xlu0 %3756
  %3758 = vrot.lane.b32.xlu0 %v425, 64
  %v3759 = vpop.permute.xlu0 %3758
  %3760 = vrot.lane.b32.xlu0 %v3134, 64
  %v3761 = vpop.permute.xlu0 %3760
  %v3762 = vsel %vm84, %v3753, 0
  %v3764 = vsel %vm84, %v3755, 0
  %v3766 = vsel %vm84, %v3757, 0
  %v3768 = vsel %vm84, %v3759, 0
  %v3770 = vsel %vm84, %v3761, 0
  %3772 = vmatpush.xpose.msra.mxu0 0.0
  %3773 = vmatpush.xpose.msra.mxu0 0.0
  %3774 = vmatpush.xpose.msra.mxu0 0.0
  %3775 = vmatpush.xpose.msra.mxu0 0.0
  %3776 = vmatpush.xpose.msra.mxu0 0.0
  %3777 = vmatpush.xpose.msra.mxu0 0.0
  %3778 = vmatpush.xpose.msra.mxu0 0.0
  %3779 = vmatpush.xpose.msra.mxu0 0.0
  %3780 = vmatpush.xpose.msra.mxu0 0.0
  %3781 = vmatpush.xpose.msra.mxu0 0.0
  %3782 = vmatpush.xpose.msra.mxu0 0.0
  %3783 = vmatpush.xpose.msra.mxu0 0.0
  %3784 = vmatpush.xpose.msra.mxu0 0.0
  %3785 = vmatpush.xpose.msra.mxu0 0.0
  %3786 = vmatpush.xpose.msra.mxu0 0.0
  %v3787 = vand.u32 %v3770, 4294901760
  %3788 = vmatpush.xpose.msra.mxu0 %v3787
  %v3789 = vand.u32 %v3762, 4294901760
  %v3790 = vsub.f32 %v3762, %v3789
  %v3791 = vand.u32 %v3790, 4294901760
  %v3792 = vsub.f32 %v3790, %v3791
  %v3793 = vand.u32 %v3792, 4294901760
  %3794 = vmatmul.f32.gmra.mxu0 %v3793
  %v3795 = vpop.f32.mrf.mxu0
  %v3796 = vadd.f32 0.0, %v3795
  %v3797 = vand.u32 %v3764, 4294901760
  %v3798 = vsub.f32 %v3764, %v3797
  %v3799 = vand.u32 %v3798, 4294901760
  %v3800 = vsub.f32 %v3798, %v3799
  %v3801 = vand.u32 %v3800, 4294901760
  %3802 = vmatmul.f32.gmra.mxu0 %v3801
  %v3803 = vpop.f32.mrf.mxu0
  %v3804 = vadd.f32 0.0, %v3803
  %v3805 = vand.u32 %v3766, 4294901760
  %v3806 = vsub.f32 %v3766, %v3805
  %v3807 = vand.u32 %v3806, 4294901760
  %v3808 = vsub.f32 %v3806, %v3807
  %v3809 = vand.u32 %v3808, 4294901760
  %3810 = vmatmul.f32.gmra.mxu0 %v3809
  %v3811 = vpop.f32.mrf.mxu0
  %v3812 = vadd.f32 0.0, %v3811
  %v3813 = vand.u32 %v3768, 4294901760
  %v3814 = vsub.f32 %v3768, %v3813
  %v3815 = vand.u32 %v3814, 4294901760
  %v3816 = vsub.f32 %v3814, %v3815
  %v3817 = vand.u32 %v3816, 4294901760
  %3818 = vmatmul.f32.gmra.mxu0 %v3817
  %v3819 = vpop.f32.mrf.mxu0
  %v3820 = vadd.f32 0.0, %v3819
  %3821 = vdwg.mxu0
  %3822 = vmatpush.xpose.msra.mxu0 0.0
  %3823 = vmatpush.xpose.msra.mxu0 0.0
  %3824 = vmatpush.xpose.msra.mxu0 0.0
  %3825 = vmatpush.xpose.msra.mxu0 0.0
  %3826 = vmatpush.xpose.msra.mxu0 0.0
  %3827 = vmatpush.xpose.msra.mxu0 0.0
  %3828 = vmatpush.xpose.msra.mxu0 0.0
  %3829 = vmatpush.xpose.msra.mxu0 0.0
  %3830 = vmatpush.xpose.msra.mxu0 0.0
  %3831 = vmatpush.xpose.msra.mxu0 0.0
  %3832 = vmatpush.xpose.msra.mxu0 0.0
  %3833 = vmatpush.xpose.msra.mxu0 0.0
  %3834 = vmatpush.xpose.msra.mxu0 0.0
  %3835 = vmatpush.xpose.msra.mxu0 0.0
  %3836 = vmatpush.xpose.msra.mxu0 0.0
  %v3837 = vand.u32 %v3770, 4294901760
  %v3838 = vsub.f32 %v3770, %v3837
  %v3839 = vand.u32 %v3838, 4294901760
  %v3840 = vsub.f32 %v3838, %v3839
  %v3841 = vand.u32 %v3840, 4294901760
  %3842 = vmatpush.xpose.msra.mxu0 %v3841
  %v3843 = vand.u32 %v3762, 4294901760
  %3844 = vmatmul.f32.gmra.mxu0 %v3843
  %v3845 = vpop.f32.mrf.mxu0
  %v3846 = vadd.f32 %v3796, %v3845
  %v3847 = vand.u32 %v3764, 4294901760
  %3848 = vmatmul.f32.gmra.mxu0 %v3847
  %v3849 = vpop.f32.mrf.mxu0
  %v3850 = vadd.f32 %v3804, %v3849
  %v3851 = vand.u32 %v3766, 4294901760
  %3852 = vmatmul.f32.gmra.mxu0 %v3851
  %v3853 = vpop.f32.mrf.mxu0
  %v3854 = vadd.f32 %v3812, %v3853
  %v3855 = vand.u32 %v3768, 4294901760
  %3856 = vmatmul.f32.gmra.mxu0 %v3855
  %v3857 = vpop.f32.mrf.mxu0
  %v3858 = vadd.f32 %v3820, %v3857
  %3859 = vdwg.mxu0
  %3860 = vmatpush.xpose.msra.mxu0 0.0
  %3861 = vmatpush.xpose.msra.mxu0 0.0
  %3862 = vmatpush.xpose.msra.mxu0 0.0
  %3863 = vmatpush.xpose.msra.mxu0 0.0
  %3864 = vmatpush.xpose.msra.mxu0 0.0
  %3865 = vmatpush.xpose.msra.mxu0 0.0
  %3866 = vmatpush.xpose.msra.mxu0 0.0
  %3867 = vmatpush.xpose.msra.mxu0 0.0
  %3868 = vmatpush.xpose.msra.mxu0 0.0
  %3869 = vmatpush.xpose.msra.mxu0 0.0
  %3870 = vmatpush.xpose.msra.mxu0 0.0
  %3871 = vmatpush.xpose.msra.mxu0 0.0
  %3872 = vmatpush.xpose.msra.mxu0 0.0
  %3873 = vmatpush.xpose.msra.mxu0 0.0
  %3874 = vmatpush.xpose.msra.mxu0 0.0
  %v3875 = vand.u32 %v3770, 4294901760
  %v3876 = vsub.f32 %v3770, %v3875
  %3877 = vmatpush.xpose.msra.mxu0 %v3876
  %v3878 = vand.u32 %v3762, 4294901760
  %v3879 = vsub.f32 %v3762, %v3878
  %3880 = vmatmul.f32.gmra.mxu0 %v3879
  %v3881 = vpop.f32.mrf.mxu0
  %v3882 = vadd.f32 %v3846, %v3881
  %v3883 = vand.u32 %v3764, 4294901760
  %v3884 = vsub.f32 %v3764, %v3883
  %3885 = vmatmul.f32.gmra.mxu0 %v3884
  %v3886 = vpop.f32.mrf.mxu0
  %v3887 = vadd.f32 %v3850, %v3886
  %v3888 = vand.u32 %v3766, 4294901760
  %v3889 = vsub.f32 %v3766, %v3888
  %3890 = vmatmul.f32.gmra.mxu0 %v3889
  %v3891 = vpop.f32.mrf.mxu0
  %v3892 = vadd.f32 %v3854, %v3891
  %v3893 = vand.u32 %v3768, 4294901760
  %v3894 = vsub.f32 %v3768, %v3893
  %3895 = vmatmul.f32.gmra.mxu0 %v3894
  %v3896 = vpop.f32.mrf.mxu0
  %v3897 = vadd.f32 %v3858, %v3896
  %3898 = vdwg.mxu0
  %3899 = vmatpush.xpose.msra.mxu0 0.0
  %3900 = vmatpush.xpose.msra.mxu0 0.0
  %3901 = vmatpush.xpose.msra.mxu0 0.0
  %3902 = vmatpush.xpose.msra.mxu0 0.0
  %3903 = vmatpush.xpose.msra.mxu0 0.0
  %3904 = vmatpush.xpose.msra.mxu0 0.0
  %3905 = vmatpush.xpose.msra.mxu0 0.0
  %3906 = vmatpush.xpose.msra.mxu0 0.0
  %3907 = vmatpush.xpose.msra.mxu0 0.0
  %3908 = vmatpush.xpose.msra.mxu0 0.0
  %3909 = vmatpush.xpose.msra.mxu0 0.0
  %3910 = vmatpush.xpose.msra.mxu0 0.0
  %3911 = vmatpush.xpose.msra.mxu0 0.0
  %3912 = vmatpush.xpose.msra.mxu0 0.0
  %3913 = vmatpush.xpose.msra.mxu0 0.0
  %v3914 = vand.u32 %v3770, 4294901760
  %3915 = vmatpush.xpose.msra.mxu0 %v3914
  %v3916 = vand.u32 %v3762, 4294901760
  %v3917 = vsub.f32 %v3762, %v3916
  %v3918 = vand.u32 %v3917, 4294901760
  %3919 = vmatmul.f32.gmra.mxu0 %v3918
  %v3920 = vpop.f32.mrf.mxu0
  %v3921 = vadd.f32 %v3882, %v3920
  %v3922 = vand.u32 %v3764, 4294901760
  %v3923 = vsub.f32 %v3764, %v3922
  %v3924 = vand.u32 %v3923, 4294901760
  %3925 = vmatmul.f32.gmra.mxu0 %v3924
  %v3926 = vpop.f32.mrf.mxu0
  %v3927 = vadd.f32 %v3887, %v3926
  %v3928 = vand.u32 %v3766, 4294901760
  %v3929 = vsub.f32 %v3766, %v3928
  %v3930 = vand.u32 %v3929, 4294901760
  %3931 = vmatmul.f32.gmra.mxu0 %v3930
  %v3932 = vpop.f32.mrf.mxu0
  %v3933 = vadd.f32 %v3892, %v3932
  %v3934 = vand.u32 %v3768, 4294901760
  %v3935 = vsub.f32 %v3768, %v3934
  %v3936 = vand.u32 %v3935, 4294901760
  %3937 = vmatmul.f32.gmra.mxu0 %v3936
  %v3938 = vpop.f32.mrf.mxu0
  %v3939 = vadd.f32 %v3897, %v3938
  %3940 = vdwg.mxu0
  %3941 = vmatpush.xpose.msra.mxu0 0.0
  %3942 = vmatpush.xpose.msra.mxu0 0.0
  %3943 = vmatpush.xpose.msra.mxu0 0.0
  %3944 = vmatpush.xpose.msra.mxu0 0.0
  %3945 = vmatpush.xpose.msra.mxu0 0.0
  %3946 = vmatpush.xpose.msra.mxu0 0.0
  %3947 = vmatpush.xpose.msra.mxu0 0.0
  %3948 = vmatpush.xpose.msra.mxu0 0.0
  %3949 = vmatpush.xpose.msra.mxu0 0.0
  %3950 = vmatpush.xpose.msra.mxu0 0.0
  %3951 = vmatpush.xpose.msra.mxu0 0.0
  %3952 = vmatpush.xpose.msra.mxu0 0.0
  %3953 = vmatpush.xpose.msra.mxu0 0.0
  %3954 = vmatpush.xpose.msra.mxu0 0.0
  %3955 = vmatpush.xpose.msra.mxu0 0.0
  %v3956 = vand.u32 %v3770, 4294901760
  %v3957 = vsub.f32 %v3770, %v3956
  %v3958 = vand.u32 %v3957, 4294901760
  %3959 = vmatpush.xpose.msra.mxu0 %v3958
  %v3960 = vand.u32 %v3762, 4294901760
  %3961 = vmatmul.f32.gmra.mxu0 %v3960
  %v3962 = vpop.f32.mrf.mxu0
  %v3963 = vadd.f32 %v3921, %v3962
  %v3964 = vand.u32 %v3764, 4294901760
  %3965 = vmatmul.f32.gmra.mxu0 %v3964
  %v3966 = vpop.f32.mrf.mxu0
  %v3967 = vadd.f32 %v3927, %v3966
  %v3968 = vand.u32 %v3766, 4294901760
  %3969 = vmatmul.f32.gmra.mxu0 %v3968
  %v3970 = vpop.f32.mrf.mxu0
  %v3971 = vadd.f32 %v3933, %v3970
  %v3972 = vand.u32 %v3768, 4294901760
  %3973 = vmatmul.f32.gmra.mxu0 %v3972
  %v3974 = vpop.f32.mrf.mxu0
  %v3975 = vadd.f32 %v3939, %v3974
  %3976 = vdwg.mxu0
  %3977 = vmatpush.xpose.msra.mxu0 0.0
  %3978 = vmatpush.xpose.msra.mxu0 0.0
  %3979 = vmatpush.xpose.msra.mxu0 0.0
  %3980 = vmatpush.xpose.msra.mxu0 0.0
  %3981 = vmatpush.xpose.msra.mxu0 0.0
  %3982 = vmatpush.xpose.msra.mxu0 0.0
  %3983 = vmatpush.xpose.msra.mxu0 0.0
  %3984 = vmatpush.xpose.msra.mxu0 0.0
  %3985 = vmatpush.xpose.msra.mxu0 0.0
  %3986 = vmatpush.xpose.msra.mxu0 0.0
  %3987 = vmatpush.xpose.msra.mxu0 0.0
  %3988 = vmatpush.xpose.msra.mxu0 0.0
  %3989 = vmatpush.xpose.msra.mxu0 0.0
  %3990 = vmatpush.xpose.msra.mxu0 0.0
  %3991 = vmatpush.xpose.msra.mxu0 0.0
  %v3992 = vand.u32 %v3770, 4294901760
  %3993 = vmatpush.xpose.msra.mxu0 %v3992
  %v3994 = vand.u32 %v3762, 4294901760
  %3995 = vmatmul.f32.gmra.mxu0 %v3994
  %v3996 = vpop.f32.mrf.mxu0
  %v3997 = vadd.f32 %v3963, %v3996
  %v3998 = vand.u32 %v3764, 4294901760
  %3999 = vmatmul.f32.gmra.mxu0 %v3998
  %v4000 = vpop.f32.mrf.mxu0
  %v4001 = vadd.f32 %v3967, %v4000
  %v4002 = vand.u32 %v3766, 4294901760
  %4003 = vmatmul.f32.gmra.mxu0 %v4002
  %v4004 = vpop.f32.mrf.mxu0
  %v4005 = vadd.f32 %v3971, %v4004
  %v4006 = vand.u32 %v3768, 4294901760
  %4007 = vmatmul.f32.gmra.mxu0 %v4006
  %v4008 = vpop.f32.mrf.mxu0
  %v4009 = vadd.f32 %v3975, %v4008
  %4010 = vdwg.mxu0
  %v4011 = vmul.f32 %v3997, 0.125
  %v4012 = vmul.f32 %v4001, 0.125
  %v4013 = vmul.f32 %v4005, 0.125
  %v4014 = vmul.f32 %v4009, 0.125
  %v4015 = vadd.f32 %v4011, %v3138
  %v4016 = vadd.f32 %v4012, %v3139
  %v4017 = vadd.f32 %v4013, %v3140
  %v4018 = vadd.f32 %v4014, %v3141
  %v4019 = vsel %vm3404, %v4015, -inf
  %4020 = vmax.xlane.f32.xlu0 %v4019
  %v4021 = vpop.xlane.xlu0 %4020
  %v4022 = vsel %vm3404, %v4016, -inf
  %4023 = vmax.xlane.f32.xlu0 %v4022
  %v4024 = vpop.xlane.xlu0 %4023
  %v4025 = vsel %vm3404, %v4017, -inf
  %4026 = vmax.xlane.f32.xlu0 %v4025
  %v4027 = vpop.xlane.xlu0 %4026
  %v4028 = vsel %vm3404, %v4018, -inf
  %4029 = vmax.xlane.f32.xlu0 %v4028
  %v4030 = vpop.xlane.xlu0 %4029
  %v4031 = vsub.f32 %v4015, %v4021
  %v4032 = vsub.f32 %v4016, %v4024
  %v4033 = vsub.f32 %v4017, %v4027
  %v4034 = vsub.f32 %v4018, %v4030
  %v4035 = vmul.f32 %v4031, 1.442695
  %v4036 = vpow.pop %v4035
  %v4037 = vmul.f32 %v4032, 1.442695
  %v4038 = vpow.pop %v4037
  %v4039 = vmul.f32 %v4033, 1.442695
  %v4040 = vpow.pop %v4039
  %v4041 = vmul.f32 %v4034, 1.442695
  %v4042 = vpow.pop %v4041
  %v4043 = vsel %vm3404, %v4036, 0.0
  %4044 = vadd.xlane.f32.xlu0 %v4043
  %v4045 = vpop.xlane.xlu0 %4044
  %v4046 = vsel %vm3404, %v4038, 0.0
  %4047 = vadd.xlane.f32.xlu0 %v4046
  %v4048 = vpop.xlane.xlu0 %4047
  %v4049 = vsel %vm3404, %v4040, 0.0
  %4050 = vadd.xlane.f32.xlu0 %v4049
  %v4051 = vpop.xlane.xlu0 %4050
  %v4052 = vsel %vm3404, %v4042, 0.0
  %4053 = vadd.xlane.f32.xlu0 %v4052
  %v4054 = vpop.xlane.xlu0 %4053
  %v4055 = vrcp.pop %v4045
  %v4056 = vmul.f32 %v4045, %v4055
  %v4057 = vsub.f32 1.0, %v4056
  %v4058 = vmul.f32 %v4055, %v4057
  %v4059 = vadd.f32 %v4055, %v4058
  %vm4060 = vweird.f32 %v4045
  %vm4061 = vweird.f32 %v4055
  %vm4062 = vmor %vm4060, %vm4061
  %v4063 = vsel %vm4062, %v4055, %v4059
  %v4064 = vand.u32 2147483647, %v4045
  %vm4065 = vcmp.eq.f32.partialorder %v4064, 8.507059e+37
  %v4066 = vand.u32 %v4045, 2147483648
  %v4067 = vor.u32 1.1754944e-38, %v4066
  %v4068 = vsel %vm4065, %v4067, %v4063
  %v4069 = vmul.f32 %v4036, %v4068
  %v4070 = vrcp.pop %v4048
  %v4071 = vmul.f32 %v4048, %v4070
  %v4072 = vsub.f32 1.0, %v4071
  %v4073 = vmul.f32 %v4070, %v4072
  %v4074 = vadd.f32 %v4070, %v4073
  %vm4075 = vweird.f32 %v4048
  %vm4076 = vweird.f32 %v4070
  %vm4077 = vmor %vm4075, %vm4076
  %v4078 = vsel %vm4077, %v4070, %v4074
  %v4079 = vand.u32 2147483647, %v4048
  %vm4080 = vcmp.eq.f32.partialorder %v4079, 8.507059e+37
  %v4081 = vand.u32 %v4048, 2147483648
  %v4082 = vor.u32 1.1754944e-38, %v4081
  %v4083 = vsel %vm4080, %v4082, %v4078
  %v4084 = vmul.f32 %v4038, %v4083
  %v4085 = vrcp.pop %v4051
  %v4086 = vmul.f32 %v4051, %v4085
  %v4087 = vsub.f32 1.0, %v4086
  %v4088 = vmul.f32 %v4085, %v4087
  %v4089 = vadd.f32 %v4085, %v4088
  %vm4090 = vweird.f32 %v4051
  %vm4091 = vweird.f32 %v4085
  %vm4092 = vmor %vm4090, %vm4091
  %v4093 = vsel %vm4092, %v4085, %v4089
  %v4094 = vand.u32 2147483647, %v4051
  %vm4095 = vcmp.eq.f32.partialorder %v4094, 8.507059e+37
  %v4096 = vand.u32 %v4051, 2147483648
  %v4097 = vor.u32 1.1754944e-38, %v4096
  %v4098 = vsel %vm4095, %v4097, %v4093
  %v4099 = vmul.f32 %v4040, %v4098
  %v4100 = vrcp.pop %v4054
  %v4101 = vmul.f32 %v4054, %v4100
  %v4102 = vsub.f32 1.0, %v4101
  %v4103 = vmul.f32 %v4100, %v4102
  %v4104 = vadd.f32 %v4100, %v4103
  %vm4105 = vweird.f32 %v4054
  %vm4106 = vweird.f32 %v4100
  %vm4107 = vmor %vm4105, %vm4106
  %v4108 = vsel %vm4107, %v4100, %v4104
  %v4109 = vand.u32 2147483647, %v4054
  %vm4110 = vcmp.eq.f32.partialorder %v4109, 8.507059e+37
  %v4111 = vand.u32 %v4054, 2147483648
  %v4112 = vor.u32 1.1754944e-38, %v4111
  %v4113 = vsel %vm4110, %v4112, %v4108
  %v4114 = vmul.f32 %v4042, %v4113
  %4116 = vrot.lane.b32.xlu0 %v3136, 64
  %v4117 = vpop.permute.xlu0 %4116
  %v4120 = vsel %vm3404, %v4069, 0
  %v4123 = vsel %vm3404, %v4084, 0
  %v4126 = vsel %vm3404, %v4099, 0
  %v4129 = vsel %vm3404, %v4114, 0
  %4131 = vmatpush.msra.mxu0 0.0
  %4132 = vmatpush.msra.mxu0 0.0
  %4133 = vmatpush.msra.mxu0 0.0
  %4134 = vmatpush.msra.mxu0 0.0
  %4135 = vmatpush.msra.mxu0 0.0
  %4136 = vmatpush.msra.mxu0 0.0
  %4137 = vmatpush.msra.mxu0 0.0
  %4138 = vmatpush.msra.mxu0 0.0
  %4139 = vmatpush.msra.mxu0 0.0
  %4140 = vmatpush.msra.mxu0 0.0
  %4141 = vmatpush.msra.mxu0 0.0
  %4142 = vmatpush.msra.mxu0 0.0
  %4143 = vmatpush.msra.mxu0 0.0
  %4144 = vmatpush.msra.mxu0 0.0
  %4145 = vmatpush.msra.mxu0 0.0
  %v4146 = vand.u32 %v4117, 4294901760
  %4147 = vmatpush.msra.mxu0 %v4146
  %v4148 = vand.u32 %v4120, 4294901760
  %v4149 = vsub.f32 %v4120, %v4148
  %v4150 = vand.u32 %v4149, 4294901760
  %v4151 = vsub.f32 %v4149, %v4150
  %v4152 = vand.u32 %v4151, 4294901760
  %4153 = vmatmul.f32.gmra.mxu0 %v4152
  %v4154 = vpop.f32.mrf.mxu0
  %v4155 = vadd.f32 0.0, %v4154
  %v4156 = vand.u32 %v4123, 4294901760
  %v4157 = vsub.f32 %v4123, %v4156
  %v4158 = vand.u32 %v4157, 4294901760
  %v4159 = vsub.f32 %v4157, %v4158
  %v4160 = vand.u32 %v4159, 4294901760
  %4161 = vmatmul.f32.gmra.mxu0 %v4160
  %v4162 = vpop.f32.mrf.mxu0
  %v4163 = vadd.f32 0.0, %v4162
  %v4164 = vand.u32 %v4126, 4294901760
  %v4165 = vsub.f32 %v4126, %v4164
  %v4166 = vand.u32 %v4165, 4294901760
  %v4167 = vsub.f32 %v4165, %v4166
  %v4168 = vand.u32 %v4167, 4294901760
  %4169 = vmatmul.f32.gmra.mxu0 %v4168
  %v4170 = vpop.f32.mrf.mxu0
  %v4171 = vadd.f32 0.0, %v4170
  %v4172 = vand.u32 %v4129, 4294901760
  %v4173 = vsub.f32 %v4129, %v4172
  %v4174 = vand.u32 %v4173, 4294901760
  %v4175 = vsub.f32 %v4173, %v4174
  %v4176 = vand.u32 %v4175, 4294901760
  %4177 = vmatmul.f32.gmra.mxu0 %v4176
  %v4178 = vpop.f32.mrf.mxu0
  %v4179 = vadd.f32 0.0, %v4178
  %4180 = vdwg.mxu0
  %4181 = vmatpush.msra.mxu0 0.0
  %4182 = vmatpush.msra.mxu0 0.0
  %4183 = vmatpush.msra.mxu0 0.0
  %4184 = vmatpush.msra.mxu0 0.0
  %4185 = vmatpush.msra.mxu0 0.0
  %4186 = vmatpush.msra.mxu0 0.0
  %4187 = vmatpush.msra.mxu0 0.0
  %4188 = vmatpush.msra.mxu0 0.0
  %4189 = vmatpush.msra.mxu0 0.0
  %4190 = vmatpush.msra.mxu0 0.0
  %4191 = vmatpush.msra.mxu0 0.0
  %4192 = vmatpush.msra.mxu0 0.0
  %4193 = vmatpush.msra.mxu0 0.0
  %4194 = vmatpush.msra.mxu0 0.0
  %4195 = vmatpush.msra.mxu0 0.0
  %v4196 = vand.u32 %v4117, 4294901760
  %v4197 = vsub.f32 %v4117, %v4196
  %v4198 = vand.u32 %v4197, 4294901760
  %v4199 = vsub.f32 %v4197, %v4198
  %v4200 = vand.u32 %v4199, 4294901760
  %4201 = vmatpush.msra.mxu0 %v4200
  %v4202 = vand.u32 %v4120, 4294901760
  %4203 = vmatmul.f32.gmra.mxu0 %v4202
  %v4204 = vpop.f32.mrf.mxu0
  %v4205 = vadd.f32 %v4155, %v4204
  %v4206 = vand.u32 %v4123, 4294901760
  %4207 = vmatmul.f32.gmra.mxu0 %v4206
  %v4208 = vpop.f32.mrf.mxu0
  %v4209 = vadd.f32 %v4163, %v4208
  %v4210 = vand.u32 %v4126, 4294901760
  %4211 = vmatmul.f32.gmra.mxu0 %v4210
  %v4212 = vpop.f32.mrf.mxu0
  %v4213 = vadd.f32 %v4171, %v4212
  %v4214 = vand.u32 %v4129, 4294901760
  %4215 = vmatmul.f32.gmra.mxu0 %v4214
  %v4216 = vpop.f32.mrf.mxu0
  %v4217 = vadd.f32 %v4179, %v4216
  %4218 = vdwg.mxu0
  %4219 = vmatpush.msra.mxu0 0.0
  %4220 = vmatpush.msra.mxu0 0.0
  %4221 = vmatpush.msra.mxu0 0.0
  %4222 = vmatpush.msra.mxu0 0.0
  %4223 = vmatpush.msra.mxu0 0.0
  %4224 = vmatpush.msra.mxu0 0.0
  %4225 = vmatpush.msra.mxu0 0.0
  %4226 = vmatpush.msra.mxu0 0.0
  %4227 = vmatpush.msra.mxu0 0.0
  %4228 = vmatpush.msra.mxu0 0.0
  %4229 = vmatpush.msra.mxu0 0.0
  %4230 = vmatpush.msra.mxu0 0.0
  %4231 = vmatpush.msra.mxu0 0.0
  %4232 = vmatpush.msra.mxu0 0.0
  %4233 = vmatpush.msra.mxu0 0.0
  %v4234 = vand.u32 %v4117, 4294901760
  %v4235 = vsub.f32 %v4117, %v4234
  %4236 = vmatpush.msra.mxu0 %v4235
  %v4237 = vand.u32 %v4120, 4294901760
  %v4238 = vsub.f32 %v4120, %v4237
  %4239 = vmatmul.f32.gmra.mxu0 %v4238
  %v4240 = vpop.f32.mrf.mxu0
  %v4241 = vadd.f32 %v4205, %v4240
  %v4242 = vand.u32 %v4123, 4294901760
  %v4243 = vsub.f32 %v4123, %v4242
  %4244 = vmatmul.f32.gmra.mxu0 %v4243
  %v4245 = vpop.f32.mrf.mxu0
  %v4246 = vadd.f32 %v4209, %v4245
  %v4247 = vand.u32 %v4126, 4294901760
  %v4248 = vsub.f32 %v4126, %v4247
  %4249 = vmatmul.f32.gmra.mxu0 %v4248
  %v4250 = vpop.f32.mrf.mxu0
  %v4251 = vadd.f32 %v4213, %v4250
  %v4252 = vand.u32 %v4129, 4294901760
  %v4253 = vsub.f32 %v4129, %v4252
  %4254 = vmatmul.f32.gmra.mxu0 %v4253
  %v4255 = vpop.f32.mrf.mxu0
  %v4256 = vadd.f32 %v4217, %v4255
  %4257 = vdwg.mxu0
  %4258 = vmatpush.msra.mxu0 0.0
  %4259 = vmatpush.msra.mxu0 0.0
  %4260 = vmatpush.msra.mxu0 0.0
  %4261 = vmatpush.msra.mxu0 0.0
  %4262 = vmatpush.msra.mxu0 0.0
  %4263 = vmatpush.msra.mxu0 0.0
  %4264 = vmatpush.msra.mxu0 0.0
  %4265 = vmatpush.msra.mxu0 0.0
  %4266 = vmatpush.msra.mxu0 0.0
  %4267 = vmatpush.msra.mxu0 0.0
  %4268 = vmatpush.msra.mxu0 0.0
  %4269 = vmatpush.msra.mxu0 0.0
  %4270 = vmatpush.msra.mxu0 0.0
  %4271 = vmatpush.msra.mxu0 0.0
  %4272 = vmatpush.msra.mxu0 0.0
  %v4273 = vand.u32 %v4117, 4294901760
  %4274 = vmatpush.msra.mxu0 %v4273
  %v4275 = vand.u32 %v4120, 4294901760
  %v4276 = vsub.f32 %v4120, %v4275
  %v4277 = vand.u32 %v4276, 4294901760
  %4278 = vmatmul.f32.gmra.mxu0 %v4277
  %v4279 = vpop.f32.mrf.mxu0
  %v4280 = vadd.f32 %v4241, %v4279
  %v4281 = vand.u32 %v4123, 4294901760
  %v4282 = vsub.f32 %v4123, %v4281
  %v4283 = vand.u32 %v4282, 4294901760
  %4284 = vmatmul.f32.gmra.mxu0 %v4283
  %v4285 = vpop.f32.mrf.mxu0
  %v4286 = vadd.f32 %v4246, %v4285
  %v4287 = vand.u32 %v4126, 4294901760
  %v4288 = vsub.f32 %v4126, %v4287
  %v4289 = vand.u32 %v4288, 4294901760
  %4290 = vmatmul.f32.gmra.mxu0 %v4289
  %v4291 = vpop.f32.mrf.mxu0
  %v4292 = vadd.f32 %v4251, %v4291
  %v4293 = vand.u32 %v4129, 4294901760
  %v4294 = vsub.f32 %v4129, %v4293
  %v4295 = vand.u32 %v4294, 4294901760
  %4296 = vmatmul.f32.gmra.mxu0 %v4295
  %v4297 = vpop.f32.mrf.mxu0
  %v4298 = vadd.f32 %v4256, %v4297
  %4299 = vdwg.mxu0
  %4300 = vmatpush.msra.mxu0 0.0
  %4301 = vmatpush.msra.mxu0 0.0
  %4302 = vmatpush.msra.mxu0 0.0
  %4303 = vmatpush.msra.mxu0 0.0
  %4304 = vmatpush.msra.mxu0 0.0
  %4305 = vmatpush.msra.mxu0 0.0
  %4306 = vmatpush.msra.mxu0 0.0
  %4307 = vmatpush.msra.mxu0 0.0
  %4308 = vmatpush.msra.mxu0 0.0
  %4309 = vmatpush.msra.mxu0 0.0
  %4310 = vmatpush.msra.mxu0 0.0
  %4311 = vmatpush.msra.mxu0 0.0
  %4312 = vmatpush.msra.mxu0 0.0
  %4313 = vmatpush.msra.mxu0 0.0
  %4314 = vmatpush.msra.mxu0 0.0
  %v4315 = vand.u32 %v4117, 4294901760
  %v4316 = vsub.f32 %v4117, %v4315
  %v4317 = vand.u32 %v4316, 4294901760
  %4318 = vmatpush.msra.mxu0 %v4317
  %v4319 = vand.u32 %v4120, 4294901760
  %4320 = vmatmul.f32.gmra.mxu0 %v4319
  %v4321 = vpop.f32.mrf.mxu0
  %v4322 = vadd.f32 %v4280, %v4321
  %v4323 = vand.u32 %v4123, 4294901760
  %4324 = vmatmul.f32.gmra.mxu0 %v4323
  %v4325 = vpop.f32.mrf.mxu0
  %v4326 = vadd.f32 %v4286, %v4325
  %v4327 = vand.u32 %v4126, 4294901760
  %4328 = vmatmul.f32.gmra.mxu0 %v4327
  %v4329 = vpop.f32.mrf.mxu0
  %v4330 = vadd.f32 %v4292, %v4329
  %v4331 = vand.u32 %v4129, 4294901760
  %4332 = vmatmul.f32.gmra.mxu0 %v4331
  %v4333 = vpop.f32.mrf.mxu0
  %v4334 = vadd.f32 %v4298, %v4333
  %4335 = vdwg.mxu0
  %4336 = vmatpush.msra.mxu0 0.0
  %4337 = vmatpush.msra.mxu0 0.0
  %4338 = vmatpush.msra.mxu0 0.0
  %4339 = vmatpush.msra.mxu0 0.0
  %4340 = vmatpush.msra.mxu0 0.0
  %4341 = vmatpush.msra.mxu0 0.0
  %4342 = vmatpush.msra.mxu0 0.0
  %4343 = vmatpush.msra.mxu0 0.0
  %4344 = vmatpush.msra.mxu0 0.0
  %4345 = vmatpush.msra.mxu0 0.0
  %4346 = vmatpush.msra.mxu0 0.0
  %4347 = vmatpush.msra.mxu0 0.0
  %4348 = vmatpush.msra.mxu0 0.0
  %4349 = vmatpush.msra.mxu0 0.0
  %4350 = vmatpush.msra.mxu0 0.0
  %v4351 = vand.u32 %v4117, 4294901760
  %4352 = vmatpush.msra.mxu0 %v4351
  %v4353 = vand.u32 %v4120, 4294901760
  %4354 = vmatmul.f32.gmra.mxu0 %v4353
  %v4355 = vpop.f32.mrf.mxu0
  %v4356 = vadd.f32 %v4322, %v4355
  %v4357 = vand.u32 %v4123, 4294901760
  %4358 = vmatmul.f32.gmra.mxu0 %v4357
  %v4359 = vpop.f32.mrf.mxu0
  %v4360 = vadd.f32 %v4326, %v4359
  %v4361 = vand.u32 %v4126, 4294901760
  %4362 = vmatmul.f32.gmra.mxu0 %v4361
  %v4363 = vpop.f32.mrf.mxu0
  %v4364 = vadd.f32 %v4330, %v4363
  %v4365 = vand.u32 %v4129, 4294901760
  %4366 = vmatmul.f32.gmra.mxu0 %v4365
  %v4367 = vpop.f32.mrf.mxu0
  %v4368 = vadd.f32 %v4334, %v4367
  %4369 = vdwg.mxu0
  %v4371 = vsel %vm84, %v743, 0
  %v4374 = vsel %vm84, %v747, 0
  %v4377 = vsel %vm84, %v751, 0
  %v4380 = vsel %vm84, %v755, 0
  %v4383 = vsel %vm84, %v3135, 0
  %4385 = vmatpush.xpose.msra.mxu0 0.0
  %4386 = vmatpush.xpose.msra.mxu0 0.0
  %4387 = vmatpush.xpose.msra.mxu0 0.0
  %4388 = vmatpush.xpose.msra.mxu0 0.0
  %4389 = vmatpush.xpose.msra.mxu0 0.0
  %4390 = vmatpush.xpose.msra.mxu0 0.0
  %4391 = vmatpush.xpose.msra.mxu0 0.0
  %4392 = vmatpush.xpose.msra.mxu0 0.0
  %4393 = vmatpush.xpose.msra.mxu0 0.0
  %4394 = vmatpush.xpose.msra.mxu0 0.0
  %4395 = vmatpush.xpose.msra.mxu0 0.0
  %4396 = vmatpush.xpose.msra.mxu0 0.0
  %4397 = vmatpush.xpose.msra.mxu0 0.0
  %4398 = vmatpush.xpose.msra.mxu0 0.0
  %4399 = vmatpush.xpose.msra.mxu0 0.0
  %v4400 = vand.u32 %v4383, 4294901760
  %4401 = vmatpush.xpose.msra.mxu0 %v4400
  %v4402 = vand.u32 %v4371, 4294901760
  %v4403 = vsub.f32 %v4371, %v4402
  %v4404 = vand.u32 %v4403, 4294901760
  %v4405 = vsub.f32 %v4403, %v4404
  %v4406 = vand.u32 %v4405, 4294901760
  %4407 = vmatmul.f32.gmra.mxu0 %v4406
  %v4408 = vpop.f32.mrf.mxu0
  %v4409 = vadd.f32 0.0, %v4408
  %v4410 = vand.u32 %v4374, 4294901760
  %v4411 = vsub.f32 %v4374, %v4410
  %v4412 = vand.u32 %v4411, 4294901760
  %v4413 = vsub.f32 %v4411, %v4412
  %v4414 = vand.u32 %v4413, 4294901760
  %4415 = vmatmul.f32.gmra.mxu0 %v4414
  %v4416 = vpop.f32.mrf.mxu0
  %v4417 = vadd.f32 0.0, %v4416
  %v4418 = vand.u32 %v4377, 4294901760
  %v4419 = vsub.f32 %v4377, %v4418
  %v4420 = vand.u32 %v4419, 4294901760
  %v4421 = vsub.f32 %v4419, %v4420
  %v4422 = vand.u32 %v4421, 4294901760
  %4423 = vmatmul.f32.gmra.mxu0 %v4422
  %v4424 = vpop.f32.mrf.mxu0
  %v4425 = vadd.f32 0.0, %v4424
  %v4426 = vand.u32 %v4380, 4294901760
  %v4427 = vsub.f32 %v4380, %v4426
  %v4428 = vand.u32 %v4427, 4294901760
  %v4429 = vsub.f32 %v4427, %v4428
  %v4430 = vand.u32 %v4429, 4294901760
  %4431 = vmatmul.f32.gmra.mxu0 %v4430
  %v4432 = vpop.f32.mrf.mxu0
  %v4433 = vadd.f32 0.0, %v4432
  %4434 = vdwg.mxu0
  %4435 = vmatpush.xpose.msra.mxu0 0.0
  %4436 = vmatpush.xpose.msra.mxu0 0.0
  %4437 = vmatpush.xpose.msra.mxu0 0.0
  %4438 = vmatpush.xpose.msra.mxu0 0.0
  %4439 = vmatpush.xpose.msra.mxu0 0.0
  %4440 = vmatpush.xpose.msra.mxu0 0.0
  %4441 = vmatpush.xpose.msra.mxu0 0.0
  %4442 = vmatpush.xpose.msra.mxu0 0.0
  %4443 = vmatpush.xpose.msra.mxu0 0.0
  %4444 = vmatpush.xpose.msra.mxu0 0.0
  %4445 = vmatpush.xpose.msra.mxu0 0.0
  %4446 = vmatpush.xpose.msra.mxu0 0.0
  %4447 = vmatpush.xpose.msra.mxu0 0.0
  %4448 = vmatpush.xpose.msra.mxu0 0.0
  %4449 = vmatpush.xpose.msra.mxu0 0.0
  %v4450 = vand.u32 %v4383, 4294901760
  %v4451 = vsub.f32 %v4383, %v4450
  %v4452 = vand.u32 %v4451, 4294901760
  %v4453 = vsub.f32 %v4451, %v4452
  %v4454 = vand.u32 %v4453, 4294901760
  %4455 = vmatpush.xpose.msra.mxu0 %v4454
  %v4456 = vand.u32 %v4371, 4294901760
  %4457 = vmatmul.f32.gmra.mxu0 %v4456
  %v4458 = vpop.f32.mrf.mxu0
  %v4459 = vadd.f32 %v4409, %v4458
  %v4460 = vand.u32 %v4374, 4294901760
  %4461 = vmatmul.f32.gmra.mxu0 %v4460
  %v4462 = vpop.f32.mrf.mxu0
  %v4463 = vadd.f32 %v4417, %v4462
  %v4464 = vand.u32 %v4377, 4294901760
  %4465 = vmatmul.f32.gmra.mxu0 %v4464
  %v4466 = vpop.f32.mrf.mxu0
  %v4467 = vadd.f32 %v4425, %v4466
  %v4468 = vand.u32 %v4380, 4294901760
  %4469 = vmatmul.f32.gmra.mxu0 %v4468
  %v4470 = vpop.f32.mrf.mxu0
  %v4471 = vadd.f32 %v4433, %v4470
  %4472 = vdwg.mxu0
  %4473 = vmatpush.xpose.msra.mxu0 0.0
  %4474 = vmatpush.xpose.msra.mxu0 0.0
  %4475 = vmatpush.xpose.msra.mxu0 0.0
  %4476 = vmatpush.xpose.msra.mxu0 0.0
  %4477 = vmatpush.xpose.msra.mxu0 0.0
  %4478 = vmatpush.xpose.msra.mxu0 0.0
  %4479 = vmatpush.xpose.msra.mxu0 0.0
  %4480 = vmatpush.xpose.msra.mxu0 0.0
  %4481 = vmatpush.xpose.msra.mxu0 0.0
  %4482 = vmatpush.xpose.msra.mxu0 0.0
  %4483 = vmatpush.xpose.msra.mxu0 0.0
  %4484 = vmatpush.xpose.msra.mxu0 0.0
  %4485 = vmatpush.xpose.msra.mxu0 0.0
  %4486 = vmatpush.xpose.msra.mxu0 0.0
  %4487 = vmatpush.xpose.msra.mxu0 0.0
  %v4488 = vand.u32 %v4383, 4294901760
  %v4489 = vsub.f32 %v4383, %v4488
  %4490 = vmatpush.xpose.msra.mxu0 %v4489
  %v4491 = vand.u32 %v4371, 4294901760
  %v4492 = vsub.f32 %v4371, %v4491
  %4493 = vmatmul.f32.gmra.mxu0 %v4492
  %v4494 = vpop.f32.mrf.mxu0
  %v4495 = vadd.f32 %v4459, %v4494
  %v4496 = vand.u32 %v4374, 4294901760
  %v4497 = vsub.f32 %v4374, %v4496
  %4498 = vmatmul.f32.gmra.mxu0 %v4497
  %v4499 = vpop.f32.mrf.mxu0
  %v4500 = vadd.f32 %v4463, %v4499
  %v4501 = vand.u32 %v4377, 4294901760
  %v4502 = vsub.f32 %v4377, %v4501
  %4503 = vmatmul.f32.gmra.mxu0 %v4502
  %v4504 = vpop.f32.mrf.mxu0
  %v4505 = vadd.f32 %v4467, %v4504
  %v4506 = vand.u32 %v4380, 4294901760
  %v4507 = vsub.f32 %v4380, %v4506
  %4508 = vmatmul.f32.gmra.mxu0 %v4507
  %v4509 = vpop.f32.mrf.mxu0
  %v4510 = vadd.f32 %v4471, %v4509
  %4511 = vdwg.mxu0
  %4512 = vmatpush.xpose.msra.mxu0 0.0
  %4513 = vmatpush.xpose.msra.mxu0 0.0
  %4514 = vmatpush.xpose.msra.mxu0 0.0
  %4515 = vmatpush.xpose.msra.mxu0 0.0
  %4516 = vmatpush.xpose.msra.mxu0 0.0
  %4517 = vmatpush.xpose.msra.mxu0 0.0
  %4518 = vmatpush.xpose.msra.mxu0 0.0
  %4519 = vmatpush.xpose.msra.mxu0 0.0
  %4520 = vmatpush.xpose.msra.mxu0 0.0
  %4521 = vmatpush.xpose.msra.mxu0 0.0
  %4522 = vmatpush.xpose.msra.mxu0 0.0
  %4523 = vmatpush.xpose.msra.mxu0 0.0
  %4524 = vmatpush.xpose.msra.mxu0 0.0
  %4525 = vmatpush.xpose.msra.mxu0 0.0
  %4526 = vmatpush.xpose.msra.mxu0 0.0
  %v4527 = vand.u32 %v4383, 4294901760
  %4528 = vmatpush.xpose.msra.mxu0 %v4527
  %v4529 = vand.u32 %v4371, 4294901760
  %v4530 = vsub.f32 %v4371, %v4529
  %v4531 = vand.u32 %v4530, 4294901760
  %4532 = vmatmul.f32.gmra.mxu0 %v4531
  %v4533 = vpop.f32.mrf.mxu0
  %v4534 = vadd.f32 %v4495, %v4533
  %v4535 = vand.u32 %v4374, 4294901760
  %v4536 = vsub.f32 %v4374, %v4535
  %v4537 = vand.u32 %v4536, 4294901760
  %4538 = vmatmul.f32.gmra.mxu0 %v4537
  %v4539 = vpop.f32.mrf.mxu0
  %v4540 = vadd.f32 %v4500, %v4539
  %v4541 = vand.u32 %v4377, 4294901760
  %v4542 = vsub.f32 %v4377, %v4541
  %v4543 = vand.u32 %v4542, 4294901760
  %4544 = vmatmul.f32.gmra.mxu0 %v4543
  %v4545 = vpop.f32.mrf.mxu0
  %v4546 = vadd.f32 %v4505, %v4545
  %v4547 = vand.u32 %v4380, 4294901760
  %v4548 = vsub.f32 %v4380, %v4547
  %v4549 = vand.u32 %v4548, 4294901760
  %4550 = vmatmul.f32.gmra.mxu0 %v4549
  %v4551 = vpop.f32.mrf.mxu0
  %v4552 = vadd.f32 %v4510, %v4551
  %4553 = vdwg.mxu0
  %4554 = vmatpush.xpose.msra.mxu0 0.0
  %4555 = vmatpush.xpose.msra.mxu0 0.0
  %4556 = vmatpush.xpose.msra.mxu0 0.0
  %4557 = vmatpush.xpose.msra.mxu0 0.0
  %4558 = vmatpush.xpose.msra.mxu0 0.0
  %4559 = vmatpush.xpose.msra.mxu0 0.0
  %4560 = vmatpush.xpose.msra.mxu0 0.0
  %4561 = vmatpush.xpose.msra.mxu0 0.0
  %4562 = vmatpush.xpose.msra.mxu0 0.0
  %4563 = vmatpush.xpose.msra.mxu0 0.0
  %4564 = vmatpush.xpose.msra.mxu0 0.0
  %4565 = vmatpush.xpose.msra.mxu0 0.0
  %4566 = vmatpush.xpose.msra.mxu0 0.0
  %4567 = vmatpush.xpose.msra.mxu0 0.0
  %4568 = vmatpush.xpose.msra.mxu0 0.0
  %v4569 = vand.u32 %v4383, 4294901760
  %v4570 = vsub.f32 %v4383, %v4569
  %v4571 = vand.u32 %v4570, 4294901760
  %4572 = vmatpush.xpose.msra.mxu0 %v4571
  %v4573 = vand.u32 %v4371, 4294901760
  %4574 = vmatmul.f32.gmra.mxu0 %v4573
  %v4575 = vpop.f32.mrf.mxu0
  %v4576 = vadd.f32 %v4534, %v4575
  %v4577 = vand.u32 %v4374, 4294901760
  %4578 = vmatmul.f32.gmra.mxu0 %v4577
  %v4579 = vpop.f32.mrf.mxu0
  %v4580 = vadd.f32 %v4540, %v4579
  %v4581 = vand.u32 %v4377, 4294901760
  %4582 = vmatmul.f32.gmra.mxu0 %v4581
  %v4583 = vpop.f32.mrf.mxu0
  %v4584 = vadd.f32 %v4546, %v4583
  %v4585 = vand.u32 %v4380, 4294901760
  %4586 = vmatmul.f32.gmra.mxu0 %v4585
  %v4587 = vpop.f32.mrf.mxu0
  %v4588 = vadd.f32 %v4552, %v4587
  %4589 = vdwg.mxu0
  %4590 = vmatpush.xpose.msra.mxu0 0.0
  %4591 = vmatpush.xpose.msra.mxu0 0.0
  %4592 = vmatpush.xpose.msra.mxu0 0.0
  %4593 = vmatpush.xpose.msra.mxu0 0.0
  %4594 = vmatpush.xpose.msra.mxu0 0.0
  %4595 = vmatpush.xpose.msra.mxu0 0.0
  %4596 = vmatpush.xpose.msra.mxu0 0.0
  %4597 = vmatpush.xpose.msra.mxu0 0.0
  %4598 = vmatpush.xpose.msra.mxu0 0.0
  %4599 = vmatpush.xpose.msra.mxu0 0.0
  %4600 = vmatpush.xpose.msra.mxu0 0.0
  %4601 = vmatpush.xpose.msra.mxu0 0.0
  %4602 = vmatpush.xpose.msra.mxu0 0.0
  %4603 = vmatpush.xpose.msra.mxu0 0.0
  %4604 = vmatpush.xpose.msra.mxu0 0.0
  %v4605 = vand.u32 %v4383, 4294901760
  %4606 = vmatpush.xpose.msra.mxu0 %v4605
  %v4607 = vand.u32 %v4371, 4294901760
  %4608 = vmatmul.f32.gmra.mxu0 %v4607
  %v4609 = vpop.f32.mrf.mxu0
  %v4610 = vadd.f32 %v4576, %v4609
  %v4611 = vand.u32 %v4374, 4294901760
  %4612 = vmatmul.f32.gmra.mxu0 %v4611
  %v4613 = vpop.f32.mrf.mxu0
  %v4614 = vadd.f32 %v4580, %v4613
  %v4615 = vand.u32 %v4377, 4294901760
  %4616 = vmatmul.f32.gmra.mxu0 %v4615
  %v4617 = vpop.f32.mrf.mxu0
  %v4618 = vadd.f32 %v4584, %v4617
  %v4619 = vand.u32 %v4380, 4294901760
  %4620 = vmatmul.f32.gmra.mxu0 %v4619
  %v4621 = vpop.f32.mrf.mxu0
  %v4622 = vadd.f32 %v4588, %v4621
  %4623 = vdwg.mxu0
  %v4624 = vmul.f32 %v4610, 0.125
  %v4625 = vmul.f32 %v4614, 0.125
  %v4626 = vmul.f32 %v4618, 0.125
  %v4627 = vmul.f32 %v4622, 0.125
  %v4628 = vadd.f32 %v4624, %v3138
  %v4629 = vadd.f32 %v4625, %v3139
  %v4630 = vadd.f32 %v4626, %v3140
  %v4631 = vadd.f32 %v4627, %v3141
  %v4632 = vsel %vm3404, %v4628, -inf
  %4633 = vmax.xlane.f32.xlu0 %v4632
  %v4634 = vpop.xlane.xlu0 %4633
  %v4635 = vsel %vm3404, %v4629, -inf
  %4636 = vmax.xlane.f32.xlu0 %v4635
  %v4637 = vpop.xlane.xlu0 %4636
  %v4638 = vsel %vm3404, %v4630, -inf
  %4639 = vmax.xlane.f32.xlu0 %v4638
  %v4640 = vpop.xlane.xlu0 %4639
  %v4641 = vsel %vm3404, %v4631, -inf
  %4642 = vmax.xlane.f32.xlu0 %v4641
  %v4643 = vpop.xlane.xlu0 %4642
  %v4644 = vsub.f32 %v4628, %v4634
  %v4645 = vsub.f32 %v4629, %v4637
  %v4646 = vsub.f32 %v4630, %v4640
  %v4647 = vsub.f32 %v4631, %v4643
  %v4648 = vmul.f32 %v4644, 1.442695
  %v4649 = vpow.pop %v4648
  %v4650 = vmul.f32 %v4645, 1.442695
  %v4651 = vpow.pop %v4650
  %v4652 = vmul.f32 %v4646, 1.442695
  %v4653 = vpow.pop %v4652
  %v4654 = vmul.f32 %v4647, 1.442695
  %v4655 = vpow.pop %v4654
  %v4656 = vsel %vm3404, %v4649, 0.0
  %4657 = vadd.xlane.f32.xlu0 %v4656
  %v4658 = vpop.xlane.xlu0 %4657
  %v4659 = vsel %vm3404, %v4651, 0.0
  %4660 = vadd.xlane.f32.xlu0 %v4659
  %v4661 = vpop.xlane.xlu0 %4660
  %v4662 = vsel %vm3404, %v4653, 0.0
  %4663 = vadd.xlane.f32.xlu0 %v4662
  %v4664 = vpop.xlane.xlu0 %4663
  %v4665 = vsel %vm3404, %v4655, 0.0
  %4666 = vadd.xlane.f32.xlu0 %v4665
  %v4667 = vpop.xlane.xlu0 %4666
  %v4668 = vrcp.pop %v4658
  %v4669 = vmul.f32 %v4658, %v4668
  %v4670 = vsub.f32 1.0, %v4669
  %v4671 = vmul.f32 %v4668, %v4670
  %v4672 = vadd.f32 %v4668, %v4671
  %vm4673 = vweird.f32 %v4658
  %vm4674 = vweird.f32 %v4668
  %vm4675 = vmor %vm4673, %vm4674
  %v4676 = vsel %vm4675, %v4668, %v4672
  %v4677 = vand.u32 2147483647, %v4658
  %vm4678 = vcmp.eq.f32.partialorder %v4677, 8.507059e+37
  %v4679 = vand.u32 %v4658, 2147483648
  %v4680 = vor.u32 1.1754944e-38, %v4679
  %v4681 = vsel %vm4678, %v4680, %v4676
  %v4682 = vmul.f32 %v4649, %v4681
  %v4683 = vrcp.pop %v4661
  %v4684 = vmul.f32 %v4661, %v4683
  %v4685 = vsub.f32 1.0, %v4684
  %v4686 = vmul.f32 %v4683, %v4685
  %v4687 = vadd.f32 %v4683, %v4686
  %vm4688 = vweird.f32 %v4661
  %vm4689 = vweird.f32 %v4683
  %vm4690 = vmor %vm4688, %vm4689
  %v4691 = vsel %vm4690, %v4683, %v4687
  %v4692 = vand.u32 2147483647, %v4661
  %vm4693 = vcmp.eq.f32.partialorder %v4692, 8.507059e+37
  %v4694 = vand.u32 %v4661, 2147483648
  %v4695 = vor.u32 1.1754944e-38, %v4694
  %v4696 = vsel %vm4693, %v4695, %v4691
  %v4697 = vmul.f32 %v4651, %v4696
  %v4698 = vrcp.pop %v4664
  %v4699 = vmul.f32 %v4664, %v4698
  %v4700 = vsub.f32 1.0, %v4699
  %v4701 = vmul.f32 %v4698, %v4700
  %v4702 = vadd.f32 %v4698, %v4701
  %vm4703 = vweird.f32 %v4664
  %vm4704 = vweird.f32 %v4698
  %vm4705 = vmor %vm4703, %vm4704
  %v4706 = vsel %vm4705, %v4698, %v4702
  %v4707 = vand.u32 2147483647, %v4664
  %vm4708 = vcmp.eq.f32.partialorder %v4707, 8.507059e+37
  %v4709 = vand.u32 %v4664, 2147483648
  %v4710 = vor.u32 1.1754944e-38, %v4709
  %v4711 = vsel %vm4708, %v4710, %v4706
  %v4712 = vmul.f32 %v4653, %v4711
  %v4713 = vrcp.pop %v4667
  %v4714 = vmul.f32 %v4667, %v4713
  %v4715 = vsub.f32 1.0, %v4714
  %v4716 = vmul.f32 %v4713, %v4715
  %v4717 = vadd.f32 %v4713, %v4716
  %vm4718 = vweird.f32 %v4667
  %vm4719 = vweird.f32 %v4713
  %vm4720 = vmor %vm4718, %vm4719
  %v4721 = vsel %vm4720, %v4713, %v4717
  %v4722 = vand.u32 2147483647, %v4667
  %vm4723 = vcmp.eq.f32.partialorder %v4722, 8.507059e+37
  %v4724 = vand.u32 %v4667, 2147483648
  %v4725 = vor.u32 1.1754944e-38, %v4724
  %v4726 = vsel %vm4723, %v4725, %v4721
  %v4727 = vmul.f32 %v4655, %v4726
  %v4729 = vsel %vm3404, %v4682, 0
  %v4732 = vsel %vm3404, %v4697, 0
  %v4735 = vsel %vm3404, %v4712, 0
  %v4738 = vsel %vm3404, %v4727, 0
  %4740 = vmatpush.msra.mxu0 0.0
  %4741 = vmatpush.msra.mxu0 0.0
  %4742 = vmatpush.msra.mxu0 0.0
  %4743 = vmatpush.msra.mxu0 0.0
  %4744 = vmatpush.msra.mxu0 0.0
  %4745 = vmatpush.msra.mxu0 0.0
  %4746 = vmatpush.msra.mxu0 0.0
  %4747 = vmatpush.msra.mxu0 0.0
  %4748 = vmatpush.msra.mxu0 0.0
  %4749 = vmatpush.msra.mxu0 0.0
  %4750 = vmatpush.msra.mxu0 0.0
  %4751 = vmatpush.msra.mxu0 0.0
  %4752 = vmatpush.msra.mxu0 0.0
  %4753 = vmatpush.msra.mxu0 0.0
  %4754 = vmatpush.msra.mxu0 0.0
  %v4755 = vand.u32 %v3137, 4294901760
  %4756 = vmatpush.msra.mxu0 %v4755
  %v4757 = vand.u32 %v4729, 4294901760
  %v4758 = vsub.f32 %v4729, %v4757
  %v4759 = vand.u32 %v4758, 4294901760
  %v4760 = vsub.f32 %v4758, %v4759
  %v4761 = vand.u32 %v4760, 4294901760
  %4762 = vmatmul.f32.gmra.mxu0 %v4761
  %v4763 = vpop.f32.mrf.mxu0
  %v4764 = vadd.f32 0.0, %v4763
  %v4765 = vand.u32 %v4732, 4294901760
  %v4766 = vsub.f32 %v4732, %v4765
  %v4767 = vand.u32 %v4766, 4294901760
  %v4768 = vsub.f32 %v4766, %v4767
  %v4769 = vand.u32 %v4768, 4294901760
  %4770 = vmatmul.f32.gmra.mxu0 %v4769
  %v4771 = vpop.f32.mrf.mxu0
  %v4772 = vadd.f32 0.0, %v4771
  %v4773 = vand.u32 %v4735, 4294901760
  %v4774 = vsub.f32 %v4735, %v4773
  %v4775 = vand.u32 %v4774, 4294901760
  %v4776 = vsub.f32 %v4774, %v4775
  %v4777 = vand.u32 %v4776, 4294901760
  %4778 = vmatmul.f32.gmra.mxu0 %v4777
  %v4779 = vpop.f32.mrf.mxu0
  %v4780 = vadd.f32 0.0, %v4779
  %v4781 = vand.u32 %v4738, 4294901760
  %v4782 = vsub.f32 %v4738, %v4781
  %v4783 = vand.u32 %v4782, 4294901760
  %v4784 = vsub.f32 %v4782, %v4783
  %v4785 = vand.u32 %v4784, 4294901760
  %4786 = vmatmul.f32.gmra.mxu0 %v4785
  %v4787 = vpop.f32.mrf.mxu0
  %v4788 = vadd.f32 0.0, %v4787
  %4789 = vdwg.mxu0
  %4790 = vmatpush.msra.mxu0 0.0
  %4791 = vmatpush.msra.mxu0 0.0
  %4792 = vmatpush.msra.mxu0 0.0
  %4793 = vmatpush.msra.mxu0 0.0
  %4794 = vmatpush.msra.mxu0 0.0
  %4795 = vmatpush.msra.mxu0 0.0
  %4796 = vmatpush.msra.mxu0 0.0
  %4797 = vmatpush.msra.mxu0 0.0
  %4798 = vmatpush.msra.mxu0 0.0
  %4799 = vmatpush.msra.mxu0 0.0
  %4800 = vmatpush.msra.mxu0 0.0
  %4801 = vmatpush.msra.mxu0 0.0
  %4802 = vmatpush.msra.mxu0 0.0
  %4803 = vmatpush.msra.mxu0 0.0
  %4804 = vmatpush.msra.mxu0 0.0
  %v4805 = vand.u32 %v3137, 4294901760
  %v4806 = vsub.f32 %v3137, %v4805
  %v4807 = vand.u32 %v4806, 4294901760
  %v4808 = vsub.f32 %v4806, %v4807
  %v4809 = vand.u32 %v4808, 4294901760
  %4810 = vmatpush.msra.mxu0 %v4809
  %v4811 = vand.u32 %v4729, 4294901760
  %4812 = vmatmul.f32.gmra.mxu0 %v4811
  %v4813 = vpop.f32.mrf.mxu0
  %v4814 = vadd.f32 %v4764, %v4813
  %v4815 = vand.u32 %v4732, 4294901760
  %4816 = vmatmul.f32.gmra.mxu0 %v4815
  %v4817 = vpop.f32.mrf.mxu0
  %v4818 = vadd.f32 %v4772, %v4817
  %v4819 = vand.u32 %v4735, 4294901760
  %4820 = vmatmul.f32.gmra.mxu0 %v4819
  %v4821 = vpop.f32.mrf.mxu0
  %v4822 = vadd.f32 %v4780, %v4821
  %v4823 = vand.u32 %v4738, 4294901760
  %4824 = vmatmul.f32.gmra.mxu0 %v4823
  %v4825 = vpop.f32.mrf.mxu0
  %v4826 = vadd.f32 %v4788, %v4825
  %4827 = vdwg.mxu0
  %4828 = vmatpush.msra.mxu0 0.0
  %4829 = vmatpush.msra.mxu0 0.0
  %4830 = vmatpush.msra.mxu0 0.0
  %4831 = vmatpush.msra.mxu0 0.0
  %4832 = vmatpush.msra.mxu0 0.0
  %4833 = vmatpush.msra.mxu0 0.0
  %4834 = vmatpush.msra.mxu0 0.0
  %4835 = vmatpush.msra.mxu0 0.0
  %4836 = vmatpush.msra.mxu0 0.0
  %4837 = vmatpush.msra.mxu0 0.0
  %4838 = vmatpush.msra.mxu0 0.0
  %4839 = vmatpush.msra.mxu0 0.0
  %4840 = vmatpush.msra.mxu0 0.0
  %4841 = vmatpush.msra.mxu0 0.0
  %4842 = vmatpush.msra.mxu0 0.0
  %v4843 = vand.u32 %v3137, 4294901760
  %v4844 = vsub.f32 %v3137, %v4843
  %4845 = vmatpush.msra.mxu0 %v4844
  %v4846 = vand.u32 %v4729, 4294901760
  %v4847 = vsub.f32 %v4729, %v4846
  %4848 = vmatmul.f32.gmra.mxu0 %v4847
  %v4849 = vpop.f32.mrf.mxu0
  %v4850 = vadd.f32 %v4814, %v4849
  %v4851 = vand.u32 %v4732, 4294901760
  %v4852 = vsub.f32 %v4732, %v4851
  %4853 = vmatmul.f32.gmra.mxu0 %v4852
  %v4854 = vpop.f32.mrf.mxu0
  %v4855 = vadd.f32 %v4818, %v4854
  %v4856 = vand.u32 %v4735, 4294901760
  %v4857 = vsub.f32 %v4735, %v4856
  %4858 = vmatmul.f32.gmra.mxu0 %v4857
  %v4859 = vpop.f32.mrf.mxu0
  %v4860 = vadd.f32 %v4822, %v4859
  %v4861 = vand.u32 %v4738, 4294901760
  %v4862 = vsub.f32 %v4738, %v4861
  %4863 = vmatmul.f32.gmra.mxu0 %v4862
  %v4864 = vpop.f32.mrf.mxu0
  %v4865 = vadd.f32 %v4826, %v4864
  %4866 = vdwg.mxu0
  %4867 = vmatpush.msra.mxu0 0.0
  %4868 = vmatpush.msra.mxu0 0.0
  %4869 = vmatpush.msra.mxu0 0.0
  %4870 = vmatpush.msra.mxu0 0.0
  %4871 = vmatpush.msra.mxu0 0.0
  %4872 = vmatpush.msra.mxu0 0.0
  %4873 = vmatpush.msra.mxu0 0.0
  %4874 = vmatpush.msra.mxu0 0.0
  %4875 = vmatpush.msra.mxu0 0.0
  %4876 = vmatpush.msra.mxu0 0.0
  %4877 = vmatpush.msra.mxu0 0.0
  %4878 = vmatpush.msra.mxu0 0.0
  %4879 = vmatpush.msra.mxu0 0.0
  %4880 = vmatpush.msra.mxu0 0.0
  %4881 = vmatpush.msra.mxu0 0.0
  %v4882 = vand.u32 %v3137, 4294901760
  %4883 = vmatpush.msra.mxu0 %v4882
  %v4884 = vand.u32 %v4729, 4294901760
  %v4885 = vsub.f32 %v4729, %v4884
  %v4886 = vand.u32 %v4885, 4294901760
  %4887 = vmatmul.f32.gmra.mxu0 %v4886
  %v4888 = vpop.f32.mrf.mxu0
  %v4889 = vadd.f32 %v4850, %v4888
  %v4890 = vand.u32 %v4732, 4294901760
  %v4891 = vsub.f32 %v4732, %v4890
  %v4892 = vand.u32 %v4891, 4294901760
  %4893 = vmatmul.f32.gmra.mxu0 %v4892
  %v4894 = vpop.f32.mrf.mxu0
  %v4895 = vadd.f32 %v4855, %v4894
  %v4896 = vand.u32 %v4735, 4294901760
  %v4897 = vsub.f32 %v4735, %v4896
  %v4898 = vand.u32 %v4897, 4294901760
  %4899 = vmatmul.f32.gmra.mxu0 %v4898
  %v4900 = vpop.f32.mrf.mxu0
  %v4901 = vadd.f32 %v4860, %v4900
  %v4902 = vand.u32 %v4738, 4294901760
  %v4903 = vsub.f32 %v4738, %v4902
  %v4904 = vand.u32 %v4903, 4294901760
  %4905 = vmatmul.f32.gmra.mxu0 %v4904
  %v4906 = vpop.f32.mrf.mxu0
  %v4907 = vadd.f32 %v4865, %v4906
  %4908 = vdwg.mxu0
  %4909 = vmatpush.msra.mxu0 0.0
  %4910 = vmatpush.msra.mxu0 0.0
  %4911 = vmatpush.msra.mxu0 0.0
  %4912 = vmatpush.msra.mxu0 0.0
  %4913 = vmatpush.msra.mxu0 0.0
  %4914 = vmatpush.msra.mxu0 0.0
  %4915 = vmatpush.msra.mxu0 0.0
  %4916 = vmatpush.msra.mxu0 0.0
  %4917 = vmatpush.msra.mxu0 0.0
  %4918 = vmatpush.msra.mxu0 0.0
  %4919 = vmatpush.msra.mxu0 0.0
  %4920 = vmatpush.msra.mxu0 0.0
  %4921 = vmatpush.msra.mxu0 0.0
  %4922 = vmatpush.msra.mxu0 0.0
  %4923 = vmatpush.msra.mxu0 0.0
  %v4924 = vand.u32 %v3137, 4294901760
  %v4925 = vsub.f32 %v3137, %v4924
  %v4926 = vand.u32 %v4925, 4294901760
  %4927 = vmatpush.msra.mxu0 %v4926
  %v4928 = vand.u32 %v4729, 4294901760
  %4929 = vmatmul.f32.gmra.mxu0 %v4928
  %v4930 = vpop.f32.mrf.mxu0
  %v4931 = vadd.f32 %v4889, %v4930
  %v4932 = vand.u32 %v4732, 4294901760
  %4933 = vmatmul.f32.gmra.mxu0 %v4932
  %v4934 = vpop.f32.mrf.mxu0
  %v4935 = vadd.f32 %v4895, %v4934
  %v4936 = vand.u32 %v4735, 4294901760
  %4937 = vmatmul.f32.gmra.mxu0 %v4936
  %v4938 = vpop.f32.mrf.mxu0
  %v4939 = vadd.f32 %v4901, %v4938
  %v4940 = vand.u32 %v4738, 4294901760
  %4941 = vmatmul.f32.gmra.mxu0 %v4940
  %v4942 = vpop.f32.mrf.mxu0
  %v4943 = vadd.f32 %v4907, %v4942
  %4944 = vdwg.mxu0
  %4945 = vmatpush.msra.mxu0 0.0
  %4946 = vmatpush.msra.mxu0 0.0
  %4947 = vmatpush.msra.mxu0 0.0
  %4948 = vmatpush.msra.mxu0 0.0
  %4949 = vmatpush.msra.mxu0 0.0
  %4950 = vmatpush.msra.mxu0 0.0
  %4951 = vmatpush.msra.mxu0 0.0
  %4952 = vmatpush.msra.mxu0 0.0
  %4953 = vmatpush.msra.mxu0 0.0
  %4954 = vmatpush.msra.mxu0 0.0
  %4955 = vmatpush.msra.mxu0 0.0
  %4956 = vmatpush.msra.mxu0 0.0
  %4957 = vmatpush.msra.mxu0 0.0
  %4958 = vmatpush.msra.mxu0 0.0
  %4959 = vmatpush.msra.mxu0 0.0
  %v4960 = vand.u32 %v3137, 4294901760
  %4961 = vmatpush.msra.mxu0 %v4960
  %v4962 = vand.u32 %v4729, 4294901760
  %4963 = vmatmul.f32.gmra.mxu0 %v4962
  %v4964 = vpop.f32.mrf.mxu0
  %v4965 = vadd.f32 %v4931, %v4964
  %v4966 = vand.u32 %v4732, 4294901760
  %4967 = vmatmul.f32.gmra.mxu0 %v4966
  %v4968 = vpop.f32.mrf.mxu0
  %v4969 = vadd.f32 %v4935, %v4968
  %v4970 = vand.u32 %v4735, 4294901760
  %4971 = vmatmul.f32.gmra.mxu0 %v4970
  %v4972 = vpop.f32.mrf.mxu0
  %v4973 = vadd.f32 %v4939, %v4972
  %v4974 = vand.u32 %v4738, 4294901760
  %4975 = vmatmul.f32.gmra.mxu0 %v4974
  %v4976 = vpop.f32.mrf.mxu0
  %v4977 = vadd.f32 %v4943, %v4976
  %4978 = vdwg.mxu0
  %4979 = vrot.lane.b32.xlu0 %v743, 64
  %v4980 = vpop.permute.xlu0 %4979
  %4981 = vrot.lane.b32.xlu0 %v747, 64
  %v4982 = vpop.permute.xlu0 %4981
  %4983 = vrot.lane.b32.xlu0 %v751, 64
  %v4984 = vpop.permute.xlu0 %4983
  %4985 = vrot.lane.b32.xlu0 %v755, 64
  %v4986 = vpop.permute.xlu0 %4985
  %4987 = vrot.lane.b32.xlu0 %v3135, 64
  %v4988 = vpop.permute.xlu0 %4987
  %v4989 = vsel %vm84, %v4980, 0
  %v4991 = vsel %vm84, %v4982, 0
  %v4993 = vsel %vm84, %v4984, 0
  %v4995 = vsel %vm84, %v4986, 0
  %v4997 = vsel %vm84, %v4988, 0
  %4999 = vmatpush.xpose.msra.mxu0 0.0
  %5000 = vmatpush.xpose.msra.mxu0 0.0
  %5001 = vmatpush.xpose.msra.mxu0 0.0
  %5002 = vmatpush.xpose.msra.mxu0 0.0
  %5003 = vmatpush.xpose.msra.mxu0 0.0
  %5004 = vmatpush.xpose.msra.mxu0 0.0
  %5005 = vmatpush.xpose.msra.mxu0 0.0
  %5006 = vmatpush.xpose.msra.mxu0 0.0
  %5007 = vmatpush.xpose.msra.mxu0 0.0
  %5008 = vmatpush.xpose.msra.mxu0 0.0
  %5009 = vmatpush.xpose.msra.mxu0 0.0
  %5010 = vmatpush.xpose.msra.mxu0 0.0
  %5011 = vmatpush.xpose.msra.mxu0 0.0
  %5012 = vmatpush.xpose.msra.mxu0 0.0
  %5013 = vmatpush.xpose.msra.mxu0 0.0
  %v5014 = vand.u32 %v4997, 4294901760
  %5015 = vmatpush.xpose.msra.mxu0 %v5014
  %v5016 = vand.u32 %v4989, 4294901760
  %v5017 = vsub.f32 %v4989, %v5016
  %v5018 = vand.u32 %v5017, 4294901760
  %v5019 = vsub.f32 %v5017, %v5018
  %v5020 = vand.u32 %v5019, 4294901760
  %5021 = vmatmul.f32.gmra.mxu0 %v5020
  %v5022 = vpop.f32.mrf.mxu0
  %v5023 = vadd.f32 0.0, %v5022
  %v5024 = vand.u32 %v4991, 4294901760
  %v5025 = vsub.f32 %v4991, %v5024
  %v5026 = vand.u32 %v5025, 4294901760
  %v5027 = vsub.f32 %v5025, %v5026
  %v5028 = vand.u32 %v5027, 4294901760
  %5029 = vmatmul.f32.gmra.mxu0 %v5028
  %v5030 = vpop.f32.mrf.mxu0
  %v5031 = vadd.f32 0.0, %v5030
  %v5032 = vand.u32 %v4993, 4294901760
  %v5033 = vsub.f32 %v4993, %v5032
  %v5034 = vand.u32 %v5033, 4294901760
  %v5035 = vsub.f32 %v5033, %v5034
  %v5036 = vand.u32 %v5035, 4294901760
  %5037 = vmatmul.f32.gmra.mxu0 %v5036
  %v5038 = vpop.f32.mrf.mxu0
  %v5039 = vadd.f32 0.0, %v5038
  %v5040 = vand.u32 %v4995, 4294901760
  %v5041 = vsub.f32 %v4995, %v5040
  %v5042 = vand.u32 %v5041, 4294901760
  %v5043 = vsub.f32 %v5041, %v5042
  %v5044 = vand.u32 %v5043, 4294901760
  %5045 = vmatmul.f32.gmra.mxu0 %v5044
  %v5046 = vpop.f32.mrf.mxu0
  %v5047 = vadd.f32 0.0, %v5046
  %5048 = vdwg.mxu0
  %5049 = vmatpush.xpose.msra.mxu0 0.0
  %5050 = vmatpush.xpose.msra.mxu0 0.0
  %5051 = vmatpush.xpose.msra.mxu0 0.0
  %5052 = vmatpush.xpose.msra.mxu0 0.0
  %5053 = vmatpush.xpose.msra.mxu0 0.0
  %5054 = vmatpush.xpose.msra.mxu0 0.0
  %5055 = vmatpush.xpose.msra.mxu0 0.0
  %5056 = vmatpush.xpose.msra.mxu0 0.0
  %5057 = vmatpush.xpose.msra.mxu0 0.0
  %5058 = vmatpush.xpose.msra.mxu0 0.0
  %5059 = vmatpush.xpose.msra.mxu0 0.0
  %5060 = vmatpush.xpose.msra.mxu0 0.0
  %5061 = vmatpush.xpose.msra.mxu0 0.0
  %5062 = vmatpush.xpose.msra.mxu0 0.0
  %5063 = vmatpush.xpose.msra.mxu0 0.0
  %v5064 = vand.u32 %v4997, 4294901760
  %v5065 = vsub.f32 %v4997, %v5064
  %v5066 = vand.u32 %v5065, 4294901760
  %v5067 = vsub.f32 %v5065, %v5066
  %v5068 = vand.u32 %v5067, 4294901760
  %5069 = vmatpush.xpose.msra.mxu0 %v5068
  %v5070 = vand.u32 %v4989, 4294901760
  %5071 = vmatmul.f32.gmra.mxu0 %v5070
  %v5072 = vpop.f32.mrf.mxu0
  %v5073 = vadd.f32 %v5023, %v5072
  %v5074 = vand.u32 %v4991, 4294901760
  %5075 = vmatmul.f32.gmra.mxu0 %v5074
  %v5076 = vpop.f32.mrf.mxu0
  %v5077 = vadd.f32 %v5031, %v5076
  %v5078 = vand.u32 %v4993, 4294901760
  %5079 = vmatmul.f32.gmra.mxu0 %v5078
  %v5080 = vpop.f32.mrf.mxu0
  %v5081 = vadd.f32 %v5039, %v5080
  %v5082 = vand.u32 %v4995, 4294901760
  %5083 = vmatmul.f32.gmra.mxu0 %v5082
  %v5084 = vpop.f32.mrf.mxu0
  %v5085 = vadd.f32 %v5047, %v5084
  %5086 = vdwg.mxu0
  %5087 = vmatpush.xpose.msra.mxu0 0.0
  %5088 = vmatpush.xpose.msra.mxu0 0.0
  %5089 = vmatpush.xpose.msra.mxu0 0.0
  %5090 = vmatpush.xpose.msra.mxu0 0.0
  %5091 = vmatpush.xpose.msra.mxu0 0.0
  %5092 = vmatpush.xpose.msra.mxu0 0.0
  %5093 = vmatpush.xpose.msra.mxu0 0.0
  %5094 = vmatpush.xpose.msra.mxu0 0.0
  %5095 = vmatpush.xpose.msra.mxu0 0.0
  %5096 = vmatpush.xpose.msra.mxu0 0.0
  %5097 = vmatpush.xpose.msra.mxu0 0.0
  %5098 = vmatpush.xpose.msra.mxu0 0.0
  %5099 = vmatpush.xpose.msra.mxu0 0.0
  %5100 = vmatpush.xpose.msra.mxu0 0.0
  %5101 = vmatpush.xpose.msra.mxu0 0.0
  %v5102 = vand.u32 %v4997, 4294901760
  %v5103 = vsub.f32 %v4997, %v5102
  %5104 = vmatpush.xpose.msra.mxu0 %v5103
  %v5105 = vand.u32 %v4989, 4294901760
  %v5106 = vsub.f32 %v4989, %v5105
  %5107 = vmatmul.f32.gmra.mxu0 %v5106
  %v5108 = vpop.f32.mrf.mxu0
  %v5109 = vadd.f32 %v5073, %v5108
  %v5110 = vand.u32 %v4991, 4294901760
  %v5111 = vsub.f32 %v4991, %v5110
  %5112 = vmatmul.f32.gmra.mxu0 %v5111
  %v5113 = vpop.f32.mrf.mxu0
  %v5114 = vadd.f32 %v5077, %v5113
  %v5115 = vand.u32 %v4993, 4294901760
  %v5116 = vsub.f32 %v4993, %v5115
  %5117 = vmatmul.f32.gmra.mxu0 %v5116
  %v5118 = vpop.f32.mrf.mxu0
  %v5119 = vadd.f32 %v5081, %v5118
  %v5120 = vand.u32 %v4995, 4294901760
  %v5121 = vsub.f32 %v4995, %v5120
  %5122 = vmatmul.f32.gmra.mxu0 %v5121
  %v5123 = vpop.f32.mrf.mxu0
  %v5124 = vadd.f32 %v5085, %v5123
  %5125 = vdwg.mxu0
  %5126 = vmatpush.xpose.msra.mxu0 0.0
  %5127 = vmatpush.xpose.msra.mxu0 0.0
  %5128 = vmatpush.xpose.msra.mxu0 0.0
  %5129 = vmatpush.xpose.msra.mxu0 0.0
  %5130 = vmatpush.xpose.msra.mxu0 0.0
  %5131 = vmatpush.xpose.msra.mxu0 0.0
  %5132 = vmatpush.xpose.msra.mxu0 0.0
  %5133 = vmatpush.xpose.msra.mxu0 0.0
  %5134 = vmatpush.xpose.msra.mxu0 0.0
  %5135 = vmatpush.xpose.msra.mxu0 0.0
  %5136 = vmatpush.xpose.msra.mxu0 0.0
  %5137 = vmatpush.xpose.msra.mxu0 0.0
  %5138 = vmatpush.xpose.msra.mxu0 0.0
  %5139 = vmatpush.xpose.msra.mxu0 0.0
  %5140 = vmatpush.xpose.msra.mxu0 0.0
  %v5141 = vand.u32 %v4997, 4294901760
  %5142 = vmatpush.xpose.msra.mxu0 %v5141
  %v5143 = vand.u32 %v4989, 4294901760
  %v5144 = vsub.f32 %v4989, %v5143
  %v5145 = vand.u32 %v5144, 4294901760
  %5146 = vmatmul.f32.gmra.mxu0 %v5145
  %v5147 = vpop.f32.mrf.mxu0
  %v5148 = vadd.f32 %v5109, %v5147
  %v5149 = vand.u32 %v4991, 4294901760
  %v5150 = vsub.f32 %v4991, %v5149
  %v5151 = vand.u32 %v5150, 4294901760
  %5152 = vmatmul.f32.gmra.mxu0 %v5151
  %v5153 = vpop.f32.mrf.mxu0
  %v5154 = vadd.f32 %v5114, %v5153
  %v5155 = vand.u32 %v4993, 4294901760
  %v5156 = vsub.f32 %v4993, %v5155
  %v5157 = vand.u32 %v5156, 4294901760
  %5158 = vmatmul.f32.gmra.mxu0 %v5157
  %v5159 = vpop.f32.mrf.mxu0
  %v5160 = vadd.f32 %v5119, %v5159
  %v5161 = vand.u32 %v4995, 4294901760
  %v5162 = vsub.f32 %v4995, %v5161
  %v5163 = vand.u32 %v5162, 4294901760
  %5164 = vmatmul.f32.gmra.mxu0 %v5163
  %v5165 = vpop.f32.mrf.mxu0
  %v5166 = vadd.f32 %v5124, %v5165
  %5167 = vdwg.mxu0
  %5168 = vmatpush.xpose.msra.mxu0 0.0
  %5169 = vmatpush.xpose.msra.mxu0 0.0
  %5170 = vmatpush.xpose.msra.mxu0 0.0
  %5171 = vmatpush.xpose.msra.mxu0 0.0
  %5172 = vmatpush.xpose.msra.mxu0 0.0
  %5173 = vmatpush.xpose.msra.mxu0 0.0
  %5174 = vmatpush.xpose.msra.mxu0 0.0
  %5175 = vmatpush.xpose.msra.mxu0 0.0
  %5176 = vmatpush.xpose.msra.mxu0 0.0
  %5177 = vmatpush.xpose.msra.mxu0 0.0
  %5178 = vmatpush.xpose.msra.mxu0 0.0
  %5179 = vmatpush.xpose.msra.mxu0 0.0
  %5180 = vmatpush.xpose.msra.mxu0 0.0
  %5181 = vmatpush.xpose.msra.mxu0 0.0
  %5182 = vmatpush.xpose.msra.mxu0 0.0
  %v5183 = vand.u32 %v4997, 4294901760
  %v5184 = vsub.f32 %v4997, %v5183
  %v5185 = vand.u32 %v5184, 4294901760
  %5186 = vmatpush.xpose.msra.mxu0 %v5185
  %v5187 = vand.u32 %v4989, 4294901760
  %5188 = vmatmul.f32.gmra.mxu0 %v5187
  %v5189 = vpop.f32.mrf.mxu0
  %v5190 = vadd.f32 %v5148, %v5189
  %v5191 = vand.u32 %v4991, 4294901760
  %5192 = vmatmul.f32.gmra.mxu0 %v5191
  %v5193 = vpop.f32.mrf.mxu0
  %v5194 = vadd.f32 %v5154, %v5193
  %v5195 = vand.u32 %v4993, 4294901760
  %5196 = vmatmul.f32.gmra.mxu0 %v5195
  %v5197 = vpop.f32.mrf.mxu0
  %v5198 = vadd.f32 %v5160, %v5197
  %v5199 = vand.u32 %v4995, 4294901760
  %5200 = vmatmul.f32.gmra.mxu0 %v5199
  %v5201 = vpop.f32.mrf.mxu0
  %v5202 = vadd.f32 %v5166, %v5201
  %5203 = vdwg.mxu0
  %5204 = vmatpush.xpose.msra.mxu0 0.0
  %5205 = vmatpush.xpose.msra.mxu0 0.0
  %5206 = vmatpush.xpose.msra.mxu0 0.0
  %5207 = vmatpush.xpose.msra.mxu0 0.0
  %5208 = vmatpush.xpose.msra.mxu0 0.0
  %5209 = vmatpush.xpose.msra.mxu0 0.0
  %5210 = vmatpush.xpose.msra.mxu0 0.0
  %5211 = vmatpush.xpose.msra.mxu0 0.0
  %5212 = vmatpush.xpose.msra.mxu0 0.0
  %5213 = vmatpush.xpose.msra.mxu0 0.0
  %5214 = vmatpush.xpose.msra.mxu0 0.0
  %5215 = vmatpush.xpose.msra.mxu0 0.0
  %5216 = vmatpush.xpose.msra.mxu0 0.0
  %5217 = vmatpush.xpose.msra.mxu0 0.0
  %5218 = vmatpush.xpose.msra.mxu0 0.0
  %v5219 = vand.u32 %v4997, 4294901760
  %5220 = vmatpush.xpose.msra.mxu0 %v5219
  %v5221 = vand.u32 %v4989, 4294901760
  %5222 = vmatmul.f32.gmra.mxu0 %v5221
  %v5223 = vpop.f32.mrf.mxu0
  %v5224 = vadd.f32 %v5190, %v5223
  %v5225 = vand.u32 %v4991, 4294901760
  %5226 = vmatmul.f32.gmra.mxu0 %v5225
  %v5227 = vpop.f32.mrf.mxu0
  %v5228 = vadd.f32 %v5194, %v5227
  %v5229 = vand.u32 %v4993, 4294901760
  %5230 = vmatmul.f32.gmra.mxu0 %v5229
  %v5231 = vpop.f32.mrf.mxu0
  %v5232 = vadd.f32 %v5198, %v5231
  %v5233 = vand.u32 %v4995, 4294901760
  %5234 = vmatmul.f32.gmra.mxu0 %v5233
  %v5235 = vpop.f32.mrf.mxu0
  %v5236 = vadd.f32 %v5202, %v5235
  %5237 = vdwg.mxu0
  %v5238 = vmul.f32 %v5224, 0.125
  %v5239 = vmul.f32 %v5228, 0.125
  %v5240 = vmul.f32 %v5232, 0.125
  %v5241 = vmul.f32 %v5236, 0.125
  %v5242 = vadd.f32 %v5238, %v3138
  %v5243 = vadd.f32 %v5239, %v3139
  %v5244 = vadd.f32 %v5240, %v3140
  %v5245 = vadd.f32 %v5241, %v3141
  %v5246 = vsel %vm3404, %v5242, -inf
  %5247 = vmax.xlane.f32.xlu0 %v5246
  %v5248 = vpop.xlane.xlu0 %5247
  %v5249 = vsel %vm3404, %v5243, -inf
  %5250 = vmax.xlane.f32.xlu0 %v5249
  %v5251 = vpop.xlane.xlu0 %5250
  %v5252 = vsel %vm3404, %v5244, -inf
  %5253 = vmax.xlane.f32.xlu0 %v5252
  %v5254 = vpop.xlane.xlu0 %5253
  %v5255 = vsel %vm3404, %v5245, -inf
  %5256 = vmax.xlane.f32.xlu0 %v5255
  %v5257 = vpop.xlane.xlu0 %5256
  %v5258 = vsub.f32 %v5242, %v5248
  %v5259 = vsub.f32 %v5243, %v5251
  %v5260 = vsub.f32 %v5244, %v5254
  %v5261 = vsub.f32 %v5245, %v5257
  %v5262 = vmul.f32 %v5258, 1.442695
  %v5263 = vpow.pop %v5262
  %v5264 = vmul.f32 %v5259, 1.442695
  %v5265 = vpow.pop %v5264
  %v5266 = vmul.f32 %v5260, 1.442695
  %v5267 = vpow.pop %v5266
  %v5268 = vmul.f32 %v5261, 1.442695
  %v5269 = vpow.pop %v5268
  %v5270 = vsel %vm3404, %v5263, 0.0
  %5271 = vadd.xlane.f32.xlu0 %v5270
  %v5272 = vpop.xlane.xlu0 %5271
  %v5273 = vsel %vm3404, %v5265, 0.0
  %5274 = vadd.xlane.f32.xlu0 %v5273
  %v5275 = vpop.xlane.xlu0 %5274
  %v5276 = vsel %vm3404, %v5267, 0.0
  %5277 = vadd.xlane.f32.xlu0 %v5276
  %v5278 = vpop.xlane.xlu0 %5277
  %v5279 = vsel %vm3404, %v5269, 0.0
  %5280 = vadd.xlane.f32.xlu0 %v5279
  %v5281 = vpop.xlane.xlu0 %5280
  %v5282 = vrcp.pop %v5272
  %v5283 = vmul.f32 %v5272, %v5282
  %v5284 = vsub.f32 1.0, %v5283
  %v5285 = vmul.f32 %v5282, %v5284
  %v5286 = vadd.f32 %v5282, %v5285
  %vm5287 = vweird.f32 %v5272
  %vm5288 = vweird.f32 %v5282
  %vm5289 = vmor %vm5287, %vm5288
  %v5290 = vsel %vm5289, %v5282, %v5286
  %v5291 = vand.u32 2147483647, %v5272
  %vm5292 = vcmp.eq.f32.partialorder %v5291, 8.507059e+37
  %v5293 = vand.u32 %v5272, 2147483648
  %v5294 = vor.u32 1.1754944e-38, %v5293
  %v5295 = vsel %vm5292, %v5294, %v5290
  %v5296 = vmul.f32 %v5263, %v5295
  %v5297 = vrcp.pop %v5275
  %v5298 = vmul.f32 %v5275, %v5297
  %v5299 = vsub.f32 1.0, %v5298
  %v5300 = vmul.f32 %v5297, %v5299
  %v5301 = vadd.f32 %v5297, %v5300
  %vm5302 = vweird.f32 %v5275
  %vm5303 = vweird.f32 %v5297
  %vm5304 = vmor %vm5302, %vm5303
  %v5305 = vsel %vm5304, %v5297, %v5301
  %v5306 = vand.u32 2147483647, %v5275
  %vm5307 = vcmp.eq.f32.partialorder %v5306, 8.507059e+37
  %v5308 = vand.u32 %v5275, 2147483648
  %v5309 = vor.u32 1.1754944e-38, %v5308
  %v5310 = vsel %vm5307, %v5309, %v5305
  %v5311 = vmul.f32 %v5265, %v5310
  %v5312 = vrcp.pop %v5278
  %v5313 = vmul.f32 %v5278, %v5312
  %v5314 = vsub.f32 1.0, %v5313
  %v5315 = vmul.f32 %v5312, %v5314
  %v5316 = vadd.f32 %v5312, %v5315
  %vm5317 = vweird.f32 %v5278
  %vm5318 = vweird.f32 %v5312
  %vm5319 = vmor %vm5317, %vm5318
  %v5320 = vsel %vm5319, %v5312, %v5316
  %v5321 = vand.u32 2147483647, %v5278
  %vm5322 = vcmp.eq.f32.partialorder %v5321, 8.507059e+37
  %v5323 = vand.u32 %v5278, 2147483648
  %v5324 = vor.u32 1.1754944e-38, %v5323
  %v5325 = vsel %vm5322, %v5324, %v5320
  %v5326 = vmul.f32 %v5267, %v5325
  %v5327 = vrcp.pop %v5281
  %v5328 = vmul.f32 %v5281, %v5327
  %v5329 = vsub.f32 1.0, %v5328
  %v5330 = vmul.f32 %v5327, %v5329
  %v5331 = vadd.f32 %v5327, %v5330
  %vm5332 = vweird.f32 %v5281
  %vm5333 = vweird.f32 %v5327
  %vm5334 = vmor %vm5332, %vm5333
  %v5335 = vsel %vm5334, %v5327, %v5331
  %v5336 = vand.u32 2147483647, %v5281
  %vm5337 = vcmp.eq.f32.partialorder %v5336, 8.507059e+37
  %v5338 = vand.u32 %v5281, 2147483648
  %v5339 = vor.u32 1.1754944e-38, %v5338
  %v5340 = vsel %vm5337, %v5339, %v5335
  %v5341 = vmul.f32 %v5269, %v5340
  %5343 = vrot.lane.b32.xlu0 %v3137, 64
  %v5344 = vpop.permute.xlu0 %5343
  %v5347 = vsel %vm3404, %v5296, 0
  %v5350 = vsel %vm3404, %v5311, 0
  %v5353 = vsel %vm3404, %v5326, 0
  %v5356 = vsel %vm3404, %v5341, 0
  %5358 = vmatpush.msra.mxu0 0.0
  %5359 = vmatpush.msra.mxu0 0.0
  %5360 = vmatpush.msra.mxu0 0.0
  %5361 = vmatpush.msra.mxu0 0.0
  %5362 = vmatpush.msra.mxu0 0.0
  %5363 = vmatpush.msra.mxu0 0.0
  %5364 = vmatpush.msra.mxu0 0.0
  %5365 = vmatpush.msra.mxu0 0.0
  %5366 = vmatpush.msra.mxu0 0.0
  %5367 = vmatpush.msra.mxu0 0.0
  %5368 = vmatpush.msra.mxu0 0.0
  %5369 = vmatpush.msra.mxu0 0.0
  %5370 = vmatpush.msra.mxu0 0.0
  %5371 = vmatpush.msra.mxu0 0.0
  %5372 = vmatpush.msra.mxu0 0.0
  %v5373 = vand.u32 %v5344, 4294901760
  %5374 = vmatpush.msra.mxu0 %v5373
  %v5375 = vand.u32 %v5347, 4294901760
  %v5376 = vsub.f32 %v5347, %v5375
  %v5377 = vand.u32 %v5376, 4294901760
  %v5378 = vsub.f32 %v5376, %v5377
  %v5379 = vand.u32 %v5378, 4294901760
  %5380 = vmatmul.f32.gmra.mxu0 %v5379
  %v5381 = vpop.f32.mrf.mxu0
  %v5382 = vadd.f32 0.0, %v5381
  %v5383 = vand.u32 %v5350, 4294901760
  %v5384 = vsub.f32 %v5350, %v5383
  %v5385 = vand.u32 %v5384, 4294901760
  %v5386 = vsub.f32 %v5384, %v5385
  %v5387 = vand.u32 %v5386, 4294901760
  %5388 = vmatmul.f32.gmra.mxu0 %v5387
  %v5389 = vpop.f32.mrf.mxu0
  %v5390 = vadd.f32 0.0, %v5389
  %v5391 = vand.u32 %v5353, 4294901760
  %v5392 = vsub.f32 %v5353, %v5391
  %v5393 = vand.u32 %v5392, 4294901760
  %v5394 = vsub.f32 %v5392, %v5393
  %v5395 = vand.u32 %v5394, 4294901760
  %5396 = vmatmul.f32.gmra.mxu0 %v5395
  %v5397 = vpop.f32.mrf.mxu0
  %v5398 = vadd.f32 0.0, %v5397
  %v5399 = vand.u32 %v5356, 4294901760
  %v5400 = vsub.f32 %v5356, %v5399
  %v5401 = vand.u32 %v5400, 4294901760
  %v5402 = vsub.f32 %v5400, %v5401
  %v5403 = vand.u32 %v5402, 4294901760
  %5404 = vmatmul.f32.gmra.mxu0 %v5403
  %v5405 = vpop.f32.mrf.mxu0
  %v5406 = vadd.f32 0.0, %v5405
  %5407 = vdwg.mxu0
  %5408 = vmatpush.msra.mxu0 0.0
  %5409 = vmatpush.msra.mxu0 0.0
  %5410 = vmatpush.msra.mxu0 0.0
  %5411 = vmatpush.msra.mxu0 0.0
  %5412 = vmatpush.msra.mxu0 0.0
  %5413 = vmatpush.msra.mxu0 0.0
  %5414 = vmatpush.msra.mxu0 0.0
  %5415 = vmatpush.msra.mxu0 0.0
  %5416 = vmatpush.msra.mxu0 0.0
  %5417 = vmatpush.msra.mxu0 0.0
  %5418 = vmatpush.msra.mxu0 0.0
  %5419 = vmatpush.msra.mxu0 0.0
  %5420 = vmatpush.msra.mxu0 0.0
  %5421 = vmatpush.msra.mxu0 0.0
  %5422 = vmatpush.msra.mxu0 0.0
  %v5423 = vand.u32 %v5344, 4294901760
  %v5424 = vsub.f32 %v5344, %v5423
  %v5425 = vand.u32 %v5424, 4294901760
  %v5426 = vsub.f32 %v5424, %v5425
  %v5427 = vand.u32 %v5426, 4294901760
  %5428 = vmatpush.msra.mxu0 %v5427
  %v5429 = vand.u32 %v5347, 4294901760
  %5430 = vmatmul.f32.gmra.mxu0 %v5429
  %v5431 = vpop.f32.mrf.mxu0
  %v5432 = vadd.f32 %v5382, %v5431
  %v5433 = vand.u32 %v5350, 4294901760
  %5434 = vmatmul.f32.gmra.mxu0 %v5433
  %v5435 = vpop.f32.mrf.mxu0
  %v5436 = vadd.f32 %v5390, %v5435
  %v5437 = vand.u32 %v5353, 4294901760
  %5438 = vmatmul.f32.gmra.mxu0 %v5437
  %v5439 = vpop.f32.mrf.mxu0
  %v5440 = vadd.f32 %v5398, %v5439
  %v5441 = vand.u32 %v5356, 4294901760
  %5442 = vmatmul.f32.gmra.mxu0 %v5441
  %v5443 = vpop.f32.mrf.mxu0
  %v5444 = vadd.f32 %v5406, %v5443
  %5445 = vdwg.mxu0
  %5446 = vmatpush.msra.mxu0 0.0
  %5447 = vmatpush.msra.mxu0 0.0
  %5448 = vmatpush.msra.mxu0 0.0
  %5449 = vmatpush.msra.mxu0 0.0
  %5450 = vmatpush.msra.mxu0 0.0
  %5451 = vmatpush.msra.mxu0 0.0
  %5452 = vmatpush.msra.mxu0 0.0
  %5453 = vmatpush.msra.mxu0 0.0
  %5454 = vmatpush.msra.mxu0 0.0
  %5455 = vmatpush.msra.mxu0 0.0
  %5456 = vmatpush.msra.mxu0 0.0
  %5457 = vmatpush.msra.mxu0 0.0
  %5458 = vmatpush.msra.mxu0 0.0
  %5459 = vmatpush.msra.mxu0 0.0
  %5460 = vmatpush.msra.mxu0 0.0
  %v5461 = vand.u32 %v5344, 4294901760
  %v5462 = vsub.f32 %v5344, %v5461
  %5463 = vmatpush.msra.mxu0 %v5462
  %v5464 = vand.u32 %v5347, 4294901760
  %v5465 = vsub.f32 %v5347, %v5464
  %5466 = vmatmul.f32.gmra.mxu0 %v5465
  %v5467 = vpop.f32.mrf.mxu0
  %v5468 = vadd.f32 %v5432, %v5467
  %v5469 = vand.u32 %v5350, 4294901760
  %v5470 = vsub.f32 %v5350, %v5469
  %5471 = vmatmul.f32.gmra.mxu0 %v5470
  %v5472 = vpop.f32.mrf.mxu0
  %v5473 = vadd.f32 %v5436, %v5472
  %v5474 = vand.u32 %v5353, 4294901760
  %v5475 = vsub.f32 %v5353, %v5474
  %5476 = vmatmul.f32.gmra.mxu0 %v5475
  %v5477 = vpop.f32.mrf.mxu0
  %v5478 = vadd.f32 %v5440, %v5477
  %v5479 = vand.u32 %v5356, 4294901760
  %v5480 = vsub.f32 %v5356, %v5479
  %5481 = vmatmul.f32.gmra.mxu0 %v5480
  %v5482 = vpop.f32.mrf.mxu0
  %v5483 = vadd.f32 %v5444, %v5482
  %5484 = vdwg.mxu0
  %5485 = vmatpush.msra.mxu0 0.0
  %5486 = vmatpush.msra.mxu0 0.0
  %5487 = vmatpush.msra.mxu0 0.0
  %5488 = vmatpush.msra.mxu0 0.0
  %5489 = vmatpush.msra.mxu0 0.0
  %5490 = vmatpush.msra.mxu0 0.0
  %5491 = vmatpush.msra.mxu0 0.0
  %5492 = vmatpush.msra.mxu0 0.0
  %5493 = vmatpush.msra.mxu0 0.0
  %5494 = vmatpush.msra.mxu0 0.0
  %5495 = vmatpush.msra.mxu0 0.0
  %5496 = vmatpush.msra.mxu0 0.0
  %5497 = vmatpush.msra.mxu0 0.0
  %5498 = vmatpush.msra.mxu0 0.0
  %5499 = vmatpush.msra.mxu0 0.0
  %v5500 = vand.u32 %v5344, 4294901760
  %5501 = vmatpush.msra.mxu0 %v5500
  %v5502 = vand.u32 %v5347, 4294901760
  %v5503 = vsub.f32 %v5347, %v5502
  %v5504 = vand.u32 %v5503, 4294901760
  %5505 = vmatmul.f32.gmra.mxu0 %v5504
  %v5506 = vpop.f32.mrf.mxu0
  %v5507 = vadd.f32 %v5468, %v5506
  %v5508 = vand.u32 %v5350, 4294901760
  %v5509 = vsub.f32 %v5350, %v5508
  %v5510 = vand.u32 %v5509, 4294901760
  %5511 = vmatmul.f32.gmra.mxu0 %v5510
  %v5512 = vpop.f32.mrf.mxu0
  %v5513 = vadd.f32 %v5473, %v5512
  %v5514 = vand.u32 %v5353, 4294901760
  %v5515 = vsub.f32 %v5353, %v5514
  %v5516 = vand.u32 %v5515, 4294901760
  %5517 = vmatmul.f32.gmra.mxu0 %v5516
  %v5518 = vpop.f32.mrf.mxu0
  %v5519 = vadd.f32 %v5478, %v5518
  %v5520 = vand.u32 %v5356, 4294901760
  %v5521 = vsub.f32 %v5356, %v5520
  %v5522 = vand.u32 %v5521, 4294901760
  %5523 = vmatmul.f32.gmra.mxu0 %v5522
  %v5524 = vpop.f32.mrf.mxu0
  %v5525 = vadd.f32 %v5483, %v5524
  %5526 = vdwg.mxu0
  %5527 = vmatpush.msra.mxu0 0.0
  %5528 = vmatpush.msra.mxu0 0.0
  %5529 = vmatpush.msra.mxu0 0.0
  %5530 = vmatpush.msra.mxu0 0.0
  %5531 = vmatpush.msra.mxu0 0.0
  %5532 = vmatpush.msra.mxu0 0.0
  %5533 = vmatpush.msra.mxu0 0.0
  %5534 = vmatpush.msra.mxu0 0.0
  %5535 = vmatpush.msra.mxu0 0.0
  %5536 = vmatpush.msra.mxu0 0.0
  %5537 = vmatpush.msra.mxu0 0.0
  %5538 = vmatpush.msra.mxu0 0.0
  %5539 = vmatpush.msra.mxu0 0.0
  %5540 = vmatpush.msra.mxu0 0.0
  %5541 = vmatpush.msra.mxu0 0.0
  %v5542 = vand.u32 %v5344, 4294901760
  %v5543 = vsub.f32 %v5344, %v5542
  %v5544 = vand.u32 %v5543, 4294901760
  %5545 = vmatpush.msra.mxu0 %v5544
  %v5546 = vand.u32 %v5347, 4294901760
  %5547 = vmatmul.f32.gmra.mxu0 %v5546
  %v5548 = vpop.f32.mrf.mxu0
  %v5549 = vadd.f32 %v5507, %v5548
  %v5550 = vand.u32 %v5350, 4294901760
  %5551 = vmatmul.f32.gmra.mxu0 %v5550
  %v5552 = vpop.f32.mrf.mxu0
  %v5553 = vadd.f32 %v5513, %v5552
  %v5554 = vand.u32 %v5353, 4294901760
  %5555 = vmatmul.f32.gmra.mxu0 %v5554
  %v5556 = vpop.f32.mrf.mxu0
  %v5557 = vadd.f32 %v5519, %v5556
  %v5558 = vand.u32 %v5356, 4294901760
  %5559 = vmatmul.f32.gmra.mxu0 %v5558
  %v5560 = vpop.f32.mrf.mxu0
  %v5561 = vadd.f32 %v5525, %v5560
  %5562 = vdwg.mxu0
  %5563 = vmatpush.msra.mxu0 0.0
  %5564 = vmatpush.msra.mxu0 0.0
  %5565 = vmatpush.msra.mxu0 0.0
  %5566 = vmatpush.msra.mxu0 0.0
  %5567 = vmatpush.msra.mxu0 0.0
  %5568 = vmatpush.msra.mxu0 0.0
  %5569 = vmatpush.msra.mxu0 0.0
  %5570 = vmatpush.msra.mxu0 0.0
  %5571 = vmatpush.msra.mxu0 0.0
  %5572 = vmatpush.msra.mxu0 0.0
  %5573 = vmatpush.msra.mxu0 0.0
  %5574 = vmatpush.msra.mxu0 0.0
  %5575 = vmatpush.msra.mxu0 0.0
  %5576 = vmatpush.msra.mxu0 0.0
  %5577 = vmatpush.msra.mxu0 0.0
  %v5578 = vand.u32 %v5344, 4294901760
  %5579 = vmatpush.msra.mxu0 %v5578
  %v5580 = vand.u32 %v5347, 4294901760
  %5581 = vmatmul.f32.gmra.mxu0 %v5580
  %v5582 = vpop.f32.mrf.mxu0
  %v5583 = vadd.f32 %v5549, %v5582
  %v5584 = vand.u32 %v5350, 4294901760
  %5585 = vmatmul.f32.gmra.mxu0 %v5584
  %v5586 = vpop.f32.mrf.mxu0
  %v5587 = vadd.f32 %v5553, %v5586
  %v5588 = vand.u32 %v5353, 4294901760
  %5589 = vmatmul.f32.gmra.mxu0 %v5588
  %v5590 = vpop.f32.mrf.mxu0
  %v5591 = vadd.f32 %v5557, %v5590
  %v5592 = vand.u32 %v5356, 4294901760
  %5593 = vmatmul.f32.gmra.mxu0 %v5592
  %v5594 = vpop.f32.mrf.mxu0
  %v5595 = vadd.f32 %v5561, %v5594
  %5596 = vdwg.mxu0
  %5601 = vrot.lane.b32.xlu0 %v4356, 64
  %v5602 = vpop.permute.xlu0 %5601
  %5603 = vrot.lane.b32.xlu0 %v4360, 64
  %v5604 = vpop.permute.xlu0 %5603
  %5605 = vrot.lane.b32.xlu0 %v4364, 64
  %v5606 = vpop.permute.xlu0 %5605
  %5607 = vrot.lane.b32.xlu0 %v4368, 64
  %v5608 = vpop.permute.xlu0 %5607
  %5617 = vrot.lane.b32.xlu0 %v5583, 64
  %v5618 = vpop.permute.xlu0 %5617
  %5619 = vrot.lane.b32.xlu0 %v5587, 64
  %v5620 = vpop.permute.xlu0 %5619
  %5621 = vrot.lane.b32.xlu0 %v5591, 64
  %v5622 = vpop.permute.xlu0 %5621
  %5623 = vrot.lane.b32.xlu0 %v5595, 64
  %v5624 = vpop.permute.xlu0 %5623
  %v5629 = vsel %vm84, %v3738, %v5602
  %v5630 = vsel %vm84, %v3742, %v5604
  %v5631 = vsel %vm84, %v3746, %v5606
  %v5632 = vsel %vm84, %v3750, %v5608
  %v5633 = vsel %vm84, %v4965, %v5618
  %v5634 = vsel %vm84, %v4969, %v5620
  %v5635 = vsel %vm84, %v4973, %v5622
  %v5636 = vsel %vm84, %v4977, %v5624
  %v5637 = vld [vmem:[%s5] sm:$0xff]
  %v5638 = vld [vmem:[%s5 + $0x8] sm:$0xff]
  %v5639 = vld [vmem:[%s5 + $0x10] sm:$0xff]
  %v5640 = vld [vmem:[%s5 + $0x18] sm:$0xff]
  %v5641 = vld [vmem:[%s5 + $0x20] sm:$0xff]
  %v5642 = vld [vmem:[%s5 + $0x28] sm:$0xff]
  %v5643 = vld [vmem:[%s5 + $0x30] sm:$0xff]
  %v5644 = vld [vmem:[%s5 + $0x38] sm:$0xff]
  %v5645 = vld [vmem:[%s5 + $0x40] sm:$0xff]
  %v5646 = vld [vmem:[%s5 + $0x48] sm:$0xff]
  %v5647 = vld [vmem:[%s5 + $0x50] sm:$0xff]
  %v5648 = vld [vmem:[%s5 + $0x58] sm:$0xff]
  %v5649 = vld [vmem:[%s5 + $0x60] sm:$0xff]
  %v5650 = vld [vmem:[%s5 + $0x68] sm:$0xff]
  %v5651 = vld [vmem:[%s5 + $0x70] sm:$0xff]
  %v5652 = vld [vmem:[%s5 + $0x78] sm:$0xff]
  %v5653 = vld [vmem:[%s5 + $0x80] sm:$0xff]
  %v5654 = vld [vmem:[%s5 + $0x88] sm:$0xff]
  %v5655 = vld [vmem:[%s5 + $0x90] sm:$0xff]
  %v5656 = vld [vmem:[%s5 + $0x98] sm:$0xff]
  %v5657 = vld [vmem:[%s5 + $0xa0] sm:$0xff]
  %v5658 = vld [vmem:[%s5 + $0xa8] sm:$0xff]
  %v5659 = vld [vmem:[%s5 + $0xb0] sm:$0xff]
  %v5660 = vld [vmem:[%s5 + $0xb8] sm:$0xff]
  %v5661 = vld [vmem:[%s5 + $0xc0] sm:$0xff]
  %v5662 = vld [vmem:[%s5 + $0xc8] sm:$0xff]
  %v5663 = vld [vmem:[%s5 + $0xd0] sm:$0xff]
  %v5664 = vld [vmem:[%s5 + $0xd8] sm:$0xff]
  %v5665 = vld [vmem:[%s5 + $0xe0] sm:$0xff]
  %v5666 = vld [vmem:[%s5 + $0xe8] sm:$0xff]
  %v5667 = vld [vmem:[%s5 + $0xf0] sm:$0xff]
  %v5668 = vld [vmem:[%s5 + $0xf8] sm:$0xff]
  %v5669 = vand.u32 %v5652, 4294901760
  %5670 = vmatpush.msra.mxu0 %v5669
  %v5671 = vand.u32 %v5651, 4294901760
  %5672 = vmatpush.msra.mxu0 %v5671
  %v5673 = vand.u32 %v5650, 4294901760
  %5674 = vmatpush.msra.mxu0 %v5673
  %v5675 = vand.u32 %v5649, 4294901760
  %5676 = vmatpush.msra.mxu0 %v5675
  %v5677 = vand.u32 %v5648, 4294901760
  %5678 = vmatpush.msra.mxu0 %v5677
  %v5679 = vand.u32 %v5647, 4294901760
  %5680 = vmatpush.msra.mxu0 %v5679
  %v5681 = vand.u32 %v5646, 4294901760
  %5682 = vmatpush.msra.mxu0 %v5681
  %v5683 = vand.u32 %v5645, 4294901760
  %5684 = vmatpush.msra.mxu0 %v5683
  %v5685 = vand.u32 %v5644, 4294901760
  %5686 = vmatpush.msra.mxu0 %v5685
  %v5687 = vand.u32 %v5643, 4294901760
  %5688 = vmatpush.msra.mxu0 %v5687
  %v5689 = vand.u32 %v5642, 4294901760
  %5690 = vmatpush.msra.mxu0 %v5689
  %v5691 = vand.u32 %v5641, 4294901760
  %5692 = vmatpush.msra.mxu0 %v5691
  %v5693 = vand.u32 %v5640, 4294901760
  %5694 = vmatpush.msra.mxu0 %v5693
  %v5695 = vand.u32 %v5639, 4294901760
  %5696 = vmatpush.msra.mxu0 %v5695
  %v5697 = vand.u32 %v5638, 4294901760
  %5698 = vmatpush.msra.mxu0 %v5697
  %v5699 = vand.u32 %v5637, 4294901760
  %5700 = vmatpush.msra.mxu0 %v5699
  %v5701 = vand.u32 %v5629, 4294901760
  %v5702 = vsub.f32 %v5629, %v5701
  %v5703 = vand.u32 %v5702, 4294901760
  %v5704 = vsub.f32 %v5702, %v5703
  %v5705 = vand.u32 %v5704, 4294901760
  %5706 = vmatmul.f32.gmra.mxu0 %v5705
  %v5707 = vpop.f32.mrf.mxu0
  %v5708 = vadd.f32 0.0, %v5707
  %v5709 = vand.u32 %v5630, 4294901760
  %v5710 = vsub.f32 %v5630, %v5709
  %v5711 = vand.u32 %v5710, 4294901760
  %v5712 = vsub.f32 %v5710, %v5711
  %v5713 = vand.u32 %v5712, 4294901760
  %5714 = vmatmul.f32.gmra.mxu0 %v5713
  %v5715 = vpop.f32.mrf.mxu0
  %v5716 = vadd.f32 0.0, %v5715
  %v5717 = vand.u32 %v5631, 4294901760
  %v5718 = vsub.f32 %v5631, %v5717
  %v5719 = vand.u32 %v5718, 4294901760
  %v5720 = vsub.f32 %v5718, %v5719
  %v5721 = vand.u32 %v5720, 4294901760
  %5722 = vmatmul.f32.gmra.mxu0 %v5721
  %v5723 = vpop.f32.mrf.mxu0
  %v5724 = vadd.f32 0.0, %v5723
  %v5725 = vand.u32 %v5632, 4294901760
  %v5726 = vsub.f32 %v5632, %v5725
  %v5727 = vand.u32 %v5726, 4294901760
  %v5728 = vsub.f32 %v5726, %v5727
  %v5729 = vand.u32 %v5728, 4294901760
  %5730 = vmatmul.f32.gmra.mxu0 %v5729
  %v5731 = vpop.f32.mrf.mxu0
  %v5732 = vadd.f32 0.0, %v5731
  %5733 = vdwg.mxu0
  %v5734 = vand.u32 %v5652, 4294901760
  %v5735 = vsub.f32 %v5652, %v5734
  %v5736 = vand.u32 %v5735, 4294901760
  %v5737 = vsub.f32 %v5735, %v5736
  %v5738 = vand.u32 %v5737, 4294901760
  %5739 = vmatpush.msra.mxu0 %v5738
  %v5740 = vand.u32 %v5651, 4294901760
  %v5741 = vsub.f32 %v5651, %v5740
  %v5742 = vand.u32 %v5741, 4294901760
  %v5743 = vsub.f32 %v5741, %v5742
  %v5744 = vand.u32 %v5743, 4294901760
  %5745 = vmatpush.msra.mxu0 %v5744
  %v5746 = vand.u32 %v5650, 4294901760
  %v5747 = vsub.f32 %v5650, %v5746
  %v5748 = vand.u32 %v5747, 4294901760
  %v5749 = vsub.f32 %v5747, %v5748
  %v5750 = vand.u32 %v5749, 4294901760
  %5751 = vmatpush.msra.mxu0 %v5750
  %v5752 = vand.u32 %v5649, 4294901760
  %v5753 = vsub.f32 %v5649, %v5752
  %v5754 = vand.u32 %v5753, 4294901760
  %v5755 = vsub.f32 %v5753, %v5754
  %v5756 = vand.u32 %v5755, 4294901760
  %5757 = vmatpush.msra.mxu0 %v5756
  %v5758 = vand.u32 %v5648, 4294901760
  %v5759 = vsub.f32 %v5648, %v5758
  %v5760 = vand.u32 %v5759, 4294901760
  %v5761 = vsub.f32 %v5759, %v5760
  %v5762 = vand.u32 %v5761, 4294901760
  %5763 = vmatpush.msra.mxu0 %v5762
  %v5764 = vand.u32 %v5647, 4294901760
  %v5765 = vsub.f32 %v5647, %v5764
  %v5766 = vand.u32 %v5765, 4294901760
  %v5767 = vsub.f32 %v5765, %v5766
  %v5768 = vand.u32 %v5767, 4294901760
  %5769 = vmatpush.msra.mxu0 %v5768
  %v5770 = vand.u32 %v5646, 4294901760
  %v5771 = vsub.f32 %v5646, %v5770
  %v5772 = vand.u32 %v5771, 4294901760
  %v5773 = vsub.f32 %v5771, %v5772
  %v5774 = vand.u32 %v5773, 4294901760
  %5775 = vmatpush.msra.mxu0 %v5774
  %v5776 = vand.u32 %v5645, 4294901760
  %v5777 = vsub.f32 %v5645, %v5776
  %v5778 = vand.u32 %v5777, 4294901760
  %v5779 = vsub.f32 %v5777, %v5778
  %v5780 = vand.u32 %v5779, 4294901760
  %5781 = vmatpush.msra.mxu0 %v5780
  %v5782 = vand.u32 %v5644, 4294901760
  %v5783 = vsub.f32 %v5644, %v5782
  %v5784 = vand.u32 %v5783, 4294901760
  %v5785 = vsub.f32 %v5783, %v5784
  %v5786 = vand.u32 %v5785, 4294901760
  %5787 = vmatpush.msra.mxu0 %v5786
  %v5788 = vand.u32 %v5643, 4294901760
  %v5789 = vsub.f32 %v5643, %v5788
  %v5790 = vand.u32 %v5789, 4294901760
  %v5791 = vsub.f32 %v5789, %v5790
  %v5792 = vand.u32 %v5791, 4294901760
  %5793 = vmatpush.msra.mxu0 %v5792
  %v5794 = vand.u32 %v5642, 4294901760
  %v5795 = vsub.f32 %v5642, %v5794
  %v5796 = vand.u32 %v5795, 4294901760
  %v5797 = vsub.f32 %v5795, %v5796
  %v5798 = vand.u32 %v5797, 4294901760
  %5799 = vmatpush.msra.mxu0 %v5798
  %v5800 = vand.u32 %v5641, 4294901760
  %v5801 = vsub.f32 %v5641, %v5800
  %v5802 = vand.u32 %v5801, 4294901760
  %v5803 = vsub.f32 %v5801, %v5802
  %v5804 = vand.u32 %v5803, 4294901760
  %5805 = vmatpush.msra.mxu0 %v5804
  %v5806 = vand.u32 %v5640, 4294901760
  %v5807 = vsub.f32 %v5640, %v5806
  %v5808 = vand.u32 %v5807, 4294901760
  %v5809 = vsub.f32 %v5807, %v5808
  %v5810 = vand.u32 %v5809, 4294901760
  %5811 = vmatpush.msra.mxu0 %v5810
  %v5812 = vand.u32 %v5639, 4294901760
  %v5813 = vsub.f32 %v5639, %v5812
  %v5814 = vand.u32 %v5813, 4294901760
  %v5815 = vsub.f32 %v5813, %v5814
  %v5816 = vand.u32 %v5815, 4294901760
  %5817 = vmatpush.msra.mxu0 %v5816
  %v5818 = vand.u32 %v5638, 4294901760
  %v5819 = vsub.f32 %v5638, %v5818
  %v5820 = vand.u32 %v5819, 4294901760
  %v5821 = vsub.f32 %v5819, %v5820
  %v5822 = vand.u32 %v5821, 4294901760
  %5823 = vmatpush.msra.mxu0 %v5822
  %v5824 = vand.u32 %v5637, 4294901760
  %v5825 = vsub.f32 %v5637, %v5824
  %v5826 = vand.u32 %v5825, 4294901760
  %v5827 = vsub.f32 %v5825, %v5826
  %v5828 = vand.u32 %v5827, 4294901760
  %5829 = vmatpush.msra.mxu0 %v5828
  %v5830 = vand.u32 %v5629, 4294901760
  %5831 = vmatmul.f32.gmra.mxu0 %v5830
  %v5832 = vpop.f32.mrf.mxu0
  %v5833 = vadd.f32 %v5708, %v5832
  %v5834 = vand.u32 %v5630, 4294901760
  %5835 = vmatmul.f32.gmra.mxu0 %v5834
  %v5836 = vpop.f32.mrf.mxu0
  %v5837 = vadd.f32 %v5716, %v5836
  %v5838 = vand.u32 %v5631, 4294901760
  %5839 = vmatmul.f32.gmra.mxu0 %v5838
  %v5840 = vpop.f32.mrf.mxu0
  %v5841 = vadd.f32 %v5724, %v5840
  %v5842 = vand.u32 %v5632, 4294901760
  %5843 = vmatmul.f32.gmra.mxu0 %v5842
  %v5844 = vpop.f32.mrf.mxu0
  %v5845 = vadd.f32 %v5732, %v5844
  %5846 = vdwg.mxu0
  %v5847 = vand.u32 %v5652, 4294901760
  %v5848 = vsub.f32 %v5652, %v5847
  %5849 = vmatpush.msra.mxu0 %v5848
  %v5850 = vand.u32 %v5651, 4294901760
  %v5851 = vsub.f32 %v5651, %v5850
  %5852 = vmatpush.msra.mxu0 %v5851
  %v5853 = vand.u32 %v5650, 4294901760
  %v5854 = vsub.f32 %v5650, %v5853
  %5855 = vmatpush.msra.mxu0 %v5854
  %v5856 = vand.u32 %v5649, 4294901760
  %v5857 = vsub.f32 %v5649, %v5856
  %5858 = vmatpush.msra.mxu0 %v5857
  %v5859 = vand.u32 %v5648, 4294901760
  %v5860 = vsub.f32 %v5648, %v5859
  %5861 = vmatpush.msra.mxu0 %v5860
  %v5862 = vand.u32 %v5647, 4294901760
  %v5863 = vsub.f32 %v5647, %v5862
  %5864 = vmatpush.msra.mxu0 %v5863
  %v5865 = vand.u32 %v5646, 4294901760
  %v5866 = vsub.f32 %v5646, %v5865
  %5867 = vmatpush.msra.mxu0 %v5866
  %v5868 = vand.u32 %v5645, 4294901760
  %v5869 = vsub.f32 %v5645, %v5868
  %5870 = vmatpush.msra.mxu0 %v5869
  %v5871 = vand.u32 %v5644, 4294901760
  %v5872 = vsub.f32 %v5644, %v5871
  %5873 = vmatpush.msra.mxu0 %v5872
  %v5874 = vand.u32 %v5643, 4294901760
  %v5875 = vsub.f32 %v5643, %v5874
  %5876 = vmatpush.msra.mxu0 %v5875
  %v5877 = vand.u32 %v5642, 4294901760
  %v5878 = vsub.f32 %v5642, %v5877
  %5879 = vmatpush.msra.mxu0 %v5878
  %v5880 = vand.u32 %v5641, 4294901760
  %v5881 = vsub.f32 %v5641, %v5880
  %5882 = vmatpush.msra.mxu0 %v5881
  %v5883 = vand.u32 %v5640, 4294901760
  %v5884 = vsub.f32 %v5640, %v5883
  %5885 = vmatpush.msra.mxu0 %v5884
  %v5886 = vand.u32 %v5639, 4294901760
  %v5887 = vsub.f32 %v5639, %v5886
  %5888 = vmatpush.msra.mxu0 %v5887
  %v5889 = vand.u32 %v5638, 4294901760
  %v5890 = vsub.f32 %v5638, %v5889
  %5891 = vmatpush.msra.mxu0 %v5890
  %v5892 = vand.u32 %v5637, 4294901760
  %v5893 = vsub.f32 %v5637, %v5892
  %5894 = vmatpush.msra.mxu0 %v5893
  %v5895 = vand.u32 %v5629, 4294901760
  %v5896 = vsub.f32 %v5629, %v5895
  %5897 = vmatmul.f32.gmra.mxu0 %v5896
  %v5898 = vpop.f32.mrf.mxu0
  %v5899 = vadd.f32 %v5833, %v5898
  %v5900 = vand.u32 %v5630, 4294901760
  %v5901 = vsub.f32 %v5630, %v5900
  %5902 = vmatmul.f32.gmra.mxu0 %v5901
  %v5903 = vpop.f32.mrf.mxu0
  %v5904 = vadd.f32 %v5837, %v5903
  %v5905 = vand.u32 %v5631, 4294901760
  %v5906 = vsub.f32 %v5631, %v5905
  %5907 = vmatmul.f32.gmra.mxu0 %v5906
  %v5908 = vpop.f32.mrf.mxu0
  %v5909 = vadd.f32 %v5841, %v5908
  %v5910 = vand.u32 %v5632, 4294901760
  %v5911 = vsub.f32 %v5632, %v5910
  %5912 = vmatmul.f32.gmra.mxu0 %v5911
  %v5913 = vpop.f32.mrf.mxu0
  %v5914 = vadd.f32 %v5845, %v5913
  %5915 = vdwg.mxu0
  %v5916 = vand.u32 %v5652, 4294901760
  %5917 = vmatpush.msra.mxu0 %v5916
  %v5918 = vand.u32 %v5651, 4294901760
  %5919 = vmatpush.msra.mxu0 %v5918
  %v5920 = vand.u32 %v5650, 4294901760
  %5921 = vmatpush.msra.mxu0 %v5920
  %v5922 = vand.u32 %v5649, 4294901760
  %5923 = vmatpush.msra.mxu0 %v5922
  %v5924 = vand.u32 %v5648, 4294901760
  %5925 = vmatpush.msra.mxu0 %v5924
  %v5926 = vand.u32 %v5647, 4294901760
  %5927 = vmatpush.msra.mxu0 %v5926
  %v5928 = vand.u32 %v5646, 4294901760
  %5929 = vmatpush.msra.mxu0 %v5928
  %v5930 = vand.u32 %v5645, 4294901760
  %5931 = vmatpush.msra.mxu0 %v5930
  %v5932 = vand.u32 %v5644, 4294901760
  %5933 = vmatpush.msra.mxu0 %v5932
  %v5934 = vand.u32 %v5643, 4294901760
  %5935 = vmatpush.msra.mxu0 %v5934
  %v5936 = vand.u32 %v5642, 4294901760
  %5937 = vmatpush.msra.mxu0 %v5936
  %v5938 = vand.u32 %v5641, 4294901760
  %5939 = vmatpush.msra.mxu0 %v5938
  %v5940 = vand.u32 %v5640, 4294901760
  %5941 = vmatpush.msra.mxu0 %v5940
  %v5942 = vand.u32 %v5639, 4294901760
  %5943 = vmatpush.msra.mxu0 %v5942
  %v5944 = vand.u32 %v5638, 4294901760
  %5945 = vmatpush.msra.mxu0 %v5944
  %v5946 = vand.u32 %v5637, 4294901760
  %5947 = vmatpush.msra.mxu0 %v5946
  %v5948 = vand.u32 %v5629, 4294901760
  %v5949 = vsub.f32 %v5629, %v5948
  %v5950 = vand.u32 %v5949, 4294901760
  %5951 = vmatmul.f32.gmra.mxu0 %v5950
  %v5952 = vpop.f32.mrf.mxu0
  %v5953 = vadd.f32 %v5899, %v5952
  %v5954 = vand.u32 %v5630, 4294901760
  %v5955 = vsub.f32 %v5630, %v5954
  %v5956 = vand.u32 %v5955, 4294901760
  %5957 = vmatmul.f32.gmra.mxu0 %v5956
  %v5958 = vpop.f32.mrf.mxu0
  %v5959 = vadd.f32 %v5904, %v5958
  %v5960 = vand.u32 %v5631, 4294901760
  %v5961 = vsub.f32 %v5631, %v5960
  %v5962 = vand.u32 %v5961, 4294901760
  %5963 = vmatmul.f32.gmra.mxu0 %v5962
  %v5964 = vpop.f32.mrf.mxu0
  %v5965 = vadd.f32 %v5909, %v5964
  %v5966 = vand.u32 %v5632, 4294901760
  %v5967 = vsub.f32 %v5632, %v5966
  %v5968 = vand.u32 %v5967, 4294901760
  %5969 = vmatmul.f32.gmra.mxu0 %v5968
  %v5970 = vpop.f32.mrf.mxu0
  %v5971 = vadd.f32 %v5914, %v5970
  %5972 = vdwg.mxu0
  %v5973 = vand.u32 %v5652, 4294901760
  %v5974 = vsub.f32 %v5652, %v5973
  %v5975 = vand.u32 %v5974, 4294901760
  %5976 = vmatpush.msra.mxu0 %v5975
  %v5977 = vand.u32 %v5651, 4294901760
  %v5978 = vsub.f32 %v5651, %v5977
  %v5979 = vand.u32 %v5978, 4294901760
  %5980 = vmatpush.msra.mxu0 %v5979
  %v5981 = vand.u32 %v5650, 4294901760
  %v5982 = vsub.f32 %v5650, %v5981
  %v5983 = vand.u32 %v5982, 4294901760
  %5984 = vmatpush.msra.mxu0 %v5983
  %v5985 = vand.u32 %v5649, 4294901760
  %v5986 = vsub.f32 %v5649, %v5985
  %v5987 = vand.u32 %v5986, 4294901760
  %5988 = vmatpush.msra.mxu0 %v5987
  %v5989 = vand.u32 %v5648, 4294901760
  %v5990 = vsub.f32 %v5648, %v5989
  %v5991 = vand.u32 %v5990, 4294901760
  %5992 = vmatpush.msra.mxu0 %v5991
  %v5993 = vand.u32 %v5647, 4294901760
  %v5994 = vsub.f32 %v5647, %v5993
  %v5995 = vand.u32 %v5994, 4294901760
  %5996 = vmatpush.msra.mxu0 %v5995
  %v5997 = vand.u32 %v5646, 4294901760
  %v5998 = vsub.f32 %v5646, %v5997
  %v5999 = vand.u32 %v5998, 4294901760
  %6000 = vmatpush.msra.mxu0 %v5999
  %v6001 = vand.u32 %v5645, 4294901760
  %v6002 = vsub.f32 %v5645, %v6001
  %v6003 = vand.u32 %v6002, 4294901760
  %6004 = vmatpush.msra.mxu0 %v6003
  %v6005 = vand.u32 %v5644, 4294901760
  %v6006 = vsub.f32 %v5644, %v6005
  %v6007 = vand.u32 %v6006, 4294901760
  %6008 = vmatpush.msra.mxu0 %v6007
  %v6009 = vand.u32 %v5643, 4294901760
  %v6010 = vsub.f32 %v5643, %v6009
  %v6011 = vand.u32 %v6010, 4294901760
  %6012 = vmatpush.msra.mxu0 %v6011
  %v6013 = vand.u32 %v5642, 4294901760
  %v6014 = vsub.f32 %v5642, %v6013
  %v6015 = vand.u32 %v6014, 4294901760
  %6016 = vmatpush.msra.mxu0 %v6015
  %v6017 = vand.u32 %v5641, 4294901760
  %v6018 = vsub.f32 %v5641, %v6017
  %v6019 = vand.u32 %v6018, 4294901760
  %6020 = vmatpush.msra.mxu0 %v6019
  %v6021 = vand.u32 %v5640, 4294901760
  %v6022 = vsub.f32 %v5640, %v6021
  %v6023 = vand.u32 %v6022, 4294901760
  %6024 = vmatpush.msra.mxu0 %v6023
  %v6025 = vand.u32 %v5639, 4294901760
  %v6026 = vsub.f32 %v5639, %v6025
  %v6027 = vand.u32 %v6026, 4294901760
  %6028 = vmatpush.msra.mxu0 %v6027
  %v6029 = vand.u32 %v5638, 4294901760
  %v6030 = vsub.f32 %v5638, %v6029
  %v6031 = vand.u32 %v6030, 4294901760
  %6032 = vmatpush.msra.mxu0 %v6031
  %v6033 = vand.u32 %v5637, 4294901760
  %v6034 = vsub.f32 %v5637, %v6033
  %v6035 = vand.u32 %v6034, 4294901760
  %6036 = vmatpush.msra.mxu0 %v6035
  %v6037 = vand.u32 %v5629, 4294901760
  %6038 = vmatmul.f32.gmra.mxu0 %v6037
  %v6039 = vpop.f32.mrf.mxu0
  %v6040 = vadd.f32 %v5953, %v6039
  %v6041 = vand.u32 %v5630, 4294901760
  %6042 = vmatmul.f32.gmra.mxu0 %v6041
  %v6043 = vpop.f32.mrf.mxu0
  %v6044 = vadd.f32 %v5959, %v6043
  %v6045 = vand.u32 %v5631, 4294901760
  %6046 = vmatmul.f32.gmra.mxu0 %v6045
  %v6047 = vpop.f32.mrf.mxu0
  %v6048 = vadd.f32 %v5965, %v6047
  %v6049 = vand.u32 %v5632, 4294901760
  %6050 = vmatmul.f32.gmra.mxu0 %v6049
  %v6051 = vpop.f32.mrf.mxu0
  %v6052 = vadd.f32 %v5971, %v6051
  %6053 = vdwg.mxu0
  %v6054 = vand.u32 %v5652, 4294901760
  %6055 = vmatpush.msra.mxu0 %v6054
  %v6056 = vand.u32 %v5651, 4294901760
  %6057 = vmatpush.msra.mxu0 %v6056
  %v6058 = vand.u32 %v5650, 4294901760
  %6059 = vmatpush.msra.mxu0 %v6058
  %v6060 = vand.u32 %v5649, 4294901760
  %6061 = vmatpush.msra.mxu0 %v6060
  %v6062 = vand.u32 %v5648, 4294901760
  %6063 = vmatpush.msra.mxu0 %v6062
  %v6064 = vand.u32 %v5647, 4294901760
  %6065 = vmatpush.msra.mxu0 %v6064
  %v6066 = vand.u32 %v5646, 4294901760
  %6067 = vmatpush.msra.mxu0 %v6066
  %v6068 = vand.u32 %v5645, 4294901760
  %6069 = vmatpush.msra.mxu0 %v6068
  %v6070 = vand.u32 %v5644, 4294901760
  %6071 = vmatpush.msra.mxu0 %v6070
  %v6072 = vand.u32 %v5643, 4294901760
  %6073 = vmatpush.msra.mxu0 %v6072
  %v6074 = vand.u32 %v5642, 4294901760
  %6075 = vmatpush.msra.mxu0 %v6074
  %v6076 = vand.u32 %v5641, 4294901760
  %6077 = vmatpush.msra.mxu0 %v6076
  %v6078 = vand.u32 %v5640, 4294901760
  %6079 = vmatpush.msra.mxu0 %v6078
  %v6080 = vand.u32 %v5639, 4294901760
  %6081 = vmatpush.msra.mxu0 %v6080
  %v6082 = vand.u32 %v5638, 4294901760
  %6083 = vmatpush.msra.mxu0 %v6082
  %v6084 = vand.u32 %v5637, 4294901760
  %6085 = vmatpush.msra.mxu0 %v6084
  %v6086 = vand.u32 %v5629, 4294901760
  %6087 = vmatmul.f32.gmra.mxu0 %v6086
  %v6088 = vpop.f32.mrf.mxu0
  %v6089 = vadd.f32 %v6040, %v6088
  %v6090 = vand.u32 %v5630, 4294901760
  %6091 = vmatmul.f32.gmra.mxu0 %v6090
  %v6092 = vpop.f32.mrf.mxu0
  %v6093 = vadd.f32 %v6044, %v6092
  %v6094 = vand.u32 %v5631, 4294901760
  %6095 = vmatmul.f32.gmra.mxu0 %v6094
  %v6096 = vpop.f32.mrf.mxu0
  %v6097 = vadd.f32 %v6048, %v6096
  %v6098 = vand.u32 %v5632, 4294901760
  %6099 = vmatmul.f32.gmra.mxu0 %v6098
  %v6100 = vpop.f32.mrf.mxu0
  %v6101 = vadd.f32 %v6052, %v6100
  %6102 = vdwg.mxu0
  %v6103 = vand.u32 %v5668, 4294901760
  %6104 = vmatpush.msra.mxu0 %v6103
  %v6105 = vand.u32 %v5667, 4294901760
  %6106 = vmatpush.msra.mxu0 %v6105
  %v6107 = vand.u32 %v5666, 4294901760
  %6108 = vmatpush.msra.mxu0 %v6107
  %v6109 = vand.u32 %v5665, 4294901760
  %6110 = vmatpush.msra.mxu0 %v6109
  %v6111 = vand.u32 %v5664, 4294901760
  %6112 = vmatpush.msra.mxu0 %v6111
  %v6113 = vand.u32 %v5663, 4294901760
  %6114 = vmatpush.msra.mxu0 %v6113
  %v6115 = vand.u32 %v5662, 4294901760
  %6116 = vmatpush.msra.mxu0 %v6115
  %v6117 = vand.u32 %v5661, 4294901760
  %6118 = vmatpush.msra.mxu0 %v6117
  %v6119 = vand.u32 %v5660, 4294901760
  %6120 = vmatpush.msra.mxu0 %v6119
  %v6121 = vand.u32 %v5659, 4294901760
  %6122 = vmatpush.msra.mxu0 %v6121
  %v6123 = vand.u32 %v5658, 4294901760
  %6124 = vmatpush.msra.mxu0 %v6123
  %v6125 = vand.u32 %v5657, 4294901760
  %6126 = vmatpush.msra.mxu0 %v6125
  %v6127 = vand.u32 %v5656, 4294901760
  %6128 = vmatpush.msra.mxu0 %v6127
  %v6129 = vand.u32 %v5655, 4294901760
  %6130 = vmatpush.msra.mxu0 %v6129
  %v6131 = vand.u32 %v5654, 4294901760
  %6132 = vmatpush.msra.mxu0 %v6131
  %v6133 = vand.u32 %v5653, 4294901760
  %6134 = vmatpush.msra.mxu0 %v6133
  %v6135 = vand.u32 %v5633, 4294901760
  %v6136 = vsub.f32 %v5633, %v6135
  %v6137 = vand.u32 %v6136, 4294901760
  %v6138 = vsub.f32 %v6136, %v6137
  %v6139 = vand.u32 %v6138, 4294901760
  %6140 = vmatmul.f32.gmra.mxu0 %v6139
  %v6141 = vpop.f32.mrf.mxu0
  %v6142 = vadd.f32 %v6089, %v6141
  %v6143 = vand.u32 %v5634, 4294901760
  %v6144 = vsub.f32 %v5634, %v6143
  %v6145 = vand.u32 %v6144, 4294901760
  %v6146 = vsub.f32 %v6144, %v6145
  %v6147 = vand.u32 %v6146, 4294901760
  %6148 = vmatmul.f32.gmra.mxu0 %v6147
  %v6149 = vpop.f32.mrf.mxu0
  %v6150 = vadd.f32 %v6093, %v6149
  %v6151 = vand.u32 %v5635, 4294901760
  %v6152 = vsub.f32 %v5635, %v6151
  %v6153 = vand.u32 %v6152, 4294901760
  %v6154 = vsub.f32 %v6152, %v6153
  %v6155 = vand.u32 %v6154, 4294901760
  %6156 = vmatmul.f32.gmra.mxu0 %v6155
  %v6157 = vpop.f32.mrf.mxu0
  %v6158 = vadd.f32 %v6097, %v6157
  %v6159 = vand.u32 %v5636, 4294901760
  %v6160 = vsub.f32 %v5636, %v6159
  %v6161 = vand.u32 %v6160, 4294901760
  %v6162 = vsub.f32 %v6160, %v6161
  %v6163 = vand.u32 %v6162, 4294901760
  %6164 = vmatmul.f32.gmra.mxu0 %v6163
  %v6165 = vpop.f32.mrf.mxu0
  %v6166 = vadd.f32 %v6101, %v6165
  %6167 = vdwg.mxu0
  %v6168 = vand.u32 %v5668, 4294901760
  %v6169 = vsub.f32 %v5668, %v6168
  %v6170 = vand.u32 %v6169, 4294901760
  %v6171 = vsub.f32 %v6169, %v6170
  %v6172 = vand.u32 %v6171, 4294901760
  %6173 = vmatpush.msra.mxu0 %v6172
  %v6174 = vand.u32 %v5667, 4294901760
  %v6175 = vsub.f32 %v5667, %v6174
  %v6176 = vand.u32 %v6175, 4294901760
  %v6177 = vsub.f32 %v6175, %v6176
  %v6178 = vand.u32 %v6177, 4294901760
  %6179 = vmatpush.msra.mxu0 %v6178
  %v6180 = vand.u32 %v5666, 4294901760
  %v6181 = vsub.f32 %v5666, %v6180
  %v6182 = vand.u32 %v6181, 4294901760
  %v6183 = vsub.f32 %v6181, %v6182
  %v6184 = vand.u32 %v6183, 4294901760
  %6185 = vmatpush.msra.mxu0 %v6184
  %v6186 = vand.u32 %v5665, 4294901760
  %v6187 = vsub.f32 %v5665, %v6186
  %v6188 = vand.u32 %v6187, 4294901760
  %v6189 = vsub.f32 %v6187, %v6188
  %v6190 = vand.u32 %v6189, 4294901760
  %6191 = vmatpush.msra.mxu0 %v6190
  %v6192 = vand.u32 %v5664, 4294901760
  %v6193 = vsub.f32 %v5664, %v6192
  %v6194 = vand.u32 %v6193, 4294901760
  %v6195 = vsub.f32 %v6193, %v6194
  %v6196 = vand.u32 %v6195, 4294901760
  %6197 = vmatpush.msra.mxu0 %v6196
  %v6198 = vand.u32 %v5663, 4294901760
  %v6199 = vsub.f32 %v5663, %v6198
  %v6200 = vand.u32 %v6199, 4294901760
  %v6201 = vsub.f32 %v6199, %v6200
  %v6202 = vand.u32 %v6201, 4294901760
  %6203 = vmatpush.msra.mxu0 %v6202
  %v6204 = vand.u32 %v5662, 4294901760
  %v6205 = vsub.f32 %v5662, %v6204
  %v6206 = vand.u32 %v6205, 4294901760
  %v6207 = vsub.f32 %v6205, %v6206
  %v6208 = vand.u32 %v6207, 4294901760
  %6209 = vmatpush.msra.mxu0 %v6208
  %v6210 = vand.u32 %v5661, 4294901760
  %v6211 = vsub.f32 %v5661, %v6210
  %v6212 = vand.u32 %v6211, 4294901760
  %v6213 = vsub.f32 %v6211, %v6212
  %v6214 = vand.u32 %v6213, 4294901760
  %6215 = vmatpush.msra.mxu0 %v6214
  %v6216 = vand.u32 %v5660, 4294901760
  %v6217 = vsub.f32 %v5660, %v6216
  %v6218 = vand.u32 %v6217, 4294901760
  %v6219 = vsub.f32 %v6217, %v6218
  %v6220 = vand.u32 %v6219, 4294901760
  %6221 = vmatpush.msra.mxu0 %v6220
  %v6222 = vand.u32 %v5659, 4294901760
  %v6223 = vsub.f32 %v5659, %v6222
  %v6224 = vand.u32 %v6223, 4294901760
  %v6225 = vsub.f32 %v6223, %v6224
  %v6226 = vand.u32 %v6225, 4294901760
  %6227 = vmatpush.msra.mxu0 %v6226
  %v6228 = vand.u32 %v5658, 4294901760
  %v6229 = vsub.f32 %v5658, %v6228
  %v6230 = vand.u32 %v6229, 4294901760
  %v6231 = vsub.f32 %v6229, %v6230
  %v6232 = vand.u32 %v6231, 4294901760
  %6233 = vmatpush.msra.mxu0 %v6232
  %v6234 = vand.u32 %v5657, 4294901760
  %v6235 = vsub.f32 %v5657, %v6234
  %v6236 = vand.u32 %v6235, 4294901760
  %v6237 = vsub.f32 %v6235, %v6236
  %v6238 = vand.u32 %v6237, 4294901760
  %6239 = vmatpush.msra.mxu0 %v6238
  %v6240 = vand.u32 %v5656, 4294901760
  %v6241 = vsub.f32 %v5656, %v6240
  %v6242 = vand.u32 %v6241, 4294901760
  %v6243 = vsub.f32 %v6241, %v6242
  %v6244 = vand.u32 %v6243, 4294901760
  %6245 = vmatpush.msra.mxu0 %v6244
  %v6246 = vand.u32 %v5655, 4294901760
  %v6247 = vsub.f32 %v5655, %v6246
  %v6248 = vand.u32 %v6247, 4294901760
  %v6249 = vsub.f32 %v6247, %v6248
  %v6250 = vand.u32 %v6249, 4294901760
  %6251 = vmatpush.msra.mxu0 %v6250
  %v6252 = vand.u32 %v5654, 4294901760
  %v6253 = vsub.f32 %v5654, %v6252
  %v6254 = vand.u32 %v6253, 4294901760
  %v6255 = vsub.f32 %v6253, %v6254
  %v6256 = vand.u32 %v6255, 4294901760
  %6257 = vmatpush.msra.mxu0 %v6256
  %v6258 = vand.u32 %v5653, 4294901760
  %v6259 = vsub.f32 %v5653, %v6258
  %v6260 = vand.u32 %v6259, 4294901760
  %v6261 = vsub.f32 %v6259, %v6260
  %v6262 = vand.u32 %v6261, 4294901760
  %6263 = vmatpush.msra.mxu0 %v6262
  %v6264 = vand.u32 %v5633, 4294901760
  %6265 = vmatmul.f32.gmra.mxu0 %v6264
  %v6266 = vpop.f32.mrf.mxu0
  %v6267 = vadd.f32 %v6142, %v6266
  %v6268 = vand.u32 %v5634, 4294901760
  %6269 = vmatmul.f32.gmra.mxu0 %v6268
  %v6270 = vpop.f32.mrf.mxu0
  %v6271 = vadd.f32 %v6150, %v6270
  %v6272 = vand.u32 %v5635, 4294901760
  %6273 = vmatmul.f32.gmra.mxu0 %v6272
  %v6274 = vpop.f32.mrf.mxu0
  %v6275 = vadd.f32 %v6158, %v6274
  %v6276 = vand.u32 %v5636, 4294901760
  %6277 = vmatmul.f32.gmra.mxu0 %v6276
  %v6278 = vpop.f32.mrf.mxu0
  %v6279 = vadd.f32 %v6166, %v6278
  %6280 = vdwg.mxu0
  %v6281 = vand.u32 %v5668, 4294901760
  %v6282 = vsub.f32 %v5668, %v6281
  %6283 = vmatpush.msra.mxu0 %v6282
  %v6284 = vand.u32 %v5667, 4294901760
  %v6285 = vsub.f32 %v5667, %v6284
  %6286 = vmatpush.msra.mxu0 %v6285
  %v6287 = vand.u32 %v5666, 4294901760
  %v6288 = vsub.f32 %v5666, %v6287
  %6289 = vmatpush.msra.mxu0 %v6288
  %v6290 = vand.u32 %v5665, 4294901760
  %v6291 = vsub.f32 %v5665, %v6290
  %6292 = vmatpush.msra.mxu0 %v6291
  %v6293 = vand.u32 %v5664, 4294901760
  %v6294 = vsub.f32 %v5664, %v6293
  %6295 = vmatpush.msra.mxu0 %v6294
  %v6296 = vand.u32 %v5663, 4294901760
  %v6297 = vsub.f32 %v5663, %v6296
  %6298 = vmatpush.msra.mxu0 %v6297
  %v6299 = vand.u32 %v5662, 4294901760
  %v6300 = vsub.f32 %v5662, %v6299
  %6301 = vmatpush.msra.mxu0 %v6300
  %v6302 = vand.u32 %v5661, 4294901760
  %v6303 = vsub.f32 %v5661, %v6302
  %6304 = vmatpush.msra.mxu0 %v6303
  %v6305 = vand.u32 %v5660, 4294901760
  %v6306 = vsub.f32 %v5660, %v6305
  %6307 = vmatpush.msra.mxu0 %v6306
  %v6308 = vand.u32 %v5659, 4294901760
  %v6309 = vsub.f32 %v5659, %v6308
  %6310 = vmatpush.msra.mxu0 %v6309
  %v6311 = vand.u32 %v5658, 4294901760
  %v6312 = vsub.f32 %v5658, %v6311
  %6313 = vmatpush.msra.mxu0 %v6312
  %v6314 = vand.u32 %v5657, 4294901760
  %v6315 = vsub.f32 %v5657, %v6314
  %6316 = vmatpush.msra.mxu0 %v6315
  %v6317 = vand.u32 %v5656, 4294901760
  %v6318 = vsub.f32 %v5656, %v6317
  %6319 = vmatpush.msra.mxu0 %v6318
  %v6320 = vand.u32 %v5655, 4294901760
  %v6321 = vsub.f32 %v5655, %v6320
  %6322 = vmatpush.msra.mxu0 %v6321
  %v6323 = vand.u32 %v5654, 4294901760
  %v6324 = vsub.f32 %v5654, %v6323
  %6325 = vmatpush.msra.mxu0 %v6324
  %v6326 = vand.u32 %v5653, 4294901760
  %v6327 = vsub.f32 %v5653, %v6326
  %6328 = vmatpush.msra.mxu0 %v6327
  %v6329 = vand.u32 %v5633, 4294901760
  %v6330 = vsub.f32 %v5633, %v6329
  %6331 = vmatmul.f32.gmra.mxu0 %v6330
  %v6332 = vpop.f32.mrf.mxu0
  %v6333 = vadd.f32 %v6267, %v6332
  %v6334 = vand.u32 %v5634, 4294901760
  %v6335 = vsub.f32 %v5634, %v6334
  %6336 = vmatmul.f32.gmra.mxu0 %v6335
  %v6337 = vpop.f32.mrf.mxu0
  %v6338 = vadd.f32 %v6271, %v6337
  %v6339 = vand.u32 %v5635, 4294901760
  %v6340 = vsub.f32 %v5635, %v6339
  %6341 = vmatmul.f32.gmra.mxu0 %v6340
  %v6342 = vpop.f32.mrf.mxu0
  %v6343 = vadd.f32 %v6275, %v6342
  %v6344 = vand.u32 %v5636, 4294901760
  %v6345 = vsub.f32 %v5636, %v6344
  %6346 = vmatmul.f32.gmra.mxu0 %v6345
  %v6347 = vpop.f32.mrf.mxu0
  %v6348 = vadd.f32 %v6279, %v6347
  %6349 = vdwg.mxu0
  %v6350 = vand.u32 %v5668, 4294901760
  %6351 = vmatpush.msra.mxu0 %v6350
  %v6352 = vand.u32 %v5667, 4294901760
  %6353 = vmatpush.msra.mxu0 %v6352
  %v6354 = vand.u32 %v5666, 4294901760
  %6355 = vmatpush.msra.mxu0 %v6354
  %v6356 = vand.u32 %v5665, 4294901760
  %6357 = vmatpush.msra.mxu0 %v6356
  %v6358 = vand.u32 %v5664, 4294901760
  %6359 = vmatpush.msra.mxu0 %v6358
  %v6360 = vand.u32 %v5663, 4294901760
  %6361 = vmatpush.msra.mxu0 %v6360
  %v6362 = vand.u32 %v5662, 4294901760
  %6363 = vmatpush.msra.mxu0 %v6362
  %v6364 = vand.u32 %v5661, 4294901760
  %6365 = vmatpush.msra.mxu0 %v6364
  %v6366 = vand.u32 %v5660, 4294901760
  %6367 = vmatpush.msra.mxu0 %v6366
  %v6368 = vand.u32 %v5659, 4294901760
  %6369 = vmatpush.msra.mxu0 %v6368
  %v6370 = vand.u32 %v5658, 4294901760
  %6371 = vmatpush.msra.mxu0 %v6370
  %v6372 = vand.u32 %v5657, 4294901760
  %6373 = vmatpush.msra.mxu0 %v6372
  %v6374 = vand.u32 %v5656, 4294901760
  %6375 = vmatpush.msra.mxu0 %v6374
  %v6376 = vand.u32 %v5655, 4294901760
  %6377 = vmatpush.msra.mxu0 %v6376
  %v6378 = vand.u32 %v5654, 4294901760
  %6379 = vmatpush.msra.mxu0 %v6378
  %v6380 = vand.u32 %v5653, 4294901760
  %6381 = vmatpush.msra.mxu0 %v6380
  %v6382 = vand.u32 %v5633, 4294901760
  %v6383 = vsub.f32 %v5633, %v6382
  %v6384 = vand.u32 %v6383, 4294901760
  %6385 = vmatmul.f32.gmra.mxu0 %v6384
  %v6386 = vpop.f32.mrf.mxu0
  %v6387 = vadd.f32 %v6333, %v6386
  %v6388 = vand.u32 %v5634, 4294901760
  %v6389 = vsub.f32 %v5634, %v6388
  %v6390 = vand.u32 %v6389, 4294901760
  %6391 = vmatmul.f32.gmra.mxu0 %v6390
  %v6392 = vpop.f32.mrf.mxu0
  %v6393 = vadd.f32 %v6338, %v6392
  %v6394 = vand.u32 %v5635, 4294901760
  %v6395 = vsub.f32 %v5635, %v6394
  %v6396 = vand.u32 %v6395, 4294901760
  %6397 = vmatmul.f32.gmra.mxu0 %v6396
  %v6398 = vpop.f32.mrf.mxu0
  %v6399 = vadd.f32 %v6343, %v6398
  %v6400 = vand.u32 %v5636, 4294901760
  %v6401 = vsub.f32 %v5636, %v6400
  %v6402 = vand.u32 %v6401, 4294901760
  %6403 = vmatmul.f32.gmra.mxu0 %v6402
  %v6404 = vpop.f32.mrf.mxu0
  %v6405 = vadd.f32 %v6348, %v6404
  %6406 = vdwg.mxu0
  %v6407 = vand.u32 %v5668, 4294901760
  %v6408 = vsub.f32 %v5668, %v6407
  %v6409 = vand.u32 %v6408, 4294901760
  %6410 = vmatpush.msra.mxu0 %v6409
  %v6411 = vand.u32 %v5667, 4294901760
  %v6412 = vsub.f32 %v5667, %v6411
  %v6413 = vand.u32 %v6412, 4294901760
  %6414 = vmatpush.msra.mxu0 %v6413
  %v6415 = vand.u32 %v5666, 4294901760
  %v6416 = vsub.f32 %v5666, %v6415
  %v6417 = vand.u32 %v6416, 4294901760
  %6418 = vmatpush.msra.mxu0 %v6417
  %v6419 = vand.u32 %v5665, 4294901760
  %v6420 = vsub.f32 %v5665, %v6419
  %v6421 = vand.u32 %v6420, 4294901760
  %6422 = vmatpush.msra.mxu0 %v6421
  %v6423 = vand.u32 %v5664, 4294901760
  %v6424 = vsub.f32 %v5664, %v6423
  %v6425 = vand.u32 %v6424, 4294901760
  %6426 = vmatpush.msra.mxu0 %v6425
  %v6427 = vand.u32 %v5663, 4294901760
  %v6428 = vsub.f32 %v5663, %v6427
  %v6429 = vand.u32 %v6428, 4294901760
  %6430 = vmatpush.msra.mxu0 %v6429
  %v6431 = vand.u32 %v5662, 4294901760
  %v6432 = vsub.f32 %v5662, %v6431
  %v6433 = vand.u32 %v6432, 4294901760
  %6434 = vmatpush.msra.mxu0 %v6433
  %v6435 = vand.u32 %v5661, 4294901760
  %v6436 = vsub.f32 %v5661, %v6435
  %v6437 = vand.u32 %v6436, 4294901760
  %6438 = vmatpush.msra.mxu0 %v6437
  %v6439 = vand.u32 %v5660, 4294901760
  %v6440 = vsub.f32 %v5660, %v6439
  %v6441 = vand.u32 %v6440, 4294901760
  %6442 = vmatpush.msra.mxu0 %v6441
  %v6443 = vand.u32 %v5659, 4294901760
  %v6444 = vsub.f32 %v5659, %v6443
  %v6445 = vand.u32 %v6444, 4294901760
  %6446 = vmatpush.msra.mxu0 %v6445
  %v6447 = vand.u32 %v5658, 4294901760
  %v6448 = vsub.f32 %v5658, %v6447
  %v6449 = vand.u32 %v6448, 4294901760
  %6450 = vmatpush.msra.mxu0 %v6449
  %v6451 = vand.u32 %v5657, 4294901760
  %v6452 = vsub.f32 %v5657, %v6451
  %v6453 = vand.u32 %v6452, 4294901760
  %6454 = vmatpush.msra.mxu0 %v6453
  %v6455 = vand.u32 %v5656, 4294901760
  %v6456 = vsub.f32 %v5656, %v6455
  %v6457 = vand.u32 %v6456, 4294901760
  %6458 = vmatpush.msra.mxu0 %v6457
  %v6459 = vand.u32 %v5655, 4294901760
  %v6460 = vsub.f32 %v5655, %v6459
  %v6461 = vand.u32 %v6460, 4294901760
  %6462 = vmatpush.msra.mxu0 %v6461
  %v6463 = vand.u32 %v5654, 4294901760
  %v6464 = vsub.f32 %v5654, %v6463
  %v6465 = vand.u32 %v6464, 4294901760
  %6466 = vmatpush.msra.mxu0 %v6465
  %v6467 = vand.u32 %v5653, 4294901760
  %v6468 = vsub.f32 %v5653, %v6467
  %v6469 = vand.u32 %v6468, 4294901760
  %6470 = vmatpush.msra.mxu0 %v6469
  %v6471 = vand.u32 %v5633, 4294901760
  %6472 = vmatmul.f32.gmra.mxu0 %v6471
  %v6473 = vpop.f32.mrf.mxu0
  %v6474 = vadd.f32 %v6387, %v6473
  %v6475 = vand.u32 %v5634, 4294901760
  %6476 = vmatmul.f32.gmra.mxu0 %v6475
  %v6477 = vpop.f32.mrf.mxu0
  %v6478 = vadd.f32 %v6393, %v6477
  %v6479 = vand.u32 %v5635, 4294901760
  %6480 = vmatmul.f32.gmra.mxu0 %v6479
  %v6481 = vpop.f32.mrf.mxu0
  %v6482 = vadd.f32 %v6399, %v6481
  %v6483 = vand.u32 %v5636, 4294901760
  %6484 = vmatmul.f32.gmra.mxu0 %v6483
  %v6485 = vpop.f32.mrf.mxu0
  %v6486 = vadd.f32 %v6405, %v6485
  %6487 = vdwg.mxu0
  %v6488 = vand.u32 %v5668, 4294901760
  %6489 = vmatpush.msra.mxu0 %v6488
  %v6490 = vand.u32 %v5667, 4294901760
  %6491 = vmatpush.msra.mxu0 %v6490
  %v6492 = vand.u32 %v5666, 4294901760
  %6493 = vmatpush.msra.mxu0 %v6492
  %v6494 = vand.u32 %v5665, 4294901760
  %6495 = vmatpush.msra.mxu0 %v6494
  %v6496 = vand.u32 %v5664, 4294901760
  %6497 = vmatpush.msra.mxu0 %v6496
  %v6498 = vand.u32 %v5663, 4294901760
  %6499 = vmatpush.msra.mxu0 %v6498
  %v6500 = vand.u32 %v5662, 4294901760
  %6501 = vmatpush.msra.mxu0 %v6500
  %v6502 = vand.u32 %v5661, 4294901760
  %6503 = vmatpush.msra.mxu0 %v6502
  %v6504 = vand.u32 %v5660, 4294901760
  %6505 = vmatpush.msra.mxu0 %v6504
  %v6506 = vand.u32 %v5659, 4294901760
  %6507 = vmatpush.msra.mxu0 %v6506
  %v6508 = vand.u32 %v5658, 4294901760
  %6509 = vmatpush.msra.mxu0 %v6508
  %v6510 = vand.u32 %v5657, 4294901760
  %6511 = vmatpush.msra.mxu0 %v6510
  %v6512 = vand.u32 %v5656, 4294901760
  %6513 = vmatpush.msra.mxu0 %v6512
  %v6514 = vand.u32 %v5655, 4294901760
  %6515 = vmatpush.msra.mxu0 %v6514
  %v6516 = vand.u32 %v5654, 4294901760
  %6517 = vmatpush.msra.mxu0 %v6516
  %v6518 = vand.u32 %v5653, 4294901760
  %6519 = vmatpush.msra.mxu0 %v6518
  %v6520 = vand.u32 %v5633, 4294901760
  %6521 = vmatmul.f32.gmra.mxu0 %v6520
  %v6522 = vpop.f32.mrf.mxu0
  %v6523 = vadd.f32 %v6474, %v6522
  %v6524 = vand.u32 %v5634, 4294901760
  %6525 = vmatmul.f32.gmra.mxu0 %v6524
  %v6526 = vpop.f32.mrf.mxu0
  %v6527 = vadd.f32 %v6478, %v6526
  %v6528 = vand.u32 %v5635, 4294901760
  %6529 = vmatmul.f32.gmra.mxu0 %v6528
  %v6530 = vpop.f32.mrf.mxu0
  %v6531 = vadd.f32 %v6482, %v6530
  %v6532 = vand.u32 %v5636, 4294901760
  %6533 = vmatmul.f32.gmra.mxu0 %v6532
  %v6534 = vpop.f32.mrf.mxu0
  %v6535 = vadd.f32 %v6486, %v6534
  %6536 = vdwg.mxu0
  %v6537 = vsel %vm84, %v6523, 0.0
  %6538 = vadd.xlane.f32.xlu0 %v6537
  %v6539 = vpop.xlane.xlu0 %6538
  %v6540 = vsel %vm84, %v6527, 0.0
  %6541 = vadd.xlane.f32.xlu0 %v6540
  %v6542 = vpop.xlane.xlu0 %6541
  %v6543 = vsel %vm84, %v6531, 0.0
  %6544 = vadd.xlane.f32.xlu0 %v6543
  %v6545 = vpop.xlane.xlu0 %6544
  %v6546 = vsel %vm84, %v6535, 0.0
  %6547 = vadd.xlane.f32.xlu0 %v6546
  %v6548 = vpop.xlane.xlu0 %6547
  %v6549 = vrcp.pop 64.0
  %v6550 = vmul.f32 64.0, %v6549
  %v6551 = vsub.f32 1.0, %v6550
  %v6552 = vmul.f32 %v6549, %v6551
  %v6553 = vadd.f32 %v6549, %v6552
  %vm6554 = vweird.f32 %v6549
  %v6555 = vsel %vm6554, %v6549, %v6553
  %v6556 = vmul.f32 %v6539, %v6555
  %v6557 = vmul.f32 %v6542, %v6555
  %v6558 = vmul.f32 %v6545, %v6555
  %v6559 = vmul.f32 %v6548, %v6555
  %v6560 = vsub.f32 %v6523, %v6556
  %v6561 = vsub.f32 %v6527, %v6557
  %v6562 = vsub.f32 %v6531, %v6558
  %v6563 = vsub.f32 %v6535, %v6559
  %v6564 = vmul.f32 %v6560, %v6560
  %v6565 = vmul.f32 %v6561, %v6561
  %v6566 = vmul.f32 %v6562, %v6562
  %v6567 = vmul.f32 %v6563, %v6563
  %v6568 = vsel %vm84, %v6564, 0.0
  %6569 = vadd.xlane.f32.xlu0 %v6568
  %v6570 = vpop.xlane.xlu0 %6569
  %v6571 = vsel %vm84, %v6565, 0.0
  %6572 = vadd.xlane.f32.xlu0 %v6571
  %v6573 = vpop.xlane.xlu0 %6572
  %v6574 = vsel %vm84, %v6566, 0.0
  %6575 = vadd.xlane.f32.xlu0 %v6574
  %v6576 = vpop.xlane.xlu0 %6575
  %v6577 = vsel %vm84, %v6567, 0.0
  %6578 = vadd.xlane.f32.xlu0 %v6577
  %v6579 = vpop.xlane.xlu0 %6578
  %v6580 = vmul.f32 %v6570, %v6555
  %v6581 = vmul.f32 %v6573, %v6555
  %v6582 = vmul.f32 %v6576, %v6555
  %v6583 = vmul.f32 %v6579, %v6555
  %v6584 = vadd.f32 %v6580, 1e-05
  %v6585 = vadd.f32 %v6581, 1e-05
  %v6586 = vadd.f32 %v6582, 1e-05
  %v6587 = vadd.f32 %v6583, 1e-05
  %v6588 = vrsqrt.pop %v6584
  %v6589 = vmul.f32 %v6588, %v6584
  %v6590 = vmul.f32 %v6589, %v6588
  %v6591 = vmul.f32 0.5, %v6590
  %v6592 = vsub.f32 1.5, %v6591
  %v6593 = vmul.f32 %v6588, %v6592
  %vm6594 = vweird.f32 %v6584
  %vm6595 = vweird.f32 %v6588
  %vm6596 = vmor %vm6594, %vm6595
  %v6597 = vsel %vm6596, %v6588, %v6593
  %v6598 = vrsqrt.pop %v6585
  %v6599 = vmul.f32 %v6598, %v6585
  %v6600 = vmul.f32 %v6599, %v6598
  %v6601 = vmul.f32 0.5, %v6600
  %v6602 = vsub.f32 1.5, %v6601
  %v6603 = vmul.f32 %v6598, %v6602
  %vm6604 = vweird.f32 %v6585
  %vm6605 = vweird.f32 %v6598
  %vm6606 = vmor %vm6604, %vm6605
  %v6607 = vsel %vm6606, %v6598, %v6603
  %v6608 = vrsqrt.pop %v6586
  %v6609 = vmul.f32 %v6608, %v6586
  %v6610 = vmul.f32 %v6609, %v6608
  %v6611 = vmul.f32 0.5, %v6610
  %v6612 = vsub.f32 1.5, %v6611
  %v6613 = vmul.f32 %v6608, %v6612
  %vm6614 = vweird.f32 %v6586
  %vm6615 = vweird.f32 %v6608
  %vm6616 = vmor %vm6614, %vm6615
  %v6617 = vsel %vm6616, %v6608, %v6613
  %v6618 = vrsqrt.pop %v6587
  %v6619 = vmul.f32 %v6618, %v6587
  %v6620 = vmul.f32 %v6619, %v6618
  %v6621 = vmul.f32 0.5, %v6620
  %v6622 = vsub.f32 1.5, %v6621
  %v6623 = vmul.f32 %v6618, %v6622
  %vm6624 = vweird.f32 %v6587
  %vm6625 = vweird.f32 %v6618
  %vm6626 = vmor %vm6624, %vm6625
  %v6627 = vsel %vm6626, %v6618, %v6623
  %v6628 = vmul.f32 %v6560, %v6597
  %v6629 = vmul.f32 %v6561, %v6607
  %v6630 = vmul.f32 %v6562, %v6617
  %v6631 = vmul.f32 %v6563, %v6627
  %v6632 = vld [vmem:[%s6] sm:$0x1]
  %v6634 = vperm.slane %v6632, 0
  %v6636 = vmul.f32 %v6628, %v6634
  %v6637 = vmul.f32 %v6629, %v6634
  %v6638 = vmul.f32 %v6630, %v6634
  %v6639 = vmul.f32 %v6631, %v6634
  %v6640 = vld [vmem:[%s7] sm:$0x1]
  %v6642 = vperm.slane %v6640, 0
  %v6644 = vadd.f32 %v6636, %v6642
  %v6645 = vadd.f32 %v6637, %v6642
  %v6646 = vadd.f32 %v6638, %v6642
  %v6647 = vadd.f32 %v6639, %v6642
  %v6648 = vadd.f32 %v32, %v6644
  %v6649 = vadd.f32 %v33, %v6645
  %v6650 = vadd.f32 %v34, %v6646
  %v6651 = vadd.f32 %v35, %v6647
  %v6652 = vld [vmem:[%s8] sm:$0xff]
  %v6653 = vld [vmem:[%s8 + $0x8] sm:$0xff]
  %v6654 = vld [vmem:[%s8 + $0x10] sm:$0xff]
  %v6655 = vld [vmem:[%s8 + $0x18] sm:$0xff]
  %v6656 = vld [vmem:[%s8 + $0x20] sm:$0xff]
  %v6657 = vld [vmem:[%s8 + $0x28] sm:$0xff]
  %v6658 = vld [vmem:[%s8 + $0x30] sm:$0xff]
  %v6659 = vld [vmem:[%s8 + $0x38] sm:$0xff]
  %v6661 = vsel %vm84, %v6648, 0
  %v6664 = vsel %vm84, %v6649, 0
  %v6667 = vsel %vm84, %v6650, 0
  %v6670 = vsel %vm84, %v6651, 0
  %6672 = vmatpush.msra.mxu0 0.0
  %6673 = vmatpush.msra.mxu0 0.0
  %6674 = vmatpush.msra.mxu0 0.0
  %6675 = vmatpush.msra.mxu0 0.0
  %6676 = vmatpush.msra.mxu0 0.0
  %6677 = vmatpush.msra.mxu0 0.0
  %6678 = vmatpush.msra.mxu0 0.0
  %6679 = vmatpush.msra.mxu0 0.0
  %v6680 = vand.u32 %v6659, 4294901760
  %6681 = vmatpush.msra.mxu0 %v6680
  %v6682 = vand.u32 %v6658, 4294901760
  %6683 = vmatpush.msra.mxu0 %v6682
  %v6684 = vand.u32 %v6657, 4294901760
  %6685 = vmatpush.msra.mxu0 %v6684
  %v6686 = vand.u32 %v6656, 4294901760
  %6687 = vmatpush.msra.mxu0 %v6686
  %v6688 = vand.u32 %v6655, 4294901760
  %6689 = vmatpush.msra.mxu0 %v6688
  %v6690 = vand.u32 %v6654, 4294901760
  %6691 = vmatpush.msra.mxu0 %v6690
  %v6692 = vand.u32 %v6653, 4294901760
  %6693 = vmatpush.msra.mxu0 %v6692
  %v6694 = vand.u32 %v6652, 4294901760
  %6695 = vmatpush.msra.mxu0 %v6694
  %v6696 = vand.u32 %v6661, 4294901760
  %v6697 = vsub.f32 %v6661, %v6696
  %v6698 = vand.u32 %v6697, 4294901760
  %v6699 = vsub.f32 %v6697, %v6698
  %v6700 = vand.u32 %v6699, 4294901760
  %6701 = vmatmul.f32.gmra.mxu0 %v6700
  %v6702 = vpop.f32.mrf.mxu0
  %v6703 = vadd.f32 0.0, %v6702
  %v6704 = vand.u32 %v6664, 4294901760
  %v6705 = vsub.f32 %v6664, %v6704
  %v6706 = vand.u32 %v6705, 4294901760
  %v6707 = vsub.f32 %v6705, %v6706
  %v6708 = vand.u32 %v6707, 4294901760
  %6709 = vmatmul.f32.gmra.mxu0 %v6708
  %v6710 = vpop.f32.mrf.mxu0
  %v6711 = vadd.f32 0.0, %v6710
  %v6712 = vand.u32 %v6667, 4294901760
  %v6713 = vsub.f32 %v6667, %v6712
  %v6714 = vand.u32 %v6713, 4294901760
  %v6715 = vsub.f32 %v6713, %v6714
  %v6716 = vand.u32 %v6715, 4294901760
  %6717 = vmatmul.f32.gmra.mxu0 %v6716
  %v6718 = vpop.f32.mrf.mxu0
  %v6719 = vadd.f32 0.0, %v6718
  %v6720 = vand.u32 %v6670, 4294901760
  %v6721 = vsub.f32 %v6670, %v6720
  %v6722 = vand.u32 %v6721, 4294901760
  %v6723 = vsub.f32 %v6721, %v6722
  %v6724 = vand.u32 %v6723, 4294901760
  %6725 = vmatmul.f32.gmra.mxu0 %v6724
  %v6726 = vpop.f32.mrf.mxu0
  %v6727 = vadd.f32 0.0, %v6726
  %6728 = vdwg.mxu0
  %6729 = vmatpush.msra.mxu0 0.0
  %6730 = vmatpush.msra.mxu0 0.0
  %6731 = vmatpush.msra.mxu0 0.0
  %6732 = vmatpush.msra.mxu0 0.0
  %6733 = vmatpush.msra.mxu0 0.0
  %6734 = vmatpush.msra.mxu0 0.0
  %6735 = vmatpush.msra.mxu0 0.0
  %6736 = vmatpush.msra.mxu0 0.0
  %v6737 = vand.u32 %v6659, 4294901760
  %v6738 = vsub.f32 %v6659, %v6737
  %v6739 = vand.u32 %v6738, 4294901760
  %v6740 = vsub.f32 %v6738, %v6739
  %v6741 = vand.u32 %v6740, 4294901760
  %6742 = vmatpush.msra.mxu0 %v6741
  %v6743 = vand.u32 %v6658, 4294901760
  %v6744 = vsub.f32 %v6658, %v6743
  %v6745 = vand.u32 %v6744, 4294901760
  %v6746 = vsub.f32 %v6744, %v6745
  %v6747 = vand.u32 %v6746, 4294901760
  %6748 = vmatpush.msra.mxu0 %v6747
  %v6749 = vand.u32 %v6657, 4294901760
  %v6750 = vsub.f32 %v6657, %v6749
  %v6751 = vand.u32 %v6750, 4294901760
  %v6752 = vsub.f32 %v6750, %v6751
  %v6753 = vand.u32 %v6752, 4294901760
  %6754 = vmatpush.msra.mxu0 %v6753
  %v6755 = vand.u32 %v6656, 4294901760
  %v6756 = vsub.f32 %v6656, %v6755
  %v6757 = vand.u32 %v6756, 4294901760
  %v6758 = vsub.f32 %v6756, %v6757
  %v6759 = vand.u32 %v6758, 4294901760
  %6760 = vmatpush.msra.mxu0 %v6759
  %v6761 = vand.u32 %v6655, 4294901760
  %v6762 = vsub.f32 %v6655, %v6761
  %v6763 = vand.u32 %v6762, 4294901760
  %v6764 = vsub.f32 %v6762, %v6763
  %v6765 = vand.u32 %v6764, 4294901760
  %6766 = vmatpush.msra.mxu0 %v6765
  %v6767 = vand.u32 %v6654, 4294901760
  %v6768 = vsub.f32 %v6654, %v6767
  %v6769 = vand.u32 %v6768, 4294901760
  %v6770 = vsub.f32 %v6768, %v6769
  %v6771 = vand.u32 %v6770, 4294901760
  %6772 = vmatpush.msra.mxu0 %v6771
  %v6773 = vand.u32 %v6653, 4294901760
  %v6774 = vsub.f32 %v6653, %v6773
  %v6775 = vand.u32 %v6774, 4294901760
  %v6776 = vsub.f32 %v6774, %v6775
  %v6777 = vand.u32 %v6776, 4294901760
  %6778 = vmatpush.msra.mxu0 %v6777
  %v6779 = vand.u32 %v6652, 4294901760
  %v6780 = vsub.f32 %v6652, %v6779
  %v6781 = vand.u32 %v6780, 4294901760
  %v6782 = vsub.f32 %v6780, %v6781
  %v6783 = vand.u32 %v6782, 4294901760
  %6784 = vmatpush.msra.mxu0 %v6783
  %v6785 = vand.u32 %v6661, 4294901760
  %6786 = vmatmul.f32.gmra.mxu0 %v6785
  %v6787 = vpop.f32.mrf.mxu0
  %v6788 = vadd.f32 %v6703, %v6787
  %v6789 = vand.u32 %v6664, 4294901760
  %6790 = vmatmul.f32.gmra.mxu0 %v6789
  %v6791 = vpop.f32.mrf.mxu0
  %v6792 = vadd.f32 %v6711, %v6791
  %v6793 = vand.u32 %v6667, 4294901760
  %6794 = vmatmul.f32.gmra.mxu0 %v6793
  %v6795 = vpop.f32.mrf.mxu0
  %v6796 = vadd.f32 %v6719, %v6795
  %v6797 = vand.u32 %v6670, 4294901760
  %6798 = vmatmul.f32.gmra.mxu0 %v6797
  %v6799 = vpop.f32.mrf.mxu0
  %v6800 = vadd.f32 %v6727, %v6799
  %6801 = vdwg.mxu0
  %6802 = vmatpush.msra.mxu0 0.0
  %6803 = vmatpush.msra.mxu0 0.0
  %6804 = vmatpush.msra.mxu0 0.0
  %6805 = vmatpush.msra.mxu0 0.0
  %6806 = vmatpush.msra.mxu0 0.0
  %6807 = vmatpush.msra.mxu0 0.0
  %6808 = vmatpush.msra.mxu0 0.0
  %6809 = vmatpush.msra.mxu0 0.0
  %v6810 = vand.u32 %v6659, 4294901760
  %v6811 = vsub.f32 %v6659, %v6810
  %6812 = vmatpush.msra.mxu0 %v6811
  %v6813 = vand.u32 %v6658, 4294901760
  %v6814 = vsub.f32 %v6658, %v6813
  %6815 = vmatpush.msra.mxu0 %v6814
  %v6816 = vand.u32 %v6657, 4294901760
  %v6817 = vsub.f32 %v6657, %v6816
  %6818 = vmatpush.msra.mxu0 %v6817
  %v6819 = vand.u32 %v6656, 4294901760
  %v6820 = vsub.f32 %v6656, %v6819
  %6821 = vmatpush.msra.mxu0 %v6820
  %v6822 = vand.u32 %v6655, 4294901760
  %v6823 = vsub.f32 %v6655, %v6822
  %6824 = vmatpush.msra.mxu0 %v6823
  %v6825 = vand.u32 %v6654, 4294901760
  %v6826 = vsub.f32 %v6654, %v6825
  %6827 = vmatpush.msra.mxu0 %v6826
  %v6828 = vand.u32 %v6653, 4294901760
  %v6829 = vsub.f32 %v6653, %v6828
  %6830 = vmatpush.msra.mxu0 %v6829
  %v6831 = vand.u32 %v6652, 4294901760
  %v6832 = vsub.f32 %v6652, %v6831
  %6833 = vmatpush.msra.mxu0 %v6832
  %v6834 = vand.u32 %v6661, 4294901760
  %v6835 = vsub.f32 %v6661, %v6834
  %6836 = vmatmul.f32.gmra.mxu0 %v6835
  %v6837 = vpop.f32.mrf.mxu0
  %v6838 = vadd.f32 %v6788, %v6837
  %v6839 = vand.u32 %v6664, 4294901760
  %v6840 = vsub.f32 %v6664, %v6839
  %6841 = vmatmul.f32.gmra.mxu0 %v6840
  %v6842 = vpop.f32.mrf.mxu0
  %v6843 = vadd.f32 %v6792, %v6842
  %v6844 = vand.u32 %v6667, 4294901760
  %v6845 = vsub.f32 %v6667, %v6844
  %6846 = vmatmul.f32.gmra.mxu0 %v6845
  %v6847 = vpop.f32.mrf.mxu0
  %v6848 = vadd.f32 %v6796, %v6847
  %v6849 = vand.u32 %v6670, 4294901760
  %v6850 = vsub.f32 %v6670, %v6849
  %6851 = vmatmul.f32.gmra.mxu0 %v6850
  %v6852 = vpop.f32.mrf.mxu0
  %v6853 = vadd.f32 %v6800, %v6852
  %6854 = vdwg.mxu0
  %6855 = vmatpush.msra.mxu0 0.0
  %6856 = vmatpush.msra.mxu0 0.0
  %6857 = vmatpush.msra.mxu0 0.0
  %6858 = vmatpush.msra.mxu0 0.0
  %6859 = vmatpush.msra.mxu0 0.0
  %6860 = vmatpush.msra.mxu0 0.0
  %6861 = vmatpush.msra.mxu0 0.0
  %6862 = vmatpush.msra.mxu0 0.0
  %v6863 = vand.u32 %v6659, 4294901760
  %6864 = vmatpush.msra.mxu0 %v6863
  %v6865 = vand.u32 %v6658, 4294901760
  %6866 = vmatpush.msra.mxu0 %v6865
  %v6867 = vand.u32 %v6657, 4294901760
  %6868 = vmatpush.msra.mxu0 %v6867
  %v6869 = vand.u32 %v6656, 4294901760
  %6870 = vmatpush.msra.mxu0 %v6869
  %v6871 = vand.u32 %v6655, 4294901760
  %6872 = vmatpush.msra.mxu0 %v6871
  %v6873 = vand.u32 %v6654, 4294901760
  %6874 = vmatpush.msra.mxu0 %v6873
  %v6875 = vand.u32 %v6653, 4294901760
  %6876 = vmatpush.msra.mxu0 %v6875
  %v6877 = vand.u32 %v6652, 4294901760
  %6878 = vmatpush.msra.mxu0 %v6877
  %v6879 = vand.u32 %v6661, 4294901760
  %v6880 = vsub.f32 %v6661, %v6879
  %v6881 = vand.u32 %v6880, 4294901760
  %6882 = vmatmul.f32.gmra.mxu0 %v6881
  %v6883 = vpop.f32.mrf.mxu0
  %v6884 = vadd.f32 %v6838, %v6883
  %v6885 = vand.u32 %v6664, 4294901760
  %v6886 = vsub.f32 %v6664, %v6885
  %v6887 = vand.u32 %v6886, 4294901760
  %6888 = vmatmul.f32.gmra.mxu0 %v6887
  %v6889 = vpop.f32.mrf.mxu0
  %v6890 = vadd.f32 %v6843, %v6889
  %v6891 = vand.u32 %v6667, 4294901760
  %v6892 = vsub.f32 %v6667, %v6891
  %v6893 = vand.u32 %v6892, 4294901760
  %6894 = vmatmul.f32.gmra.mxu0 %v6893
  %v6895 = vpop.f32.mrf.mxu0
  %v6896 = vadd.f32 %v6848, %v6895
  %v6897 = vand.u32 %v6670, 4294901760
  %v6898 = vsub.f32 %v6670, %v6897
  %v6899 = vand.u32 %v6898, 4294901760
  %6900 = vmatmul.f32.gmra.mxu0 %v6899
  %v6901 = vpop.f32.mrf.mxu0
  %v6902 = vadd.f32 %v6853, %v6901
  %6903 = vdwg.mxu0
  %6904 = vmatpush.msra.mxu0 0.0
  %6905 = vmatpush.msra.mxu0 0.0
  %6906 = vmatpush.msra.mxu0 0.0
  %6907 = vmatpush.msra.mxu0 0.0
  %6908 = vmatpush.msra.mxu0 0.0
  %6909 = vmatpush.msra.mxu0 0.0
  %6910 = vmatpush.msra.mxu0 0.0
  %6911 = vmatpush.msra.mxu0 0.0
  %v6912 = vand.u32 %v6659, 4294901760
  %v6913 = vsub.f32 %v6659, %v6912
  %v6914 = vand.u32 %v6913, 4294901760
  %6915 = vmatpush.msra.mxu0 %v6914
  %v6916 = vand.u32 %v6658, 4294901760
  %v6917 = vsub.f32 %v6658, %v6916
  %v6918 = vand.u32 %v6917, 4294901760
  %6919 = vmatpush.msra.mxu0 %v6918
  %v6920 = vand.u32 %v6657, 4294901760
  %v6921 = vsub.f32 %v6657, %v6920
  %v6922 = vand.u32 %v6921, 4294901760
  %6923 = vmatpush.msra.mxu0 %v6922
  %v6924 = vand.u32 %v6656, 4294901760
  %v6925 = vsub.f32 %v6656, %v6924
  %v6926 = vand.u32 %v6925, 4294901760
  %6927 = vmatpush.msra.mxu0 %v6926
  %v6928 = vand.u32 %v6655, 4294901760
  %v6929 = vsub.f32 %v6655, %v6928
  %v6930 = vand.u32 %v6929, 4294901760
  %6931 = vmatpush.msra.mxu0 %v6930
  %v6932 = vand.u32 %v6654, 4294901760
  %v6933 = vsub.f32 %v6654, %v6932
  %v6934 = vand.u32 %v6933, 4294901760
  %6935 = vmatpush.msra.mxu0 %v6934
  %v6936 = vand.u32 %v6653, 4294901760
  %v6937 = vsub.f32 %v6653, %v6936
  %v6938 = vand.u32 %v6937, 4294901760
  %6939 = vmatpush.msra.mxu0 %v6938
  %v6940 = vand.u32 %v6652, 4294901760
  %v6941 = vsub.f32 %v6652, %v6940
  %v6942 = vand.u32 %v6941, 4294901760
  %6943 = vmatpush.msra.mxu0 %v6942
  %v6944 = vand.u32 %v6661, 4294901760
  %6945 = vmatmul.f32.gmra.mxu0 %v6944
  %v6946 = vpop.f32.mrf.mxu0
  %v6947 = vadd.f32 %v6884, %v6946
  %v6948 = vand.u32 %v6664, 4294901760
  %6949 = vmatmul.f32.gmra.mxu0 %v6948
  %v6950 = vpop.f32.mrf.mxu0
  %v6951 = vadd.f32 %v6890, %v6950
  %v6952 = vand.u32 %v6667, 4294901760
  %6953 = vmatmul.f32.gmra.mxu0 %v6952
  %v6954 = vpop.f32.mrf.mxu0
  %v6955 = vadd.f32 %v6896, %v6954
  %v6956 = vand.u32 %v6670, 4294901760
  %6957 = vmatmul.f32.gmra.mxu0 %v6956
  %v6958 = vpop.f32.mrf.mxu0
  %v6959 = vadd.f32 %v6902, %v6958
  %6960 = vdwg.mxu0
  %6961 = vmatpush.msra.mxu0 0.0
  %6962 = vmatpush.msra.mxu0 0.0
  %6963 = vmatpush.msra.mxu0 0.0
  %6964 = vmatpush.msra.mxu0 0.0
  %6965 = vmatpush.msra.mxu0 0.0
  %6966 = vmatpush.msra.mxu0 0.0
  %6967 = vmatpush.msra.mxu0 0.0
  %6968 = vmatpush.msra.mxu0 0.0
  %v6969 = vand.u32 %v6659, 4294901760
  %6970 = vmatpush.msra.mxu0 %v6969
  %v6971 = vand.u32 %v6658, 4294901760
  %6972 = vmatpush.msra.mxu0 %v6971
  %v6973 = vand.u32 %v6657, 4294901760
  %6974 = vmatpush.msra.mxu0 %v6973
  %v6975 = vand.u32 %v6656, 4294901760
  %6976 = vmatpush.msra.mxu0 %v6975
  %v6977 = vand.u32 %v6655, 4294901760
  %6978 = vmatpush.msra.mxu0 %v6977
  %v6979 = vand.u32 %v6654, 4294901760
  %6980 = vmatpush.msra.mxu0 %v6979
  %v6981 = vand.u32 %v6653, 4294901760
  %6982 = vmatpush.msra.mxu0 %v6981
  %v6983 = vand.u32 %v6652, 4294901760
  %6984 = vmatpush.msra.mxu0 %v6983
  %v6985 = vand.u32 %v6661, 4294901760
  %6986 = vmatmul.f32.gmra.mxu0 %v6985
  %v6987 = vpop.f32.mrf.mxu0
  %v6988 = vadd.f32 %v6947, %v6987
  %v6989 = vand.u32 %v6664, 4294901760
  %6990 = vmatmul.f32.gmra.mxu0 %v6989
  %v6991 = vpop.f32.mrf.mxu0
  %v6992 = vadd.f32 %v6951, %v6991
  %v6993 = vand.u32 %v6667, 4294901760
  %6994 = vmatmul.f32.gmra.mxu0 %v6993
  %v6995 = vpop.f32.mrf.mxu0
  %v6996 = vadd.f32 %v6955, %v6995
  %v6997 = vand.u32 %v6670, 4294901760
  %6998 = vmatmul.f32.gmra.mxu0 %v6997
  %v6999 = vpop.f32.mrf.mxu0
  %v7000 = vadd.f32 %v6959, %v6999
  %7001 = vdwg.mxu0
  %v7002 = vmax.f32 %v6988, 0.0
  %v7003 = vmax.f32 %v6992, 0.0
  %v7004 = vmax.f32 %v6996, 0.0
  %v7005 = vmax.f32 %v7000, 0.0
  %v7006 = vmin.f32 %v7002, 6.0
  %v7007 = vmin.f32 %v7003, 6.0
  %v7008 = vmin.f32 %v7004, 6.0
  %v7009 = vmin.f32 %v7005, 6.0
  %v7010 = vadd.f32 %v6648, %v7006
  %v7011 = vadd.f32 %v6649, %v7007
  %v7012 = vadd.f32 %v6650, %v7008
  %v7013 = vadd.f32 %v6651, %v7009
  %7014 = vst.msk [vmem:[%s9] sm:$0xff] %vm84, %v7010
  %7015 = vst.msk [vmem:[%s9 + $0x8] sm:$0xff] %vm84, %v7011
  %7016 = vst.msk [vmem:[%s9 + $0x10] sm:$0xff] %vm84, %v7012
  %7017 = vst.msk [vmem:[%s9 + $0x18] sm:$0xff] %vm84, %v7013
  // Predicated region
  $region38: #{spectral_transformer_block.1} parent=0 // pred_check
    _
  $region39: #{spectral_transformer_block.1} parent=0 // pred_check_branch
    %7019 = sbr.rel (0) target = $region41
  $region40: #{spectral_transformer_block.1} parent=0 // pred_region
    _
  $region41: #{spectral_transformer_block.1} parent=0 // pred_fallthru
    _
  // Predicated region
  $region42: #{spectral_transformer_block.1} parent=0 // pred_check
    _
  $region43: #{spectral_transformer_block.1} parent=0 // pred_check_branch
    %7021 = sbr.rel (0) target = $region45
  $region44: #{spectral_transformer_block.1} parent=0 // pred_region
    _
  $region45: #{spectral_transformer_block.1} parent=0 // pred_fallthru
    _

</llo_original>
